<compile_context>
chip_gen: v7x
topology: tpu7x:2x2x1
jax: 0.10.0
libtpu: 0.0.40
codegen_flags: <defaults>
</compile_context>

<pallas_src>
import functools
import numpy as np
import jax
import jax.numpy as jnp
from jax.experimental import pallas as pl
from jax.experimental.pallas import tpu as pltpu


# ----------------------------------------------------------------------------
# In-kernel helpers (pure jnp on VMEM-resident values)
# ----------------------------------------------------------------------------
def _subsample(t, s, Ho, Wo):
    """t: (s*Ho, s*Wo, C) -> (Ho, Wo, C), every s-th row/col starting at 0.

    Done with two reshapes that each split ONE dim and keep the lane (C) dim
    intact, so it lowers to cheap sublane/major regrouping, not lane shuffles.
    """
    if s == 1:
        return t
    C = t.shape[-1]
    t = t.reshape(Ho, s, s * Wo, C)[:, 0, :, :]     # pick rows 0, s, 2s, ...
    t = t.reshape(Ho, Wo, s, C)[:, :, 0, :]         # pick cols 0, s, 2s, ...
    return t


def _conv_taps(x, stride, Ho, Wo):
    """Zero-pad (pad=1 halo, built in VMEM) and return the 9 strided 3x3 taps.

    x: (H, W, Cin).  Returns list of 9 arrays (Ho, Wo, Cin), tap order
    (ky, kx) row-major; tap (ky, kx)[i, j] = x_padded[stride*i + ky, stride*j + kx].
    """
    H, W, Cin = x.shape
    s = stride
    # pad 1 on top/left (the conv halo), s on bottom/right (so every tap window
    # of length s*Ho / s*Wo fits; the extra rows/cols are read then discarded).
    zt = jnp.zeros((1, W, Cin), x.dtype)
    zb = jnp.zeros((s, W, Cin), x.dtype)
    xp = jnp.concatenate([zt, x, zb], axis=0)                  # (H+1+s, W, Cin)
    Hp = H + 1 + s
    zl = jnp.zeros((Hp, 1, Cin), x.dtype)
    zr = jnp.zeros((Hp, s, Cin), x.dtype)
    xp = jnp.concatenate([zl, xp, zr], axis=1)                 # (H+1+s, W+1+s, Cin)

    taps = []
    for ky in range(3):
        for kx in range(3):
            t = xp[ky:ky + s * Ho, kx:kx + s * Wo, :]          # static slice
            taps.append(_subsample(t, s, Ho, Wo))
    return taps


def _im2col_matmul(taps, w2d, Ho, Wo):
    """taps: 9 x (Ho, Wo, Cin) bf16, w2d: (9*Cin, Cout) bf16 -> (Ho*Wo, Cout) f32."""
    Cin = taps[0].shape[-1]
    patches = jnp.concatenate(taps, axis=-1).reshape(Ho * Wo, 9 * Cin)
    return jnp.dot(patches, w2d, preferred_element_type=jnp.float32)


def _channel_stats(y):
    """y: (HW, C) f32 -> (2, C): row 0 = sum, row 1 = sum of squares."""
    return jnp.concatenate([jnp.sum(y, axis=0, keepdims=True),
                            jnp.sum(y * y, axis=0, keepdims=True)], axis=0)


# ----------------------------------------------------------------------------
# Pallas kernels
# ----------------------------------------------------------------------------
def conv1_sc_kernel(x_ref, w1_ref, ws_ref, y1_ref, ys_ref, st1_ref, sts_ref, *, stride):
    """conv1 (3x3, strided) + shortcut conv1x1 (strided) + per-sample BN stats."""
    _, Ho, Wo, Cout = y1_ref.shape
    Cin = x_ref.shape[-1]
    x = x_ref[0].astype(jnp.bfloat16)                           # (H, W, Cin)
    taps = _conv_taps(x, stride, Ho, Wo)

    y1 = _im2col_matmul(taps, w1_ref[...], Ho, Wo)              # (HW, Cout) f32
    y1_ref[...] = y1.reshape(1, Ho, Wo, Cout)
    st1_ref[0] = _channel_stats(y1)

    # 1x1 stride-s shortcut conv == matmul on the centre tap (x[s*i, s*j, :]).
    ctr = taps[4].reshape(Ho * Wo, Cin)
    ys = jnp.dot(ctr, ws_ref[...], preferred_element_type=jnp.float32)
    ys_ref[...] = ys.reshape(1, Ho, Wo, Cout)
    sts_ref[0] = _channel_stats(ys)


def conv1_kernel(x_ref, w1_ref, y1_ref, st1_ref, *, stride):
    """conv1 only (identity-shortcut blocks) + per-sample BN stats."""
    _, Ho, Wo, Cout = y1_ref.shape
    x = x_ref[0].astype(jnp.bfloat16)
    taps = _conv_taps(x, stride, Ho, Wo)
    y1 = _im2col_matmul(taps, w1_ref[...], Ho, Wo)
    y1_ref[...] = y1.reshape(1, Ho, Wo, Cout)
    st1_ref[0] = _channel_stats(y1)


def conv2_kernel(y1_ref, s1_ref, b1_ref, w2_ref, y2_ref, st2_ref):
    """BN1-apply + ReLU prologue, conv2 (3x3, stride 1), BN2 partial stats."""
    _, Ho, Wo, C = y1_ref.shape
    s1 = s1_ref[...].reshape(1, 1, C)
    b1 = b1_ref[...].reshape(1, 1, C)
    h = jnp.maximum(y1_ref[0] * s1 + b1, 0.0).astype(jnp.bfloat16)   # (Ho, Wo, C)
    taps = _conv_taps(h, 1, Ho, Wo)
    y2 = _im2col_matmul(taps, w2_ref[...], Ho, Wo)
    y2_ref[...] = y2.reshape(1, Ho, Wo, C)
    st2_ref[0] = _channel_stats(y2)


def bn_add_relu_sc_kernel(y2_ref, s2_ref, b2_ref, r_ref, ss_ref, bs_ref, o_ref):
    """o = relu((y2 * s2 + b2) + (r * ss + bs)) — BN2 + shortcut-BN + add + relu."""
    C = y2_ref.shape[-1]
    s2 = s2_ref[...].reshape(1, 1, 1, C)
    b2 = b2_ref[...].reshape(1, 1, 1, C)
    ss = ss_ref[...].reshape(1, 1, 1, C)
    bs = bs_ref[...].reshape(1, 1, 1, C)
    out = y2_ref[...] * s2 + b2 + r_ref[...] * ss + bs
    o_ref[...] = jnp.maximum(out, 0.0)


def bn_add_relu_id_kernel(y2_ref, s2_ref, b2_ref, r_ref, o_ref):
    """o = relu((y2 * s2 + b2) + r) — BN2 + identity residual + relu."""
    C = y2_ref.shape[-1]
    s2 = s2_ref[...].reshape(1, 1, 1, C)
    b2 = b2_ref[...].reshape(1, 1, 1, C)
    o_ref[...] = jnp.maximum(y2_ref[...] * s2 + b2 + r_ref[...], 0.0)


# ----------------------------------------------------------------------------
# Host-side glue (tiny O(N*C) math between the three pallas_calls, fused by jit)
# ----------------------------------------------------------------------------
def _bn_scale_shift(stats, count, gamma, beta, eps=1e-5):
    """stats: (N, 2, C) per-sample partial sums -> per-channel (scale, shift)."""
    tot = jnp.sum(stats, axis=0)                 # (2, C)
    mean = tot[0] / count
    var = jnp.maximum(tot[1] / count - mean * mean, 0.0)   # biased var, clamped
    scale = gamma / jnp.sqrt(var + eps)
    shift = beta - mean * scale
    return scale.reshape(1, -1).astype(jnp.float32), shift.reshape(1, -1).astype(jnp.float32)


def _compiler_params():
    return pltpu.CompilerParams(dimension_semantics=("parallel",),
                                vmem_limit_bytes=32 * 1024 * 1024)


def _basic_block_forward(x_nchw, params, stride):
    """Pallas implementation of BasicBlock.forward. x_nchw: (N, Cin, H, W) fp32."""
    N, Cin, H, W = x_nchw.shape
    Cout = params["w1"].shape[0]
    has_sc = (stride != 1) or (Cin != Cout)
    Ho = (H - 1) // stride + 1
    Wo = (W - 1) // stride + 1

    x = jnp.transpose(x_nchw, (0, 2, 3, 1)).astype(jnp.float32)          # NHWC

    # weight repack: (Cout, Cin, 3, 3) -> (9*Cin, Cout), K index = (ky*3+kx)*Cin + ci
    w1 = jnp.transpose(params["w1"], (2, 3, 1, 0)).reshape(9 * Cin, Cout).astype(jnp.bfloat16)
    w2 = jnp.transpose(params["w2"], (2, 3, 1, 0)).reshape(9 * Cout, Cout).astype(jnp.bfloat16)

    cp = _compiler_params()

    if has_sc:
        ws = jnp.transpose(params["ws"], (2, 3, 1, 0)).reshape(Cin, Cout).astype(jnp.bfloat16)
        y1, ys, st1, sts = pl.pallas_call(
            functools.partial(conv1_sc_kernel, stride=stride),
            out_shape=(jax.ShapeDtypeStruct((N, Ho, Wo, Cout), jnp.float32),
                       jax.ShapeDtypeStruct((N, Ho, Wo, Cout), jnp.float32),
                       jax.ShapeDtypeStruct((N, 2, Cout), jnp.float32),
                       jax.ShapeDtypeStruct((N, 2, Cout), jnp.float32)),
            grid=(N,),
            in_specs=[pl.BlockSpec((1, H, W, Cin), lambda n: (n, 0, 0, 0)),
                      pl.BlockSpec((9 * Cin, Cout), lambda n: (0, 0)),
                      pl.BlockSpec((Cin, Cout), lambda n: (0, 0))],
            out_specs=(pl.BlockSpec((1, Ho, Wo, Cout), lambda n: (n, 0, 0, 0)),
                       pl.BlockSpec((1, Ho, Wo, Cout), lambda n: (n, 0, 0, 0)),
                       pl.BlockSpec((1, 2, Cout), lambda n: (n, 0, 0)),
                       pl.BlockSpec((1, 2, Cout), lambda n: (n, 0, 0))),
            compiler_params=cp,
        )(x, w1, ws)
    else:
        y1, st1 = pl.pallas_call(
            functools.partial(conv1_kernel, stride=stride),
            out_shape=(jax.ShapeDtypeStruct((N, Ho, Wo, Cout), jnp.float32),
                       jax.ShapeDtypeStruct((N, 2, Cout), jnp.float32)),
            grid=(N,),
            in_specs=[pl.BlockSpec((1, H, W, Cin), lambda n: (n, 0, 0, 0)),
                      pl.BlockSpec((9 * Cin, Cout), lambda n: (0, 0))],
            out_specs=(pl.BlockSpec((1, Ho, Wo, Cout), lambda n: (n, 0, 0, 0)),
                       pl.BlockSpec((1, 2, Cout), lambda n: (n, 0, 0))),
            compiler_params=cp,
        )(x, w1)
        ys, sts = x, None

    count = float(N * Ho * Wo)
    s1, b1 = _bn_scale_shift(st1, count, params["g1"], params["b1"])

    y2, st2 = pl.pallas_call(
        conv2_kernel,
        out_shape=(jax.ShapeDtypeStruct((N, Ho, Wo, Cout), jnp.float32),
                   jax.ShapeDtypeStruct((N, 2, Cout), jnp.float32)),
        grid=(N,),
        in_specs=[pl.BlockSpec((1, Ho, Wo, Cout), lambda n: (n, 0, 0, 0)),
                  pl.BlockSpec((1, Cout), lambda n: (0, 0)),
                  pl.BlockSpec((1, Cout), lambda n: (0, 0)),
                  pl.BlockSpec((9 * Cout, Cout), lambda n: (0, 0))],
        out_specs=(pl.BlockSpec((1, Ho, Wo, Cout), lambda n: (n, 0, 0, 0)),
                   pl.BlockSpec((1, 2, Cout), lambda n: (n, 0, 0))),
        compiler_params=cp,
    )(y1, s1, b1, w2)

    s2, b2 = _bn_scale_shift(st2, count, params["g2"], params["b2"])

    if has_sc:
        ss, bs = _bn_scale_shift(sts, count, params["gs"], params["bs"])
        out = pl.pallas_call(
            bn_add_relu_sc_kernel,
            out_shape=jax.ShapeDtypeStruct((N, Ho, Wo, Cout), jnp.float32),
            grid=(N,),
            in_specs=[pl.BlockSpec((1, Ho, Wo, Cout), lambda n: (n, 0, 0, 0)),
                      pl.BlockSpec((1, Cout), lambda n: (0, 0)),
                      pl.BlockSpec((1, Cout), lambda n: (0, 0)),
                      pl.BlockSpec((1, Ho, Wo, Cout), lambda n: (n, 0, 0, 0)),
                      pl.BlockSpec((1, Cout), lambda n: (0, 0)),
                      pl.BlockSpec((1, Cout), lambda n: (0, 0))],
            out_specs=pl.BlockSpec((1, Ho, Wo, Cout), lambda n: (n, 0, 0, 0)),
            compiler_params=cp,
        )(y2, s2, b2, ys, ss, bs)
    else:
        out = pl.pallas_call(
            bn_add_relu_id_kernel,
            out_shape=jax.ShapeDtypeStruct((N, Ho, Wo, Cout), jnp.float32),
            grid=(N,),
            in_specs=[pl.BlockSpec((1, Ho, Wo, Cout), lambda n: (n, 0, 0, 0)),
                      pl.BlockSpec((1, Cout), lambda n: (0, 0)),
                      pl.BlockSpec((1, Cout), lambda n: (0, 0)),
                      pl.BlockSpec((1, Ho, Wo, Cout), lambda n: (n, 0, 0, 0))],
            out_specs=pl.BlockSpec((1, Ho, Wo, Cout), lambda n: (n, 0, 0, 0)),
            compiler_params=cp,
        )(y2, s2, b2, x)       # identity shortcut: x is NHWC with C==Cout, same spatial size

    return jnp.transpose(out, (0, 3, 1, 2))                               # -> NCHW


# jit the whole block: inter-kernel BN math and layout transposes fuse into XLA ops.
basic_block_forward = jax.jit(_basic_block_forward, static_argnums=(2,))


# ----------------------------------------------------------------------------
# Pure-JAX reference (for sanity check)
# ----------------------------------------------------------------------------
def ref_forward(x, p, stride, has_sc):
    def conv(x, w, s, pad):
        return jax.lax.conv_general_dilated(
            x, w, (s, s), [(pad, pad), (pad, pad)],
            dimension_numbers=("NCHW", "OIHW", "NCHW"),
            precision=jax.lax.Precision.HIGHEST)

    def bn(y, g, b, eps=1e-5):
        mean = jnp.mean(y, axis=(0, 2, 3), keepdims=True)
        var = jnp.mean((y - mean) ** 2, axis=(0, 2, 3), keepdims=True)
        return (y - mean) / jnp.sqrt(var + eps) * g.reshape(1, -1, 1, 1) + b.reshape(1, -1, 1, 1)

    out = jax.nn.relu(bn(conv(x, p["w1"], stride, 1), p["g1"], p["b1"]))
    out = bn(conv(out, p["w2"], 1, 1), p["g2"], p["b2"])
    sc = bn(conv(x, p["ws"], stride, 0), p["gs"], p["bs"]) if has_sc else x
    return jax.nn.relu(out + sc)


# ----------------------------------------------------------------------------
if __name__ == "__main__":
    def make_params(keys, in_planes, planes, has_sc):
        p = {
            "w1": 0.2 * jax.random.normal(keys[0], (planes, in_planes, 3, 3), jnp.float32),
            "w2": 0.2 * jax.random.normal(keys[1], (planes, planes, 3, 3), jnp.float32),
            "g1": 1.0 + 0.1 * jax.random.normal(keys[3], (planes,), jnp.float32),
            "b1": 0.1 * jax.random.normal(keys[4], (planes,), jnp.float32),
            "g2": 1.0 + 0.1 * jax.random.normal(keys[5], (planes,), jnp.float32),
            "b2": 0.1 * jax.random.normal(keys[6], (planes,), jnp.float32),
        }
        if has_sc:
            p["ws"] = 0.2 * jax.random.normal(keys[2], (planes, in_planes, 1, 1), jnp.float32)
            p["gs"] = 1.0 + 0.1 * jax.random.normal(keys[7], (planes,), jnp.float32)
            p["bs"] = 0.1 * jax.random.normal(keys[8], (planes,), jnp.float32)
        return p

    N, H, W = 2, 16, 16
    TOL = 7e-2   # bf16 matmul operands vs f32 reference

    root = jax.random.PRNGKey(0)
    k_case1, k_case2 = jax.random.split(root, 2)

    # Case 1: downsampling block (stride=2, Cin != Cout) -> conv shortcut.
    ks = jax.random.split(k_case1, 10)
    in_planes, planes, stride = 4, 8, 2
    params = make_params(ks, in_planes, planes, True)
    x = jax.random.normal(ks[9], (N, in_planes, H, W), jnp.float32)
    out = jax.block_until_ready(basic_block_forward(x, params, stride))
    ref = jax.block_until_ready(ref_forward(x, params, stride, True))
    assert out.shape == ref.shape == (N, planes, H // stride, W // stride)
    err = float(jnp.max(jnp.abs(out - ref)))
    assert np.isfinite(err) and err < TOL, f"downsample block: max abs err {err}"

    # Case 2: identity-shortcut block (stride=1, Cin == Cout).
    ks2 = jax.random.split(k_case2, 10)
    params2 = make_params(ks2, planes, planes, False)
    x2 = jax.random.normal(ks2[9], (N, planes, H, W), jnp.float32)
    out2 = jax.block_until_ready(basic_block_forward(x2, params2, 1))
    ref2 = jax.block_until_ready(ref_forward(x2, params2, 1, False))
    assert out2.shape == ref2.shape == (N, planes, H, W)
    err2 = float(jnp.max(jnp.abs(out2 - ref2)))
    assert np.isfinite(err2) and err2 < TOL, f"identity block: max abs err {err2}"

    print("KERNEL_OK")
</pallas_src>

<mosaic_0001>
module attributes {stable_mosaic.version = 11 : i64} {
  func.func @conv2_kernel(%arg0: i32, %arg1: memref<1x8x8x8xf32, #tpu.memory_space<vmem>>, %arg2: memref<1x8xf32, #tpu.memory_space<vmem>>, %arg3: memref<1x8xf32, #tpu.memory_space<vmem>>, %arg4: memref<72x8xbf16, #tpu.memory_space<vmem>>, %arg5: memref<1x8x8x8xf32, #tpu.memory_space<vmem>>, %arg6: memref<1x2x8xf32, #tpu.memory_space<vmem>>) attributes {dimension_semantics = [#tpu.dimension_semantics<parallel>], iteration_bounds = array<i64: 2>, scalar_prefetch = 0 : i64, scratch_operands = 0 : i64, tpu.core_type = #tpu.core_type<tc>, window_params = [{transform_indices = @transform_0, window_bounds = array<i64: 1, 8, 8, 8>}, {pipeline_mode = #tpu.pipeline_mode<synchronous>, transform_indices = @transform_1, window_bounds = array<i64: 1, 8>}, {pipeline_mode = #tpu.pipeline_mode<synchronous>, transform_indices = @transform_2, window_bounds = array<i64: 1, 8>}, {pipeline_mode = #tpu.pipeline_mode<synchronous>, transform_indices = @transform_3, window_bounds = array<i64: 72, 8>}, {transform_indices = @transform_4, window_bounds = array<i64: 1, 8, 8, 8>}, {transform_indices = @transform_5, window_bounds = array<i64: 1, 2, 8>}]} {
    %c0 = arith.constant 0 : index
    %c0_0 = arith.constant 0 : index
    %0 = vector.load %arg2[%c0, %c0_0] : memref<1x8xf32, #tpu.memory_space<vmem>>, vector<1x8xf32>
    %1 = vector.shape_cast %0 : vector<1x8xf32> to vector<1x1x8xf32>
    %c0_1 = arith.constant 0 : index
    %c0_2 = arith.constant 0 : index
    %2 = vector.load %arg3[%c0_1, %c0_2] : memref<1x8xf32, #tpu.memory_space<vmem>>, vector<1x8xf32>
    %3 = vector.shape_cast %2 : vector<1x8xf32> to vector<1x1x8xf32>
    %c0_3 = arith.constant 0 : index
    %c0_4 = arith.constant 0 : index
    %c0_5 = arith.constant 0 : index
    %c0_6 = arith.constant 0 : index
    %4 = vector.load %arg1[%c0_3, %c0_4, %c0_5, %c0_6] : memref<1x8x8x8xf32, #tpu.memory_space<vmem>>, vector<1x8x8x8xf32>
    %5 = vector.shape_cast %4 : vector<1x8x8x8xf32> to vector<8x8x8xf32>
    %6 = vector.broadcast %1 : vector<1x1x8xf32> to vector<8x8x8xf32>
    %7 = arith.mulf %5, %6 : vector<8x8x8xf32>
    %8 = vector.broadcast %3 : vector<1x1x8xf32> to vector<8x8x8xf32>
    %9 = arith.addf %7, %8 : vector<8x8x8xf32>
    %cst = arith.constant 0.000000e+00 : f32
    %10 = vector.broadcast %cst : f32 to vector<8x8x8xf32>
    %11 = arith.maximumf %9, %10 : vector<8x8x8xf32>
    %12 = arith.truncf %11 : vector<8x8x8xf32> to vector<8x8x8xbf16>
    %cst_7 = arith.constant 0.000000e+00 : bf16
    %13 = vector.broadcast %cst_7 : bf16 to vector<1x8x8xbf16>
    %cst_8 = arith.constant 0.000000e+00 : bf16
    %14 = vector.broadcast %cst_8 : bf16 to vector<1x8x8xbf16>
    %15 = tpu.concatenate %13, %12, %14 in 0 : vector<1x8x8xbf16>, vector<8x8x8xbf16>, vector<1x8x8xbf16> -> vector<10x8x8xbf16>
    %cst_9 = arith.constant 0.000000e+00 : bf16
    %16 = vector.broadcast %cst_9 : bf16 to vector<10x1x8xbf16>
    %cst_10 = arith.constant 0.000000e+00 : bf16
    %17 = vector.broadcast %cst_10 : bf16 to vector<10x1x8xbf16>
    %18 = tpu.concatenate %16, %15, %17 in 1 : vector<10x1x8xbf16>, vector<10x8x8xbf16>, vector<10x1x8xbf16> -> vector<10x10x8xbf16>
    %19 = vector.extract_strided_slice %18 {offsets = [0, 0, 0], sizes = [8, 8, 8], strides = [1, 1, 1]} : vector<10x10x8xbf16> to vector<8x8x8xbf16>
    %20 = vector.extract_strided_slice %18 {offsets = [0, 1, 0], sizes = [8, 8, 8], strides = [1, 1, 1]} : vector<10x10x8xbf16> to vector<8x8x8xbf16>
    %21 = vector.extract_strided_slice %18 {offsets = [0, 2, 0], sizes = [8, 8, 8], strides = [1, 1, 1]} : vector<10x10x8xbf16> to vector<8x8x8xbf16>
    %22 = vector.extract_strided_slice %18 {offsets = [1, 0, 0], sizes = [8, 8, 8], strides = [1, 1, 1]} : vector<10x10x8xbf16> to vector<8x8x8xbf16>
    %23 = vector.extract_strided_slice %18 {offsets = [1, 1, 0], sizes = [8, 8, 8], strides = [1, 1, 1]} : vector<10x10x8xbf16> to vector<8x8x8xbf16>
    %24 = vector.extract_strided_slice %18 {offsets = [1, 2, 0], sizes = [8, 8, 8], strides = [1, 1, 1]} : vector<10x10x8xbf16> to vector<8x8x8xbf16>
    %25 = vector.extract_strided_slice %18 {offsets = [2, 0, 0], sizes = [8, 8, 8], strides = [1, 1, 1]} : vector<10x10x8xbf16> to vector<8x8x8xbf16>
    %26 = vector.extract_strided_slice %18 {offsets = [2, 1, 0], sizes = [8, 8, 8], strides = [1, 1, 1]} : vector<10x10x8xbf16> to vector<8x8x8xbf16>
    %27 = vector.extract_strided_slice %18 {offsets = [2, 2, 0], sizes = [8, 8, 8], strides = [1, 1, 1]} : vector<10x10x8xbf16> to vector<8x8x8xbf16>
    %c0_11 = arith.constant 0 : index
    %c0_12 = arith.constant 0 : index
    %28 = vector.load %arg4[%c0_11, %c0_12] : memref<72x8xbf16, #tpu.memory_space<vmem>>, vector<72x8xbf16>
    %29 = tpu.concatenate %19, %20, %21, %22, %23, %24, %25, %26, %27 in 2 : vector<8x8x8xbf16>, vector<8x8x8xbf16>, vector<8x8x8xbf16>, vector<8x8x8xbf16>, vector<8x8x8xbf16>, vector<8x8x8xbf16>, vector<8x8x8xbf16>, vector<8x8x8xbf16>, vector<8x8x8xbf16> -> vector<8x8x72xbf16>
    %30 = vector.shape_cast %29 : vector<8x8x72xbf16> to vector<64x72xbf16>
    %cst_13 = arith.constant dense<0.000000e+00> : vector<64x8xf32>
    %31 = tpu.matmul %30, %28, %cst_13 {dimension_numbers = #tpu.dot_dimension_numbers<[1], [0], [0], [1], [0, 0, 1, 1], [], []>} : vector<64x72xbf16>, vector<72x8xbf16>, vector<64x8xf32> -> vector<64x8xf32>
    %32 = vector.shape_cast %31 : vector<64x8xf32> to vector<1x8x8x8xf32>
    %c0_14 = arith.constant 0 : index
    %c0_15 = arith.constant 0 : index
    %c0_16 = arith.constant 0 : index
    %c0_17 = arith.constant 0 : index
    %33 = vector.load %arg5[%c0_14, %c0_15, %c0_16, %c0_17] : memref<1x8x8x8xf32, #tpu.memory_space<vmem>>, vector<1x8x8x8xf32>
    tpu.vector_store %arg5[%c0_14, %c0_15, %c0_16, %c0_17], %32 {strides = array<i32>} : memref<1x8x8x8xf32, #tpu.memory_space<vmem>>, vector<1x8x8x8xf32>,
    %cst_18 = arith.constant dense<0.000000e+00> : vector<8xf32>
    %34 = vector.multi_reduction <add>, %31, %cst_18 [0] : vector<64x8xf32> to vector<8xf32>
    %35 = vector.shape_cast %34 : vector<8xf32> to vector<1x8xf32>
    %36 = arith.mulf %31, %31 : vector<64x8xf32>
    %cst_19 = arith.constant dense<0.000000e+00> : vector<8xf32>
    %37 = vector.multi_reduction <add>, %36, %cst_19 [0] : vector<64x8xf32> to vector<8xf32>
    %38 = vector.shape_cast %37 : vector<8xf32> to vector<1x8xf32>
    %39 = tpu.concatenate %35, %38 in 0 : vector<1x8xf32>, vector<1x8xf32> -> vector<2x8xf32>
    %c0_20 = arith.constant 0 : index
    %c0_21 = arith.constant 0 : index
    %c0_22 = arith.constant 0 : index
    %40 = vector.load %arg6[%c0_20, %c0_21, %c0_22] : memref<1x2x8xf32, #tpu.memory_space<vmem>>, vector<1x2x8xf32>
    %41 = vector.shape_cast %40 : vector<1x2x8xf32> to vector<2x8xf32>
    %42 = vector.shape_cast %39 : vector<2x8xf32> to vector<1x2x8xf32>
    tpu.vector_store %arg6[%c0_20, %c0_21, %c0_22], %42 {strides = array<i32>} : memref<1x2x8xf32, #tpu.memory_space<vmem>>, vector<1x2x8xf32>,
    return
  }
  func.func @transform_0(%arg0: i32) -> (i32, i32, i32, i32) {
    %c0_i32 = arith.constant 0 : i32
    %c0_i32_0 = arith.constant 0 : i32
    %c0_i32_1 = arith.constant 0 : i32
    %c0_i32_2 = arith.constant 0 : i32
    return %arg0, %c0_i32, %c0_i32_0, %c0_i32_1 : i32, i32, i32, i32
  }
  func.func @transform_1(%arg0: i32) -> (i32, i32) {
    %c0_i32 = arith.constant 0 : i32
    %c0_i32_0 = arith.constant 0 : i32
    %c0_i32_1 = arith.constant 0 : i32
    return %c0_i32, %c0_i32_0 : i32, i32
  }
  func.func @transform_2(%arg0: i32) -> (i32, i32) {
    %c0_i32 = arith.constant 0 : i32
    %c0_i32_0 = arith.constant 0 : i32
    %c0_i32_1 = arith.constant 0 : i32
    return %c0_i32, %c0_i32_0 : i32, i32
  }
  func.func @transform_3(%arg0: i32) -> (i32, i32) {
    %c0_i32 = arith.constant 0 : i32
    %c0_i32_0 = arith.constant 0 : i32
    %c0_i32_1 = arith.constant 0 : i32
    return %c0_i32, %c0_i32_0 : i32, i32
  }
  func.func @transform_4(%arg0: i32) -> (i32, i32, i32, i32) {
    %c0_i32 = arith.constant 0 : i32
    %c0_i32_0 = arith.constant 0 : i32
    %c0_i32_1 = arith.constant 0 : i32
    %c0_i32_2 = arith.constant 0 : i32
    return %arg0, %c0_i32, %c0_i32_0, %c0_i32_1 : i32, i32, i32, i32
  }
  func.func @transform_5(%arg0: i32) -> (i32, i32, i32) {
    %c0_i32 = arith.constant 0 : i32
    %c0_i32_0 = arith.constant 0 : i32
    %c0_i32_1 = arith.constant 0 : i32
    return %arg0, %c0_i32, %c0_i32_0 : i32, i32, i32
  }
}

module attributes {stable_mosaic.version = 11 : i64} {
  func.func @conv1_sc_kernel(%arg0: i32, %arg1: memref<1x16x16x4xf32, #tpu.memory_space<vmem>>, %arg2: memref<36x8xbf16, #tpu.memory_space<vmem>>, %arg3: memref<4x8xbf16, #tpu.memory_space<vmem>>, %arg4: memref<1x8x8x8xf32, #tpu.memory_space<vmem>>, %arg5: memref<1x8x8x8xf32, #tpu.memory_space<vmem>>, %arg6: memref<1x2x8xf32, #tpu.memory_space<vmem>>, %arg7: memref<1x2x8xf32, #tpu.memory_space<vmem>>) attributes {dimension_semantics = [#tpu.dimension_semantics<parallel>], iteration_bounds = array<i64: 2>, scalar_prefetch = 0 : i64, scratch_operands = 0 : i64, tpu.core_type = #tpu.core_type<tc>, window_params = [{transform_indices = @transform_0, window_bounds = array<i64: 1, 16, 16, 4>}, {pipeline_mode = #tpu.pipeline_mode<synchronous>, transform_indices = @transform_1, window_bounds = array<i64: 36, 8>}, {pipeline_mode = #tpu.pipeline_mode<synchronous>, transform_indices = @transform_2, window_bounds = array<i64: 4, 8>}, {transform_indices = @transform_3, window_bounds = array<i64: 1, 8, 8, 8>}, {transform_indices = @transform_4, window_bounds = array<i64: 1, 8, 8, 8>}, {transform_indices = @transform_5, window_bounds = array<i64: 1, 2, 8>}, {transform_indices = @transform_6, window_bounds = array<i64: 1, 2, 8>}]} {
    %c0 = arith.constant 0 : index
    %c0_0 = arith.constant 0 : index
    %c0_1 = arith.constant 0 : index
    %c0_2 = arith.constant 0 : index
    %0 = vector.load %arg1[%c0, %c0_0, %c0_1, %c0_2] : memref<1x16x16x4xf32, #tpu.memory_space<vmem>>, vector<1x16x16x4xf32>
    %1 = vector.shape_cast %0 : vector<1x16x16x4xf32> to vector<16x16x4xf32>
    %2 = arith.truncf %1 : vector<16x16x4xf32> to vector<16x16x4xbf16>
    %cst = arith.constant 0.000000e+00 : bf16
    %3 = vector.broadcast %cst : bf16 to vector<1x16x4xbf16>
    %cst_3 = arith.constant 0.000000e+00 : bf16
    %4 = vector.broadcast %cst_3 : bf16 to vector<2x16x4xbf16>
    %5 = tpu.concatenate %3, %2, %4 in 0 : vector<1x16x4xbf16>, vector<16x16x4xbf16>, vector<2x16x4xbf16> -> vector<19x16x4xbf16>
    %cst_4 = arith.constant 0.000000e+00 : bf16
    %6 = vector.broadcast %cst_4 : bf16 to vector<19x1x4xbf16>
    %cst_5 = arith.constant 0.000000e+00 : bf16
    %7 = vector.broadcast %cst_5 : bf16 to vector<19x2x4xbf16>
    %8 = tpu.concatenate %6, %5, %7 in 1 : vector<19x1x4xbf16>, vector<19x16x4xbf16>, vector<19x2x4xbf16> -> vector<19x19x4xbf16>
    %9 = vector.extract_strided_slice %8 {offsets = [0, 0, 0], sizes = [16, 16, 4], strides = [1, 1, 1]} : vector<19x19x4xbf16> to vector<16x16x4xbf16>
    %10 = vector.shape_cast %9 : vector<16x16x4xbf16> to vector<8x2x16x4xbf16>
    %11 = vector.extract_strided_slice %10 {offsets = [0, 0, 0, 0], sizes = [8, 1, 16, 4], strides = [1, 1, 1, 1]} : vector<8x2x16x4xbf16> to vector<8x1x16x4xbf16>
    %12 = vector.shape_cast %11 : vector<8x1x16x4xbf16> to vector<8x16x4xbf16>
    %13 = vector.shape_cast %12 : vector<8x16x4xbf16> to vector<8x8x2x4xbf16>
    %14 = vector.extract_strided_slice %13 {offsets = [0, 0, 0, 0], sizes = [8, 8, 1, 4], strides = [1, 1, 1, 1]} : vector<8x8x2x4xbf16> to vector<8x8x1x4xbf16>
    %15 = vector.shape_cast %14 : vector<8x8x1x4xbf16> to vector<8x8x4xbf16>
    %16 = vector.extract_strided_slice %8 {offsets = [0, 1, 0], sizes = [16, 16, 4], strides = [1, 1, 1]} : vector<19x19x4xbf16> to vector<16x16x4xbf16>
    %17 = vector.shape_cast %16 : vector<16x16x4xbf16> to vector<8x2x16x4xbf16>
    %18 = vector.extract_strided_slice %17 {offsets = [0, 0, 0, 0], sizes = [8, 1, 16, 4], strides = [1, 1, 1, 1]} : vector<8x2x16x4xbf16> to vector<8x1x16x4xbf16>
    %19 = vector.shape_cast %18 : vector<8x1x16x4xbf16> to vector<8x16x4xbf16>
    %20 = vector.shape_cast %19 : vector<8x16x4xbf16> to vector<8x8x2x4xbf16>
    %21 = vector.extract_strided_slice %20 {offsets = [0, 0, 0, 0], sizes = [8, 8, 1, 4], strides = [1, 1, 1, 1]} : vector<8x8x2x4xbf16> to vector<8x8x1x4xbf16>
    %22 = vector.shape_cast %21 : vector<8x8x1x4xbf16> to vector<8x8x4xbf16>
    %23 = vector.extract_strided_slice %8 {offsets = [0, 2, 0], sizes = [16, 16, 4], strides = [1, 1, 1]} : vector<19x19x4xbf16> to vector<16x16x4xbf16>
    %24 = vector.shape_cast %23 : vector<16x16x4xbf16> to vector<8x2x16x4xbf16>
    %25 = vector.extract_strided_slice %24 {offsets = [0, 0, 0, 0], sizes = [8, 1, 16, 4], strides = [1, 1, 1, 1]} : vector<8x2x16x4xbf16> to vector<8x1x16x4xbf16>
    %26 = vector.shape_cast %25 : vector<8x1x16x4xbf16> to vector<8x16x4xbf16>
    %27 = vector.shape_cast %26 : vector<8x16x4xbf16> to vector<8x8x2x4xbf16>
    %28 = vector.extract_strided_slice %27 {offsets = [0, 0, 0, 0], sizes = [8, 8, 1, 4], strides = [1, 1, 1, 1]} : vector<8x8x2x4xbf16> to vector<8x8x1x4xbf16>
    %29 = vector.shape_cast %28 : vector<8x8x1x4xbf16> to vector<8x8x4xbf16>
    %30 = vector.extract_strided_slice %8 {offsets = [1, 0, 0], sizes = [16, 16, 4], strides = [1, 1, 1]} : vector<19x19x4xbf16> to vector<16x16x4xbf16>
    %31 = vector.shape_cast %30 : vector<16x16x4xbf16> to vector<8x2x16x4xbf16>
    %32 = vector.extract_strided_slice %31 {offsets = [0, 0, 0, 0], sizes = [8, 1, 16, 4], strides = [1, 1, 1, 1]} : vector<8x2x16x4xbf16> to vector<8x1x16x4xbf16>
    %33 = vector.shape_cast %32 : vector<8x1x16x4xbf16> to vector<8x16x4xbf16>
    %34 = vector.shape_cast %33 : vector<8x16x4xbf16> to vector<8x8x2x4xbf16>
    %35 = vector.extract_strided_slice %34 {offsets = [0, 0, 0, 0], sizes = [8, 8, 1, 4], strides = [1, 1, 1, 1]} : vector<8x8x2x4xbf16> to vector<8x8x1x4xbf16>
    %36 = vector.shape_cast %35 : vector<8x8x1x4xbf16> to vector<8x8x4xbf16>
    %37 = vector.extract_strided_slice %8 {offsets = [1, 1, 0], sizes = [16, 16, 4], strides = [1, 1, 1]} : vector<19x19x4xbf16> to vector<16x16x4xbf16>
    %38 = vector.shape_cast %37 : vector<16x16x4xbf16> to vector<8x2x16x4xbf16>
    %39 = vector.extract_strided_slice %38 {offsets = [0, 0, 0, 0], sizes = [8, 1, 16, 4], strides = [1, 1, 1, 1]} : vector<8x2x16x4xbf16> to vector<8x1x16x4xbf16>
    %40 = vector.shape_cast %39 : vector<8x1x16x4xbf16> to vector<8x16x4xbf16>
    %41 = vector.shape_cast %40 : vector<8x16x4xbf16> to vector<8x8x2x4xbf16>
    %42 = vector.extract_strided_slice %41 {offsets = [0, 0, 0, 0], sizes = [8, 8, 1, 4], strides = [1, 1, 1, 1]} : vector<8x8x2x4xbf16> to vector<8x8x1x4xbf16>
    %43 = vector.shape_cast %42 : vector<8x8x1x4xbf16> to vector<8x8x4xbf16>
    %44 = vector.extract_strided_slice %8 {offsets = [1, 2, 0], sizes = [16, 16, 4], strides = [1, 1, 1]} : vector<19x19x4xbf16> to vector<16x16x4xbf16>
    %45 = vector.shape_cast %44 : vector<16x16x4xbf16> to vector<8x2x16x4xbf16>
    %46 = vector.extract_strided_slice %45 {offsets = [0, 0, 0, 0], sizes = [8, 1, 16, 4], strides = [1, 1, 1, 1]} : vector<8x2x16x4xbf16> to vector<8x1x16x4xbf16>
    %47 = vector.shape_cast %46 : vector<8x1x16x4xbf16> to vector<8x16x4xbf16>
    %48 = vector.shape_cast %47 : vector<8x16x4xbf16> to vector<8x8x2x4xbf16>
    %49 = vector.extract_strided_slice %48 {offsets = [0, 0, 0, 0], sizes = [8, 8, 1, 4], strides = [1, 1, 1, 1]} : vector<8x8x2x4xbf16> to vector<8x8x1x4xbf16>
    %50 = vector.shape_cast %49 : vector<8x8x1x4xbf16> to vector<8x8x4xbf16>
    %51 = vector.extract_strided_slice %8 {offsets = [2, 0, 0], sizes = [16, 16, 4], strides = [1, 1, 1]} : vector<19x19x4xbf16> to vector<16x16x4xbf16>
    %52 = vector.shape_cast %51 : vector<16x16x4xbf16> to vector<8x2x16x4xbf16>
    %53 = vector.extract_strided_slice %52 {offsets = [0, 0, 0, 0], sizes = [8, 1, 16, 4], strides = [1, 1, 1, 1]} : vector<8x2x16x4xbf16> to vector<8x1x16x4xbf16>
    %54 = vector.shape_cast %53 : vector<8x1x16x4xbf16> to vector<8x16x4xbf16>
    %55 = vector.shape_cast %54 : vector<8x16x4xbf16> to vector<8x8x2x4xbf16>
    %56 = vector.extract_strided_slice %55 {offsets = [0, 0, 0, 0], sizes = [8, 8, 1, 4], strides = [1, 1, 1, 1]} : vector<8x8x2x4xbf16> to vector<8x8x1x4xbf16>
    %57 = vector.shape_cast %56 : vector<8x8x1x4xbf16> to vector<8x8x4xbf16>
    %58 = vector.extract_strided_slice %8 {offsets = [2, 1, 0], sizes = [16, 16, 4], strides = [1, 1, 1]} : vector<19x19x4xbf16> to vector<16x16x4xbf16>
    %59 = vector.shape_cast %58 : vector<16x16x4xbf16> to vector<8x2x16x4xbf16>
    %60 = vector.extract_strided_slice %59 {offsets = [0, 0, 0, 0], sizes = [8, 1, 16, 4], strides = [1, 1, 1, 1]} : vector<8x2x16x4xbf16> to vector<8x1x16x4xbf16>
    %61 = vector.shape_cast %60 : vector<8x1x16x4xbf16> to vector<8x16x4xbf16>
    %62 = vector.shape_cast %61 : vector<8x16x4xbf16> to vector<8x8x2x4xbf16>
    %63 = vector.extract_strided_slice %62 {offsets = [0, 0, 0, 0], sizes = [8, 8, 1, 4], strides = [1, 1, 1, 1]} : vector<8x8x2x4xbf16> to vector<8x8x1x4xbf16>
    %64 = vector.shape_cast %63 : vector<8x8x1x4xbf16> to vector<8x8x4xbf16>
    %65 = vector.extract_strided_slice %8 {offsets = [2, 2, 0], sizes = [16, 16, 4], strides = [1, 1, 1]} : vector<19x19x4xbf16> to vector<16x16x4xbf16>
    %66 = vector.shape_cast %65 : vector<16x16x4xbf16> to vector<8x2x16x4xbf16>
    %67 = vector.extract_strided_slice %66 {offsets = [0, 0, 0, 0], sizes = [8, 1, 16, 4], strides = [1, 1, 1, 1]} : vector<8x2x16x4xbf16> to vector<8x1x16x4xbf16>
    %68 = vector.shape_cast %67 : vector<8x1x16x4xbf16> to vector<8x16x4xbf16>
    %69 = vector.shape_cast %68 : vector<8x16x4xbf16> to vector<8x8x2x4xbf16>
    %70 = vector.extract_strided_slice %69 {offsets = [0, 0, 0, 0], sizes = [8, 8, 1, 4], strides = [1, 1, 1, 1]} : vector<8x8x2x4xbf16> to vector<8x8x1x4xbf16>
    %71 = vector.shape_cast %70 : vector<8x8x1x4xbf16> to vector<8x8x4xbf16>
    %c0_6 = arith.constant 0 : index
    %c0_7 = arith.constant 0 : index
    %72 = vector.load %arg2[%c0_6, %c0_7] : memref<36x8xbf16, #tpu.memory_space<vmem>>, vector<36x8xbf16>
    %73 = tpu.concatenate %15, %22, %29, %36, %43, %50, %57, %64, %71 in 2 : vector<8x8x4xbf16>, vector<8x8x4xbf16>, vector<8x8x4xbf16>, vector<8x8x4xbf16>, vector<8x8x4xbf16>, vector<8x8x4xbf16>, vector<8x8x4xbf16>, vector<8x8x4xbf16>, vector<8x8x4xbf16> -> vector<8x8x36xbf16>
    %74 = vector.shape_cast %73 : vector<8x8x36xbf16> to vector<64x36xbf16>
    %cst_8 = arith.constant dense<0.000000e+00> : vector<64x8xf32>
    %75 = tpu.matmul %74, %72, %cst_8 {dimension_numbers = #tpu.dot_dimension_numbers<[1], [0], [0], [1], [0, 0, 1, 1], [], []>} : vector<64x36xbf16>, vector<36x8xbf16>, vector<64x8xf32> -> vector<64x8xf32>
    %76 = vector.shape_cast %75 : vector<64x8xf32> to vector<1x8x8x8xf32>
    %c0_9 = arith.constant 0 : index
    %c0_10 = arith.constant 0 : index
    %c0_11 = arith.constant 0 : index
    %c0_12 = arith.constant 0 : index
    %77 = vector.load %arg4[%c0_9, %c0_10, %c0_11, %c0_12] : memref<1x8x8x8xf32, #tpu.memory_space<vmem>>, vector<1x8x8x8xf32>
    tpu.vector_store %arg4[%c0_9, %c0_10, %c0_11, %c0_12], %76 {strides = array<i32>} : memref<1x8x8x8xf32, #tpu.memory_space<vmem>>, vector<1x8x8x8xf32>,
    %cst_13 = arith.constant dense<0.000000e+00> : vector<8xf32>
    %78 = vector.multi_reduction <add>, %75, %cst_13 [0] : vector<64x8xf32> to vector<8xf32>
    %79 = vector.shape_cast %78 : vector<8xf32> to vector<1x8xf32>
    %80 = arith.mulf %75, %75 : vector<64x8xf32>
    %cst_14 = arith.constant dense<0.000000e+00> : vector<8xf32>
    %81 = vector.multi_reduction <add>, %80, %cst_14 [0] : vector<64x8xf32> to vector<8xf32>
    %82 = vector.shape_cast %81 : vector<8xf32> to vector<1x8xf32>
    %83 = tpu.concatenate %79, %82 in 0 : vector<1x8xf32>, vector<1x8xf32> -> vector<2x8xf32>
    %c0_15 = arith.constant 0 : index
    %c0_16 = arith.constant 0 : index
    %c0_17 = arith.constant 0 : index
    %84 = vector.load %arg6[%c0_15, %c0_16, %c0_17] : memref<1x2x8xf32, #tpu.memory_space<vmem>>, vector<1x2x8xf32>
    %85 = vector.shape_cast %84 : vector<1x2x8xf32> to vector<2x8xf32>
    %86 = vector.shape_cast %83 : vector<2x8xf32> to vector<1x2x8xf32>
    tpu.vector_store %arg6[%c0_15, %c0_16, %c0_17], %86 {strides = array<i32>} : memref<1x2x8xf32, #tpu.memory_space<vmem>>, vector<1x2x8xf32>,
    %87 = vector.shape_cast %43 : vector<8x8x4xbf16> to vector<64x4xbf16>
    %c0_18 = arith.constant 0 : index
    %c0_19 = arith.constant 0 : index
    %88 = vector.load %arg3[%c0_18, %c0_19] : memref<4x8xbf16, #tpu.memory_space<vmem>>, vector<4x8xbf16>
    %cst_20 = arith.constant dense<0.000000e+00> : vector<64x8xf32>
    %89 = tpu.matmul %87, %88, %cst_20 {dimension_numbers = #tpu.dot_dimension_numbers<[1], [0], [0], [1], [0, 0, 1, 1], [], []>} : vector<64x4xbf16>, vector<4x8xbf16>, vector<64x8xf32> -> vector<64x8xf32>
    %90 = vector.shape_cast %89 : vector<64x8xf32> to vector<1x8x8x8xf32>
    %c0_21 = arith.constant 0 : index
    %c0_22 = arith.constant 0 : index
    %c0_23 = arith.constant 0 : index
    %c0_24 = arith.constant 0 : index
    %91 = vector.load %arg5[%c0_21, %c0_22, %c0_23, %c0_24] : memref<1x8x8x8xf32, #tpu.memory_space<vmem>>, vector<1x8x8x8xf32>
    tpu.vector_store %arg5[%c0_21, %c0_22, %c0_23, %c0_24], %90 {strides = array<i32>} : memref<1x8x8x8xf32, #tpu.memory_space<vmem>>, vector<1x8x8x8xf32>,
    %cst_25 = arith.constant dense<0.000000e+00> : vector<8xf32>
    %92 = vector.multi_reduction <add>, %89, %cst_25 [0] : vector<64x8xf32> to vector<8xf32>
    %93 = vector.shape_cast %92 : vector<8xf32> to vector<1x8xf32>
    %94 = arith.mulf %89, %89 : vector<64x8xf32>
    %cst_26 = arith.constant dense<0.000000e+00> : vector<8xf32>
    %95 = vector.multi_reduction <add>, %94, %cst_26 [0] : vector<64x8xf32> to vector<8xf32>
    %96 = vector.shape_cast %95 : vector<8xf32> to vector<1x8xf32>
    %97 = tpu.concatenate %93, %96 in 0 : vector<1x8xf32>, vector<1x8xf32> -> vector<2x8xf32>
    %c0_27 = arith.constant 0 : index
    %c0_28 = arith.constant 0 : index
    %c0_29 = arith.constant 0 : index
    %98 = vector.load %arg7[%c0_27, %c0_28, %c0_29] : memref<1x2x8xf32, #tpu.memory_space<vmem>>, vector<1x2x8xf32>
    %99 = vector.shape_cast %98 : vector<1x2x8xf32> to vector<2x8xf32>
    %100 = vector.shape_cast %97 : vector<2x8xf32> to vector<1x2x8xf32>
    tpu.vector_store %arg7[%c0_27, %c0_28, %c0_29], %100 {strides = array<i32>} : memref<1x2x8xf32, #tpu.memory_space<vmem>>, vector<1x2x8xf32>,
    return
  }
  func.func @transform_0(%arg0: i32) -> (i32, i32, i32, i32) {
    %c0_i32 = arith.constant 0 : i32
    %c0_i32_0 = arith.constant 0 : i32
    %c0_i32_1 = arith.constant 0 : i32
    %c0_i32_2 = arith.constant 0 : i32
    return %arg0, %c0_i32, %c0_i32_0, %c0_i32_1 : i32, i32, i32, i32
  }
  func.func @transform_1(%arg0: i32) -> (i32, i32) {
    %c0_i32 = arith.constant 0 : i32
    %c0_i32_0 = arith.constant 0 : i32
    %c0_i32_1 = arith.constant 0 : i32
    return %c0_i32, %c0_i32_0 : i32, i32
  }
  func.func @transform_2(%arg0: i32) -> (i32, i32) {
    %c0_i32 = arith.constant 0 : i32
    %c0_i32_0 = arith.constant 0 : i32
    %c0_i32_1 = arith.constant 0 : i32
    return %c0_i32, %c0_i32_0 : i32, i32
  }
  func.func @transform_3(%arg0: i32) -> (i32, i32, i32, i32) {
    %c0_i32 = arith.constant 0 : i32
    %c0_i32_0 = arith.constant 0 : i32
    %c0_i32_1 = arith.constant 0 : i32
    %c0_i32_2 = arith.constant 0 : i32
    return %arg0, %c0_i32, %c0_i32_0, %c0_i32_1 : i32, i32, i32, i32
  }
  func.func @transform_4(%arg0: i32) -> (i32, i32, i32, i32) {
    %c0_i32 = arith.constant 0 : i32
    %c0_i32_0 = arith.constant 0 : i32
    %c0_i32_1 = arith.constant 0 : i32
    %c0_i32_2 = arith.constant 0 : i32
    return %arg0, %c0_i32, %c0_i32_0, %c0_i32_1 : i32, i32, i32, i32
  }
  func.func @transform_5(%arg0: i32) -> (i32, i32, i32) {
    %c0_i32 = arith.constant 0 : i32
    %c0_i32_0 = arith.constant 0 : i32
    %c0_i32_1 = arith.constant 0 : i32
    return %arg0, %c0_i32, %c0_i32_0 : i32, i32, i32
  }
  func.func @transform_6(%arg0: i32) -> (i32, i32, i32) {
    %c0_i32 = arith.constant 0 : i32
    %c0_i32_0 = arith.constant 0 : i32
    %c0_i32_1 = arith.constant 0 : i32
    return %arg0, %c0_i32, %c0_i32_0 : i32, i32, i32
  }
}

module attributes {stable_mosaic.version = 11 : i64} {
  func.func @bn_add_relu_sc_kernel(%arg0: i32, %arg1: memref<1x8x8x8xf32, #tpu.memory_space<vmem>>, %arg2: memref<1x8xf32, #tpu.memory_space<vmem>>, %arg3: memref<1x8xf32, #tpu.memory_space<vmem>>, %arg4: memref<1x8x8x8xf32, #tpu.memory_space<vmem>>, %arg5: memref<1x8xf32, #tpu.memory_space<vmem>>, %arg6: memref<1x8xf32, #tpu.memory_space<vmem>>, %arg7: memref<1x8x8x8xf32, #tpu.memory_space<vmem>>) attributes {dimension_semantics = [#tpu.dimension_semantics<parallel>], iteration_bounds = array<i64: 2>, scalar_prefetch = 0 : i64, scratch_operands = 0 : i64, tpu.core_type = #tpu.core_type<tc>, window_params = [{transform_indices = @transform_0, window_bounds = array<i64: 1, 8, 8, 8>}, {pipeline_mode = #tpu.pipeline_mode<synchronous>, transform_indices = @transform_1, window_bounds = array<i64: 1, 8>}, {pipeline_mode = #tpu.pipeline_mode<synchronous>, transform_indices = @transform_2, window_bounds = array<i64: 1, 8>}, {transform_indices = @transform_3, window_bounds = array<i64: 1, 8, 8, 8>}, {pipeline_mode = #tpu.pipeline_mode<synchronous>, transform_indices = @transform_4, window_bounds = array<i64: 1, 8>}, {pipeline_mode = #tpu.pipeline_mode<synchronous>, transform_indices = @transform_5, window_bounds = array<i64: 1, 8>}, {transform_indices = @transform_6, window_bounds = array<i64: 1, 8, 8, 8>}]} {
    %c0 = arith.constant 0 : index
    %c0_0 = arith.constant 0 : index
    %0 = vector.load %arg2[%c0, %c0_0] : memref<1x8xf32, #tpu.memory_space<vmem>>, vector<1x8xf32>
    %1 = vector.shape_cast %0 : vector<1x8xf32> to vector<1x1x1x8xf32>
    %c0_1 = arith.constant 0 : index
    %c0_2 = arith.constant 0 : index
    %2 = vector.load %arg3[%c0_1, %c0_2] : memref<1x8xf32, #tpu.memory_space<vmem>>, vector<1x8xf32>
    %3 = vector.shape_cast %2 : vector<1x8xf32> to vector<1x1x1x8xf32>
    %c0_3 = arith.constant 0 : index
    %c0_4 = arith.constant 0 : index
    %4 = vector.load %arg5[%c0_3, %c0_4] : memref<1x8xf32, #tpu.memory_space<vmem>>, vector<1x8xf32>
    %5 = vector.shape_cast %4 : vector<1x8xf32> to vector<1x1x1x8xf32>
    %c0_5 = arith.constant 0 : index
    %c0_6 = arith.constant 0 : index
    %6 = vector.load %arg6[%c0_5, %c0_6] : memref<1x8xf32, #tpu.memory_space<vmem>>, vector<1x8xf32>
    %7 = vector.shape_cast %6 : vector<1x8xf32> to vector<1x1x1x8xf32>
    %c0_7 = arith.constant 0 : index
    %c0_8 = arith.constant 0 : index
    %c0_9 = arith.constant 0 : index
    %c0_10 = arith.constant 0 : index
    %8 = vector.load %arg1[%c0_7, %c0_8, %c0_9, %c0_10] : memref<1x8x8x8xf32, #tpu.memory_space<vmem>>, vector<1x8x8x8xf32>
    %9 = vector.broadcast %1 : vector<1x1x1x8xf32> to vector<1x8x8x8xf32>
    %10 = arith.mulf %8, %9 : vector<1x8x8x8xf32>
    %11 = vector.broadcast %3 : vector<1x1x1x8xf32> to vector<1x8x8x8xf32>
    %12 = arith.addf %10, %11 : vector<1x8x8x8xf32>
    %c0_11 = arith.constant 0 : index
    %c0_12 = arith.constant 0 : index
    %c0_13 = arith.constant 0 : index
    %c0_14 = arith.constant 0 : index
    %13 = vector.load %arg4[%c0_11, %c0_12, %c0_13, %c0_14] : memref<1x8x8x8xf32, #tpu.memory_space<vmem>>, vector<1x8x8x8xf32>
    %14 = vector.broadcast %5 : vector<1x1x1x8xf32> to vector<1x8x8x8xf32>
    %15 = arith.mulf %13, %14 : vector<1x8x8x8xf32>
    %16 = arith.addf %12, %15 : vector<1x8x8x8xf32>
    %17 = vector.broadcast %7 : vector<1x1x1x8xf32> to vector<1x8x8x8xf32>
    %18 = arith.addf %16, %17 : vector<1x8x8x8xf32>
    %cst = arith.constant 0.000000e+00 : f32
    %19 = vector.broadcast %cst : f32 to vector<1x8x8x8xf32>
    %20 = arith.maximumf %18, %19 : vector<1x8x8x8xf32>
    %c0_15 = arith.constant 0 : index
    %c0_16 = arith.constant 0 : index
    %c0_17 = arith.constant 0 : index
    %c0_18 = arith.constant 0 : index
    %21 = vector.load %arg7[%c0_15, %c0_16, %c0_17, %c0_18] : memref<1x8x8x8xf32, #tpu.memory_space<vmem>>, vector<1x8x8x8xf32>
    tpu.vector_store %arg7[%c0_15, %c0_16, %c0_17, %c0_18], %20 {strides = array<i32>} : memref<1x8x8x8xf32, #tpu.memory_space<vmem>>, vector<1x8x8x8xf32>,
    return
  }
  func.func @transform_0(%arg0: i32) -> (i32, i32, i32, i32) {
    %c0_i32 = arith.constant 0 : i32
    %c0_i32_0 = arith.constant 0 : i32
    %c0_i32_1 = arith.constant 0 : i32
    %c0_i32_2 = arith.constant 0 : i32
    return %arg0, %c0_i32, %c0_i32_0, %c0_i32_1 : i32, i32, i32, i32
  }
  func.func @transform_1(%arg0: i32) -> (i32, i32) {
    %c0_i32 = arith.constant 0 : i32
    %c0_i32_0 = arith.constant 0 : i32
    %c0_i32_1 = arith.constant 0 : i32
    return %c0_i32, %c0_i32_0 : i32, i32
  }
  func.func @transform_2(%arg0: i32) -> (i32, i32) {
    %c0_i32 = arith.constant 0 : i32
    %c0_i32_0 = arith.constant 0 : i32
    %c0_i32_1 = arith.constant 0 : i32
    return %c0_i32, %c0_i32_0 : i32, i32
  }
  func.func @transform_3(%arg0: i32) -> (i32, i32, i32, i32) {
    %c0_i32 = arith.constant 0 : i32
    %c0_i32_0 = arith.constant 0 : i32
    %c0_i32_1 = arith.constant 0 : i32
    %c0_i32_2 = arith.constant 0 : i32
    return %arg0, %c0_i32, %c0_i32_0, %c0_i32_1 : i32, i32, i32, i32
  }
  func.func @transform_4(%arg0: i32) -> (i32, i32) {
    %c0_i32 = arith.constant 0 : i32
    %c0_i32_0 = arith.constant 0 : i32
    %c0_i32_1 = arith.constant 0 : i32
    return %c0_i32, %c0_i32_0 : i32, i32
  }
  func.func @transform_5(%arg0: i32) -> (i32, i32) {
    %c0_i32 = arith.constant 0 : i32
    %c0_i32_0 = arith.constant 0 : i32
    %c0_i32_1 = arith.constant 0 : i32
    return %c0_i32, %c0_i32_0 : i32, i32
  }
  func.func @transform_6(%arg0: i32) -> (i32, i32, i32, i32) {
    %c0_i32 = arith.constant 0 : i32
    %c0_i32_0 = arith.constant 0 : i32
    %c0_i32_1 = arith.constant 0 : i32
    %c0_i32_2 = arith.constant 0 : i32
    return %arg0, %c0_i32, %c0_i32_0, %c0_i32_1 : i32, i32, i32, i32
  }
}

</mosaic_0001>

<llo_original>
// kernel: _basic_block_forward.5
$region0: #{_basic_block_forward.5}
  #allocation0 [shape = 'u32[]', space=smem, size = 0x4, offset = 0x4, fixed_abs, tag = 'smem constant byte address 0x4 - core index']
  #allocation1 [shape = 'u32[144,128]{1,0:T(1,128)}', space=vmem, size = 0x12000, scoped, tag = 'internal scratch']
  %s0 = inlined_call_operand.vmem [shape: f32[2,8,8,8], index: 0, kind: input, shape index: {}]
  %s1 = inlined_call_operand.vmem [shape: f32[1,8], index: 1, kind: input, shape index: {}]
  %s2 = inlined_call_operand.vmem [shape: f32[1,8], index: 2, kind: input, shape index: {}]
  %s3 = inlined_call_operand.vmem [shape: f32[2,8,8,8], index: 3, kind: input, shape index: {}]
  %s4 = inlined_call_operand.vmem [shape: f32[1,8], index: 4, kind: input, shape index: {}]
  %s5 = inlined_call_operand.vmem [shape: f32[1,8], index: 5, kind: input, shape index: {}]
  %s6 = inlined_call_operand.vmem [shape: f32[2,8,8,8], index: 6, kind: output, shape index: {}]
  %s7 = sld [smem:[#allocation0]]
  $region57: #{_basic_block_forward.5} parent=0
    _
  %s9 = ssub.s32 1, %s7
  %s10 = scalar_select 0, %s9, %s7
  loop: start=0, step=1, limit=4
  $region2: #{_basic_block_forward.5} parent=0 // loop_pre_header
    _
  $region3: #{_basic_block_forward.5} parent=0 // loop_header
    %s12 = sphi 0, %s16
    %p13 = scmp.ge.s32.totalorder %s12, 4
    %s22 = sphi 0, %s24
    %s25 = sphi 0, %s22
    %s26 = sphi 0, %s25
    %s42 = sphi 0, %s26
    %s46 = sphi 0, %s46
    %s48 = sphi 0, %s46
    %s49 = sphi 0, %s48
    %s63 = sphi 0, %s49
    %s67 = sphi 0, %s67
    %s69 = sphi 0, %s67
    %s70 = sphi 0, %s69
    %s84 = sphi 0, %s70
    %s90 = sphi 0, %s92
    %s93 = sphi 0, %s90
    %s94 = sphi 0, %s93
    %s110 = sphi 0, %s94
    %s114 = sphi 0, %s114
    %s116 = sphi 0, %s114
    %s117 = sphi 0, %s116
    %s131 = sphi 0, %s117
    %s135 = sphi 0, %s135
    %s137 = sphi 0, %s135
    %s138 = sphi 0, %s137
    %s152 = sphi 0, %s138
    %s158 = sphi 0, %s160
    %s161 = sphi 0, %s158
    %s162 = sphi 0, %s161
    %s178 = sphi 0, %s162
  $region4: #{_basic_block_forward.5} parent=0 // loop_header_branch
    %15 = sbr.rel (%p13) target = $region8
  $region5: #{_basic_block_forward.5} parent=0 // loop_body
    %s17 = ssub.s32 %s12, 1
    %s18 = ssub.s32 %s12, 2
    %s19 = sadd.s32 %s12, 1
    %s20 = ssub.s32 %s12, %s19
    %p21 = scmp.eq.s32.totalorder %s20, 0
    %s23 = sadd.s32 %s22, 1
    %s24 = scalar_select %p21, %s22, %s23
    %p27 = pneg %p21
    %p28 = scmp.eq.s32.totalorder %s12, 1
    %p29 = por %p27, %p28
    %p30 = scmp.ne.s32.totalorder %s22, %s25
    %p31 = scmp.eq.s32.totalorder %s12, 0
    %p32 = por %p30, %p31
    %p33 = scmp.ne.s32.totalorder %s22, %s25
    %p34 = scmp.eq.s32.totalorder %s17, 1
    %p35 = por %p33, %p34
    %p36 = scmp.ne.s32.totalorder %s25, %s26
    %p37 = scmp.eq.s32.totalorder %s17, 0
    %p38 = por %p36, %p37
    %p39 = scmp.ne.s32.totalorder %s25, %s26
    %p40 = scmp.eq.s32.totalorder %s18, 1
    %p41 = por %p39, %p40
    %p43 = scmp.ne.s32.totalorder %s26, %s42
    %p44 = scmp.eq.s32.totalorder %s18, 0
    %p45 = por %p43, %p44
    %s47 = sadd.s32 %s46, 1
    %p50 = scmp.eq.s32.totalorder %s12, 1
    %p51 = scmp.ne.s32.totalorder %s46, %s48
    %p52 = scmp.eq.s32.totalorder %s12, 0
    %p53 = por %p51, %p52
    %p54 = scmp.ne.s32.totalorder %s46, %s48
    %p55 = scmp.eq.s32.totalorder %s17, 1
    %p56 = por %p54, %p55
    %p57 = scmp.ne.s32.totalorder %s48, %s49
    %p58 = scmp.eq.s32.totalorder %s17, 0
    %p59 = por %p57, %p58
    %p60 = scmp.ne.s32.totalorder %s48, %s49
    %p61 = scmp.eq.s32.totalorder %s18, 1
    %p62 = por %p60, %p61
    %p64 = scmp.ne.s32.totalorder %s49, %s63
    %p65 = scmp.eq.s32.totalorder %s18, 0
    %p66 = por %p64, %p65
    %s68 = sadd.s32 %s67, 1
    %p71 = scmp.eq.s32.totalorder %s12, 1
    %p72 = scmp.ne.s32.totalorder %s67, %s69
    %p73 = scmp.eq.s32.totalorder %s12, 0
    %p74 = por %p72, %p73
    %p75 = scmp.ne.s32.totalorder %s67, %s69
    %p76 = scmp.eq.s32.totalorder %s17, 1
    %p77 = por %p75, %p76
    %p78 = scmp.ne.s32.totalorder %s69, %s70
    %p79 = scmp.eq.s32.totalorder %s17, 0
    %p80 = por %p78, %p79
    %p81 = scmp.ne.s32.totalorder %s69, %s70
    %p82 = scmp.eq.s32.totalorder %s18, 1
    %p83 = por %p81, %p82
    %p85 = scmp.ne.s32.totalorder %s70, %s84
    %p86 = scmp.eq.s32.totalorder %s18, 0
    %p87 = por %p85, %p86
    %s88 = ssub.s32 %s12, %s19
    %p89 = scmp.eq.s32.totalorder %s88, 0
    %s91 = sadd.s32 %s90, 1
    %s92 = scalar_select %p89, %s90, %s91
    %p95 = pneg %p89
    %p96 = scmp.eq.s32.totalorder %s12, 1
    %p97 = por %p95, %p96
    %p98 = scmp.ne.s32.totalorder %s90, %s93
    %p99 = scmp.eq.s32.totalorder %s12, 0
    %p100 = por %p98, %p99
    %p101 = scmp.ne.s32.totalorder %s90, %s93
    %p102 = scmp.eq.s32.totalorder %s17, 1
    %p103 = por %p101, %p102
    %p104 = scmp.ne.s32.totalorder %s93, %s94
    %p105 = scmp.eq.s32.totalorder %s17, 0
    %p106 = por %p104, %p105
    %p107 = scmp.ne.s32.totalorder %s93, %s94
    %p108 = scmp.eq.s32.totalorder %s18, 1
    %p109 = por %p107, %p108
    %p111 = scmp.ne.s32.totalorder %s94, %s110
    %p112 = scmp.eq.s32.totalorder %s18, 0
    %p113 = por %p111, %p112
    %s115 = sadd.s32 %s114, 1
    %p118 = scmp.eq.s32.totalorder %s12, 1
    %p119 = scmp.ne.s32.totalorder %s114, %s116
    %p120 = scmp.eq.s32.totalorder %s12, 0
    %p121 = por %p119, %p120
    %p122 = scmp.ne.s32.totalorder %s114, %s116
    %p123 = scmp.eq.s32.totalorder %s17, 1
    %p124 = por %p122, %p123
    %p125 = scmp.ne.s32.totalorder %s116, %s117
    %p126 = scmp.eq.s32.totalorder %s17, 0
    %p127 = por %p125, %p126
    %p128 = scmp.ne.s32.totalorder %s116, %s117
    %p129 = scmp.eq.s32.totalorder %s18, 1
    %p130 = por %p128, %p129
    %p132 = scmp.ne.s32.totalorder %s117, %s131
    %p133 = scmp.eq.s32.totalorder %s18, 0
    %p134 = por %p132, %p133
    %s136 = sadd.s32 %s135, 1
    %p139 = scmp.eq.s32.totalorder %s12, 1
    %p140 = scmp.ne.s32.totalorder %s135, %s137
    %p141 = scmp.eq.s32.totalorder %s12, 0
    %p142 = por %p140, %p141
    %p143 = scmp.ne.s32.totalorder %s135, %s137
    %p144 = scmp.eq.s32.totalorder %s17, 1
    %p145 = por %p143, %p144
    %p146 = scmp.ne.s32.totalorder %s137, %s138
    %p147 = scmp.eq.s32.totalorder %s17, 0
    %p148 = por %p146, %p147
    %p149 = scmp.ne.s32.totalorder %s137, %s138
    %p150 = scmp.eq.s32.totalorder %s18, 1
    %p151 = por %p149, %p150
    %p153 = scmp.ne.s32.totalorder %s138, %s152
    %p154 = scmp.eq.s32.totalorder %s18, 0
    %p155 = por %p153, %p154
    %s156 = ssub.s32 %s12, %s19
    %p157 = scmp.eq.s32.totalorder %s156, 0
    %s159 = sadd.s32 %s158, 1
    %s160 = scalar_select %p157, %s158, %s159
    %p163 = pneg %p157
    %p164 = scmp.eq.s32.totalorder %s12, 1
    %p165 = por %p163, %p164
    %p166 = scmp.ne.s32.totalorder %s158, %s161
    %p167 = scmp.eq.s32.totalorder %s12, 0
    %p168 = por %p166, %p167
    %p169 = scmp.ne.s32.totalorder %s158, %s161
    %p170 = scmp.eq.s32.totalorder %s17, 1
    %p171 = por %p169, %p170
    %p172 = scmp.ne.s32.totalorder %s161, %s162
    %p173 = scmp.eq.s32.totalorder %s17, 0
    %p174 = por %p172, %p173
    %p175 = scmp.ne.s32.totalorder %s161, %s162
    %p176 = scmp.eq.s32.totalorder %s18, 1
    %p177 = por %p175, %p176
    %p179 = scmp.ne.s32.totalorder %s162, %s178
    %p180 = scmp.eq.s32.totalorder %s18, 0
    %p181 = por %p179, %p180
    %p182 = scmp.le.s32.totalorder 1, %s12
    %p183 = scmp.lt.s32.totalorder %s12, 3
    %p184 = pnand %p182, %p183
    %p185 = pneg %p184
    // Predicated region
    $region9: #{_basic_block_forward.5} parent=5 // pred_check
      _
    $region10: #{_basic_block_forward.5} parent=5 // pred_check_branch
      %187 = sbr.rel (%p184) target = $region12
    $region11: #{_basic_block_forward.5} parent=5 // pred_region
      %s188 = ssub.s32 %s12, 1
      // Predicated region
      $region13: #{_basic_block_forward.5} parent=11 // pred_check
        %p189 = pneg %p59
      $region14: #{_basic_block_forward.5} parent=11 // pred_check_branch
        %191 = sbr.rel (%p189) target = $region16
      $region15: #{_basic_block_forward.5} parent=11 // pred_region
        _
      $region16: #{_basic_block_forward.5} parent=11 // pred_fallthru
        _
      // Predicated region
      $region17: #{_basic_block_forward.5} parent=11 // pred_check
        %p192 = pneg %p80
      $region18: #{_basic_block_forward.5} parent=11 // pred_check_branch
        %194 = sbr.rel (%p192) target = $region20
      $region19: #{_basic_block_forward.5} parent=11 // pred_region
        _
      $region20: #{_basic_block_forward.5} parent=11 // pred_fallthru
        _
      // Predicated region
      $region21: #{_basic_block_forward.5} parent=11 // pred_check
        %p195 = pneg %p127
      $region22: #{_basic_block_forward.5} parent=11 // pred_check_branch
        %197 = sbr.rel (%p195) target = $region24
      $region23: #{_basic_block_forward.5} parent=11 // pred_region
        _
      $region24: #{_basic_block_forward.5} parent=11 // pred_fallthru
        _
      // Predicated region
      $region25: #{_basic_block_forward.5} parent=11 // pred_check
        %p198 = pneg %p148
      $region26: #{_basic_block_forward.5} parent=11 // pred_check_branch
        %200 = sbr.rel (%p198) target = $region28
      $region27: #{_basic_block_forward.5} parent=11 // pred_region
        _
      $region28: #{_basic_block_forward.5} parent=11 // pred_fallthru
        _
    $region12: #{_basic_block_forward.5} parent=5 // pred_fallthru
      _
    %p201 = scmp.lt.s32.totalorder %s12, 2
    // Predicated region
    $region29: #{_basic_block_forward.5} parent=5 // pred_check
      %p202 = pneg %p201
    $region30: #{_basic_block_forward.5} parent=5 // pred_check_branch
      %204 = sbr.rel (%p202) target = $region32
    $region31: #{_basic_block_forward.5} parent=5 // pred_region
      // Predicated region
      $region33: #{_basic_block_forward.5} parent=31 // pred_check
        %p205 = pneg %p32
      $region34: #{_basic_block_forward.5} parent=31 // pred_check_branch
        %207 = sbr.rel (%p205) target = $region36
      $region35: #{_basic_block_forward.5} parent=31 // pred_region
        %p208 = scmp.lt.s32.totalorder %s12, 1
        %s209 = scalar_select %p208, %s12, 1
        %s210 = smul.addr %s209, 8
        %s211 = smul.addr %s210, 8
        %s212 = scalar_lea.vmem %s0, %s211
      $region36: #{_basic_block_forward.5} parent=31 // pred_fallthru
        _
      // Predicated region
      $region37: #{_basic_block_forward.5} parent=31 // pred_check
        %p213 = pneg %p100
      $region38: #{_basic_block_forward.5} parent=31 // pred_check_branch
        %215 = sbr.rel (%p213) target = $region40
      $region39: #{_basic_block_forward.5} parent=31 // pred_region
        %p216 = scmp.lt.s32.totalorder %s12, 1
        %s217 = scalar_select %p216, %s12, 1
        %s218 = smul.addr %s217, 8
        %s219 = smul.addr %s218, 8
        %s220 = scalar_lea.vmem %s3, %s219
      $region40: #{_basic_block_forward.5} parent=31 // pred_fallthru
        _
    $region32: #{_basic_block_forward.5} parent=5 // pred_fallthru
      _
    %p221 = scmp.le.s32.totalorder 1, %s12
    %p222 = scmp.lt.s32.totalorder %s12, 3
    %p223 = pnand %p221, %p222
    %p224 = pneg %p223
    // Predicated region
    $region41: #{_basic_block_forward.5} parent=5 // pred_check
      _
    $region42: #{_basic_block_forward.5} parent=5 // pred_check_branch
      %226 = sbr.rel (%p223) target = $region44
    $region43: #{_basic_block_forward.5} parent=5 // pred_region
      %s227 = ssub.s32 %s12, 1
      %p228 = scmp.lt.s32.totalorder %s17, 1
      %s229 = scalar_select %p228, %s17, 1
      %s230 = smul.addr %s229, 8
      %s231 = smul.addr %s230, 8
      %s232 = scalar_lea.vmem %s0, %s231
      %p233 = pneg %p38
      %p234 = pneg %p35
      %p235 = pneg %p59
      %p236 = pneg %p56
      %p237 = pneg %p80
      %p238 = pneg %p77
      %p239 = scmp.lt.s32.totalorder %s17, 1
      %s240 = scalar_select %p239, %s17, 1
      %s241 = smul.addr %s240, 8
      %s242 = smul.addr %s241, 8
      %s243 = scalar_lea.vmem %s3, %s242
      %p244 = pneg %p106
      %p245 = pneg %p103
      %p246 = pneg %p127
      %p247 = pneg %p124
      %p248 = pneg %p148
      %p249 = pneg %p145
      %p250 = pneg %p174
      %p251 = pneg %p171
      %p252 = scmp.lt.s32.totalorder %s17, 1
      %s253 = scalar_select %p252, %s17, 1
      %s254 = smul.addr %s253, 8
      %s255 = smul.addr %s254, 8
      %s256 = scalar_lea.vmem %s6, %s255
      %p257 = scmp.lt.s32.totalorder %s17, 1
      %s258 = scalar_select %p257, %s17, 1
      %s259 = smul.addr %s258, 8
      %s260 = smul.addr %s259, 8
      %s261 = scalar_lea.vmem %s0, %s260
      %p262 = scmp.lt.s32.totalorder %s17, 1
      %s263 = scalar_select %p262, %s17, 1
      %s264 = smul.addr %s263, 8
      %s265 = smul.addr %s264, 8
      %s266 = scalar_lea.vmem %s3, %s265
      %p267 = scmp.lt.s32.totalorder %s17, 1
      %s268 = scalar_select %p267, %s17, 1
      %s269 = smul.addr %s268, 8
      %s270 = smul.addr %s269, 8
      %s271 = scalar_lea.vmem %s6, %s270
      %v272 = vld [vmem:[%s1] sm:$0x1]
      %v273 = vld [vmem:[%s2] sm:$0x1]
      %v274 = vld [vmem:[%s4] sm:$0x1]
      %v275 = vld [vmem:[%s5] sm:$0x1]
      %v276 = vld [vmem:[%s261] sm:$0xff]
      %v277 = vld [vmem:[%s261 + $0x8] sm:$0xff]
      %v278 = vld [vmem:[%s261 + $0x10] sm:$0xff]
      %v279 = vld [vmem:[%s261 + $0x18] sm:$0xff]
      %v280 = vld [vmem:[%s261 + $0x20] sm:$0xff]
      %v281 = vld [vmem:[%s261 + $0x28] sm:$0xff]
      %v282 = vld [vmem:[%s261 + $0x30] sm:$0xff]
      %v283 = vld [vmem:[%s261 + $0x38] sm:$0xff]
      %v285 = vlaneseq
      %v286 = vshrl.u32 %v285, 7
      %v287 = vsub.s32 0, %v286
      %v288 = vrot.slane %v272, %v287
      %v290 = vmul.f32 %v276, %v288
      %v291 = vmul.f32 %v277, %v288
      %v292 = vmul.f32 %v278, %v288
      %v293 = vmul.f32 %v279, %v288
      %v294 = vmul.f32 %v280, %v288
      %v295 = vmul.f32 %v281, %v288
      %v296 = vmul.f32 %v282, %v288
      %v297 = vmul.f32 %v283, %v288
      %v299 = vlaneseq
      %v300 = vshrl.u32 %v299, 7
      %v301 = vsub.s32 0, %v300
      %v302 = vrot.slane %v273, %v301
      %v304 = vadd.f32 %v290, %v302
      %v305 = vadd.f32 %v291, %v302
      %v306 = vadd.f32 %v292, %v302
      %v307 = vadd.f32 %v293, %v302
      %v308 = vadd.f32 %v294, %v302
      %v309 = vadd.f32 %v295, %v302
      %v310 = vadd.f32 %v296, %v302
      %v311 = vadd.f32 %v297, %v302
      %v312 = vld [vmem:[%s266] sm:$0xff]
      %v313 = vld [vmem:[%s266 + $0x8] sm:$0xff]
      %v314 = vld [vmem:[%s266 + $0x10] sm:$0xff]
      %v315 = vld [vmem:[%s266 + $0x18] sm:$0xff]
      %v316 = vld [vmem:[%s266 + $0x20] sm:$0xff]
      %v317 = vld [vmem:[%s266 + $0x28] sm:$0xff]
      %v318 = vld [vmem:[%s266 + $0x30] sm:$0xff]
      %v319 = vld [vmem:[%s266 + $0x38] sm:$0xff]
      %v321 = vlaneseq
      %v322 = vshrl.u32 %v321, 7
      %v323 = vsub.s32 0, %v322
      %v324 = vrot.slane %v274, %v323
      %v326 = vmul.f32 %v312, %v324
      %v327 = vmul.f32 %v313, %v324
      %v328 = vmul.f32 %v314, %v324
      %v329 = vmul.f32 %v315, %v324
      %v330 = vmul.f32 %v316, %v324
      %v331 = vmul.f32 %v317, %v324
      %v332 = vmul.f32 %v318, %v324
      %v333 = vmul.f32 %v319, %v324
      %v334 = vadd.f32 %v304, %v326
      %v335 = vadd.f32 %v305, %v327
      %v336 = vadd.f32 %v306, %v328
      %v337 = vadd.f32 %v307, %v329
      %v338 = vadd.f32 %v308, %v330
      %v339 = vadd.f32 %v309, %v331
      %v340 = vadd.f32 %v310, %v332
      %v341 = vadd.f32 %v311, %v333
      %v343 = vlaneseq
      %v344 = vshrl.u32 %v343, 7
      %v345 = vsub.s32 0, %v344
      %v346 = vrot.slane %v275, %v345
      %v348 = vadd.f32 %v334, %v346
      %v349 = vadd.f32 %v335, %v346
      %v350 = vadd.f32 %v336, %v346
      %v351 = vadd.f32 %v337, %v346
      %v352 = vadd.f32 %v338, %v346
      %v353 = vadd.f32 %v339, %v346
      %v354 = vadd.f32 %v340, %v346
      %v355 = vadd.f32 %v341, %v346
      %v356 = vmax.f32 %v348, 0.0
      %v357 = vmax.f32 %v349, 0.0
      %v358 = vmax.f32 %v350, 0.0
      %v359 = vmax.f32 %v351, 0.0
      %v360 = vmax.f32 %v352, 0.0
      %v361 = vmax.f32 %v353, 0.0
      %v362 = vmax.f32 %v354, 0.0
      %v363 = vmax.f32 %v355, 0.0
      %vm364 = vcmask 64512
      %365 = vst.msk [vmem:[%s271] sm:$0xff] %vm364, %v356
      %366 = vst.msk [vmem:[%s271 + $0x8] sm:$0xff] %vm364, %v357
      %367 = vst.msk [vmem:[%s271 + $0x10] sm:$0xff] %vm364, %v358
      %368 = vst.msk [vmem:[%s271 + $0x18] sm:$0xff] %vm364, %v359
      %369 = vst.msk [vmem:[%s271 + $0x20] sm:$0xff] %vm364, %v360
      %370 = vst.msk [vmem:[%s271 + $0x28] sm:$0xff] %vm364, %v361
      %371 = vst.msk [vmem:[%s271 + $0x30] sm:$0xff] %vm364, %v362
      %372 = vst.msk [vmem:[%s271 + $0x38] sm:$0xff] %vm364, %v363
      %p373 = scmp.lt.s32.totalorder %s17, 1
      %s374 = scalar_select %p373, %s17, 1
      %s375 = smul.addr %s374, 8
      %s376 = smul.addr %s375, 8
      %s377 = scalar_lea.vmem %s6, %s376
      // Predicated region
      $region45: #{_basic_block_forward.5} parent=43 // pred_check
        %p378 = pneg %p171
      $region46: #{_basic_block_forward.5} parent=43 // pred_check_branch
        %380 = sbr.rel (%p378) target = $region48
      $region47: #{_basic_block_forward.5} parent=43 // pred_region
        _
      $region48: #{_basic_block_forward.5} parent=43 // pred_fallthru
        _
    $region44: #{_basic_block_forward.5} parent=5 // pred_fallthru
      _
    %p381 = scmp.le.s32.totalorder 2, %s12
    // Predicated region
    $region49: #{_basic_block_forward.5} parent=5 // pred_check
      %p382 = pneg %p381
    $region50: #{_basic_block_forward.5} parent=5 // pred_check_branch
      %384 = sbr.rel (%p382) target = $region52
    $region51: #{_basic_block_forward.5} parent=5 // pred_region
      %s385 = ssub.s32 %s12, 2
      // Predicated region
      $region53: #{_basic_block_forward.5} parent=51 // pred_check
        %p386 = pneg %p177
      $region54: #{_basic_block_forward.5} parent=51 // pred_check_branch
        %388 = sbr.rel (%p386) target = $region56
      $region55: #{_basic_block_forward.5} parent=51 // pred_region
        %p389 = scmp.lt.s32.totalorder %s18, 1
        %s390 = scalar_select %p389, %s18, 1
        %s391 = smul.addr %s390, 8
        %s392 = smul.addr %s391, 8
        %s393 = scalar_lea.vmem %s6, %s392
      $region56: #{_basic_block_forward.5} parent=51 // pred_fallthru
        _
    $region52: #{_basic_block_forward.5} parent=5 // pred_fallthru
      _
  $region6: #{_basic_block_forward.5} parent=0 // loop_footer
    %s16 = sadd.s32 1, %s12
  $region7: #{_basic_block_forward.5} parent=0 // loop_footer_branch
    %11 = sbr.rel target = $region3
  $region8: #{_basic_block_forward.5} parent=0 // loop_exit
    _

// kernel: _basic_block_forward.4
$region0: #{_basic_block_forward.4}
  #allocation0 [shape = 'u32[]', space=smem, size = 0x4, offset = 0x4, fixed_abs, tag = 'smem constant byte address 0x4 - core index']
  #allocation1 [shape = 'u32[144,128]{1,0:T(1,128)}', space=vmem, size = 0x12000, scoped, tag = 'internal scratch']
  %s0 = inlined_call_operand.vmem [shape: f32[2,8,8,8], index: 0, kind: input, shape index: {}]
  %s1 = inlined_call_operand.vmem [shape: f32[1,8], index: 1, kind: input, shape index: {}]
  %s2 = inlined_call_operand.vmem [shape: f32[1,8], index: 2, kind: input, shape index: {}]
  %s3 = inlined_call_operand.vmem [shape: bf16[72,8], index: 3, kind: input, shape index: {}]
  %s4 = inlined_call_operand.vmem [shape: f32[2,8,8,8], index: 4, kind: output, shape index: {0}]
  %s5 = inlined_call_operand.vmem [shape: f32[2,2,8], index: 5, kind: output, shape index: {1}]
  %6 = xla_tuple %s4, %s5
  %s7 = sld [smem:[#allocation0]]
  $region57: #{_basic_block_forward.4} parent=0
    _
  %s9 = ssub.s32 1, %s7
  %s10 = scalar_select 0, %s9, %s7
  loop: start=0, step=1, limit=4
  $region2: #{_basic_block_forward.4} parent=0 // loop_pre_header
    _
  $region3: #{_basic_block_forward.4} parent=0 // loop_header
    %s12 = sphi 0, %s16
    %p13 = scmp.ge.s32.totalorder %s12, 4
    %s22 = sphi 0, %s24
    %s25 = sphi 0, %s22
    %s26 = sphi 0, %s25
    %s42 = sphi 0, %s26
    %s46 = sphi 0, %s46
    %s48 = sphi 0, %s46
    %s49 = sphi 0, %s48
    %s63 = sphi 0, %s49
    %s67 = sphi 0, %s67
    %s69 = sphi 0, %s67
    %s70 = sphi 0, %s69
    %s84 = sphi 0, %s70
    %s88 = sphi 0, %s88
    %s90 = sphi 0, %s88
    %s91 = sphi 0, %s90
    %s105 = sphi 0, %s91
    %s111 = sphi 0, %s113
    %s114 = sphi 0, %s111
    %s115 = sphi 0, %s114
    %s131 = sphi 0, %s115
    %s137 = sphi 0, %s139
    %s140 = sphi 0, %s137
    %s141 = sphi 0, %s140
    %s157 = sphi 0, %s141
  $region4: #{_basic_block_forward.4} parent=0 // loop_header_branch
    %15 = sbr.rel (%p13) target = $region8
  $region5: #{_basic_block_forward.4} parent=0 // loop_body
    %s17 = ssub.s32 %s12, 1
    %s18 = ssub.s32 %s12, 2
    %s19 = sadd.s32 %s12, 1
    %s20 = ssub.s32 %s12, %s19
    %p21 = scmp.eq.s32.totalorder %s20, 0
    %s23 = sadd.s32 %s22, 1
    %s24 = scalar_select %p21, %s22, %s23
    %p27 = pneg %p21
    %p28 = scmp.eq.s32.totalorder %s12, 1
    %p29 = por %p27, %p28
    %p30 = scmp.ne.s32.totalorder %s22, %s25
    %p31 = scmp.eq.s32.totalorder %s12, 0
    %p32 = por %p30, %p31
    %p33 = scmp.ne.s32.totalorder %s22, %s25
    %p34 = scmp.eq.s32.totalorder %s17, 1
    %p35 = por %p33, %p34
    %p36 = scmp.ne.s32.totalorder %s25, %s26
    %p37 = scmp.eq.s32.totalorder %s17, 0
    %p38 = por %p36, %p37
    %p39 = scmp.ne.s32.totalorder %s25, %s26
    %p40 = scmp.eq.s32.totalorder %s18, 1
    %p41 = por %p39, %p40
    %p43 = scmp.ne.s32.totalorder %s26, %s42
    %p44 = scmp.eq.s32.totalorder %s18, 0
    %p45 = por %p43, %p44
    %s47 = sadd.s32 %s46, 1
    %p50 = scmp.eq.s32.totalorder %s12, 1
    %p51 = scmp.ne.s32.totalorder %s46, %s48
    %p52 = scmp.eq.s32.totalorder %s12, 0
    %p53 = por %p51, %p52
    %p54 = scmp.ne.s32.totalorder %s46, %s48
    %p55 = scmp.eq.s32.totalorder %s17, 1
    %p56 = por %p54, %p55
    %p57 = scmp.ne.s32.totalorder %s48, %s49
    %p58 = scmp.eq.s32.totalorder %s17, 0
    %p59 = por %p57, %p58
    %p60 = scmp.ne.s32.totalorder %s48, %s49
    %p61 = scmp.eq.s32.totalorder %s18, 1
    %p62 = por %p60, %p61
    %p64 = scmp.ne.s32.totalorder %s49, %s63
    %p65 = scmp.eq.s32.totalorder %s18, 0
    %p66 = por %p64, %p65
    %s68 = sadd.s32 %s67, 1
    %p71 = scmp.eq.s32.totalorder %s12, 1
    %p72 = scmp.ne.s32.totalorder %s67, %s69
    %p73 = scmp.eq.s32.totalorder %s12, 0
    %p74 = por %p72, %p73
    %p75 = scmp.ne.s32.totalorder %s67, %s69
    %p76 = scmp.eq.s32.totalorder %s17, 1
    %p77 = por %p75, %p76
    %p78 = scmp.ne.s32.totalorder %s69, %s70
    %p79 = scmp.eq.s32.totalorder %s17, 0
    %p80 = por %p78, %p79
    %p81 = scmp.ne.s32.totalorder %s69, %s70
    %p82 = scmp.eq.s32.totalorder %s18, 1
    %p83 = por %p81, %p82
    %p85 = scmp.ne.s32.totalorder %s70, %s84
    %p86 = scmp.eq.s32.totalorder %s18, 0
    %p87 = por %p85, %p86
    %s89 = sadd.s32 %s88, 1
    %p92 = scmp.eq.s32.totalorder %s12, 1
    %p93 = scmp.ne.s32.totalorder %s88, %s90
    %p94 = scmp.eq.s32.totalorder %s12, 0
    %p95 = por %p93, %p94
    %p96 = scmp.ne.s32.totalorder %s88, %s90
    %p97 = scmp.eq.s32.totalorder %s17, 1
    %p98 = por %p96, %p97
    %p99 = scmp.ne.s32.totalorder %s90, %s91
    %p100 = scmp.eq.s32.totalorder %s17, 0
    %p101 = por %p99, %p100
    %p102 = scmp.ne.s32.totalorder %s90, %s91
    %p103 = scmp.eq.s32.totalorder %s18, 1
    %p104 = por %p102, %p103
    %p106 = scmp.ne.s32.totalorder %s91, %s105
    %p107 = scmp.eq.s32.totalorder %s18, 0
    %p108 = por %p106, %p107
    %s109 = ssub.s32 %s12, %s19
    %p110 = scmp.eq.s32.totalorder %s109, 0
    %s112 = sadd.s32 %s111, 1
    %s113 = scalar_select %p110, %s111, %s112
    %p116 = pneg %p110
    %p117 = scmp.eq.s32.totalorder %s12, 1
    %p118 = por %p116, %p117
    %p119 = scmp.ne.s32.totalorder %s111, %s114
    %p120 = scmp.eq.s32.totalorder %s12, 0
    %p121 = por %p119, %p120
    %p122 = scmp.ne.s32.totalorder %s111, %s114
    %p123 = scmp.eq.s32.totalorder %s17, 1
    %p124 = por %p122, %p123
    %p125 = scmp.ne.s32.totalorder %s114, %s115
    %p126 = scmp.eq.s32.totalorder %s17, 0
    %p127 = por %p125, %p126
    %p128 = scmp.ne.s32.totalorder %s114, %s115
    %p129 = scmp.eq.s32.totalorder %s18, 1
    %p130 = por %p128, %p129
    %p132 = scmp.ne.s32.totalorder %s115, %s131
    %p133 = scmp.eq.s32.totalorder %s18, 0
    %p134 = por %p132, %p133
    %s135 = ssub.s32 %s12, %s19
    %p136 = scmp.eq.s32.totalorder %s135, 0
    %s138 = sadd.s32 %s137, 1
    %s139 = scalar_select %p136, %s137, %s138
    %p142 = pneg %p136
    %p143 = scmp.eq.s32.totalorder %s12, 1
    %p144 = por %p142, %p143
    %p145 = scmp.ne.s32.totalorder %s137, %s140
    %p146 = scmp.eq.s32.totalorder %s12, 0
    %p147 = por %p145, %p146
    %p148 = scmp.ne.s32.totalorder %s137, %s140
    %p149 = scmp.eq.s32.totalorder %s17, 1
    %p150 = por %p148, %p149
    %p151 = scmp.ne.s32.totalorder %s140, %s141
    %p152 = scmp.eq.s32.totalorder %s17, 0
    %p153 = por %p151, %p152
    %p154 = scmp.ne.s32.totalorder %s140, %s141
    %p155 = scmp.eq.s32.totalorder %s18, 1
    %p156 = por %p154, %p155
    %p158 = scmp.ne.s32.totalorder %s141, %s157
    %p159 = scmp.eq.s32.totalorder %s18, 0
    %p160 = por %p158, %p159
    %p161 = scmp.le.s32.totalorder 1, %s12
    %p162 = scmp.lt.s32.totalorder %s12, 3
    %p163 = pnand %p161, %p162
    %p164 = pneg %p163
    // Predicated region
    $region9: #{_basic_block_forward.4} parent=5 // pred_check
      _
    $region10: #{_basic_block_forward.4} parent=5 // pred_check_branch
      %166 = sbr.rel (%p163) target = $region12
    $region11: #{_basic_block_forward.4} parent=5 // pred_region
      %s167 = ssub.s32 %s12, 1
      // Predicated region
      $region13: #{_basic_block_forward.4} parent=11 // pred_check
        %p168 = pneg %p59
      $region14: #{_basic_block_forward.4} parent=11 // pred_check_branch
        %170 = sbr.rel (%p168) target = $region16
      $region15: #{_basic_block_forward.4} parent=11 // pred_region
        _
      $region16: #{_basic_block_forward.4} parent=11 // pred_fallthru
        _
      // Predicated region
      $region17: #{_basic_block_forward.4} parent=11 // pred_check
        %p171 = pneg %p80
      $region18: #{_basic_block_forward.4} parent=11 // pred_check_branch
        %173 = sbr.rel (%p171) target = $region20
      $region19: #{_basic_block_forward.4} parent=11 // pred_region
        _
      $region20: #{_basic_block_forward.4} parent=11 // pred_fallthru
        _
      // Predicated region
      $region21: #{_basic_block_forward.4} parent=11 // pred_check
        %p174 = pneg %p101
      $region22: #{_basic_block_forward.4} parent=11 // pred_check_branch
        %176 = sbr.rel (%p174) target = $region24
      $region23: #{_basic_block_forward.4} parent=11 // pred_region
        _
      $region24: #{_basic_block_forward.4} parent=11 // pred_fallthru
        _
    $region12: #{_basic_block_forward.4} parent=5 // pred_fallthru
      _
    %p177 = scmp.lt.s32.totalorder %s12, 2
    // Predicated region
    $region25: #{_basic_block_forward.4} parent=5 // pred_check
      %p178 = pneg %p177
    $region26: #{_basic_block_forward.4} parent=5 // pred_check_branch
      %180 = sbr.rel (%p178) target = $region28
    $region27: #{_basic_block_forward.4} parent=5 // pred_region
      // Predicated region
      $region29: #{_basic_block_forward.4} parent=27 // pred_check
        %p181 = pneg %p32
      $region30: #{_basic_block_forward.4} parent=27 // pred_check_branch
        %183 = sbr.rel (%p181) target = $region32
      $region31: #{_basic_block_forward.4} parent=27 // pred_region
        %p184 = scmp.lt.s32.totalorder %s12, 1
        %s185 = scalar_select %p184, %s12, 1
        %s186 = smul.addr %s185, 8
        %s187 = smul.addr %s186, 8
        %s188 = scalar_lea.vmem %s0, %s187
      $region32: #{_basic_block_forward.4} parent=27 // pred_fallthru
        _
    $region28: #{_basic_block_forward.4} parent=5 // pred_fallthru
      _
    %p189 = scmp.le.s32.totalorder 1, %s12
    %p190 = scmp.lt.s32.totalorder %s12, 3
    %p191 = pnand %p189, %p190
    %p192 = pneg %p191
    // Predicated region
    $region33: #{_basic_block_forward.4} parent=5 // pred_check
      _
    $region34: #{_basic_block_forward.4} parent=5 // pred_check_branch
      %194 = sbr.rel (%p191) target = $region36
    $region35: #{_basic_block_forward.4} parent=5 // pred_region
      %s195 = ssub.s32 %s12, 1
      %p196 = scmp.lt.s32.totalorder %s17, 1
      %s197 = scalar_select %p196, %s17, 1
      %s198 = smul.addr %s197, 8
      %s199 = smul.addr %s198, 8
      %s200 = scalar_lea.vmem %s0, %s199
      %p201 = pneg %p38
      %p202 = pneg %p35
      %p203 = pneg %p59
      %p204 = pneg %p56
      %p205 = pneg %p80
      %p206 = pneg %p77
      %p207 = pneg %p101
      %p208 = pneg %p98
      %p209 = pneg %p127
      %p210 = pneg %p124
      %p211 = scmp.lt.s32.totalorder %s17, 1
      %s212 = scalar_select %p211, %s17, 1
      %s213 = smul.addr %s212, 8
      %s214 = smul.addr %s213, 8
      %s215 = scalar_lea.vmem %s4, %s214
      %p216 = pneg %p153
      %p217 = pneg %p150
      %p218 = scmp.lt.s32.totalorder %s17, 1
      %s219 = scalar_select %p218, %s17, 1
      %s220 = smul.addr %s219, 2
      %s221 = scalar_lea.vmem %s5, %s220
      %p222 = scmp.lt.s32.totalorder %s17, 1
      %s223 = scalar_select %p222, %s17, 1
      %s224 = smul.addr %s223, 8
      %s225 = smul.addr %s224, 8
      %s226 = scalar_lea.vmem %s0, %s225
      %p227 = scmp.lt.s32.totalorder %s17, 1
      %s228 = scalar_select %p227, %s17, 1
      %s229 = smul.addr %s228, 8
      %s230 = smul.addr %s229, 8
      %s231 = scalar_lea.vmem %s4, %s230
      %p232 = scmp.lt.s32.totalorder %s17, 1
      %s233 = scalar_select %p232, %s17, 1
      %s234 = smul.addr %s233, 2
      %s235 = scalar_lea.vmem %s5, %s234
      %v237 = vld [vmem:[%s1] sm:$0x1]
      %v238 = vld [vmem:[%s2] sm:$0x1]
      %v239 = vld [vmem:[%s226] sm:$0xff]
      %v240 = vld [vmem:[%s226 + $0x8] sm:$0xff]
      %v241 = vld [vmem:[%s226 + $0x10] sm:$0xff]
      %v242 = vld [vmem:[%s226 + $0x18] sm:$0xff]
      %v243 = vld [vmem:[%s226 + $0x20] sm:$0xff]
      %v244 = vld [vmem:[%s226 + $0x28] sm:$0xff]
      %v245 = vld [vmem:[%s226 + $0x30] sm:$0xff]
      %v246 = vld [vmem:[%s226 + $0x38] sm:$0xff]
      %v248 = vlaneseq
      %v249 = vshrl.u32 %v248, 7
      %v250 = vsub.s32 0, %v249
      %v251 = vrot.slane %v237, %v250
      %v253 = vmul.f32 %v239, %v251
      %v254 = vmul.f32 %v240, %v251
      %v255 = vmul.f32 %v241, %v251
      %v256 = vmul.f32 %v242, %v251
      %v257 = vmul.f32 %v243, %v251
      %v258 = vmul.f32 %v244, %v251
      %v259 = vmul.f32 %v245, %v251
      %v260 = vmul.f32 %v246, %v251
      %v262 = vlaneseq
      %v263 = vshrl.u32 %v262, 7
      %v264 = vsub.s32 0, %v263
      %v265 = vrot.slane %v238, %v264
      %v267 = vadd.f32 %v253, %v265
      %v268 = vadd.f32 %v254, %v265
      %v269 = vadd.f32 %v255, %v265
      %v270 = vadd.f32 %v256, %v265
      %v271 = vadd.f32 %v257, %v265
      %v272 = vadd.f32 %v258, %v265
      %v273 = vadd.f32 %v259, %v265
      %v274 = vadd.f32 %v260, %v265
      %v275 = vmax.f32 %v267, 0.0
      %v276 = vmax.f32 %v268, 0.0
      %v277 = vmax.f32 %v269, 0.0
      %v278 = vmax.f32 %v270, 0.0
      %v279 = vmax.f32 %v271, 0.0
      %v280 = vmax.f32 %v272, 0.0
      %v281 = vmax.f32 %v273, 0.0
      %v282 = vmax.f32 %v274, 0.0
      %v283 = vpack.c.bf16 %v275, %v275
      %v284 = vpack.c.bf16 %v276, %v276
      %v285 = vpack.c.bf16 %v277, %v277
      %v286 = vpack.c.bf16 %v278, %v278
      %v287 = vpack.c.bf16 %v279, %v279
      %v288 = vpack.c.bf16 %v280, %v280
      %v289 = vpack.c.bf16 %v281, %v281
      %v290 = vpack.c.bf16 %v282, %v282
      %v292 = vshrl.u32 0, 16
      %v294 = vrot.slane %v292, 7
      %v295 = vshll.u32 0, 16
      %v297 = vor.u32 %v294, %v295
      %v299 = vshrl.u32 %v283, 16
      %v301 = vrot.slane %v299, 7
      %v302 = vshll.u32 %v283, 16
      %v304 = vor.u32 %v301, %v302
      %v306 = vshrl.u32 %v284, 16
      %v308 = vrot.slane %v306, 7
      %v309 = vshll.u32 %v284, 16
      %v311 = vor.u32 %v308, %v309
      %v313 = vshrl.u32 %v285, 16
      %v315 = vrot.slane %v313, 7
      %v316 = vshll.u32 %v285, 16
      %v318 = vor.u32 %v315, %v316
      %v320 = vshrl.u32 %v286, 16
      %v322 = vrot.slane %v320, 7
      %v323 = vshll.u32 %v286, 16
      %v325 = vor.u32 %v322, %v323
      %v327 = vshrl.u32 %v287, 16
      %v329 = vrot.slane %v327, 7
      %v330 = vshll.u32 %v287, 16
      %v332 = vor.u32 %v329, %v330
      %v334 = vshrl.u32 %v288, 16
      %v336 = vrot.slane %v334, 7
      %v337 = vshll.u32 %v288, 16
      %v339 = vor.u32 %v336, %v337
      %v341 = vshrl.u32 %v289, 16
      %v343 = vrot.slane %v341, 7
      %v344 = vshll.u32 %v289, 16
      %v346 = vor.u32 %v343, %v344
      %v348 = vshrl.u32 %v290, 16
      %v350 = vrot.slane %v348, 7
      %v351 = vshll.u32 %v290, 16
      %v353 = vor.u32 %v350, %v351
      %vm363 = vcmask 1040384
      %vm364 = vsmask.f32 256
      %vm365 = vmand %vm363, %vm364
      %v366 = vsel %vm365, 0, %v297
      %v367 = vsel %vm365, 0, %v304
      %v368 = vsel %vm365, 0, %v311
      %v369 = vsel %vm365, 0, %v318
      %v370 = vsel %vm365, 0, %v325
      %v371 = vsel %vm365, 0, %v332
      %v372 = vsel %vm365, 0, %v339
      %v373 = vsel %vm365, 0, %v346
      %v374 = vsel %vm365, 0, %v353
      %vm375 = vcmask 1044480
      %vm376 = vsmask.f32 4352
      %vm377 = vmand %vm375, %vm376
      %v378 = vsel %vm377, %v366, 0
      %v379 = vsel %vm377, %v367, 0
      %v380 = vsel %vm377, %v368, 0
      %v381 = vsel %vm377, %v369, 0
      %v382 = vsel %vm377, %v370, 0
      %v383 = vsel %vm377, %v371, 0
      %v384 = vsel %vm377, %v372, 0
      %v385 = vsel %vm377, %v373, 0
      %v386 = vsel %vm377, %v374, 0
      %v387 = vld [vmem:[%s3] sm:$0xf]
      %v388 = vld [vmem:[%s3 + $0x4] sm:$0xf]
      %v389 = vld [vmem:[%s3 + $0x8] sm:$0xf]
      %v390 = vld [vmem:[%s3 + $0xc] sm:$0xf]
      %v391 = vld [vmem:[%s3 + $0x10] sm:$0xf]
      %v392 = vld [vmem:[%s3 + $0x14] sm:$0xf]
      %v393 = vld [vmem:[%s3 + $0x18] sm:$0xf]
      %v394 = vld [vmem:[%s3 + $0x1c] sm:$0xf]
      %v395 = vld [vmem:[%s3 + $0x20] sm:$0xf]
      %v397 = vshrl.u32 %v378, 16
      %v399 = vshll.u32 %v378, 16
      %v401 = vrot.slane %v399, 1
      %v402 = vor.u32 %v397, %v401
      %v404 = vshrl.u32 %v379, 16
      %v406 = vshll.u32 %v379, 16
      %v408 = vrot.slane %v406, 1
      %v409 = vor.u32 %v404, %v408
      %v411 = vshrl.u32 %v380, 16
      %v413 = vshll.u32 %v380, 16
      %v415 = vrot.slane %v413, 1
      %v416 = vor.u32 %v411, %v415
      %v418 = vshrl.u32 %v381, 16
      %v420 = vshll.u32 %v381, 16
      %v422 = vrot.slane %v420, 1
      %v423 = vor.u32 %v418, %v422
      %v425 = vshrl.u32 %v382, 16
      %v427 = vshll.u32 %v382, 16
      %v429 = vrot.slane %v427, 1
      %v430 = vor.u32 %v425, %v429
      %v432 = vshrl.u32 %v383, 16
      %v434 = vshll.u32 %v383, 16
      %v436 = vrot.slane %v434, 1
      %v437 = vor.u32 %v432, %v436
      %v439 = vshrl.u32 %v384, 16
      %v441 = vshll.u32 %v384, 16
      %v443 = vrot.slane %v441, 1
      %v444 = vor.u32 %v439, %v443
      %v446 = vshrl.u32 %v385, 16
      %v448 = vshll.u32 %v385, 16
      %v450 = vrot.slane %v448, 1
      %v451 = vor.u32 %v446, %v450
      %452 = vrot.lane.b32.xlu0 %v402, 8
      %v453 = vpop.permute.xlu0 %452
      %454 = vrot.lane.b32.xlu0 %v409, 8
      %v455 = vpop.permute.xlu0 %454
      %456 = vrot.lane.b32.xlu0 %v416, 8
      %v457 = vpop.permute.xlu0 %456
      %458 = vrot.lane.b32.xlu0 %v423, 8
      %v459 = vpop.permute.xlu0 %458
      %460 = vrot.lane.b32.xlu0 %v430, 8
      %v461 = vpop.permute.xlu0 %460
      %462 = vrot.lane.b32.xlu0 %v437, 8
      %v463 = vpop.permute.xlu0 %462
      %464 = vrot.lane.b32.xlu0 %v444, 8
      %v465 = vpop.permute.xlu0 %464
      %466 = vrot.lane.b32.xlu0 %v451, 8
      %v467 = vpop.permute.xlu0 %466
      %v476 = vrot.slane %v378, 1
      %v477 = vrot.slane %v379, 1
      %v478 = vrot.slane %v380, 1
      %v479 = vrot.slane %v381, 1
      %v480 = vrot.slane %v382, 1
      %v481 = vrot.slane %v383, 1
      %v482 = vrot.slane %v384, 1
      %v483 = vrot.slane %v385, 1
      %484 = vrot.lane.b32.xlu0 %v476, 16
      %v485 = vpop.permute.xlu0 %484
      %486 = vrot.lane.b32.xlu0 %v477, 16
      %v487 = vpop.permute.xlu0 %486
      %488 = vrot.lane.b32.xlu0 %v478, 16
      %v489 = vpop.permute.xlu0 %488
      %490 = vrot.lane.b32.xlu0 %v479, 16
      %v491 = vpop.permute.xlu0 %490
      %492 = vrot.lane.b32.xlu0 %v480, 16
      %v493 = vpop.permute.xlu0 %492
      %494 = vrot.lane.b32.xlu0 %v481, 16
      %v495 = vpop.permute.xlu0 %494
      %496 = vrot.lane.b32.xlu0 %v482, 16
      %v497 = vpop.permute.xlu0 %496
      %498 = vrot.lane.b32.xlu0 %v483, 16
      %v499 = vpop.permute.xlu0 %498
      %501 = vrot.lane.b32.xlu0 %v379, 24
      %v502 = vpop.permute.xlu0 %501
      %503 = vrot.lane.b32.xlu0 %v380, 24
      %v504 = vpop.permute.xlu0 %503
      %505 = vrot.lane.b32.xlu0 %v381, 24
      %v506 = vpop.permute.xlu0 %505
      %507 = vrot.lane.b32.xlu0 %v382, 24
      %v508 = vpop.permute.xlu0 %507
      %509 = vrot.lane.b32.xlu0 %v383, 24
      %v510 = vpop.permute.xlu0 %509
      %511 = vrot.lane.b32.xlu0 %v384, 24
      %v512 = vpop.permute.xlu0 %511
      %513 = vrot.lane.b32.xlu0 %v385, 24
      %v514 = vpop.permute.xlu0 %513
      %515 = vrot.lane.b32.xlu0 %v386, 24
      %v516 = vpop.permute.xlu0 %515
      %v518 = vshrl.u32 %v386, 16
      %v520 = vshll.u32 %v386, 16
      %v522 = vrot.slane %v520, 1
      %v523 = vor.u32 %v518, %v522
      %524 = vrot.lane.b32.xlu0 %v409, 32
      %v525 = vpop.permute.xlu0 %524
      %526 = vrot.lane.b32.xlu0 %v416, 32
      %v527 = vpop.permute.xlu0 %526
      %528 = vrot.lane.b32.xlu0 %v423, 32
      %v529 = vpop.permute.xlu0 %528
      %530 = vrot.lane.b32.xlu0 %v430, 32
      %v531 = vpop.permute.xlu0 %530
      %532 = vrot.lane.b32.xlu0 %v437, 32
      %v533 = vpop.permute.xlu0 %532
      %534 = vrot.lane.b32.xlu0 %v444, 32
      %v535 = vpop.permute.xlu0 %534
      %536 = vrot.lane.b32.xlu0 %v451, 32
      %v537 = vpop.permute.xlu0 %536
      %538 = vrot.lane.b32.xlu0 %v523, 32
      %v539 = vpop.permute.xlu0 %538
      %v540 = vrot.slane %v386, 1
      %541 = vrot.lane.b32.xlu0 %v477, 40
      %v542 = vpop.permute.xlu0 %541
      %543 = vrot.lane.b32.xlu0 %v478, 40
      %v544 = vpop.permute.xlu0 %543
      %545 = vrot.lane.b32.xlu0 %v479, 40
      %v546 = vpop.permute.xlu0 %545
      %547 = vrot.lane.b32.xlu0 %v480, 40
      %v548 = vpop.permute.xlu0 %547
      %549 = vrot.lane.b32.xlu0 %v481, 40
      %v550 = vpop.permute.xlu0 %549
      %551 = vrot.lane.b32.xlu0 %v482, 40
      %v552 = vpop.permute.xlu0 %551
      %553 = vrot.lane.b32.xlu0 %v483, 40
      %v554 = vpop.permute.xlu0 %553
      %555 = vrot.lane.b32.xlu0 %v540, 40
      %v556 = vpop.permute.xlu0 %555
      %557 = vrot.lane.b32.xlu0 %v380, 48
      %v558 = vpop.permute.xlu0 %557
      %559 = vrot.lane.b32.xlu0 %v381, 48
      %v560 = vpop.permute.xlu0 %559
      %561 = vrot.lane.b32.xlu0 %v382, 48
      %v562 = vpop.permute.xlu0 %561
      %563 = vrot.lane.b32.xlu0 %v383, 48
      %v564 = vpop.permute.xlu0 %563
      %565 = vrot.lane.b32.xlu0 %v384, 48
      %v566 = vpop.permute.xlu0 %565
      %567 = vrot.lane.b32.xlu0 %v385, 48
      %v568 = vpop.permute.xlu0 %567
      %569 = vrot.lane.b32.xlu0 %v386, 48
      %v570 = vpop.permute.xlu0 %569
      %571 = vrot.lane.b32.xlu0 %v378, 48
      %v572 = vpop.permute.xlu0 %571
      %573 = vrot.lane.b32.xlu0 %v416, 56
      %v574 = vpop.permute.xlu0 %573
      %575 = vrot.lane.b32.xlu0 %v423, 56
      %v576 = vpop.permute.xlu0 %575
      %577 = vrot.lane.b32.xlu0 %v430, 56
      %v578 = vpop.permute.xlu0 %577
      %579 = vrot.lane.b32.xlu0 %v437, 56
      %v580 = vpop.permute.xlu0 %579
      %581 = vrot.lane.b32.xlu0 %v444, 56
      %v582 = vpop.permute.xlu0 %581
      %583 = vrot.lane.b32.xlu0 %v451, 56
      %v584 = vpop.permute.xlu0 %583
      %585 = vrot.lane.b32.xlu0 %v523, 56
      %v586 = vpop.permute.xlu0 %585
      %587 = vrot.lane.b32.xlu0 %v402, 56
      %v588 = vpop.permute.xlu0 %587
      %589 = vrot.lane.b32.xlu0 %v478, 64
      %v590 = vpop.permute.xlu0 %589
      %591 = vrot.lane.b32.xlu0 %v479, 64
      %v592 = vpop.permute.xlu0 %591
      %593 = vrot.lane.b32.xlu0 %v480, 64
      %v594 = vpop.permute.xlu0 %593
      %595 = vrot.lane.b32.xlu0 %v481, 64
      %v596 = vpop.permute.xlu0 %595
      %597 = vrot.lane.b32.xlu0 %v482, 64
      %v598 = vpop.permute.xlu0 %597
      %599 = vrot.lane.b32.xlu0 %v483, 64
      %v600 = vpop.permute.xlu0 %599
      %601 = vrot.lane.b32.xlu0 %v540, 64
      %v602 = vpop.permute.xlu0 %601
      %603 = vrot.lane.b32.xlu0 %v476, 64
      %v604 = vpop.permute.xlu0 %603
      %vm605 = vcmask 64512
      %v607 = vsel %vm605, %v378, %v453
      %v609 = vsel %vm605, %v379, %v455
      %v611 = vsel %vm605, %v380, %v457
      %v613 = vsel %vm605, %v381, %v459
      %v615 = vsel %vm605, %v382, %v461
      %v617 = vsel %vm605, %v383, %v463
      %v619 = vsel %vm605, %v384, %v465
      %v621 = vsel %vm605, %v385, %v467
      %vm622 = vcmask 130048
      %v624 = vsel %vm622, %v607, %v485
      %v626 = vsel %vm622, %v609, %v487
      %v628 = vsel %vm622, %v611, %v489
      %v630 = vsel %vm622, %v613, %v491
      %v632 = vsel %vm622, %v615, %v493
      %v634 = vsel %vm622, %v617, %v495
      %v636 = vsel %vm622, %v619, %v497
      %v638 = vsel %vm622, %v621, %v499
      %vm639 = vcmask 195584
      %v641 = vsel %vm639, %v624, %v502
      %v643 = vsel %vm639, %v626, %v504
      %v645 = vsel %vm639, %v628, %v506
      %v647 = vsel %vm639, %v630, %v508
      %v649 = vsel %vm639, %v632, %v510
      %v651 = vsel %vm639, %v634, %v512
      %v653 = vsel %vm639, %v636, %v514
      %v655 = vsel %vm639, %v638, %v516
      %vm656 = vcmask 261120
      %v658 = vsel %vm656, %v641, %v525
      %v660 = vsel %vm656, %v643, %v527
      %v662 = vsel %vm656, %v645, %v529
      %v664 = vsel %vm656, %v647, %v531
      %v666 = vsel %vm656, %v649, %v533
      %v668 = vsel %vm656, %v651, %v535
      %v670 = vsel %vm656, %v653, %v537
      %v672 = vsel %vm656, %v655, %v539
      %vm673 = vcmask 326656
      %v675 = vsel %vm673, %v658, %v542
      %v677 = vsel %vm673, %v660, %v544
      %v679 = vsel %vm673, %v662, %v546
      %v681 = vsel %vm673, %v664, %v548
      %v683 = vsel %vm673, %v666, %v550
      %v685 = vsel %vm673, %v668, %v552
      %v687 = vsel %vm673, %v670, %v554
      %v689 = vsel %vm673, %v672, %v556
      %vm690 = vcmask 392192
      %v692 = vsel %vm690, %v675, %v558
      %v694 = vsel %vm690, %v677, %v560
      %v696 = vsel %vm690, %v679, %v562
      %v698 = vsel %vm690, %v681, %v564
      %v700 = vsel %vm690, %v683, %v566
      %v702 = vsel %vm690, %v685, %v568
      %v704 = vsel %vm690, %v687, %v570
      %v706 = vsel %vm690, %v689, %v572
      %vm707 = vcmask 457728
      %v709 = vsel %vm707, %v692, %v574
      %v711 = vsel %vm707, %v694, %v576
      %v713 = vsel %vm707, %v696, %v578
      %v715 = vsel %vm707, %v698, %v580
      %v717 = vsel %vm707, %v700, %v582
      %v719 = vsel %vm707, %v702, %v584
      %v721 = vsel %vm707, %v704, %v586
      %v723 = vsel %vm707, %v706, %v588
      %vm724 = vcmask 523264
      %v726 = vsel %vm724, %v709, %v590
      %v728 = vsel %vm724, %v711, %v592
      %v730 = vsel %vm724, %v713, %v594
      %v732 = vsel %vm724, %v715, %v596
      %v734 = vsel %vm724, %v717, %v598
      %v736 = vsel %vm724, %v719, %v600
      %v738 = vsel %vm724, %v721, %v602
      %v740 = vsel %vm724, %v723, %v604
      %v749 = vunpack.c.l.b16 %v726
      %v750 = vunpack.c.l.b16 %v728
      %v751 = vunpack.c.l.b16 %v730
      %v752 = vunpack.c.l.b16 %v732
      %v753 = vunpack.c.l.b16 %v734
      %v754 = vunpack.c.l.b16 %v736
      %v755 = vunpack.c.l.b16 %v738
      %v756 = vunpack.c.l.b16 %v740
      %v757 = vpack.c.b16 %v750, %v749
      %v758 = vpack.c.b16 %v752, %v751
      %v759 = vpack.c.b16 %v754, %v753
      %v760 = vpack.c.b16 %v756, %v755
      %v770 = vunpack.c.l.b16 %v387
      %v771 = vunpack.c.l.b16 %v388
      %v772 = vunpack.c.l.b16 %v389
      %v773 = vunpack.c.l.b16 %v390
      %v774 = vunpack.c.l.b16 %v391
      %v775 = vunpack.c.l.b16 %v392
      %v776 = vunpack.c.l.b16 %v393
      %v777 = vunpack.c.l.b16 %v394
      %v778 = vunpack.c.l.b16 %v395
      %v779 = vpack.c.b16 %v771, %v770
      %v780 = vpack.c.b16 %v773, %v772
      %v781 = vpack.c.b16 %v775, %v774
      %v782 = vpack.c.b16 %v777, %v776
      %v783 = vpack.c.b16 %v778, %v778
      %vm788 = vcmask 588800
      %v790 = vsel %vm788, %v757, 0
      %v793 = vsel %vm788, %v758, 0
      %v796 = vsel %vm788, %v759, 0
      %v799 = vsel %vm788, %v760, 0
      %vm801 = vcmask 1043456
      %v803 = vsel %vm801, %v783, 0
      %805 = vmatprep.subr.bf16.mxu0 0
      %806 = vmatpush1.bf16.msra.mxu0 %v779
      %807 = vmatprep.subr.bf16.mxu0 0
      %808 = vmatpush1.bf16.msra.mxu0 %v780
      %809 = vmatprep.subr.bf16.mxu0 0
      %810 = vmatpush1.bf16.msra.mxu0 %v781
      %811 = vmatprep.subr.bf16.mxu0 0
      %812 = vmatpush1.bf16.msra.mxu0 %v782
      %813 = vmatprep.subr.bf16.mxu0 0
      %814 = vmatpush1.bf16.msra.mxu0 %v803
      %815 = vmatprep.subr.bf16.mxu0 0
      %816 = vmatpush1.bf16.msra.mxu0 0
      %817 = vmatprep.subr.bf16.mxu0 0
      %818 = vmatpush1.bf16.msra.mxu0 0
      %819 = vmatprep.subr.bf16.mxu0 0
      %820 = vmatpush1.bf16.msra.mxu0 0
      %821 = vmatprep.subr.bf16.mxu0 0
      %822 = vmatpush1.bf16.msra.mxu0 0
      %823 = vmatprep.subr.bf16.mxu0 0
      %824 = vmatpush1.bf16.msra.mxu0 0
      %825 = vmatprep.subr.bf16.mxu0 0
      %826 = vmatpush1.bf16.msra.mxu0 0
      %827 = vmatprep.subr.bf16.mxu0 0
      %828 = vmatpush1.bf16.msra.mxu0 0
      %829 = vmatprep.subr.bf16.mxu0 0
      %830 = vmatpush1.bf16.msra.mxu0 0
      %831 = vmatprep.subr.bf16.mxu0 0
      %832 = vmatpush1.bf16.msra.mxu0 0
      %833 = vmatprep.subr.bf16.mxu0 0
      %834 = vmatpush1.bf16.msra.mxu0 0
      %835 = vmatprep.subr.bf16.mxu0 0
      %836 = vmatpush1.bf16.msra.mxu0 0
      %837 = vmatprep.mubr.bf16.mxu0 0
      %838 = vmatmul.mubr.bf16.gmra.mrb[0].mxu0 %v790
      %v839 = vpop.f32.mrb[0].mxu0
      %v840 = vadd.f32 0.0, %v839
      %v841 = vpop.f32.mrb[0].mxu0
      %v842 = vpop.f32.mrb[0].mxu0
      %v843 = vadd.f32 0.0, %v842
      %v844 = vpop.f32.mrb[0].mxu0
      %845 = vmatprep.mubr.bf16.mxu0 0
      %846 = vmatmul.mubr.bf16.gmra.mrb[0].mxu0 %v793
      %v847 = vpop.f32.mrb[0].mxu0
      %v848 = vadd.f32 0.0, %v847
      %v849 = vpop.f32.mrb[0].mxu0
      %v850 = vpop.f32.mrb[0].mxu0
      %v851 = vadd.f32 0.0, %v850
      %v852 = vpop.f32.mrb[0].mxu0
      %853 = vmatprep.mubr.bf16.mxu0 0
      %854 = vmatmul.mubr.bf16.gmra.mrb[0].mxu0 %v796
      %v855 = vpop.f32.mrb[0].mxu0
      %v856 = vadd.f32 0.0, %v855
      %v857 = vpop.f32.mrb[0].mxu0
      %v858 = vpop.f32.mrb[0].mxu0
      %v859 = vadd.f32 0.0, %v858
      %v860 = vpop.f32.mrb[0].mxu0
      %861 = vmatprep.mubr.bf16.mxu0 0
      %862 = vmatmul.mubr.bf16.gmra.mrb[0].mxu0 %v799
      %v863 = vpop.f32.mrb[0].mxu0
      %v864 = vadd.f32 0.0, %v863
      %v865 = vpop.f32.mrb[0].mxu0
      %v866 = vpop.f32.mrb[0].mxu0
      %v867 = vadd.f32 0.0, %v866
      %v868 = vpop.f32.mrb[0].mxu0
      %869 = vdwg.mxu0
      %870 = vst.msk [vmem:[%s231] sm:$0xff] %vm605, %v840
      %871 = vst.msk [vmem:[%s231 + $0x8] sm:$0xff] %vm605, %v843
      %872 = vst.msk [vmem:[%s231 + $0x10] sm:$0xff] %vm605, %v848
      %873 = vst.msk [vmem:[%s231 + $0x18] sm:$0xff] %vm605, %v851
      %874 = vst.msk [vmem:[%s231 + $0x20] sm:$0xff] %vm605, %v856
      %875 = vst.msk [vmem:[%s231 + $0x28] sm:$0xff] %vm605, %v859
      %876 = vst.msk [vmem:[%s231 + $0x30] sm:$0xff] %vm605, %v864
      %877 = vst.msk [vmem:[%s231 + $0x38] sm:$0xff] %vm605, %v867
      %v878 = vsel %vm605, %v840, 0.0
      %v879 = vsel %vm605, %v843, 0.0
      %v880 = vadd.f32 %v878, %v879
      %v881 = vsel %vm605, %v848, 0.0
      %v882 = vadd.f32 %v880, %v881
      %v883 = vsel %vm605, %v851, 0.0
      %v884 = vadd.f32 %v882, %v883
      %v885 = vsel %vm605, %v856, 0.0
      %v886 = vadd.f32 %v884, %v885
      %v887 = vsel %vm605, %v859, 0.0
      %v888 = vadd.f32 %v886, %v887
      %v889 = vsel %vm605, %v864, 0.0
      %v890 = vadd.f32 %v888, %v889
      %v891 = vsel %vm605, %v867, 0.0
      %v892 = vadd.f32 %v890, %v891
      %v893 = vrot.slane %v892, 4
      %v894 = vadd.f32 %v892, %v893
      %v895 = vrot.slane %v894, 2
      %v896 = vadd.f32 %v894, %v895
      %v897 = vrot.slane %v896, 1
      %v898 = vadd.f32 %v896, %v897
      %v899 = vmul.f32 %v840, %v840
      %v900 = vmul.f32 %v843, %v843
      %v901 = vmul.f32 %v848, %v848
      %v902 = vmul.f32 %v851, %v851
      %v903 = vmul.f32 %v856, %v856
      %v904 = vmul.f32 %v859, %v859
      %v905 = vmul.f32 %v864, %v864
      %v906 = vmul.f32 %v867, %v867
      %v907 = vsel %vm605, %v899, 0.0
      %v908 = vsel %vm605, %v900, 0.0
      %v909 = vadd.f32 %v907, %v908
      %v910 = vsel %vm605, %v901, 0.0
      %v911 = vadd.f32 %v909, %v910
      %v912 = vsel %vm605, %v902, 0.0
      %v913 = vadd.f32 %v911, %v912
      %v914 = vsel %vm605, %v903, 0.0
      %v915 = vadd.f32 %v913, %v914
      %v916 = vsel %vm605, %v904, 0.0
      %v917 = vadd.f32 %v915, %v916
      %v918 = vsel %vm605, %v905, 0.0
      %v919 = vadd.f32 %v917, %v918
      %v920 = vsel %vm605, %v906, 0.0
      %v921 = vadd.f32 %v919, %v920
      %v922 = vrot.slane %v921, 4
      %v923 = vadd.f32 %v921, %v922
      %v924 = vrot.slane %v923, 2
      %v925 = vadd.f32 %v923, %v924
      %v926 = vrot.slane %v925, 1
      %v927 = vadd.f32 %v925, %v926
      %vm928 = vcmask 1040384
      %v929 = vsel %vm928, %v898, %v927
      %vm930 = vcmask 58368
      %931 = vst.msk [vmem:[%s235] sm:$0x3] %vm930, %v929
      %p932 = scmp.lt.s32.totalorder %s17, 1
      %s933 = scalar_select %p932, %s17, 1
      %s934 = smul.addr %s933, 8
      %s935 = smul.addr %s934, 8
      %s936 = scalar_lea.vmem %s4, %s935
      %p937 = scmp.lt.s32.totalorder %s17, 1
      %s938 = scalar_select %p937, %s17, 1
      %s939 = smul.addr %s938, 2
      %s940 = scalar_lea.vmem %s5, %s939
      // Predicated region
      $region37: #{_basic_block_forward.4} parent=35 // pred_check
        %p941 = pneg %p124
      $region38: #{_basic_block_forward.4} parent=35 // pred_check_branch
        %943 = sbr.rel (%p941) target = $region40
      $region39: #{_basic_block_forward.4} parent=35 // pred_region
        _
      $region40: #{_basic_block_forward.4} parent=35 // pred_fallthru
        _
      // Predicated region
      $region41: #{_basic_block_forward.4} parent=35 // pred_check
        %p944 = pneg %p150
      $region42: #{_basic_block_forward.4} parent=35 // pred_check_branch
        %946 = sbr.rel (%p944) target = $region44
      $region43: #{_basic_block_forward.4} parent=35 // pred_region
        _
      $region44: #{_basic_block_forward.4} parent=35 // pred_fallthru
        _
    $region36: #{_basic_block_forward.4} parent=5 // pred_fallthru
      _
    %p947 = scmp.le.s32.totalorder 2, %s12
    // Predicated region
    $region45: #{_basic_block_forward.4} parent=5 // pred_check
      %p948 = pneg %p947
    $region46: #{_basic_block_forward.4} parent=5 // pred_check_branch
      %950 = sbr.rel (%p948) target = $region48
    $region47: #{_basic_block_forward.4} parent=5 // pred_region
      %s951 = ssub.s32 %s12, 2
      // Predicated region
      $region49: #{_basic_block_forward.4} parent=47 // pred_check
        %p952 = pneg %p130
      $region50: #{_basic_block_forward.4} parent=47 // pred_check_branch
        %954 = sbr.rel (%p952) target = $region52
      $region51: #{_basic_block_forward.4} parent=47 // pred_region
        %p955 = scmp.lt.s32.totalorder %s18, 1
        %s956 = scalar_select %p955, %s18, 1
        %s957 = smul.addr %s956, 8
        %s958 = smul.addr %s957, 8
        %s959 = scalar_lea.vmem %s4, %s958
      $region52: #{_basic_block_forward.4} parent=47 // pred_fallthru
        _
      // Predicated region
      $region53: #{_basic_block_forward.4} parent=47 // pred_check
        %p960 = pneg %p156
      $region54: #{_basic_block_forward.4} parent=47 // pred_check_branch
        %962 = sbr.rel (%p960) target = $region56
      $region55: #{_basic_block_forward.4} parent=47 // pred_region
        %p963 = scmp.lt.s32.totalorder %s18, 1
        %s964 = scalar_select %p963, %s18, 1
        %s965 = smul.addr %s964, 2
        %s966 = scalar_lea.vmem %s5, %s965
      $region56: #{_basic_block_forward.4} parent=47 // pred_fallthru
        _
    $region48: #{_basic_block_forward.4} parent=5 // pred_fallthru
      _
  $region6: #{_basic_block_forward.4} parent=0 // loop_footer
    %s16 = sadd.s32 1, %s12
  $region7: #{_basic_block_forward.4} parent=0 // loop_footer_branch
    %11 = sbr.rel target = $region3
  $region8: #{_basic_block_forward.4} parent=0 // loop_exit
    _

// kernel: _basic_block_forward.3
$region0: #{_basic_block_forward.3}
  #allocation0 [shape = 'u32[]', space=smem, size = 0x4, offset = 0x4, fixed_abs, tag = 'smem constant byte address 0x4 - core index']
  #allocation1 [shape = 'u32[144,128]{1,0:T(1,128)}', space=vmem, size = 0x12000, scoped, tag = 'internal scratch']
  %s0 = inlined_call_operand.vmem [shape: f32[2,16,16,4], index: 0, kind: input, shape index: {}]
  %s1 = inlined_call_operand.vmem [shape: bf16[36,8], index: 1, kind: input, shape index: {}]
  %s2 = inlined_call_operand.vmem [shape: bf16[4,8], index: 2, kind: input, shape index: {}]
  %s3 = inlined_call_operand.vmem [shape: f32[2,8,8,8], index: 3, kind: output, shape index: {0}]
  %s4 = inlined_call_operand.vmem [shape: f32[2,8,8,8], index: 4, kind: output, shape index: {1}]
  %s5 = inlined_call_operand.vmem [shape: f32[2,2,8], index: 5, kind: output, shape index: {2}]
  %s6 = inlined_call_operand.vmem [shape: f32[2,2,8], index: 6, kind: output, shape index: {3}]
  %7 = xla_tuple %s3, %s4, %s5, %s6
  %s8 = sld [smem:[#allocation0]]
  $region69: #{_basic_block_forward.3} parent=0
    _
  %s10 = ssub.s32 1, %s8
  %s11 = scalar_select 0, %s10, %s8
  loop: start=0, step=1, limit=4
  $region2: #{_basic_block_forward.3} parent=0 // loop_pre_header
    _
  $region3: #{_basic_block_forward.3} parent=0 // loop_header
    %s13 = sphi 0, %s17
    %p14 = scmp.ge.s32.totalorder %s13, 4
    %s23 = sphi 0, %s25
    %s26 = sphi 0, %s23
    %s27 = sphi 0, %s26
    %s43 = sphi 0, %s27
    %s47 = sphi 0, %s47
    %s49 = sphi 0, %s47
    %s50 = sphi 0, %s49
    %s64 = sphi 0, %s50
    %s68 = sphi 0, %s68
    %s70 = sphi 0, %s68
    %s71 = sphi 0, %s70
    %s85 = sphi 0, %s71
    %s91 = sphi 0, %s93
    %s94 = sphi 0, %s91
    %s95 = sphi 0, %s94
    %s111 = sphi 0, %s95
    %s117 = sphi 0, %s119
    %s120 = sphi 0, %s117
    %s121 = sphi 0, %s120
    %s137 = sphi 0, %s121
    %s143 = sphi 0, %s145
    %s146 = sphi 0, %s143
    %s147 = sphi 0, %s146
    %s163 = sphi 0, %s147
    %s169 = sphi 0, %s171
    %s172 = sphi 0, %s169
    %s173 = sphi 0, %s172
    %s189 = sphi 0, %s173
  $region4: #{_basic_block_forward.3} parent=0 // loop_header_branch
    %16 = sbr.rel (%p14) target = $region8
  $region5: #{_basic_block_forward.3} parent=0 // loop_body
    %s18 = ssub.s32 %s13, 1
    %s19 = ssub.s32 %s13, 2
    %s20 = sadd.s32 %s13, 1
    %s21 = ssub.s32 %s13, %s20
    %p22 = scmp.eq.s32.totalorder %s21, 0
    %s24 = sadd.s32 %s23, 1
    %s25 = scalar_select %p22, %s23, %s24
    %p28 = pneg %p22
    %p29 = scmp.eq.s32.totalorder %s13, 1
    %p30 = por %p28, %p29
    %p31 = scmp.ne.s32.totalorder %s23, %s26
    %p32 = scmp.eq.s32.totalorder %s13, 0
    %p33 = por %p31, %p32
    %p34 = scmp.ne.s32.totalorder %s23, %s26
    %p35 = scmp.eq.s32.totalorder %s18, 1
    %p36 = por %p34, %p35
    %p37 = scmp.ne.s32.totalorder %s26, %s27
    %p38 = scmp.eq.s32.totalorder %s18, 0
    %p39 = por %p37, %p38
    %p40 = scmp.ne.s32.totalorder %s26, %s27
    %p41 = scmp.eq.s32.totalorder %s19, 1
    %p42 = por %p40, %p41
    %p44 = scmp.ne.s32.totalorder %s27, %s43
    %p45 = scmp.eq.s32.totalorder %s19, 0
    %p46 = por %p44, %p45
    %s48 = sadd.s32 %s47, 1
    %p51 = scmp.eq.s32.totalorder %s13, 1
    %p52 = scmp.ne.s32.totalorder %s47, %s49
    %p53 = scmp.eq.s32.totalorder %s13, 0
    %p54 = por %p52, %p53
    %p55 = scmp.ne.s32.totalorder %s47, %s49
    %p56 = scmp.eq.s32.totalorder %s18, 1
    %p57 = por %p55, %p56
    %p58 = scmp.ne.s32.totalorder %s49, %s50
    %p59 = scmp.eq.s32.totalorder %s18, 0
    %p60 = por %p58, %p59
    %p61 = scmp.ne.s32.totalorder %s49, %s50
    %p62 = scmp.eq.s32.totalorder %s19, 1
    %p63 = por %p61, %p62
    %p65 = scmp.ne.s32.totalorder %s50, %s64
    %p66 = scmp.eq.s32.totalorder %s19, 0
    %p67 = por %p65, %p66
    %s69 = sadd.s32 %s68, 1
    %p72 = scmp.eq.s32.totalorder %s13, 1
    %p73 = scmp.ne.s32.totalorder %s68, %s70
    %p74 = scmp.eq.s32.totalorder %s13, 0
    %p75 = por %p73, %p74
    %p76 = scmp.ne.s32.totalorder %s68, %s70
    %p77 = scmp.eq.s32.totalorder %s18, 1
    %p78 = por %p76, %p77
    %p79 = scmp.ne.s32.totalorder %s70, %s71
    %p80 = scmp.eq.s32.totalorder %s18, 0
    %p81 = por %p79, %p80
    %p82 = scmp.ne.s32.totalorder %s70, %s71
    %p83 = scmp.eq.s32.totalorder %s19, 1
    %p84 = por %p82, %p83
    %p86 = scmp.ne.s32.totalorder %s71, %s85
    %p87 = scmp.eq.s32.totalorder %s19, 0
    %p88 = por %p86, %p87
    %s89 = ssub.s32 %s13, %s20
    %p90 = scmp.eq.s32.totalorder %s89, 0
    %s92 = sadd.s32 %s91, 1
    %s93 = scalar_select %p90, %s91, %s92
    %p96 = pneg %p90
    %p97 = scmp.eq.s32.totalorder %s13, 1
    %p98 = por %p96, %p97
    %p99 = scmp.ne.s32.totalorder %s91, %s94
    %p100 = scmp.eq.s32.totalorder %s13, 0
    %p101 = por %p99, %p100
    %p102 = scmp.ne.s32.totalorder %s91, %s94
    %p103 = scmp.eq.s32.totalorder %s18, 1
    %p104 = por %p102, %p103
    %p105 = scmp.ne.s32.totalorder %s94, %s95
    %p106 = scmp.eq.s32.totalorder %s18, 0
    %p107 = por %p105, %p106
    %p108 = scmp.ne.s32.totalorder %s94, %s95
    %p109 = scmp.eq.s32.totalorder %s19, 1
    %p110 = por %p108, %p109
    %p112 = scmp.ne.s32.totalorder %s95, %s111
    %p113 = scmp.eq.s32.totalorder %s19, 0
    %p114 = por %p112, %p113
    %s115 = ssub.s32 %s13, %s20
    %p116 = scmp.eq.s32.totalorder %s115, 0
    %s118 = sadd.s32 %s117, 1
    %s119 = scalar_select %p116, %s117, %s118
    %p122 = pneg %p116
    %p123 = scmp.eq.s32.totalorder %s13, 1
    %p124 = por %p122, %p123
    %p125 = scmp.ne.s32.totalorder %s117, %s120
    %p126 = scmp.eq.s32.totalorder %s13, 0
    %p127 = por %p125, %p126
    %p128 = scmp.ne.s32.totalorder %s117, %s120
    %p129 = scmp.eq.s32.totalorder %s18, 1
    %p130 = por %p128, %p129
    %p131 = scmp.ne.s32.totalorder %s120, %s121
    %p132 = scmp.eq.s32.totalorder %s18, 0
    %p133 = por %p131, %p132
    %p134 = scmp.ne.s32.totalorder %s120, %s121
    %p135 = scmp.eq.s32.totalorder %s19, 1
    %p136 = por %p134, %p135
    %p138 = scmp.ne.s32.totalorder %s121, %s137
    %p139 = scmp.eq.s32.totalorder %s19, 0
    %p140 = por %p138, %p139
    %s141 = ssub.s32 %s13, %s20
    %p142 = scmp.eq.s32.totalorder %s141, 0
    %s144 = sadd.s32 %s143, 1
    %s145 = scalar_select %p142, %s143, %s144
    %p148 = pneg %p142
    %p149 = scmp.eq.s32.totalorder %s13, 1
    %p150 = por %p148, %p149
    %p151 = scmp.ne.s32.totalorder %s143, %s146
    %p152 = scmp.eq.s32.totalorder %s13, 0
    %p153 = por %p151, %p152
    %p154 = scmp.ne.s32.totalorder %s143, %s146
    %p155 = scmp.eq.s32.totalorder %s18, 1
    %p156 = por %p154, %p155
    %p157 = scmp.ne.s32.totalorder %s146, %s147
    %p158 = scmp.eq.s32.totalorder %s18, 0
    %p159 = por %p157, %p158
    %p160 = scmp.ne.s32.totalorder %s146, %s147
    %p161 = scmp.eq.s32.totalorder %s19, 1
    %p162 = por %p160, %p161
    %p164 = scmp.ne.s32.totalorder %s147, %s163
    %p165 = scmp.eq.s32.totalorder %s19, 0
    %p166 = por %p164, %p165
    %s167 = ssub.s32 %s13, %s20
    %p168 = scmp.eq.s32.totalorder %s167, 0
    %s170 = sadd.s32 %s169, 1
    %s171 = scalar_select %p168, %s169, %s170
    %p174 = pneg %p168
    %p175 = scmp.eq.s32.totalorder %s13, 1
    %p176 = por %p174, %p175
    %p177 = scmp.ne.s32.totalorder %s169, %s172
    %p178 = scmp.eq.s32.totalorder %s13, 0
    %p179 = por %p177, %p178
    %p180 = scmp.ne.s32.totalorder %s169, %s172
    %p181 = scmp.eq.s32.totalorder %s18, 1
    %p182 = por %p180, %p181
    %p183 = scmp.ne.s32.totalorder %s172, %s173
    %p184 = scmp.eq.s32.totalorder %s18, 0
    %p185 = por %p183, %p184
    %p186 = scmp.ne.s32.totalorder %s172, %s173
    %p187 = scmp.eq.s32.totalorder %s19, 1
    %p188 = por %p186, %p187
    %p190 = scmp.ne.s32.totalorder %s173, %s189
    %p191 = scmp.eq.s32.totalorder %s19, 0
    %p192 = por %p190, %p191
    %p193 = scmp.le.s32.totalorder 1, %s13
    %p194 = scmp.lt.s32.totalorder %s13, 3
    %p195 = pnand %p193, %p194
    %p196 = pneg %p195
    // Predicated region
    $region9: #{_basic_block_forward.3} parent=5 // pred_check
      _
    $region10: #{_basic_block_forward.3} parent=5 // pred_check_branch
      %198 = sbr.rel (%p195) target = $region12
    $region11: #{_basic_block_forward.3} parent=5 // pred_region
      %s199 = ssub.s32 %s13, 1
      // Predicated region
      $region13: #{_basic_block_forward.3} parent=11 // pred_check
        %p200 = pneg %p60
      $region14: #{_basic_block_forward.3} parent=11 // pred_check_branch
        %202 = sbr.rel (%p200) target = $region16
      $region15: #{_basic_block_forward.3} parent=11 // pred_region
        _
      $region16: #{_basic_block_forward.3} parent=11 // pred_fallthru
        _
      // Predicated region
      $region17: #{_basic_block_forward.3} parent=11 // pred_check
        %p203 = pneg %p81
      $region18: #{_basic_block_forward.3} parent=11 // pred_check_branch
        %205 = sbr.rel (%p203) target = $region20
      $region19: #{_basic_block_forward.3} parent=11 // pred_region
        _
      $region20: #{_basic_block_forward.3} parent=11 // pred_fallthru
        _
    $region12: #{_basic_block_forward.3} parent=5 // pred_fallthru
      _
    %p206 = scmp.lt.s32.totalorder %s13, 2
    // Predicated region
    $region21: #{_basic_block_forward.3} parent=5 // pred_check
      %p207 = pneg %p206
    $region22: #{_basic_block_forward.3} parent=5 // pred_check_branch
      %209 = sbr.rel (%p207) target = $region24
    $region23: #{_basic_block_forward.3} parent=5 // pred_region
      // Predicated region
      $region25: #{_basic_block_forward.3} parent=23 // pred_check
        %p210 = pneg %p33
      $region26: #{_basic_block_forward.3} parent=23 // pred_check_branch
        %212 = sbr.rel (%p210) target = $region28
      $region27: #{_basic_block_forward.3} parent=23 // pred_region
        %p213 = scmp.lt.s32.totalorder %s13, 1
        %s214 = scalar_select %p213, %s13, 1
        %s215 = smul.addr %s214, 32
        %s216 = smul.addr %s215, 8
        %s217 = scalar_lea.vmem %s0, %s216
      $region28: #{_basic_block_forward.3} parent=23 // pred_fallthru
        _
    $region24: #{_basic_block_forward.3} parent=5 // pred_fallthru
      _
    %p218 = scmp.le.s32.totalorder 1, %s13
    %p219 = scmp.lt.s32.totalorder %s13, 3
    %p220 = pnand %p218, %p219
    %p221 = pneg %p220
    // Predicated region
    $region29: #{_basic_block_forward.3} parent=5 // pred_check
      _
    $region30: #{_basic_block_forward.3} parent=5 // pred_check_branch
      %223 = sbr.rel (%p220) target = $region32
    $region31: #{_basic_block_forward.3} parent=5 // pred_region
      %s224 = ssub.s32 %s13, 1
      %p225 = scmp.lt.s32.totalorder %s18, 1
      %s226 = scalar_select %p225, %s18, 1
      %s227 = smul.addr %s226, 32
      %s228 = smul.addr %s227, 8
      %s229 = scalar_lea.vmem %s0, %s228
      %p230 = pneg %p39
      %p231 = pneg %p36
      %p232 = pneg %p60
      %p233 = pneg %p57
      %p234 = pneg %p81
      %p235 = pneg %p78
      %p236 = pneg %p107
      %p237 = pneg %p104
      %p238 = scmp.lt.s32.totalorder %s18, 1
      %s239 = scalar_select %p238, %s18, 1
      %s240 = smul.addr %s239, 8
      %s241 = smul.addr %s240, 8
      %s242 = scalar_lea.vmem %s3, %s241
      %p243 = pneg %p133
      %p244 = pneg %p130
      %p245 = scmp.lt.s32.totalorder %s18, 1
      %s246 = scalar_select %p245, %s18, 1
      %s247 = smul.addr %s246, 8
      %s248 = smul.addr %s247, 8
      %s249 = scalar_lea.vmem %s4, %s248
      %p250 = pneg %p159
      %p251 = pneg %p156
      %p252 = scmp.lt.s32.totalorder %s18, 1
      %s253 = scalar_select %p252, %s18, 1
      %s254 = smul.addr %s253, 2
      %s255 = scalar_lea.vmem %s5, %s254
      %p256 = pneg %p185
      %p257 = pneg %p182
      %p258 = scmp.lt.s32.totalorder %s18, 1
      %s259 = scalar_select %p258, %s18, 1
      %s260 = smul.addr %s259, 2
      %s261 = scalar_lea.vmem %s6, %s260
      %p262 = scmp.lt.s32.totalorder %s18, 1
      %s263 = scalar_select %p262, %s18, 1
      %s264 = smul.addr %s263, 32
      %s265 = smul.addr %s264, 8
      %s266 = scalar_lea.vmem %s0, %s265
      %p267 = scmp.lt.s32.totalorder %s18, 1
      %s268 = scalar_select %p267, %s18, 1
      %s269 = smul.addr %s268, 8
      %s270 = smul.addr %s269, 8
      %s271 = scalar_lea.vmem %s3, %s270
      %p272 = scmp.lt.s32.totalorder %s18, 1
      %s273 = scalar_select %p272, %s18, 1
      %s274 = smul.addr %s273, 8
      %s275 = smul.addr %s274, 8
      %s276 = scalar_lea.vmem %s4, %s275
      %p277 = scmp.lt.s32.totalorder %s18, 1
      %s278 = scalar_select %p277, %s18, 1
      %s279 = smul.addr %s278, 2
      %s280 = scalar_lea.vmem %s5, %s279
      %p281 = scmp.lt.s32.totalorder %s18, 1
      %s282 = scalar_select %p281, %s18, 1
      %s283 = smul.addr %s282, 2
      %s284 = scalar_lea.vmem %s6, %s283
      %v286 = vld [vmem:[%s266] sm:$0xff]
      %v287 = vld [vmem:[%s266 + $0x8] sm:$0xff]
      %v288 = vld [vmem:[%s266 + $0x10] sm:$0xff]
      %v289 = vld [vmem:[%s266 + $0x18] sm:$0xff]
      %v290 = vld [vmem:[%s266 + $0x20] sm:$0xff]
      %v291 = vld [vmem:[%s266 + $0x28] sm:$0xff]
      %v292 = vld [vmem:[%s266 + $0x30] sm:$0xff]
      %v293 = vld [vmem:[%s266 + $0x38] sm:$0xff]
      %v294 = vld [vmem:[%s266 + $0x40] sm:$0xff]
      %v295 = vld [vmem:[%s266 + $0x48] sm:$0xff]
      %v296 = vld [vmem:[%s266 + $0x50] sm:$0xff]
      %v297 = vld [vmem:[%s266 + $0x58] sm:$0xff]
      %v298 = vld [vmem:[%s266 + $0x60] sm:$0xff]
      %v299 = vld [vmem:[%s266 + $0x68] sm:$0xff]
      %v300 = vld [vmem:[%s266 + $0x70] sm:$0xff]
      %v301 = vld [vmem:[%s266 + $0x78] sm:$0xff]
      %v302 = vld [vmem:[%s266 + $0x80] sm:$0xff]
      %v303 = vld [vmem:[%s266 + $0x88] sm:$0xff]
      %v304 = vld [vmem:[%s266 + $0x90] sm:$0xff]
      %v305 = vld [vmem:[%s266 + $0x98] sm:$0xff]
      %v306 = vld [vmem:[%s266 + $0xa0] sm:$0xff]
      %v307 = vld [vmem:[%s266 + $0xa8] sm:$0xff]
      %v308 = vld [vmem:[%s266 + $0xb0] sm:$0xff]
      %v309 = vld [vmem:[%s266 + $0xb8] sm:$0xff]
      %v310 = vld [vmem:[%s266 + $0xc0] sm:$0xff]
      %v311 = vld [vmem:[%s266 + $0xc8] sm:$0xff]
      %v312 = vld [vmem:[%s266 + $0xd0] sm:$0xff]
      %v313 = vld [vmem:[%s266 + $0xd8] sm:$0xff]
      %v314 = vld [vmem:[%s266 + $0xe0] sm:$0xff]
      %v315 = vld [vmem:[%s266 + $0xe8] sm:$0xff]
      %v316 = vld [vmem:[%s266 + $0xf0] sm:$0xff]
      %v317 = vld [vmem:[%s266 + $0xf8] sm:$0xff]
      %v318 = vpack.c.bf16 %v287, %v286
      %v319 = vpack.c.bf16 %v289, %v288
      %v320 = vpack.c.bf16 %v291, %v290
      %v321 = vpack.c.bf16 %v293, %v292
      %v322 = vpack.c.bf16 %v295, %v294
      %v323 = vpack.c.bf16 %v297, %v296
      %v324 = vpack.c.bf16 %v299, %v298
      %v325 = vpack.c.bf16 %v301, %v300
      %v326 = vpack.c.bf16 %v303, %v302
      %v327 = vpack.c.bf16 %v305, %v304
      %v328 = vpack.c.bf16 %v307, %v306
      %v329 = vpack.c.bf16 %v309, %v308
      %v330 = vpack.c.bf16 %v311, %v310
      %v331 = vpack.c.bf16 %v313, %v312
      %v332 = vpack.c.bf16 %v315, %v314
      %v333 = vpack.c.bf16 %v317, %v316
      %v335 = vshrl.u32 0, 16
      %v337 = vrot.slane %v335, 7
      %v338 = vshll.u32 0, 16
      %v340 = vor.u32 %v337, %v338
      %v342 = vshrl.u32 %v318, 16
      %v344 = vrot.slane %v342, 7
      %v345 = vshll.u32 %v318, 16
      %v347 = vor.u32 %v344, %v345
      %v349 = vshrl.u32 %v319, 16
      %v351 = vrot.slane %v349, 7
      %v352 = vshll.u32 %v319, 16
      %v354 = vor.u32 %v351, %v352
      %v356 = vshrl.u32 %v320, 16
      %v358 = vrot.slane %v356, 7
      %v359 = vshll.u32 %v320, 16
      %v361 = vor.u32 %v358, %v359
      %v363 = vshrl.u32 %v321, 16
      %v365 = vrot.slane %v363, 7
      %v366 = vshll.u32 %v321, 16
      %v368 = vor.u32 %v365, %v366
      %v370 = vshrl.u32 %v322, 16
      %v372 = vrot.slane %v370, 7
      %v373 = vshll.u32 %v322, 16
      %v375 = vor.u32 %v372, %v373
      %v377 = vshrl.u32 %v323, 16
      %v379 = vrot.slane %v377, 7
      %v380 = vshll.u32 %v323, 16
      %v382 = vor.u32 %v379, %v380
      %v384 = vshrl.u32 %v324, 16
      %v386 = vrot.slane %v384, 7
      %v387 = vshll.u32 %v324, 16
      %v389 = vor.u32 %v386, %v387
      %v391 = vshrl.u32 %v325, 16
      %v393 = vrot.slane %v391, 7
      %v394 = vshll.u32 %v325, 16
      %v396 = vor.u32 %v393, %v394
      %v398 = vshrl.u32 %v326, 16
      %v400 = vrot.slane %v398, 7
      %v401 = vshll.u32 %v326, 16
      %v403 = vor.u32 %v400, %v401
      %v405 = vshrl.u32 %v327, 16
      %v407 = vrot.slane %v405, 7
      %v408 = vshll.u32 %v327, 16
      %v410 = vor.u32 %v407, %v408
      %v412 = vshrl.u32 %v328, 16
      %v414 = vrot.slane %v412, 7
      %v415 = vshll.u32 %v328, 16
      %v417 = vor.u32 %v414, %v415
      %v419 = vshrl.u32 %v329, 16
      %v421 = vrot.slane %v419, 7
      %v422 = vshll.u32 %v329, 16
      %v424 = vor.u32 %v421, %v422
      %v426 = vshrl.u32 %v330, 16
      %v428 = vrot.slane %v426, 7
      %v429 = vshll.u32 %v330, 16
      %v431 = vor.u32 %v428, %v429
      %v433 = vshrl.u32 %v331, 16
      %v435 = vrot.slane %v433, 7
      %v436 = vshll.u32 %v331, 16
      %v438 = vor.u32 %v435, %v436
      %v440 = vshrl.u32 %v332, 16
      %v442 = vrot.slane %v440, 7
      %v443 = vshll.u32 %v332, 16
      %v445 = vor.u32 %v442, %v443
      %v447 = vshrl.u32 %v333, 16
      %v449 = vrot.slane %v447, 7
      %v450 = vshll.u32 %v333, 16
      %v452 = vor.u32 %v449, %v450
      %vm487 = vcmask 1040384
      %vm488 = vsmask.f32 256
      %vm489 = vmand %vm487, %vm488
      %v490 = vsel %vm489, 0, %v340
      %v491 = vsel %vm489, 0, %v347
      %v492 = vsel %vm489, 0, %v354
      %v493 = vsel %vm489, 0, %v361
      %v494 = vsel %vm489, 0, %v368
      %v495 = vsel %vm489, 0, %v375
      %v496 = vsel %vm489, 0, %v382
      %v497 = vsel %vm489, 0, %v389
      %v498 = vsel %vm489, 0, %v396
      %v499 = vsel %vm489, 0, %v403
      %v500 = vsel %vm489, 0, %v410
      %v501 = vsel %vm489, 0, %v417
      %v502 = vsel %vm489, 0, %v424
      %v503 = vsel %vm489, 0, %v431
      %v504 = vsel %vm489, 0, %v438
      %v505 = vsel %vm489, 0, %v445
      %v506 = vsel %vm489, 0, %v452
      %v507 = vsel %vm489, %v337, 0
      %v508 = vsel %vm489, %v344, 0
      %v509 = vsel %vm489, %v351, 0
      %v510 = vsel %vm489, %v358, 0
      %v511 = vsel %vm489, %v365, 0
      %v512 = vsel %vm489, %v372, 0
      %v513 = vsel %vm489, %v379, 0
      %v514 = vsel %vm489, %v386, 0
      %v515 = vsel %vm489, %v393, 0
      %v516 = vsel %vm489, %v400, 0
      %v517 = vsel %vm489, %v407, 0
      %v518 = vsel %vm489, %v414, 0
      %v519 = vsel %vm489, %v421, 0
      %v520 = vsel %vm489, %v428, 0
      %v521 = vsel %vm489, %v435, 0
      %v522 = vsel %vm489, %v442, 0
      %v523 = vsel %vm489, %v449, 0
      %v532 = vcombine.high %v490, %v490
      %v534 = vunpack.c.l.s4 1966171168
      %v535 = vunpack.c.0.s8 %v534
      %v536 = vlaneseq
      %v537 = vshrl.u32 %v536, 7
      %v538 = vsub.s32 %v535, %v537
      %v539 = vrot.slane %v490, %v538
      %v541 = vunpack.c.l.s4 1966171168
      %v542 = vunpack.c.0.s8 %v541
      %v543 = vlaneseq
      %v544 = vshrl.u32 %v543, 7
      %v545 = vsub.s32 %v542, %v544
      %v546 = vrot.slane %v532, %v545
      %v547 = vcombine.high %v539, %v539
      %v548 = vcombine.high %v546, %v546
      %v550 = vunpack.c.l.s4 1966171168
      %v551 = vunpack.c.0.s8 %v550
      %v552 = vlaneseq
      %v553 = vshrl.u32 %v552, 7
      %v554 = vsub.s32 %v551, %v553
      %v555 = vrot.slane %v539, %v554
      %v557 = vunpack.c.l.s4 1966171168
      %v558 = vunpack.c.0.s8 %v557
      %v559 = vlaneseq
      %v560 = vshrl.u32 %v559, 7
      %v561 = vsub.s32 %v558, %v560
      %v562 = vrot.slane %v546, %v561
      %v564 = vunpack.c.l.s4 1966171168
      %v565 = vunpack.c.0.s8 %v564
      %v566 = vlaneseq
      %v567 = vshrl.u32 %v566, 7
      %v568 = vsub.s32 %v565, %v567
      %v569 = vrot.slane %v547, %v568
      %v571 = vunpack.c.l.s4 1966171168
      %v572 = vunpack.c.0.s8 %v571
      %v573 = vlaneseq
      %v574 = vshrl.u32 %v573, 7
      %v575 = vsub.s32 %v572, %v574
      %v576 = vrot.slane %v548, %v575
      %v577 = vcombine.high %v555, %v555
      %v578 = vcombine.high %v562, %v562
      %v579 = vcombine.high %v569, %v569
      %v580 = vcombine.high %v576, %v576
      %v581 = vcombine.high %v492, %v492
      %v583 = vunpack.c.l.s4 1966171168
      %v584 = vunpack.c.0.s8 %v583
      %v585 = vlaneseq
      %v586 = vshrl.u32 %v585, 7
      %v587 = vsub.s32 %v584, %v586
      %v588 = vrot.slane %v492, %v587
      %v590 = vunpack.c.l.s4 1966171168
      %v591 = vunpack.c.0.s8 %v590
      %v592 = vlaneseq
      %v593 = vshrl.u32 %v592, 7
      %v594 = vsub.s32 %v591, %v593
      %v595 = vrot.slane %v581, %v594
      %v596 = vcombine.high %v588, %v588
      %v597 = vcombine.high %v595, %v595
      %v599 = vunpack.c.l.s4 1966171168
      %v600 = vunpack.c.0.s8 %v599
      %v601 = vlaneseq
      %v602 = vshrl.u32 %v601, 7
      %v603 = vsub.s32 %v600, %v602
      %v604 = vrot.slane %v588, %v603
      %v606 = vunpack.c.l.s4 1966171168
      %v607 = vunpack.c.0.s8 %v606
      %v608 = vlaneseq
      %v609 = vshrl.u32 %v608, 7
      %v610 = vsub.s32 %v607, %v609
      %v611 = vrot.slane %v595, %v610
      %v613 = vunpack.c.l.s4 1966171168
      %v614 = vunpack.c.0.s8 %v613
      %v615 = vlaneseq
      %v616 = vshrl.u32 %v615, 7
      %v617 = vsub.s32 %v614, %v616
      %v618 = vrot.slane %v596, %v617
      %v620 = vunpack.c.l.s4 1966171168
      %v621 = vunpack.c.0.s8 %v620
      %v622 = vlaneseq
      %v623 = vshrl.u32 %v622, 7
      %v624 = vsub.s32 %v621, %v623
      %v625 = vrot.slane %v597, %v624
      %v626 = vcombine.high %v604, %v604
      %v627 = vcombine.high %v611, %v611
      %v628 = vcombine.high %v618, %v618
      %v629 = vcombine.high %v625, %v625
      %v630 = vcombine.high %v494, %v494
      %v632 = vunpack.c.l.s4 1966171168
      %v633 = vunpack.c.0.s8 %v632
      %v634 = vlaneseq
      %v635 = vshrl.u32 %v634, 7
      %v636 = vsub.s32 %v633, %v635
      %v637 = vrot.slane %v494, %v636
      %v639 = vunpack.c.l.s4 1966171168
      %v640 = vunpack.c.0.s8 %v639
      %v641 = vlaneseq
      %v642 = vshrl.u32 %v641, 7
      %v643 = vsub.s32 %v640, %v642
      %v644 = vrot.slane %v630, %v643
      %v645 = vcombine.high %v637, %v637
      %v646 = vcombine.high %v644, %v644
      %v648 = vunpack.c.l.s4 1966171168
      %v649 = vunpack.c.0.s8 %v648
      %v650 = vlaneseq
      %v651 = vshrl.u32 %v650, 7
      %v652 = vsub.s32 %v649, %v651
      %v653 = vrot.slane %v637, %v652
      %v655 = vunpack.c.l.s4 1966171168
      %v656 = vunpack.c.0.s8 %v655
      %v657 = vlaneseq
      %v658 = vshrl.u32 %v657, 7
      %v659 = vsub.s32 %v656, %v658
      %v660 = vrot.slane %v644, %v659
      %v662 = vunpack.c.l.s4 1966171168
      %v663 = vunpack.c.0.s8 %v662
      %v664 = vlaneseq
      %v665 = vshrl.u32 %v664, 7
      %v666 = vsub.s32 %v663, %v665
      %v667 = vrot.slane %v645, %v666
      %v669 = vunpack.c.l.s4 1966171168
      %v670 = vunpack.c.0.s8 %v669
      %v671 = vlaneseq
      %v672 = vshrl.u32 %v671, 7
      %v673 = vsub.s32 %v670, %v672
      %v674 = vrot.slane %v646, %v673
      %v675 = vcombine.high %v653, %v653
      %v676 = vcombine.high %v660, %v660
      %v677 = vcombine.high %v667, %v667
      %v678 = vcombine.high %v674, %v674
      %v679 = vcombine.high %v496, %v496
      %v681 = vunpack.c.l.s4 1966171168
      %v682 = vunpack.c.0.s8 %v681
      %v683 = vlaneseq
      %v684 = vshrl.u32 %v683, 7
      %v685 = vsub.s32 %v682, %v684
      %v686 = vrot.slane %v496, %v685
      %v688 = vunpack.c.l.s4 1966171168
      %v689 = vunpack.c.0.s8 %v688
      %v690 = vlaneseq
      %v691 = vshrl.u32 %v690, 7
      %v692 = vsub.s32 %v689, %v691
      %v693 = vrot.slane %v679, %v692
      %v694 = vcombine.high %v686, %v686
      %v695 = vcombine.high %v693, %v693
      %v697 = vunpack.c.l.s4 1966171168
      %v698 = vunpack.c.0.s8 %v697
      %v699 = vlaneseq
      %v700 = vshrl.u32 %v699, 7
      %v701 = vsub.s32 %v698, %v700
      %v702 = vrot.slane %v686, %v701
      %v704 = vunpack.c.l.s4 1966171168
      %v705 = vunpack.c.0.s8 %v704
      %v706 = vlaneseq
      %v707 = vshrl.u32 %v706, 7
      %v708 = vsub.s32 %v705, %v707
      %v709 = vrot.slane %v693, %v708
      %v711 = vunpack.c.l.s4 1966171168
      %v712 = vunpack.c.0.s8 %v711
      %v713 = vlaneseq
      %v714 = vshrl.u32 %v713, 7
      %v715 = vsub.s32 %v712, %v714
      %v716 = vrot.slane %v694, %v715
      %v718 = vunpack.c.l.s4 1966171168
      %v719 = vunpack.c.0.s8 %v718
      %v720 = vlaneseq
      %v721 = vshrl.u32 %v720, 7
      %v722 = vsub.s32 %v719, %v721
      %v723 = vrot.slane %v695, %v722
      %v724 = vcombine.high %v702, %v702
      %v725 = vcombine.high %v709, %v709
      %v726 = vcombine.high %v716, %v716
      %v727 = vcombine.high %v723, %v723
      %v728 = vcombine.high %v498, %v498
      %v730 = vunpack.c.l.s4 1966171168
      %v731 = vunpack.c.0.s8 %v730
      %v732 = vlaneseq
      %v733 = vshrl.u32 %v732, 7
      %v734 = vsub.s32 %v731, %v733
      %v735 = vrot.slane %v498, %v734
      %v737 = vunpack.c.l.s4 1966171168
      %v738 = vunpack.c.0.s8 %v737
      %v739 = vlaneseq
      %v740 = vshrl.u32 %v739, 7
      %v741 = vsub.s32 %v738, %v740
      %v742 = vrot.slane %v728, %v741
      %v743 = vcombine.high %v735, %v735
      %v744 = vcombine.high %v742, %v742
      %v746 = vunpack.c.l.s4 1966171168
      %v747 = vunpack.c.0.s8 %v746
      %v748 = vlaneseq
      %v749 = vshrl.u32 %v748, 7
      %v750 = vsub.s32 %v747, %v749
      %v751 = vrot.slane %v735, %v750
      %v753 = vunpack.c.l.s4 1966171168
      %v754 = vunpack.c.0.s8 %v753
      %v755 = vlaneseq
      %v756 = vshrl.u32 %v755, 7
      %v757 = vsub.s32 %v754, %v756
      %v758 = vrot.slane %v742, %v757
      %v760 = vunpack.c.l.s4 1966171168
      %v761 = vunpack.c.0.s8 %v760
      %v762 = vlaneseq
      %v763 = vshrl.u32 %v762, 7
      %v764 = vsub.s32 %v761, %v763
      %v765 = vrot.slane %v743, %v764
      %v767 = vunpack.c.l.s4 1966171168
      %v768 = vunpack.c.0.s8 %v767
      %v769 = vlaneseq
      %v770 = vshrl.u32 %v769, 7
      %v771 = vsub.s32 %v768, %v770
      %v772 = vrot.slane %v744, %v771
      %v773 = vcombine.high %v751, %v751
      %v774 = vcombine.high %v758, %v758
      %v775 = vcombine.high %v765, %v765
      %v776 = vcombine.high %v772, %v772
      %v777 = vcombine.high %v500, %v500
      %v779 = vunpack.c.l.s4 1966171168
      %v780 = vunpack.c.0.s8 %v779
      %v781 = vlaneseq
      %v782 = vshrl.u32 %v781, 7
      %v783 = vsub.s32 %v780, %v782
      %v784 = vrot.slane %v500, %v783
      %v786 = vunpack.c.l.s4 1966171168
      %v787 = vunpack.c.0.s8 %v786
      %v788 = vlaneseq
      %v789 = vshrl.u32 %v788, 7
      %v790 = vsub.s32 %v787, %v789
      %v791 = vrot.slane %v777, %v790
      %v792 = vcombine.high %v784, %v784
      %v793 = vcombine.high %v791, %v791
      %v795 = vunpack.c.l.s4 1966171168
      %v796 = vunpack.c.0.s8 %v795
      %v797 = vlaneseq
      %v798 = vshrl.u32 %v797, 7
      %v799 = vsub.s32 %v796, %v798
      %v800 = vrot.slane %v784, %v799
      %v802 = vunpack.c.l.s4 1966171168
      %v803 = vunpack.c.0.s8 %v802
      %v804 = vlaneseq
      %v805 = vshrl.u32 %v804, 7
      %v806 = vsub.s32 %v803, %v805
      %v807 = vrot.slane %v791, %v806
      %v809 = vunpack.c.l.s4 1966171168
      %v810 = vunpack.c.0.s8 %v809
      %v811 = vlaneseq
      %v812 = vshrl.u32 %v811, 7
      %v813 = vsub.s32 %v810, %v812
      %v814 = vrot.slane %v792, %v813
      %v816 = vunpack.c.l.s4 1966171168
      %v817 = vunpack.c.0.s8 %v816
      %v818 = vlaneseq
      %v819 = vshrl.u32 %v818, 7
      %v820 = vsub.s32 %v817, %v819
      %v821 = vrot.slane %v793, %v820
      %v822 = vcombine.high %v800, %v800
      %v823 = vcombine.high %v807, %v807
      %v824 = vcombine.high %v814, %v814
      %v825 = vcombine.high %v821, %v821
      %v826 = vcombine.high %v502, %v502
      %v828 = vunpack.c.l.s4 1966171168
      %v829 = vunpack.c.0.s8 %v828
      %v830 = vlaneseq
      %v831 = vshrl.u32 %v830, 7
      %v832 = vsub.s32 %v829, %v831
      %v833 = vrot.slane %v502, %v832
      %v835 = vunpack.c.l.s4 1966171168
      %v836 = vunpack.c.0.s8 %v835
      %v837 = vlaneseq
      %v838 = vshrl.u32 %v837, 7
      %v839 = vsub.s32 %v836, %v838
      %v840 = vrot.slane %v826, %v839
      %v841 = vcombine.high %v833, %v833
      %v842 = vcombine.high %v840, %v840
      %v844 = vunpack.c.l.s4 1966171168
      %v845 = vunpack.c.0.s8 %v844
      %v846 = vlaneseq
      %v847 = vshrl.u32 %v846, 7
      %v848 = vsub.s32 %v845, %v847
      %v849 = vrot.slane %v833, %v848
      %v851 = vunpack.c.l.s4 1966171168
      %v852 = vunpack.c.0.s8 %v851
      %v853 = vlaneseq
      %v854 = vshrl.u32 %v853, 7
      %v855 = vsub.s32 %v852, %v854
      %v856 = vrot.slane %v840, %v855
      %v858 = vunpack.c.l.s4 1966171168
      %v859 = vunpack.c.0.s8 %v858
      %v860 = vlaneseq
      %v861 = vshrl.u32 %v860, 7
      %v862 = vsub.s32 %v859, %v861
      %v863 = vrot.slane %v841, %v862
      %v865 = vunpack.c.l.s4 1966171168
      %v866 = vunpack.c.0.s8 %v865
      %v867 = vlaneseq
      %v868 = vshrl.u32 %v867, 7
      %v869 = vsub.s32 %v866, %v868
      %v870 = vrot.slane %v842, %v869
      %v871 = vcombine.high %v849, %v849
      %v872 = vcombine.high %v856, %v856
      %v873 = vcombine.high %v863, %v863
      %v874 = vcombine.high %v870, %v870
      %v875 = vcombine.high %v504, %v504
      %v877 = vunpack.c.l.s4 1966171168
      %v878 = vunpack.c.0.s8 %v877
      %v879 = vlaneseq
      %v880 = vshrl.u32 %v879, 7
      %v881 = vsub.s32 %v878, %v880
      %v882 = vrot.slane %v504, %v881
      %v884 = vunpack.c.l.s4 1966171168
      %v885 = vunpack.c.0.s8 %v884
      %v886 = vlaneseq
      %v887 = vshrl.u32 %v886, 7
      %v888 = vsub.s32 %v885, %v887
      %v889 = vrot.slane %v875, %v888
      %v890 = vcombine.high %v882, %v882
      %v891 = vcombine.high %v889, %v889
      %v893 = vunpack.c.l.s4 1966171168
      %v894 = vunpack.c.0.s8 %v893
      %v895 = vlaneseq
      %v896 = vshrl.u32 %v895, 7
      %v897 = vsub.s32 %v894, %v896
      %v898 = vrot.slane %v882, %v897
      %v900 = vunpack.c.l.s4 1966171168
      %v901 = vunpack.c.0.s8 %v900
      %v902 = vlaneseq
      %v903 = vshrl.u32 %v902, 7
      %v904 = vsub.s32 %v901, %v903
      %v905 = vrot.slane %v889, %v904
      %v907 = vunpack.c.l.s4 1966171168
      %v908 = vunpack.c.0.s8 %v907
      %v909 = vlaneseq
      %v910 = vshrl.u32 %v909, 7
      %v911 = vsub.s32 %v908, %v910
      %v912 = vrot.slane %v890, %v911
      %v914 = vunpack.c.l.s4 1966171168
      %v915 = vunpack.c.0.s8 %v914
      %v916 = vlaneseq
      %v917 = vshrl.u32 %v916, 7
      %v918 = vsub.s32 %v915, %v917
      %v919 = vrot.slane %v891, %v918
      %v920 = vcombine.high %v898, %v898
      %v921 = vcombine.high %v905, %v905
      %v922 = vcombine.high %v912, %v912
      %v923 = vcombine.high %v919, %v919
      %v933 = vunpack.c.l.s4 1966171168
      %v934 = vunpack.c.0.s8 %v933
      %v935 = vlaneseq
      %v936 = vshrl.u32 %v935, 7
      %v937 = vsub.s32 %v934, %v936
      %v938 = vrot.slane %v507, %v937
      %v940 = vunpack.c.l.s4 1966171168
      %v941 = vunpack.c.0.s8 %v940
      %v942 = vlaneseq
      %v943 = vshrl.u32 %v942, 7
      %v944 = vsub.s32 %v941, %v943
      %v945 = vrot.slane %v938, %v944
      %v947 = vunpack.c.l.s4 1966171168
      %v948 = vunpack.c.0.s8 %v947
      %v949 = vlaneseq
      %v950 = vshrl.u32 %v949, 7
      %v951 = vsub.s32 %v948, %v950
      %v952 = vrot.slane %v509, %v951
      %v954 = vunpack.c.l.s4 1966171168
      %v955 = vunpack.c.0.s8 %v954
      %v956 = vlaneseq
      %v957 = vshrl.u32 %v956, 7
      %v958 = vsub.s32 %v955, %v957
      %v959 = vrot.slane %v952, %v958
      %v961 = vunpack.c.l.s4 1966171168
      %v962 = vunpack.c.0.s8 %v961
      %v963 = vlaneseq
      %v964 = vshrl.u32 %v963, 7
      %v965 = vsub.s32 %v962, %v964
      %v966 = vrot.slane %v511, %v965
      %v968 = vunpack.c.l.s4 1966171168
      %v969 = vunpack.c.0.s8 %v968
      %v970 = vlaneseq
      %v971 = vshrl.u32 %v970, 7
      %v972 = vsub.s32 %v969, %v971
      %v973 = vrot.slane %v966, %v972
      %v975 = vunpack.c.l.s4 1966171168
      %v976 = vunpack.c.0.s8 %v975
      %v977 = vlaneseq
      %v978 = vshrl.u32 %v977, 7
      %v979 = vsub.s32 %v976, %v978
      %v980 = vrot.slane %v513, %v979
      %v982 = vunpack.c.l.s4 1966171168
      %v983 = vunpack.c.0.s8 %v982
      %v984 = vlaneseq
      %v985 = vshrl.u32 %v984, 7
      %v986 = vsub.s32 %v983, %v985
      %v987 = vrot.slane %v980, %v986
      %v989 = vunpack.c.l.s4 1966171168
      %v990 = vunpack.c.0.s8 %v989
      %v991 = vlaneseq
      %v992 = vshrl.u32 %v991, 7
      %v993 = vsub.s32 %v990, %v992
      %v994 = vrot.slane %v515, %v993
      %v996 = vunpack.c.l.s4 1966171168
      %v997 = vunpack.c.0.s8 %v996
      %v998 = vlaneseq
      %v999 = vshrl.u32 %v998, 7
      %v1000 = vsub.s32 %v997, %v999
      %v1001 = vrot.slane %v994, %v1000
      %v1003 = vunpack.c.l.s4 1966171168
      %v1004 = vunpack.c.0.s8 %v1003
      %v1005 = vlaneseq
      %v1006 = vshrl.u32 %v1005, 7
      %v1007 = vsub.s32 %v1004, %v1006
      %v1008 = vrot.slane %v517, %v1007
      %v1010 = vunpack.c.l.s4 1966171168
      %v1011 = vunpack.c.0.s8 %v1010
      %v1012 = vlaneseq
      %v1013 = vshrl.u32 %v1012, 7
      %v1014 = vsub.s32 %v1011, %v1013
      %v1015 = vrot.slane %v1008, %v1014
      %v1017 = vunpack.c.l.s4 1966171168
      %v1018 = vunpack.c.0.s8 %v1017
      %v1019 = vlaneseq
      %v1020 = vshrl.u32 %v1019, 7
      %v1021 = vsub.s32 %v1018, %v1020
      %v1022 = vrot.slane %v519, %v1021
      %v1024 = vunpack.c.l.s4 1966171168
      %v1025 = vunpack.c.0.s8 %v1024
      %v1026 = vlaneseq
      %v1027 = vshrl.u32 %v1026, 7
      %v1028 = vsub.s32 %v1025, %v1027
      %v1029 = vrot.slane %v1022, %v1028
      %v1031 = vunpack.c.l.s4 1966171168
      %v1032 = vunpack.c.0.s8 %v1031
      %v1033 = vlaneseq
      %v1034 = vshrl.u32 %v1033, 7
      %v1035 = vsub.s32 %v1032, %v1034
      %v1036 = vrot.slane %v521, %v1035
      %v1038 = vunpack.c.l.s4 1966171168
      %v1039 = vunpack.c.0.s8 %v1038
      %v1040 = vlaneseq
      %v1041 = vshrl.u32 %v1040, 7
      %v1042 = vsub.s32 %v1039, %v1041
      %v1043 = vrot.slane %v1036, %v1042
      %vm1044 = vsmask.f32 1284
      %vm1045 = vmor %vm488, %vm1044
      %vm1046 = vsmask.f32 2312
      %vm1047 = vmor %vm1045, %vm1046
      %vm1048 = vsmask.f32 3340
      %vm1049 = vmor %vm1047, %vm1048
      %vm1050 = vsmask.f32 4368
      %vm1051 = vmor %vm1049, %vm1050
      %vm1052 = vsmask.f32 5396
      %vm1053 = vmor %vm1051, %vm1052
      %vm1054 = vsmask.f32 6424
      %vm1055 = vmor %vm1053, %vm1054
      %vm1056 = vsmask.f32 7452
      %vm1057 = vmor %vm1055, %vm1056
      %v1059 = vshrl.u32 %v555, 16
      %v1061 = vrot.slane %v1059, 7
      %v1062 = vrot.slane %v1061, 1
      %v1064 = vshll.u32 %v569, 16
      %v1066 = vsel %vm1057, %v1062, %v1064
      %v1067 = vshrl.u32 %v569, 16
      %v1069 = vrot.slane %v1067, 7
      %v1070 = vrot.slane %v1069, 1
      %v1072 = vshll.u32 %v577, 16
      %v1074 = vsel %vm1057, %v1070, %v1072
      %v1075 = vshrl.u32 %v577, 16
      %v1077 = vrot.slane %v1075, 7
      %v1078 = vrot.slane %v1077, 1
      %v1080 = vshll.u32 %v579, 16
      %v1082 = vsel %vm1057, %v1078, %v1080
      %v1083 = vshrl.u32 %v579, 16
      %v1085 = vrot.slane %v1083, 7
      %v1086 = vrot.slane %v1085, 1
      %v1088 = vshll.u32 %v562, 16
      %v1090 = vsel %vm1057, %v1086, %v1088
      %v1091 = vshrl.u32 %v562, 16
      %v1093 = vrot.slane %v1091, 7
      %v1094 = vrot.slane %v1093, 1
      %v1096 = vshll.u32 %v576, 16
      %v1098 = vsel %vm1057, %v1094, %v1096
      %v1099 = vshrl.u32 %v576, 16
      %v1101 = vrot.slane %v1099, 7
      %v1102 = vrot.slane %v1101, 1
      %v1104 = vshll.u32 %v578, 16
      %v1106 = vsel %vm1057, %v1102, %v1104
      %v1107 = vshrl.u32 %v578, 16
      %v1109 = vrot.slane %v1107, 7
      %v1110 = vrot.slane %v1109, 1
      %v1112 = vshll.u32 %v580, 16
      %v1114 = vsel %vm1057, %v1110, %v1112
      %v1115 = vshrl.u32 %v580, 16
      %v1117 = vrot.slane %v1115, 7
      %v1118 = vrot.slane %v1117, 1
      %v1120 = vshll.u32 %v945, 16
      %v1122 = vsel %vm1057, %v1118, %v1120
      %v1124 = vshrl.u32 %v604, 16
      %v1126 = vrot.slane %v1124, 7
      %v1127 = vrot.slane %v1126, 1
      %v1129 = vshll.u32 %v618, 16
      %v1131 = vsel %vm1057, %v1127, %v1129
      %v1132 = vshrl.u32 %v618, 16
      %v1134 = vrot.slane %v1132, 7
      %v1135 = vrot.slane %v1134, 1
      %v1137 = vshll.u32 %v626, 16
      %v1139 = vsel %vm1057, %v1135, %v1137
      %v1140 = vshrl.u32 %v626, 16
      %v1142 = vrot.slane %v1140, 7
      %v1143 = vrot.slane %v1142, 1
      %v1145 = vshll.u32 %v628, 16
      %v1147 = vsel %vm1057, %v1143, %v1145
      %v1148 = vshrl.u32 %v628, 16
      %v1150 = vrot.slane %v1148, 7
      %v1151 = vrot.slane %v1150, 1
      %v1153 = vshll.u32 %v611, 16
      %v1155 = vsel %vm1057, %v1151, %v1153
      %v1156 = vshrl.u32 %v611, 16
      %v1158 = vrot.slane %v1156, 7
      %v1159 = vrot.slane %v1158, 1
      %v1161 = vshll.u32 %v625, 16
      %v1163 = vsel %vm1057, %v1159, %v1161
      %v1164 = vshrl.u32 %v625, 16
      %v1166 = vrot.slane %v1164, 7
      %v1167 = vrot.slane %v1166, 1
      %v1169 = vshll.u32 %v627, 16
      %v1171 = vsel %vm1057, %v1167, %v1169
      %v1172 = vshrl.u32 %v627, 16
      %v1174 = vrot.slane %v1172, 7
      %v1175 = vrot.slane %v1174, 1
      %v1177 = vshll.u32 %v629, 16
      %v1179 = vsel %vm1057, %v1175, %v1177
      %v1180 = vshrl.u32 %v629, 16
      %v1182 = vrot.slane %v1180, 7
      %v1183 = vrot.slane %v1182, 1
      %v1185 = vshll.u32 %v959, 16
      %v1187 = vsel %vm1057, %v1183, %v1185
      %v1189 = vshrl.u32 %v653, 16
      %v1191 = vrot.slane %v1189, 7
      %v1192 = vrot.slane %v1191, 1
      %v1194 = vshll.u32 %v667, 16
      %v1196 = vsel %vm1057, %v1192, %v1194
      %v1197 = vshrl.u32 %v667, 16
      %v1199 = vrot.slane %v1197, 7
      %v1200 = vrot.slane %v1199, 1
      %v1202 = vshll.u32 %v675, 16
      %v1204 = vsel %vm1057, %v1200, %v1202
      %v1205 = vshrl.u32 %v675, 16
      %v1207 = vrot.slane %v1205, 7
      %v1208 = vrot.slane %v1207, 1
      %v1210 = vshll.u32 %v677, 16
      %v1212 = vsel %vm1057, %v1208, %v1210
      %v1213 = vshrl.u32 %v677, 16
      %v1215 = vrot.slane %v1213, 7
      %v1216 = vrot.slane %v1215, 1
      %v1218 = vshll.u32 %v660, 16
      %v1220 = vsel %vm1057, %v1216, %v1218
      %v1221 = vshrl.u32 %v660, 16
      %v1223 = vrot.slane %v1221, 7
      %v1224 = vrot.slane %v1223, 1
      %v1226 = vshll.u32 %v674, 16
      %v1228 = vsel %vm1057, %v1224, %v1226
      %v1229 = vshrl.u32 %v674, 16
      %v1231 = vrot.slane %v1229, 7
      %v1232 = vrot.slane %v1231, 1
      %v1234 = vshll.u32 %v676, 16
      %v1236 = vsel %vm1057, %v1232, %v1234
      %v1237 = vshrl.u32 %v676, 16
      %v1239 = vrot.slane %v1237, 7
      %v1240 = vrot.slane %v1239, 1
      %v1242 = vshll.u32 %v678, 16
      %v1244 = vsel %vm1057, %v1240, %v1242
      %v1245 = vshrl.u32 %v678, 16
      %v1247 = vrot.slane %v1245, 7
      %v1248 = vrot.slane %v1247, 1
      %v1250 = vshll.u32 %v973, 16
      %v1252 = vsel %vm1057, %v1248, %v1250
      %v1254 = vshrl.u32 %v702, 16
      %v1256 = vrot.slane %v1254, 7
      %v1257 = vrot.slane %v1256, 1
      %v1259 = vshll.u32 %v716, 16
      %v1261 = vsel %vm1057, %v1257, %v1259
      %v1262 = vshrl.u32 %v716, 16
      %v1264 = vrot.slane %v1262, 7
      %v1265 = vrot.slane %v1264, 1
      %v1267 = vshll.u32 %v724, 16
      %v1269 = vsel %vm1057, %v1265, %v1267
      %v1270 = vshrl.u32 %v724, 16
      %v1272 = vrot.slane %v1270, 7
      %v1273 = vrot.slane %v1272, 1
      %v1275 = vshll.u32 %v726, 16
      %v1277 = vsel %vm1057, %v1273, %v1275
      %v1278 = vshrl.u32 %v726, 16
      %v1280 = vrot.slane %v1278, 7
      %v1281 = vrot.slane %v1280, 1
      %v1283 = vshll.u32 %v709, 16
      %v1285 = vsel %vm1057, %v1281, %v1283
      %v1286 = vshrl.u32 %v709, 16
      %v1288 = vrot.slane %v1286, 7
      %v1289 = vrot.slane %v1288, 1
      %v1291 = vshll.u32 %v723, 16
      %v1293 = vsel %vm1057, %v1289, %v1291
      %v1294 = vshrl.u32 %v723, 16
      %v1296 = vrot.slane %v1294, 7
      %v1297 = vrot.slane %v1296, 1
      %v1299 = vshll.u32 %v725, 16
      %v1301 = vsel %vm1057, %v1297, %v1299
      %v1302 = vshrl.u32 %v725, 16
      %v1304 = vrot.slane %v1302, 7
      %v1305 = vrot.slane %v1304, 1
      %v1307 = vshll.u32 %v727, 16
      %v1309 = vsel %vm1057, %v1305, %v1307
      %v1310 = vshrl.u32 %v727, 16
      %v1312 = vrot.slane %v1310, 7
      %v1313 = vrot.slane %v1312, 1
      %v1315 = vshll.u32 %v987, 16
      %v1317 = vsel %vm1057, %v1313, %v1315
      %v1319 = vshrl.u32 %v751, 16
      %v1321 = vrot.slane %v1319, 7
      %v1322 = vrot.slane %v1321, 1
      %v1324 = vshll.u32 %v765, 16
      %v1326 = vsel %vm1057, %v1322, %v1324
      %v1327 = vshrl.u32 %v765, 16
      %v1329 = vrot.slane %v1327, 7
      %v1330 = vrot.slane %v1329, 1
      %v1332 = vshll.u32 %v773, 16
      %v1334 = vsel %vm1057, %v1330, %v1332
      %v1335 = vshrl.u32 %v773, 16
      %v1337 = vrot.slane %v1335, 7
      %v1338 = vrot.slane %v1337, 1
      %v1340 = vshll.u32 %v775, 16
      %v1342 = vsel %vm1057, %v1338, %v1340
      %v1343 = vshrl.u32 %v775, 16
      %v1345 = vrot.slane %v1343, 7
      %v1346 = vrot.slane %v1345, 1
      %v1348 = vshll.u32 %v758, 16
      %v1350 = vsel %vm1057, %v1346, %v1348
      %v1351 = vshrl.u32 %v758, 16
      %v1353 = vrot.slane %v1351, 7
      %v1354 = vrot.slane %v1353, 1
      %v1356 = vshll.u32 %v772, 16
      %v1358 = vsel %vm1057, %v1354, %v1356
      %v1359 = vshrl.u32 %v772, 16
      %v1361 = vrot.slane %v1359, 7
      %v1362 = vrot.slane %v1361, 1
      %v1364 = vshll.u32 %v774, 16
      %v1366 = vsel %vm1057, %v1362, %v1364
      %v1367 = vshrl.u32 %v774, 16
      %v1369 = vrot.slane %v1367, 7
      %v1370 = vrot.slane %v1369, 1
      %v1372 = vshll.u32 %v776, 16
      %v1374 = vsel %vm1057, %v1370, %v1372
      %v1375 = vshrl.u32 %v776, 16
      %v1377 = vrot.slane %v1375, 7
      %v1378 = vrot.slane %v1377, 1
      %v1380 = vshll.u32 %v1001, 16
      %v1382 = vsel %vm1057, %v1378, %v1380
      %v1384 = vshrl.u32 %v800, 16
      %v1386 = vrot.slane %v1384, 7
      %v1387 = vrot.slane %v1386, 1
      %v1389 = vshll.u32 %v814, 16
      %v1391 = vsel %vm1057, %v1387, %v1389
      %v1392 = vshrl.u32 %v814, 16
      %v1394 = vrot.slane %v1392, 7
      %v1395 = vrot.slane %v1394, 1
      %v1397 = vshll.u32 %v822, 16
      %v1399 = vsel %vm1057, %v1395, %v1397
      %v1400 = vshrl.u32 %v822, 16
      %v1402 = vrot.slane %v1400, 7
      %v1403 = vrot.slane %v1402, 1
      %v1405 = vshll.u32 %v824, 16
      %v1407 = vsel %vm1057, %v1403, %v1405
      %v1408 = vshrl.u32 %v824, 16
      %v1410 = vrot.slane %v1408, 7
      %v1411 = vrot.slane %v1410, 1
      %v1413 = vshll.u32 %v807, 16
      %v1415 = vsel %vm1057, %v1411, %v1413
      %v1416 = vshrl.u32 %v807, 16
      %v1418 = vrot.slane %v1416, 7
      %v1419 = vrot.slane %v1418, 1
      %v1421 = vshll.u32 %v821, 16
      %v1423 = vsel %vm1057, %v1419, %v1421
      %v1424 = vshrl.u32 %v821, 16
      %v1426 = vrot.slane %v1424, 7
      %v1427 = vrot.slane %v1426, 1
      %v1429 = vshll.u32 %v823, 16
      %v1431 = vsel %vm1057, %v1427, %v1429
      %v1432 = vshrl.u32 %v823, 16
      %v1434 = vrot.slane %v1432, 7
      %v1435 = vrot.slane %v1434, 1
      %v1437 = vshll.u32 %v825, 16
      %v1439 = vsel %vm1057, %v1435, %v1437
      %v1440 = vshrl.u32 %v825, 16
      %v1442 = vrot.slane %v1440, 7
      %v1443 = vrot.slane %v1442, 1
      %v1445 = vshll.u32 %v1015, 16
      %v1447 = vsel %vm1057, %v1443, %v1445
      %v1449 = vshrl.u32 %v849, 16
      %v1451 = vrot.slane %v1449, 7
      %v1452 = vrot.slane %v1451, 1
      %v1454 = vshll.u32 %v863, 16
      %v1456 = vsel %vm1057, %v1452, %v1454
      %v1457 = vshrl.u32 %v863, 16
      %v1459 = vrot.slane %v1457, 7
      %v1460 = vrot.slane %v1459, 1
      %v1462 = vshll.u32 %v871, 16
      %v1464 = vsel %vm1057, %v1460, %v1462
      %v1465 = vshrl.u32 %v871, 16
      %v1467 = vrot.slane %v1465, 7
      %v1468 = vrot.slane %v1467, 1
      %v1470 = vshll.u32 %v873, 16
      %v1472 = vsel %vm1057, %v1468, %v1470
      %v1473 = vshrl.u32 %v873, 16
      %v1475 = vrot.slane %v1473, 7
      %v1476 = vrot.slane %v1475, 1
      %v1478 = vshll.u32 %v856, 16
      %v1480 = vsel %vm1057, %v1476, %v1478
      %v1481 = vshrl.u32 %v856, 16
      %v1483 = vrot.slane %v1481, 7
      %v1484 = vrot.slane %v1483, 1
      %v1486 = vshll.u32 %v870, 16
      %v1488 = vsel %vm1057, %v1484, %v1486
      %v1489 = vshrl.u32 %v870, 16
      %v1491 = vrot.slane %v1489, 7
      %v1492 = vrot.slane %v1491, 1
      %v1494 = vshll.u32 %v872, 16
      %v1496 = vsel %vm1057, %v1492, %v1494
      %v1497 = vshrl.u32 %v872, 16
      %v1499 = vrot.slane %v1497, 7
      %v1500 = vrot.slane %v1499, 1
      %v1502 = vshll.u32 %v874, 16
      %v1504 = vsel %vm1057, %v1500, %v1502
      %v1505 = vshrl.u32 %v874, 16
      %v1507 = vrot.slane %v1505, 7
      %v1508 = vrot.slane %v1507, 1
      %v1510 = vshll.u32 %v1029, 16
      %v1512 = vsel %vm1057, %v1508, %v1510
      %v1514 = vshrl.u32 %v898, 16
      %v1516 = vrot.slane %v1514, 7
      %v1517 = vrot.slane %v1516, 1
      %v1519 = vshll.u32 %v912, 16
      %v1521 = vsel %vm1057, %v1517, %v1519
      %v1522 = vshrl.u32 %v912, 16
      %v1524 = vrot.slane %v1522, 7
      %v1525 = vrot.slane %v1524, 1
      %v1527 = vshll.u32 %v920, 16
      %v1529 = vsel %vm1057, %v1525, %v1527
      %v1530 = vshrl.u32 %v920, 16
      %v1532 = vrot.slane %v1530, 7
      %v1533 = vrot.slane %v1532, 1
      %v1535 = vshll.u32 %v922, 16
      %v1537 = vsel %vm1057, %v1533, %v1535
      %v1538 = vshrl.u32 %v922, 16
      %v1540 = vrot.slane %v1538, 7
      %v1541 = vrot.slane %v1540, 1
      %v1543 = vshll.u32 %v905, 16
      %v1545 = vsel %vm1057, %v1541, %v1543
      %v1546 = vshrl.u32 %v905, 16
      %v1548 = vrot.slane %v1546, 7
      %v1549 = vrot.slane %v1548, 1
      %v1551 = vshll.u32 %v919, 16
      %v1553 = vsel %vm1057, %v1549, %v1551
      %v1554 = vshrl.u32 %v919, 16
      %v1556 = vrot.slane %v1554, 7
      %v1557 = vrot.slane %v1556, 1
      %v1559 = vshll.u32 %v921, 16
      %v1561 = vsel %vm1057, %v1557, %v1559
      %v1562 = vshrl.u32 %v921, 16
      %v1564 = vrot.slane %v1562, 7
      %v1565 = vrot.slane %v1564, 1
      %v1567 = vshll.u32 %v923, 16
      %v1569 = vsel %vm1057, %v1565, %v1567
      %v1570 = vshrl.u32 %v923, 16
      %v1572 = vrot.slane %v1570, 7
      %v1573 = vrot.slane %v1572, 1
      %v1575 = vshll.u32 %v1043, 16
      %v1577 = vsel %vm1057, %v1573, %v1575
      %v1586 = vcombine.high %v491, %v491
      %v1588 = vunpack.c.l.s4 1966171168
      %v1589 = vunpack.c.0.s8 %v1588
      %v1590 = vlaneseq
      %v1591 = vshrl.u32 %v1590, 7
      %v1592 = vsub.s32 %v1589, %v1591
      %v1593 = vrot.slane %v491, %v1592
      %v1595 = vunpack.c.l.s4 1966171168
      %v1596 = vunpack.c.0.s8 %v1595
      %v1597 = vlaneseq
      %v1598 = vshrl.u32 %v1597, 7
      %v1599 = vsub.s32 %v1596, %v1598
      %v1600 = vrot.slane %v1586, %v1599
      %v1601 = vcombine.high %v1593, %v1593
      %v1602 = vcombine.high %v1600, %v1600
      %v1604 = vunpack.c.l.s4 1966171168
      %v1605 = vunpack.c.0.s8 %v1604
      %v1606 = vlaneseq
      %v1607 = vshrl.u32 %v1606, 7
      %v1608 = vsub.s32 %v1605, %v1607
      %v1609 = vrot.slane %v1593, %v1608
      %v1611 = vunpack.c.l.s4 1966171168
      %v1612 = vunpack.c.0.s8 %v1611
      %v1613 = vlaneseq
      %v1614 = vshrl.u32 %v1613, 7
      %v1615 = vsub.s32 %v1612, %v1614
      %v1616 = vrot.slane %v1600, %v1615
      %v1618 = vunpack.c.l.s4 1966171168
      %v1619 = vunpack.c.0.s8 %v1618
      %v1620 = vlaneseq
      %v1621 = vshrl.u32 %v1620, 7
      %v1622 = vsub.s32 %v1619, %v1621
      %v1623 = vrot.slane %v1601, %v1622
      %v1625 = vunpack.c.l.s4 1966171168
      %v1626 = vunpack.c.0.s8 %v1625
      %v1627 = vlaneseq
      %v1628 = vshrl.u32 %v1627, 7
      %v1629 = vsub.s32 %v1626, %v1628
      %v1630 = vrot.slane %v1602, %v1629
      %v1631 = vcombine.high %v1609, %v1609
      %v1632 = vcombine.high %v1616, %v1616
      %v1633 = vcombine.high %v1623, %v1623
      %v1634 = vcombine.high %v1630, %v1630
      %v1635 = vcombine.high %v493, %v493
      %v1637 = vunpack.c.l.s4 1966171168
      %v1638 = vunpack.c.0.s8 %v1637
      %v1639 = vlaneseq
      %v1640 = vshrl.u32 %v1639, 7
      %v1641 = vsub.s32 %v1638, %v1640
      %v1642 = vrot.slane %v493, %v1641
      %v1644 = vunpack.c.l.s4 1966171168
      %v1645 = vunpack.c.0.s8 %v1644
      %v1646 = vlaneseq
      %v1647 = vshrl.u32 %v1646, 7
      %v1648 = vsub.s32 %v1645, %v1647
      %v1649 = vrot.slane %v1635, %v1648
      %v1650 = vcombine.high %v1642, %v1642
      %v1651 = vcombine.high %v1649, %v1649
      %v1653 = vunpack.c.l.s4 1966171168
      %v1654 = vunpack.c.0.s8 %v1653
      %v1655 = vlaneseq
      %v1656 = vshrl.u32 %v1655, 7
      %v1657 = vsub.s32 %v1654, %v1656
      %v1658 = vrot.slane %v1642, %v1657
      %v1660 = vunpack.c.l.s4 1966171168
      %v1661 = vunpack.c.0.s8 %v1660
      %v1662 = vlaneseq
      %v1663 = vshrl.u32 %v1662, 7
      %v1664 = vsub.s32 %v1661, %v1663
      %v1665 = vrot.slane %v1649, %v1664
      %v1667 = vunpack.c.l.s4 1966171168
      %v1668 = vunpack.c.0.s8 %v1667
      %v1669 = vlaneseq
      %v1670 = vshrl.u32 %v1669, 7
      %v1671 = vsub.s32 %v1668, %v1670
      %v1672 = vrot.slane %v1650, %v1671
      %v1674 = vunpack.c.l.s4 1966171168
      %v1675 = vunpack.c.0.s8 %v1674
      %v1676 = vlaneseq
      %v1677 = vshrl.u32 %v1676, 7
      %v1678 = vsub.s32 %v1675, %v1677
      %v1679 = vrot.slane %v1651, %v1678
      %v1680 = vcombine.high %v1658, %v1658
      %v1681 = vcombine.high %v1665, %v1665
      %v1682 = vcombine.high %v1672, %v1672
      %v1683 = vcombine.high %v1679, %v1679
      %v1684 = vcombine.high %v495, %v495
      %v1686 = vunpack.c.l.s4 1966171168
      %v1687 = vunpack.c.0.s8 %v1686
      %v1688 = vlaneseq
      %v1689 = vshrl.u32 %v1688, 7
      %v1690 = vsub.s32 %v1687, %v1689
      %v1691 = vrot.slane %v495, %v1690
      %v1693 = vunpack.c.l.s4 1966171168
      %v1694 = vunpack.c.0.s8 %v1693
      %v1695 = vlaneseq
      %v1696 = vshrl.u32 %v1695, 7
      %v1697 = vsub.s32 %v1694, %v1696
      %v1698 = vrot.slane %v1684, %v1697
      %v1699 = vcombine.high %v1691, %v1691
      %v1700 = vcombine.high %v1698, %v1698
      %v1702 = vunpack.c.l.s4 1966171168
      %v1703 = vunpack.c.0.s8 %v1702
      %v1704 = vlaneseq
      %v1705 = vshrl.u32 %v1704, 7
      %v1706 = vsub.s32 %v1703, %v1705
      %v1707 = vrot.slane %v1691, %v1706
      %v1709 = vunpack.c.l.s4 1966171168
      %v1710 = vunpack.c.0.s8 %v1709
      %v1711 = vlaneseq
      %v1712 = vshrl.u32 %v1711, 7
      %v1713 = vsub.s32 %v1710, %v1712
      %v1714 = vrot.slane %v1698, %v1713
      %v1716 = vunpack.c.l.s4 1966171168
      %v1717 = vunpack.c.0.s8 %v1716
      %v1718 = vlaneseq
      %v1719 = vshrl.u32 %v1718, 7
      %v1720 = vsub.s32 %v1717, %v1719
      %v1721 = vrot.slane %v1699, %v1720
      %v1723 = vunpack.c.l.s4 1966171168
      %v1724 = vunpack.c.0.s8 %v1723
      %v1725 = vlaneseq
      %v1726 = vshrl.u32 %v1725, 7
      %v1727 = vsub.s32 %v1724, %v1726
      %v1728 = vrot.slane %v1700, %v1727
      %v1729 = vcombine.high %v1707, %v1707
      %v1730 = vcombine.high %v1714, %v1714
      %v1731 = vcombine.high %v1721, %v1721
      %v1732 = vcombine.high %v1728, %v1728
      %v1733 = vcombine.high %v497, %v497
      %v1735 = vunpack.c.l.s4 1966171168
      %v1736 = vunpack.c.0.s8 %v1735
      %v1737 = vlaneseq
      %v1738 = vshrl.u32 %v1737, 7
      %v1739 = vsub.s32 %v1736, %v1738
      %v1740 = vrot.slane %v497, %v1739
      %v1742 = vunpack.c.l.s4 1966171168
      %v1743 = vunpack.c.0.s8 %v1742
      %v1744 = vlaneseq
      %v1745 = vshrl.u32 %v1744, 7
      %v1746 = vsub.s32 %v1743, %v1745
      %v1747 = vrot.slane %v1733, %v1746
      %v1748 = vcombine.high %v1740, %v1740
      %v1749 = vcombine.high %v1747, %v1747
      %v1751 = vunpack.c.l.s4 1966171168
      %v1752 = vunpack.c.0.s8 %v1751
      %v1753 = vlaneseq
      %v1754 = vshrl.u32 %v1753, 7
      %v1755 = vsub.s32 %v1752, %v1754
      %v1756 = vrot.slane %v1740, %v1755
      %v1758 = vunpack.c.l.s4 1966171168
      %v1759 = vunpack.c.0.s8 %v1758
      %v1760 = vlaneseq
      %v1761 = vshrl.u32 %v1760, 7
      %v1762 = vsub.s32 %v1759, %v1761
      %v1763 = vrot.slane %v1747, %v1762
      %v1765 = vunpack.c.l.s4 1966171168
      %v1766 = vunpack.c.0.s8 %v1765
      %v1767 = vlaneseq
      %v1768 = vshrl.u32 %v1767, 7
      %v1769 = vsub.s32 %v1766, %v1768
      %v1770 = vrot.slane %v1748, %v1769
      %v1772 = vunpack.c.l.s4 1966171168
      %v1773 = vunpack.c.0.s8 %v1772
      %v1774 = vlaneseq
      %v1775 = vshrl.u32 %v1774, 7
      %v1776 = vsub.s32 %v1773, %v1775
      %v1777 = vrot.slane %v1749, %v1776
      %v1778 = vcombine.high %v1756, %v1756
      %v1779 = vcombine.high %v1763, %v1763
      %v1780 = vcombine.high %v1770, %v1770
      %v1781 = vcombine.high %v1777, %v1777
      %v1782 = vcombine.high %v499, %v499
      %v1784 = vunpack.c.l.s4 1966171168
      %v1785 = vunpack.c.0.s8 %v1784
      %v1786 = vlaneseq
      %v1787 = vshrl.u32 %v1786, 7
      %v1788 = vsub.s32 %v1785, %v1787
      %v1789 = vrot.slane %v499, %v1788
      %v1791 = vunpack.c.l.s4 1966171168
      %v1792 = vunpack.c.0.s8 %v1791
      %v1793 = vlaneseq
      %v1794 = vshrl.u32 %v1793, 7
      %v1795 = vsub.s32 %v1792, %v1794
      %v1796 = vrot.slane %v1782, %v1795
      %v1797 = vcombine.high %v1789, %v1789
      %v1798 = vcombine.high %v1796, %v1796
      %v1800 = vunpack.c.l.s4 1966171168
      %v1801 = vunpack.c.0.s8 %v1800
      %v1802 = vlaneseq
      %v1803 = vshrl.u32 %v1802, 7
      %v1804 = vsub.s32 %v1801, %v1803
      %v1805 = vrot.slane %v1789, %v1804
      %v1807 = vunpack.c.l.s4 1966171168
      %v1808 = vunpack.c.0.s8 %v1807
      %v1809 = vlaneseq
      %v1810 = vshrl.u32 %v1809, 7
      %v1811 = vsub.s32 %v1808, %v1810
      %v1812 = vrot.slane %v1796, %v1811
      %v1814 = vunpack.c.l.s4 1966171168
      %v1815 = vunpack.c.0.s8 %v1814
      %v1816 = vlaneseq
      %v1817 = vshrl.u32 %v1816, 7
      %v1818 = vsub.s32 %v1815, %v1817
      %v1819 = vrot.slane %v1797, %v1818
      %v1821 = vunpack.c.l.s4 1966171168
      %v1822 = vunpack.c.0.s8 %v1821
      %v1823 = vlaneseq
      %v1824 = vshrl.u32 %v1823, 7
      %v1825 = vsub.s32 %v1822, %v1824
      %v1826 = vrot.slane %v1798, %v1825
      %v1827 = vcombine.high %v1805, %v1805
      %v1828 = vcombine.high %v1812, %v1812
      %v1829 = vcombine.high %v1819, %v1819
      %v1830 = vcombine.high %v1826, %v1826
      %v1831 = vcombine.high %v501, %v501
      %v1833 = vunpack.c.l.s4 1966171168
      %v1834 = vunpack.c.0.s8 %v1833
      %v1835 = vlaneseq
      %v1836 = vshrl.u32 %v1835, 7
      %v1837 = vsub.s32 %v1834, %v1836
      %v1838 = vrot.slane %v501, %v1837
      %v1840 = vunpack.c.l.s4 1966171168
      %v1841 = vunpack.c.0.s8 %v1840
      %v1842 = vlaneseq
      %v1843 = vshrl.u32 %v1842, 7
      %v1844 = vsub.s32 %v1841, %v1843
      %v1845 = vrot.slane %v1831, %v1844
      %v1846 = vcombine.high %v1838, %v1838
      %v1847 = vcombine.high %v1845, %v1845
      %v1849 = vunpack.c.l.s4 1966171168
      %v1850 = vunpack.c.0.s8 %v1849
      %v1851 = vlaneseq
      %v1852 = vshrl.u32 %v1851, 7
      %v1853 = vsub.s32 %v1850, %v1852
      %v1854 = vrot.slane %v1838, %v1853
      %v1856 = vunpack.c.l.s4 1966171168
      %v1857 = vunpack.c.0.s8 %v1856
      %v1858 = vlaneseq
      %v1859 = vshrl.u32 %v1858, 7
      %v1860 = vsub.s32 %v1857, %v1859
      %v1861 = vrot.slane %v1845, %v1860
      %v1863 = vunpack.c.l.s4 1966171168
      %v1864 = vunpack.c.0.s8 %v1863
      %v1865 = vlaneseq
      %v1866 = vshrl.u32 %v1865, 7
      %v1867 = vsub.s32 %v1864, %v1866
      %v1868 = vrot.slane %v1846, %v1867
      %v1870 = vunpack.c.l.s4 1966171168
      %v1871 = vunpack.c.0.s8 %v1870
      %v1872 = vlaneseq
      %v1873 = vshrl.u32 %v1872, 7
      %v1874 = vsub.s32 %v1871, %v1873
      %v1875 = vrot.slane %v1847, %v1874
      %v1876 = vcombine.high %v1854, %v1854
      %v1877 = vcombine.high %v1861, %v1861
      %v1878 = vcombine.high %v1868, %v1868
      %v1879 = vcombine.high %v1875, %v1875
      %v1880 = vcombine.high %v503, %v503
      %v1882 = vunpack.c.l.s4 1966171168
      %v1883 = vunpack.c.0.s8 %v1882
      %v1884 = vlaneseq
      %v1885 = vshrl.u32 %v1884, 7
      %v1886 = vsub.s32 %v1883, %v1885
      %v1887 = vrot.slane %v503, %v1886
      %v1889 = vunpack.c.l.s4 1966171168
      %v1890 = vunpack.c.0.s8 %v1889
      %v1891 = vlaneseq
      %v1892 = vshrl.u32 %v1891, 7
      %v1893 = vsub.s32 %v1890, %v1892
      %v1894 = vrot.slane %v1880, %v1893
      %v1895 = vcombine.high %v1887, %v1887
      %v1896 = vcombine.high %v1894, %v1894
      %v1898 = vunpack.c.l.s4 1966171168
      %v1899 = vunpack.c.0.s8 %v1898
      %v1900 = vlaneseq
      %v1901 = vshrl.u32 %v1900, 7
      %v1902 = vsub.s32 %v1899, %v1901
      %v1903 = vrot.slane %v1887, %v1902
      %v1905 = vunpack.c.l.s4 1966171168
      %v1906 = vunpack.c.0.s8 %v1905
      %v1907 = vlaneseq
      %v1908 = vshrl.u32 %v1907, 7
      %v1909 = vsub.s32 %v1906, %v1908
      %v1910 = vrot.slane %v1894, %v1909
      %v1912 = vunpack.c.l.s4 1966171168
      %v1913 = vunpack.c.0.s8 %v1912
      %v1914 = vlaneseq
      %v1915 = vshrl.u32 %v1914, 7
      %v1916 = vsub.s32 %v1913, %v1915
      %v1917 = vrot.slane %v1895, %v1916
      %v1919 = vunpack.c.l.s4 1966171168
      %v1920 = vunpack.c.0.s8 %v1919
      %v1921 = vlaneseq
      %v1922 = vshrl.u32 %v1921, 7
      %v1923 = vsub.s32 %v1920, %v1922
      %v1924 = vrot.slane %v1896, %v1923
      %v1925 = vcombine.high %v1903, %v1903
      %v1926 = vcombine.high %v1910, %v1910
      %v1927 = vcombine.high %v1917, %v1917
      %v1928 = vcombine.high %v1924, %v1924
      %v1929 = vcombine.high %v505, %v505
      %v1931 = vunpack.c.l.s4 1966171168
      %v1932 = vunpack.c.0.s8 %v1931
      %v1933 = vlaneseq
      %v1934 = vshrl.u32 %v1933, 7
      %v1935 = vsub.s32 %v1932, %v1934
      %v1936 = vrot.slane %v505, %v1935
      %v1938 = vunpack.c.l.s4 1966171168
      %v1939 = vunpack.c.0.s8 %v1938
      %v1940 = vlaneseq
      %v1941 = vshrl.u32 %v1940, 7
      %v1942 = vsub.s32 %v1939, %v1941
      %v1943 = vrot.slane %v1929, %v1942
      %v1944 = vcombine.high %v1936, %v1936
      %v1945 = vcombine.high %v1943, %v1943
      %v1947 = vunpack.c.l.s4 1966171168
      %v1948 = vunpack.c.0.s8 %v1947
      %v1949 = vlaneseq
      %v1950 = vshrl.u32 %v1949, 7
      %v1951 = vsub.s32 %v1948, %v1950
      %v1952 = vrot.slane %v1936, %v1951
      %v1954 = vunpack.c.l.s4 1966171168
      %v1955 = vunpack.c.0.s8 %v1954
      %v1956 = vlaneseq
      %v1957 = vshrl.u32 %v1956, 7
      %v1958 = vsub.s32 %v1955, %v1957
      %v1959 = vrot.slane %v1943, %v1958
      %v1961 = vunpack.c.l.s4 1966171168
      %v1962 = vunpack.c.0.s8 %v1961
      %v1963 = vlaneseq
      %v1964 = vshrl.u32 %v1963, 7
      %v1965 = vsub.s32 %v1962, %v1964
      %v1966 = vrot.slane %v1944, %v1965
      %v1968 = vunpack.c.l.s4 1966171168
      %v1969 = vunpack.c.0.s8 %v1968
      %v1970 = vlaneseq
      %v1971 = vshrl.u32 %v1970, 7
      %v1972 = vsub.s32 %v1969, %v1971
      %v1973 = vrot.slane %v1945, %v1972
      %v1974 = vcombine.high %v1952, %v1952
      %v1975 = vcombine.high %v1959, %v1959
      %v1976 = vcombine.high %v1966, %v1966
      %v1977 = vcombine.high %v1973, %v1973
      %v1987 = vunpack.c.l.s4 1966171168
      %v1988 = vunpack.c.0.s8 %v1987
      %v1989 = vlaneseq
      %v1990 = vshrl.u32 %v1989, 7
      %v1991 = vsub.s32 %v1988, %v1990
      %v1992 = vrot.slane %v508, %v1991
      %v1994 = vunpack.c.l.s4 1966171168
      %v1995 = vunpack.c.0.s8 %v1994
      %v1996 = vlaneseq
      %v1997 = vshrl.u32 %v1996, 7
      %v1998 = vsub.s32 %v1995, %v1997
      %v1999 = vrot.slane %v1992, %v1998
      %v2001 = vunpack.c.l.s4 1966171168
      %v2002 = vunpack.c.0.s8 %v2001
      %v2003 = vlaneseq
      %v2004 = vshrl.u32 %v2003, 7
      %v2005 = vsub.s32 %v2002, %v2004
      %v2006 = vrot.slane %v510, %v2005
      %v2008 = vunpack.c.l.s4 1966171168
      %v2009 = vunpack.c.0.s8 %v2008
      %v2010 = vlaneseq
      %v2011 = vshrl.u32 %v2010, 7
      %v2012 = vsub.s32 %v2009, %v2011
      %v2013 = vrot.slane %v2006, %v2012
      %v2015 = vunpack.c.l.s4 1966171168
      %v2016 = vunpack.c.0.s8 %v2015
      %v2017 = vlaneseq
      %v2018 = vshrl.u32 %v2017, 7
      %v2019 = vsub.s32 %v2016, %v2018
      %v2020 = vrot.slane %v512, %v2019
      %v2022 = vunpack.c.l.s4 1966171168
      %v2023 = vunpack.c.0.s8 %v2022
      %v2024 = vlaneseq
      %v2025 = vshrl.u32 %v2024, 7
      %v2026 = vsub.s32 %v2023, %v2025
      %v2027 = vrot.slane %v2020, %v2026
      %v2029 = vunpack.c.l.s4 1966171168
      %v2030 = vunpack.c.0.s8 %v2029
      %v2031 = vlaneseq
      %v2032 = vshrl.u32 %v2031, 7
      %v2033 = vsub.s32 %v2030, %v2032
      %v2034 = vrot.slane %v514, %v2033
      %v2036 = vunpack.c.l.s4 1966171168
      %v2037 = vunpack.c.0.s8 %v2036
      %v2038 = vlaneseq
      %v2039 = vshrl.u32 %v2038, 7
      %v2040 = vsub.s32 %v2037, %v2039
      %v2041 = vrot.slane %v2034, %v2040
      %v2043 = vunpack.c.l.s4 1966171168
      %v2044 = vunpack.c.0.s8 %v2043
      %v2045 = vlaneseq
      %v2046 = vshrl.u32 %v2045, 7
      %v2047 = vsub.s32 %v2044, %v2046
      %v2048 = vrot.slane %v516, %v2047
      %v2050 = vunpack.c.l.s4 1966171168
      %v2051 = vunpack.c.0.s8 %v2050
      %v2052 = vlaneseq
      %v2053 = vshrl.u32 %v2052, 7
      %v2054 = vsub.s32 %v2051, %v2053
      %v2055 = vrot.slane %v2048, %v2054
      %v2057 = vunpack.c.l.s4 1966171168
      %v2058 = vunpack.c.0.s8 %v2057
      %v2059 = vlaneseq
      %v2060 = vshrl.u32 %v2059, 7
      %v2061 = vsub.s32 %v2058, %v2060
      %v2062 = vrot.slane %v518, %v2061
      %v2064 = vunpack.c.l.s4 1966171168
      %v2065 = vunpack.c.0.s8 %v2064
      %v2066 = vlaneseq
      %v2067 = vshrl.u32 %v2066, 7
      %v2068 = vsub.s32 %v2065, %v2067
      %v2069 = vrot.slane %v2062, %v2068
      %v2071 = vunpack.c.l.s4 1966171168
      %v2072 = vunpack.c.0.s8 %v2071
      %v2073 = vlaneseq
      %v2074 = vshrl.u32 %v2073, 7
      %v2075 = vsub.s32 %v2072, %v2074
      %v2076 = vrot.slane %v520, %v2075
      %v2078 = vunpack.c.l.s4 1966171168
      %v2079 = vunpack.c.0.s8 %v2078
      %v2080 = vlaneseq
      %v2081 = vshrl.u32 %v2080, 7
      %v2082 = vsub.s32 %v2079, %v2081
      %v2083 = vrot.slane %v2076, %v2082
      %v2085 = vunpack.c.l.s4 1966171168
      %v2086 = vunpack.c.0.s8 %v2085
      %v2087 = vlaneseq
      %v2088 = vshrl.u32 %v2087, 7
      %v2089 = vsub.s32 %v2086, %v2088
      %v2090 = vrot.slane %v522, %v2089
      %v2092 = vunpack.c.l.s4 1966171168
      %v2093 = vunpack.c.0.s8 %v2092
      %v2094 = vlaneseq
      %v2095 = vshrl.u32 %v2094, 7
      %v2096 = vsub.s32 %v2093, %v2095
      %v2097 = vrot.slane %v2090, %v2096
      %v2099 = vshrl.u32 %v1609, 16
      %v2101 = vrot.slane %v2099, 7
      %v2102 = vrot.slane %v2101, 1
      %v2104 = vshll.u32 %v1623, 16
      %v2106 = vsel %vm1057, %v2102, %v2104
      %v2107 = vshrl.u32 %v1623, 16
      %v2109 = vrot.slane %v2107, 7
      %v2110 = vrot.slane %v2109, 1
      %v2112 = vshll.u32 %v1631, 16
      %v2114 = vsel %vm1057, %v2110, %v2112
      %v2115 = vshrl.u32 %v1631, 16
      %v2117 = vrot.slane %v2115, 7
      %v2118 = vrot.slane %v2117, 1
      %v2120 = vshll.u32 %v1633, 16
      %v2122 = vsel %vm1057, %v2118, %v2120
      %v2123 = vshrl.u32 %v1633, 16
      %v2125 = vrot.slane %v2123, 7
      %v2126 = vrot.slane %v2125, 1
      %v2128 = vshll.u32 %v1616, 16
      %v2130 = vsel %vm1057, %v2126, %v2128
      %v2131 = vshrl.u32 %v1616, 16
      %v2133 = vrot.slane %v2131, 7
      %v2134 = vrot.slane %v2133, 1
      %v2136 = vshll.u32 %v1630, 16
      %v2138 = vsel %vm1057, %v2134, %v2136
      %v2139 = vshrl.u32 %v1630, 16
      %v2141 = vrot.slane %v2139, 7
      %v2142 = vrot.slane %v2141, 1
      %v2144 = vshll.u32 %v1632, 16
      %v2146 = vsel %vm1057, %v2142, %v2144
      %v2147 = vshrl.u32 %v1632, 16
      %v2149 = vrot.slane %v2147, 7
      %v2150 = vrot.slane %v2149, 1
      %v2152 = vshll.u32 %v1634, 16
      %v2154 = vsel %vm1057, %v2150, %v2152
      %v2155 = vshrl.u32 %v1634, 16
      %v2157 = vrot.slane %v2155, 7
      %v2158 = vrot.slane %v2157, 1
      %v2160 = vshll.u32 %v1999, 16
      %v2162 = vsel %vm1057, %v2158, %v2160
      %v2164 = vshrl.u32 %v1658, 16
      %v2166 = vrot.slane %v2164, 7
      %v2167 = vrot.slane %v2166, 1
      %v2169 = vshll.u32 %v1672, 16
      %v2171 = vsel %vm1057, %v2167, %v2169
      %v2172 = vshrl.u32 %v1672, 16
      %v2174 = vrot.slane %v2172, 7
      %v2175 = vrot.slane %v2174, 1
      %v2177 = vshll.u32 %v1680, 16
      %v2179 = vsel %vm1057, %v2175, %v2177
      %v2180 = vshrl.u32 %v1680, 16
      %v2182 = vrot.slane %v2180, 7
      %v2183 = vrot.slane %v2182, 1
      %v2185 = vshll.u32 %v1682, 16
      %v2187 = vsel %vm1057, %v2183, %v2185
      %v2188 = vshrl.u32 %v1682, 16
      %v2190 = vrot.slane %v2188, 7
      %v2191 = vrot.slane %v2190, 1
      %v2193 = vshll.u32 %v1665, 16
      %v2195 = vsel %vm1057, %v2191, %v2193
      %v2196 = vshrl.u32 %v1665, 16
      %v2198 = vrot.slane %v2196, 7
      %v2199 = vrot.slane %v2198, 1
      %v2201 = vshll.u32 %v1679, 16
      %v2203 = vsel %vm1057, %v2199, %v2201
      %v2204 = vshrl.u32 %v1679, 16
      %v2206 = vrot.slane %v2204, 7
      %v2207 = vrot.slane %v2206, 1
      %v2209 = vshll.u32 %v1681, 16
      %v2211 = vsel %vm1057, %v2207, %v2209
      %v2212 = vshrl.u32 %v1681, 16
      %v2214 = vrot.slane %v2212, 7
      %v2215 = vrot.slane %v2214, 1
      %v2217 = vshll.u32 %v1683, 16
      %v2219 = vsel %vm1057, %v2215, %v2217
      %v2220 = vshrl.u32 %v1683, 16
      %v2222 = vrot.slane %v2220, 7
      %v2223 = vrot.slane %v2222, 1
      %v2225 = vshll.u32 %v2013, 16
      %v2227 = vsel %vm1057, %v2223, %v2225
      %v2229 = vshrl.u32 %v1707, 16
      %v2231 = vrot.slane %v2229, 7
      %v2232 = vrot.slane %v2231, 1
      %v2234 = vshll.u32 %v1721, 16
      %v2236 = vsel %vm1057, %v2232, %v2234
      %v2237 = vshrl.u32 %v1721, 16
      %v2239 = vrot.slane %v2237, 7
      %v2240 = vrot.slane %v2239, 1
      %v2242 = vshll.u32 %v1729, 16
      %v2244 = vsel %vm1057, %v2240, %v2242
      %v2245 = vshrl.u32 %v1729, 16
      %v2247 = vrot.slane %v2245, 7
      %v2248 = vrot.slane %v2247, 1
      %v2250 = vshll.u32 %v1731, 16
      %v2252 = vsel %vm1057, %v2248, %v2250
      %v2253 = vshrl.u32 %v1731, 16
      %v2255 = vrot.slane %v2253, 7
      %v2256 = vrot.slane %v2255, 1
      %v2258 = vshll.u32 %v1714, 16
      %v2260 = vsel %vm1057, %v2256, %v2258
      %v2261 = vshrl.u32 %v1714, 16
      %v2263 = vrot.slane %v2261, 7
      %v2264 = vrot.slane %v2263, 1
      %v2266 = vshll.u32 %v1728, 16
      %v2268 = vsel %vm1057, %v2264, %v2266
      %v2269 = vshrl.u32 %v1728, 16
      %v2271 = vrot.slane %v2269, 7
      %v2272 = vrot.slane %v2271, 1
      %v2274 = vshll.u32 %v1730, 16
      %v2276 = vsel %vm1057, %v2272, %v2274
      %v2277 = vshrl.u32 %v1730, 16
      %v2279 = vrot.slane %v2277, 7
      %v2280 = vrot.slane %v2279, 1
      %v2282 = vshll.u32 %v1732, 16
      %v2284 = vsel %vm1057, %v2280, %v2282
      %v2285 = vshrl.u32 %v1732, 16
      %v2287 = vrot.slane %v2285, 7
      %v2288 = vrot.slane %v2287, 1
      %v2290 = vshll.u32 %v2027, 16
      %v2292 = vsel %vm1057, %v2288, %v2290
      %v2294 = vshrl.u32 %v1756, 16
      %v2296 = vrot.slane %v2294, 7
      %v2297 = vrot.slane %v2296, 1
      %v2299 = vshll.u32 %v1770, 16
      %v2301 = vsel %vm1057, %v2297, %v2299
      %v2302 = vshrl.u32 %v1770, 16
      %v2304 = vrot.slane %v2302, 7
      %v2305 = vrot.slane %v2304, 1
      %v2307 = vshll.u32 %v1778, 16
      %v2309 = vsel %vm1057, %v2305, %v2307
      %v2310 = vshrl.u32 %v1778, 16
      %v2312 = vrot.slane %v2310, 7
      %v2313 = vrot.slane %v2312, 1
      %v2315 = vshll.u32 %v1780, 16
      %v2317 = vsel %vm1057, %v2313, %v2315
      %v2318 = vshrl.u32 %v1780, 16
      %v2320 = vrot.slane %v2318, 7
      %v2321 = vrot.slane %v2320, 1
      %v2323 = vshll.u32 %v1763, 16
      %v2325 = vsel %vm1057, %v2321, %v2323
      %v2326 = vshrl.u32 %v1763, 16
      %v2328 = vrot.slane %v2326, 7
      %v2329 = vrot.slane %v2328, 1
      %v2331 = vshll.u32 %v1777, 16
      %v2333 = vsel %vm1057, %v2329, %v2331
      %v2334 = vshrl.u32 %v1777, 16
      %v2336 = vrot.slane %v2334, 7
      %v2337 = vrot.slane %v2336, 1
      %v2339 = vshll.u32 %v1779, 16
      %v2341 = vsel %vm1057, %v2337, %v2339
      %v2342 = vshrl.u32 %v1779, 16
      %v2344 = vrot.slane %v2342, 7
      %v2345 = vrot.slane %v2344, 1
      %v2347 = vshll.u32 %v1781, 16
      %v2349 = vsel %vm1057, %v2345, %v2347
      %v2350 = vshrl.u32 %v1781, 16
      %v2352 = vrot.slane %v2350, 7
      %v2353 = vrot.slane %v2352, 1
      %v2355 = vshll.u32 %v2041, 16
      %v2357 = vsel %vm1057, %v2353, %v2355
      %v2359 = vshrl.u32 %v1805, 16
      %v2361 = vrot.slane %v2359, 7
      %v2362 = vrot.slane %v2361, 1
      %v2364 = vshll.u32 %v1819, 16
      %v2366 = vsel %vm1057, %v2362, %v2364
      %v2367 = vshrl.u32 %v1819, 16
      %v2369 = vrot.slane %v2367, 7
      %v2370 = vrot.slane %v2369, 1
      %v2372 = vshll.u32 %v1827, 16
      %v2374 = vsel %vm1057, %v2370, %v2372
      %v2375 = vshrl.u32 %v1827, 16
      %v2377 = vrot.slane %v2375, 7
      %v2378 = vrot.slane %v2377, 1
      %v2380 = vshll.u32 %v1829, 16
      %v2382 = vsel %vm1057, %v2378, %v2380
      %v2383 = vshrl.u32 %v1829, 16
      %v2385 = vrot.slane %v2383, 7
      %v2386 = vrot.slane %v2385, 1
      %v2388 = vshll.u32 %v1812, 16
      %v2390 = vsel %vm1057, %v2386, %v2388
      %v2391 = vshrl.u32 %v1812, 16
      %v2393 = vrot.slane %v2391, 7
      %v2394 = vrot.slane %v2393, 1
      %v2396 = vshll.u32 %v1826, 16
      %v2398 = vsel %vm1057, %v2394, %v2396
      %v2399 = vshrl.u32 %v1826, 16
      %v2401 = vrot.slane %v2399, 7
      %v2402 = vrot.slane %v2401, 1
      %v2404 = vshll.u32 %v1828, 16
      %v2406 = vsel %vm1057, %v2402, %v2404
      %v2407 = vshrl.u32 %v1828, 16
      %v2409 = vrot.slane %v2407, 7
      %v2410 = vrot.slane %v2409, 1
      %v2412 = vshll.u32 %v1830, 16
      %v2414 = vsel %vm1057, %v2410, %v2412
      %v2415 = vshrl.u32 %v1830, 16
      %v2417 = vrot.slane %v2415, 7
      %v2418 = vrot.slane %v2417, 1
      %v2420 = vshll.u32 %v2055, 16
      %v2422 = vsel %vm1057, %v2418, %v2420
      %v2424 = vshrl.u32 %v1854, 16
      %v2426 = vrot.slane %v2424, 7
      %v2427 = vrot.slane %v2426, 1
      %v2429 = vshll.u32 %v1868, 16
      %v2431 = vsel %vm1057, %v2427, %v2429
      %v2432 = vshrl.u32 %v1868, 16
      %v2434 = vrot.slane %v2432, 7
      %v2435 = vrot.slane %v2434, 1
      %v2437 = vshll.u32 %v1876, 16
      %v2439 = vsel %vm1057, %v2435, %v2437
      %v2440 = vshrl.u32 %v1876, 16
      %v2442 = vrot.slane %v2440, 7
      %v2443 = vrot.slane %v2442, 1
      %v2445 = vshll.u32 %v1878, 16
      %v2447 = vsel %vm1057, %v2443, %v2445
      %v2448 = vshrl.u32 %v1878, 16
      %v2450 = vrot.slane %v2448, 7
      %v2451 = vrot.slane %v2450, 1
      %v2453 = vshll.u32 %v1861, 16
      %v2455 = vsel %vm1057, %v2451, %v2453
      %v2456 = vshrl.u32 %v1861, 16
      %v2458 = vrot.slane %v2456, 7
      %v2459 = vrot.slane %v2458, 1
      %v2461 = vshll.u32 %v1875, 16
      %v2463 = vsel %vm1057, %v2459, %v2461
      %v2464 = vshrl.u32 %v1875, 16
      %v2466 = vrot.slane %v2464, 7
      %v2467 = vrot.slane %v2466, 1
      %v2469 = vshll.u32 %v1877, 16
      %v2471 = vsel %vm1057, %v2467, %v2469
      %v2472 = vshrl.u32 %v1877, 16
      %v2474 = vrot.slane %v2472, 7
      %v2475 = vrot.slane %v2474, 1
      %v2477 = vshll.u32 %v1879, 16
      %v2479 = vsel %vm1057, %v2475, %v2477
      %v2480 = vshrl.u32 %v1879, 16
      %v2482 = vrot.slane %v2480, 7
      %v2483 = vrot.slane %v2482, 1
      %v2485 = vshll.u32 %v2069, 16
      %v2487 = vsel %vm1057, %v2483, %v2485
      %v2489 = vshrl.u32 %v1903, 16
      %v2491 = vrot.slane %v2489, 7
      %v2492 = vrot.slane %v2491, 1
      %v2494 = vshll.u32 %v1917, 16
      %v2496 = vsel %vm1057, %v2492, %v2494
      %v2497 = vshrl.u32 %v1917, 16
      %v2499 = vrot.slane %v2497, 7
      %v2500 = vrot.slane %v2499, 1
      %v2502 = vshll.u32 %v1925, 16
      %v2504 = vsel %vm1057, %v2500, %v2502
      %v2505 = vshrl.u32 %v1925, 16
      %v2507 = vrot.slane %v2505, 7
      %v2508 = vrot.slane %v2507, 1
      %v2510 = vshll.u32 %v1927, 16
      %v2512 = vsel %vm1057, %v2508, %v2510
      %v2513 = vshrl.u32 %v1927, 16
      %v2515 = vrot.slane %v2513, 7
      %v2516 = vrot.slane %v2515, 1
      %v2518 = vshll.u32 %v1910, 16
      %v2520 = vsel %vm1057, %v2516, %v2518
      %v2521 = vshrl.u32 %v1910, 16
      %v2523 = vrot.slane %v2521, 7
      %v2524 = vrot.slane %v2523, 1
      %v2526 = vshll.u32 %v1924, 16
      %v2528 = vsel %vm1057, %v2524, %v2526
      %v2529 = vshrl.u32 %v1924, 16
      %v2531 = vrot.slane %v2529, 7
      %v2532 = vrot.slane %v2531, 1
      %v2534 = vshll.u32 %v1926, 16
      %v2536 = vsel %vm1057, %v2532, %v2534
      %v2537 = vshrl.u32 %v1926, 16
      %v2539 = vrot.slane %v2537, 7
      %v2540 = vrot.slane %v2539, 1
      %v2542 = vshll.u32 %v1928, 16
      %v2544 = vsel %vm1057, %v2540, %v2542
      %v2545 = vshrl.u32 %v1928, 16
      %v2547 = vrot.slane %v2545, 7
      %v2548 = vrot.slane %v2547, 1
      %v2550 = vshll.u32 %v2083, 16
      %v2552 = vsel %vm1057, %v2548, %v2550
      %v2554 = vshrl.u32 %v1952, 16
      %v2556 = vrot.slane %v2554, 7
      %v2557 = vrot.slane %v2556, 1
      %v2559 = vshll.u32 %v1966, 16
      %v2561 = vsel %vm1057, %v2557, %v2559
      %v2562 = vshrl.u32 %v1966, 16
      %v2564 = vrot.slane %v2562, 7
      %v2565 = vrot.slane %v2564, 1
      %v2567 = vshll.u32 %v1974, 16
      %v2569 = vsel %vm1057, %v2565, %v2567
      %v2570 = vshrl.u32 %v1974, 16
      %v2572 = vrot.slane %v2570, 7
      %v2573 = vrot.slane %v2572, 1
      %v2575 = vshll.u32 %v1976, 16
      %v2577 = vsel %vm1057, %v2573, %v2575
      %v2578 = vshrl.u32 %v1976, 16
      %v2580 = vrot.slane %v2578, 7
      %v2581 = vrot.slane %v2580, 1
      %v2583 = vshll.u32 %v1959, 16
      %v2585 = vsel %vm1057, %v2581, %v2583
      %v2586 = vshrl.u32 %v1959, 16
      %v2588 = vrot.slane %v2586, 7
      %v2589 = vrot.slane %v2588, 1
      %v2591 = vshll.u32 %v1973, 16
      %v2593 = vsel %vm1057, %v2589, %v2591
      %v2594 = vshrl.u32 %v1973, 16
      %v2596 = vrot.slane %v2594, 7
      %v2597 = vrot.slane %v2596, 1
      %v2599 = vshll.u32 %v1975, 16
      %v2601 = vsel %vm1057, %v2597, %v2599
      %v2602 = vshrl.u32 %v1975, 16
      %v2604 = vrot.slane %v2602, 7
      %v2605 = vrot.slane %v2604, 1
      %v2607 = vshll.u32 %v1977, 16
      %v2609 = vsel %vm1057, %v2605, %v2607
      %v2610 = vshrl.u32 %v1977, 16
      %v2612 = vrot.slane %v2610, 7
      %v2613 = vrot.slane %v2612, 1
      %v2615 = vshll.u32 %v2097, 16
      %v2617 = vsel %vm1057, %v2613, %v2615
      %v2619 = vcombine.high %v506, %v506
      %v2621 = vunpack.c.l.s4 1966171168
      %v2622 = vunpack.c.0.s8 %v2621
      %v2623 = vlaneseq
      %v2624 = vshrl.u32 %v2623, 7
      %v2625 = vsub.s32 %v2622, %v2624
      %v2626 = vrot.slane %v506, %v2625
      %v2628 = vunpack.c.l.s4 1966171168
      %v2629 = vunpack.c.0.s8 %v2628
      %v2630 = vlaneseq
      %v2631 = vshrl.u32 %v2630, 7
      %v2632 = vsub.s32 %v2629, %v2631
      %v2633 = vrot.slane %v2619, %v2632
      %v2634 = vcombine.high %v2626, %v2626
      %v2635 = vcombine.high %v2633, %v2633
      %v2637 = vunpack.c.l.s4 1966171168
      %v2638 = vunpack.c.0.s8 %v2637
      %v2639 = vlaneseq
      %v2640 = vshrl.u32 %v2639, 7
      %v2641 = vsub.s32 %v2638, %v2640
      %v2642 = vrot.slane %v2626, %v2641
      %v2644 = vunpack.c.l.s4 1966171168
      %v2645 = vunpack.c.0.s8 %v2644
      %v2646 = vlaneseq
      %v2647 = vshrl.u32 %v2646, 7
      %v2648 = vsub.s32 %v2645, %v2647
      %v2649 = vrot.slane %v2633, %v2648
      %v2651 = vunpack.c.l.s4 1966171168
      %v2652 = vunpack.c.0.s8 %v2651
      %v2653 = vlaneseq
      %v2654 = vshrl.u32 %v2653, 7
      %v2655 = vsub.s32 %v2652, %v2654
      %v2656 = vrot.slane %v2634, %v2655
      %v2658 = vunpack.c.l.s4 1966171168
      %v2659 = vunpack.c.0.s8 %v2658
      %v2660 = vlaneseq
      %v2661 = vshrl.u32 %v2660, 7
      %v2662 = vsub.s32 %v2659, %v2661
      %v2663 = vrot.slane %v2635, %v2662
      %v2664 = vcombine.high %v2642, %v2642
      %v2665 = vcombine.high %v2649, %v2649
      %v2666 = vcombine.high %v2656, %v2656
      %v2667 = vcombine.high %v2663, %v2663
      %v2670 = vunpack.c.l.s4 1966171168
      %v2671 = vunpack.c.0.s8 %v2670
      %v2672 = vlaneseq
      %v2673 = vshrl.u32 %v2672, 7
      %v2674 = vsub.s32 %v2671, %v2673
      %v2675 = vrot.slane %v523, %v2674
      %v2677 = vunpack.c.l.s4 1966171168
      %v2678 = vunpack.c.0.s8 %v2677
      %v2679 = vlaneseq
      %v2680 = vshrl.u32 %v2679, 7
      %v2681 = vsub.s32 %v2678, %v2680
      %v2682 = vrot.slane %v2675, %v2681
      %v2684 = vshrl.u32 %v2642, 16
      %v2686 = vrot.slane %v2684, 7
      %v2687 = vrot.slane %v2686, 1
      %v2689 = vshll.u32 %v2656, 16
      %v2691 = vsel %vm1057, %v2687, %v2689
      %v2692 = vshrl.u32 %v2656, 16
      %v2694 = vrot.slane %v2692, 7
      %v2695 = vrot.slane %v2694, 1
      %v2697 = vshll.u32 %v2664, 16
      %v2699 = vsel %vm1057, %v2695, %v2697
      %v2700 = vshrl.u32 %v2664, 16
      %v2702 = vrot.slane %v2700, 7
      %v2703 = vrot.slane %v2702, 1
      %v2705 = vshll.u32 %v2666, 16
      %v2707 = vsel %vm1057, %v2703, %v2705
      %v2708 = vshrl.u32 %v2666, 16
      %v2710 = vrot.slane %v2708, 7
      %v2711 = vrot.slane %v2710, 1
      %v2713 = vshll.u32 %v2649, 16
      %v2715 = vsel %vm1057, %v2711, %v2713
      %v2716 = vshrl.u32 %v2649, 16
      %v2718 = vrot.slane %v2716, 7
      %v2719 = vrot.slane %v2718, 1
      %v2721 = vshll.u32 %v2663, 16
      %v2723 = vsel %vm1057, %v2719, %v2721
      %v2724 = vshrl.u32 %v2663, 16
      %v2726 = vrot.slane %v2724, 7
      %v2727 = vrot.slane %v2726, 1
      %v2729 = vshll.u32 %v2665, 16
      %v2731 = vsel %vm1057, %v2727, %v2729
      %v2732 = vshrl.u32 %v2665, 16
      %v2734 = vrot.slane %v2732, 7
      %v2735 = vrot.slane %v2734, 1
      %v2737 = vshll.u32 %v2667, 16
      %v2739 = vsel %vm1057, %v2735, %v2737
      %v2740 = vshrl.u32 %v2667, 16
      %v2742 = vrot.slane %v2740, 7
      %v2743 = vrot.slane %v2742, 1
      %v2745 = vshll.u32 %v2682, 16
      %v2747 = vsel %vm1057, %v2743, %v2745
      %v2748 = vld [vmem:[%s1] sm:$0xf]
      %v2749 = vld [vmem:[%s1 + $0x4] sm:$0xf]
      %v2750 = vld [vmem:[%s1 + $0x8] sm:$0xf]
      %v2751 = vld [vmem:[%s1 + $0xc] sm:$0xf]
      %v2752 = vld [vmem:[%s1 + $0x10] sm:$0x3]
      %v2754 = vunpack.c.l.s4 1966171168
      %v2755 = vunpack.c.0.s8 %v2754
      %v2756 = vlaneseq
      %v2757 = vshrl.u32 %v2756, 7
      %v2758 = vsub.s32 %v2755, %v2757
      %v2759 = vrot.slane %v555, %v2758
      %v2761 = vunpack.c.l.s4 1966171168
      %v2762 = vunpack.c.0.s8 %v2761
      %v2763 = vlaneseq
      %v2764 = vshrl.u32 %v2763, 7
      %v2765 = vsub.s32 %v2762, %v2764
      %v2766 = vrot.slane %v2759, %v2765
      %v2768 = vunpack.c.l.s4 1966171168
      %v2769 = vunpack.c.0.s8 %v2768
      %v2770 = vlaneseq
      %v2771 = vshrl.u32 %v2770, 7
      %v2772 = vsub.s32 %v2769, %v2771
      %v2773 = vrot.slane %v569, %v2772
      %v2775 = vunpack.c.l.s4 1966171168
      %v2776 = vunpack.c.0.s8 %v2775
      %v2777 = vlaneseq
      %v2778 = vshrl.u32 %v2777, 7
      %v2779 = vsub.s32 %v2776, %v2778
      %v2780 = vrot.slane %v2773, %v2779
      %v2782 = vunpack.c.l.s4 1966171168
      %v2783 = vunpack.c.0.s8 %v2782
      %v2784 = vlaneseq
      %v2785 = vshrl.u32 %v2784, 7
      %v2786 = vsub.s32 %v2783, %v2785
      %v2787 = vrot.slane %v577, %v2786
      %v2789 = vunpack.c.l.s4 1966171168
      %v2790 = vunpack.c.0.s8 %v2789
      %v2791 = vlaneseq
      %v2792 = vshrl.u32 %v2791, 7
      %v2793 = vsub.s32 %v2790, %v2792
      %v2794 = vrot.slane %v2787, %v2793
      %v2796 = vunpack.c.l.s4 1966171168
      %v2797 = vunpack.c.0.s8 %v2796
      %v2798 = vlaneseq
      %v2799 = vshrl.u32 %v2798, 7
      %v2800 = vsub.s32 %v2797, %v2799
      %v2801 = vrot.slane %v579, %v2800
      %v2803 = vunpack.c.l.s4 1966171168
      %v2804 = vunpack.c.0.s8 %v2803
      %v2805 = vlaneseq
      %v2806 = vshrl.u32 %v2805, 7
      %v2807 = vsub.s32 %v2804, %v2806
      %v2808 = vrot.slane %v2801, %v2807
      %v2810 = vunpack.c.l.s4 1966171168
      %v2811 = vunpack.c.0.s8 %v2810
      %v2812 = vlaneseq
      %v2813 = vshrl.u32 %v2812, 7
      %v2814 = vsub.s32 %v2811, %v2813
      %v2815 = vrot.slane %v562, %v2814
      %v2817 = vunpack.c.l.s4 1966171168
      %v2818 = vunpack.c.0.s8 %v2817
      %v2819 = vlaneseq
      %v2820 = vshrl.u32 %v2819, 7
      %v2821 = vsub.s32 %v2818, %v2820
      %v2822 = vrot.slane %v2815, %v2821
      %v2824 = vunpack.c.l.s4 1966171168
      %v2825 = vunpack.c.0.s8 %v2824
      %v2826 = vlaneseq
      %v2827 = vshrl.u32 %v2826, 7
      %v2828 = vsub.s32 %v2825, %v2827
      %v2829 = vrot.slane %v576, %v2828
      %v2831 = vunpack.c.l.s4 1966171168
      %v2832 = vunpack.c.0.s8 %v2831
      %v2833 = vlaneseq
      %v2834 = vshrl.u32 %v2833, 7
      %v2835 = vsub.s32 %v2832, %v2834
      %v2836 = vrot.slane %v2829, %v2835
      %v2838 = vunpack.c.l.s4 1966171168
      %v2839 = vunpack.c.0.s8 %v2838
      %v2840 = vlaneseq
      %v2841 = vshrl.u32 %v2840, 7
      %v2842 = vsub.s32 %v2839, %v2841
      %v2843 = vrot.slane %v578, %v2842
      %v2845 = vunpack.c.l.s4 1966171168
      %v2846 = vunpack.c.0.s8 %v2845
      %v2847 = vlaneseq
      %v2848 = vshrl.u32 %v2847, 7
      %v2849 = vsub.s32 %v2846, %v2848
      %v2850 = vrot.slane %v2843, %v2849
      %v2852 = vunpack.c.l.s4 1966171168
      %v2853 = vunpack.c.0.s8 %v2852
      %v2854 = vlaneseq
      %v2855 = vshrl.u32 %v2854, 7
      %v2856 = vsub.s32 %v2853, %v2855
      %v2857 = vrot.slane %v580, %v2856
      %v2859 = vunpack.c.l.s4 1966171168
      %v2860 = vunpack.c.0.s8 %v2859
      %v2861 = vlaneseq
      %v2862 = vshrl.u32 %v2861, 7
      %v2863 = vsub.s32 %v2860, %v2862
      %v2864 = vrot.slane %v2857, %v2863
      %v2866 = vunpack.c.l.s4 1966171168
      %v2867 = vunpack.c.0.s8 %v2866
      %v2868 = vlaneseq
      %v2869 = vshrl.u32 %v2868, 7
      %v2870 = vsub.s32 %v2867, %v2869
      %v2871 = vrot.slane %v604, %v2870
      %v2873 = vunpack.c.l.s4 1966171168
      %v2874 = vunpack.c.0.s8 %v2873
      %v2875 = vlaneseq
      %v2876 = vshrl.u32 %v2875, 7
      %v2877 = vsub.s32 %v2874, %v2876
      %v2878 = vrot.slane %v2871, %v2877
      %v2880 = vunpack.c.l.s4 1966171168
      %v2881 = vunpack.c.0.s8 %v2880
      %v2882 = vlaneseq
      %v2883 = vshrl.u32 %v2882, 7
      %v2884 = vsub.s32 %v2881, %v2883
      %v2885 = vrot.slane %v618, %v2884
      %v2887 = vunpack.c.l.s4 1966171168
      %v2888 = vunpack.c.0.s8 %v2887
      %v2889 = vlaneseq
      %v2890 = vshrl.u32 %v2889, 7
      %v2891 = vsub.s32 %v2888, %v2890
      %v2892 = vrot.slane %v2885, %v2891
      %v2894 = vunpack.c.l.s4 1966171168
      %v2895 = vunpack.c.0.s8 %v2894
      %v2896 = vlaneseq
      %v2897 = vshrl.u32 %v2896, 7
      %v2898 = vsub.s32 %v2895, %v2897
      %v2899 = vrot.slane %v626, %v2898
      %v2901 = vunpack.c.l.s4 1966171168
      %v2902 = vunpack.c.0.s8 %v2901
      %v2903 = vlaneseq
      %v2904 = vshrl.u32 %v2903, 7
      %v2905 = vsub.s32 %v2902, %v2904
      %v2906 = vrot.slane %v2899, %v2905
      %v2908 = vunpack.c.l.s4 1966171168
      %v2909 = vunpack.c.0.s8 %v2908
      %v2910 = vlaneseq
      %v2911 = vshrl.u32 %v2910, 7
      %v2912 = vsub.s32 %v2909, %v2911
      %v2913 = vrot.slane %v628, %v2912
      %v2915 = vunpack.c.l.s4 1966171168
      %v2916 = vunpack.c.0.s8 %v2915
      %v2917 = vlaneseq
      %v2918 = vshrl.u32 %v2917, 7
      %v2919 = vsub.s32 %v2916, %v2918
      %v2920 = vrot.slane %v2913, %v2919
      %v2922 = vunpack.c.l.s4 1966171168
      %v2923 = vunpack.c.0.s8 %v2922
      %v2924 = vlaneseq
      %v2925 = vshrl.u32 %v2924, 7
      %v2926 = vsub.s32 %v2923, %v2925
      %v2927 = vrot.slane %v611, %v2926
      %v2929 = vunpack.c.l.s4 1966171168
      %v2930 = vunpack.c.0.s8 %v2929
      %v2931 = vlaneseq
      %v2932 = vshrl.u32 %v2931, 7
      %v2933 = vsub.s32 %v2930, %v2932
      %v2934 = vrot.slane %v2927, %v2933
      %v2936 = vunpack.c.l.s4 1966171168
      %v2937 = vunpack.c.0.s8 %v2936
      %v2938 = vlaneseq
      %v2939 = vshrl.u32 %v2938, 7
      %v2940 = vsub.s32 %v2937, %v2939
      %v2941 = vrot.slane %v625, %v2940
      %v2943 = vunpack.c.l.s4 1966171168
      %v2944 = vunpack.c.0.s8 %v2943
      %v2945 = vlaneseq
      %v2946 = vshrl.u32 %v2945, 7
      %v2947 = vsub.s32 %v2944, %v2946
      %v2948 = vrot.slane %v2941, %v2947
      %v2950 = vunpack.c.l.s4 1966171168
      %v2951 = vunpack.c.0.s8 %v2950
      %v2952 = vlaneseq
      %v2953 = vshrl.u32 %v2952, 7
      %v2954 = vsub.s32 %v2951, %v2953
      %v2955 = vrot.slane %v627, %v2954
      %v2957 = vunpack.c.l.s4 1966171168
      %v2958 = vunpack.c.0.s8 %v2957
      %v2959 = vlaneseq
      %v2960 = vshrl.u32 %v2959, 7
      %v2961 = vsub.s32 %v2958, %v2960
      %v2962 = vrot.slane %v2955, %v2961
      %v2964 = vunpack.c.l.s4 1966171168
      %v2965 = vunpack.c.0.s8 %v2964
      %v2966 = vlaneseq
      %v2967 = vshrl.u32 %v2966, 7
      %v2968 = vsub.s32 %v2965, %v2967
      %v2969 = vrot.slane %v629, %v2968
      %v2971 = vunpack.c.l.s4 1966171168
      %v2972 = vunpack.c.0.s8 %v2971
      %v2973 = vlaneseq
      %v2974 = vshrl.u32 %v2973, 7
      %v2975 = vsub.s32 %v2972, %v2974
      %v2976 = vrot.slane %v2969, %v2975
      %v2978 = vunpack.c.l.s4 1966171168
      %v2979 = vunpack.c.0.s8 %v2978
      %v2980 = vlaneseq
      %v2981 = vshrl.u32 %v2980, 7
      %v2982 = vsub.s32 %v2979, %v2981
      %v2983 = vrot.slane %v653, %v2982
      %v2985 = vunpack.c.l.s4 1966171168
      %v2986 = vunpack.c.0.s8 %v2985
      %v2987 = vlaneseq
      %v2988 = vshrl.u32 %v2987, 7
      %v2989 = vsub.s32 %v2986, %v2988
      %v2990 = vrot.slane %v2983, %v2989
      %v2992 = vunpack.c.l.s4 1966171168
      %v2993 = vunpack.c.0.s8 %v2992
      %v2994 = vlaneseq
      %v2995 = vshrl.u32 %v2994, 7
      %v2996 = vsub.s32 %v2993, %v2995
      %v2997 = vrot.slane %v667, %v2996
      %v2999 = vunpack.c.l.s4 1966171168
      %v3000 = vunpack.c.0.s8 %v2999
      %v3001 = vlaneseq
      %v3002 = vshrl.u32 %v3001, 7
      %v3003 = vsub.s32 %v3000, %v3002
      %v3004 = vrot.slane %v2997, %v3003
      %v3006 = vunpack.c.l.s4 1966171168
      %v3007 = vunpack.c.0.s8 %v3006
      %v3008 = vlaneseq
      %v3009 = vshrl.u32 %v3008, 7
      %v3010 = vsub.s32 %v3007, %v3009
      %v3011 = vrot.slane %v675, %v3010
      %v3013 = vunpack.c.l.s4 1966171168
      %v3014 = vunpack.c.0.s8 %v3013
      %v3015 = vlaneseq
      %v3016 = vshrl.u32 %v3015, 7
      %v3017 = vsub.s32 %v3014, %v3016
      %v3018 = vrot.slane %v3011, %v3017
      %v3020 = vunpack.c.l.s4 1966171168
      %v3021 = vunpack.c.0.s8 %v3020
      %v3022 = vlaneseq
      %v3023 = vshrl.u32 %v3022, 7
      %v3024 = vsub.s32 %v3021, %v3023
      %v3025 = vrot.slane %v677, %v3024
      %v3027 = vunpack.c.l.s4 1966171168
      %v3028 = vunpack.c.0.s8 %v3027
      %v3029 = vlaneseq
      %v3030 = vshrl.u32 %v3029, 7
      %v3031 = vsub.s32 %v3028, %v3030
      %v3032 = vrot.slane %v3025, %v3031
      %v3034 = vunpack.c.l.s4 1966171168
      %v3035 = vunpack.c.0.s8 %v3034
      %v3036 = vlaneseq
      %v3037 = vshrl.u32 %v3036, 7
      %v3038 = vsub.s32 %v3035, %v3037
      %v3039 = vrot.slane %v660, %v3038
      %v3041 = vunpack.c.l.s4 1966171168
      %v3042 = vunpack.c.0.s8 %v3041
      %v3043 = vlaneseq
      %v3044 = vshrl.u32 %v3043, 7
      %v3045 = vsub.s32 %v3042, %v3044
      %v3046 = vrot.slane %v3039, %v3045
      %v3048 = vunpack.c.l.s4 1966171168
      %v3049 = vunpack.c.0.s8 %v3048
      %v3050 = vlaneseq
      %v3051 = vshrl.u32 %v3050, 7
      %v3052 = vsub.s32 %v3049, %v3051
      %v3053 = vrot.slane %v674, %v3052
      %v3055 = vunpack.c.l.s4 1966171168
      %v3056 = vunpack.c.0.s8 %v3055
      %v3057 = vlaneseq
      %v3058 = vshrl.u32 %v3057, 7
      %v3059 = vsub.s32 %v3056, %v3058
      %v3060 = vrot.slane %v3053, %v3059
      %v3062 = vunpack.c.l.s4 1966171168
      %v3063 = vunpack.c.0.s8 %v3062
      %v3064 = vlaneseq
      %v3065 = vshrl.u32 %v3064, 7
      %v3066 = vsub.s32 %v3063, %v3065
      %v3067 = vrot.slane %v676, %v3066
      %v3069 = vunpack.c.l.s4 1966171168
      %v3070 = vunpack.c.0.s8 %v3069
      %v3071 = vlaneseq
      %v3072 = vshrl.u32 %v3071, 7
      %v3073 = vsub.s32 %v3070, %v3072
      %v3074 = vrot.slane %v3067, %v3073
      %v3076 = vunpack.c.l.s4 1966171168
      %v3077 = vunpack.c.0.s8 %v3076
      %v3078 = vlaneseq
      %v3079 = vshrl.u32 %v3078, 7
      %v3080 = vsub.s32 %v3077, %v3079
      %v3081 = vrot.slane %v678, %v3080
      %v3083 = vunpack.c.l.s4 1966171168
      %v3084 = vunpack.c.0.s8 %v3083
      %v3085 = vlaneseq
      %v3086 = vshrl.u32 %v3085, 7
      %v3087 = vsub.s32 %v3084, %v3086
      %v3088 = vrot.slane %v3081, %v3087
      %v3090 = vunpack.c.l.s4 1966171168
      %v3091 = vunpack.c.0.s8 %v3090
      %v3092 = vlaneseq
      %v3093 = vshrl.u32 %v3092, 7
      %v3094 = vsub.s32 %v3091, %v3093
      %v3095 = vrot.slane %v702, %v3094
      %v3097 = vunpack.c.l.s4 1966171168
      %v3098 = vunpack.c.0.s8 %v3097
      %v3099 = vlaneseq
      %v3100 = vshrl.u32 %v3099, 7
      %v3101 = vsub.s32 %v3098, %v3100
      %v3102 = vrot.slane %v3095, %v3101
      %v3104 = vunpack.c.l.s4 1966171168
      %v3105 = vunpack.c.0.s8 %v3104
      %v3106 = vlaneseq
      %v3107 = vshrl.u32 %v3106, 7
      %v3108 = vsub.s32 %v3105, %v3107
      %v3109 = vrot.slane %v716, %v3108
      %v3111 = vunpack.c.l.s4 1966171168
      %v3112 = vunpack.c.0.s8 %v3111
      %v3113 = vlaneseq
      %v3114 = vshrl.u32 %v3113, 7
      %v3115 = vsub.s32 %v3112, %v3114
      %v3116 = vrot.slane %v3109, %v3115
      %v3118 = vunpack.c.l.s4 1966171168
      %v3119 = vunpack.c.0.s8 %v3118
      %v3120 = vlaneseq
      %v3121 = vshrl.u32 %v3120, 7
      %v3122 = vsub.s32 %v3119, %v3121
      %v3123 = vrot.slane %v724, %v3122
      %v3125 = vunpack.c.l.s4 1966171168
      %v3126 = vunpack.c.0.s8 %v3125
      %v3127 = vlaneseq
      %v3128 = vshrl.u32 %v3127, 7
      %v3129 = vsub.s32 %v3126, %v3128
      %v3130 = vrot.slane %v3123, %v3129
      %v3132 = vunpack.c.l.s4 1966171168
      %v3133 = vunpack.c.0.s8 %v3132
      %v3134 = vlaneseq
      %v3135 = vshrl.u32 %v3134, 7
      %v3136 = vsub.s32 %v3133, %v3135
      %v3137 = vrot.slane %v726, %v3136
      %v3139 = vunpack.c.l.s4 1966171168
      %v3140 = vunpack.c.0.s8 %v3139
      %v3141 = vlaneseq
      %v3142 = vshrl.u32 %v3141, 7
      %v3143 = vsub.s32 %v3140, %v3142
      %v3144 = vrot.slane %v3137, %v3143
      %v3146 = vunpack.c.l.s4 1966171168
      %v3147 = vunpack.c.0.s8 %v3146
      %v3148 = vlaneseq
      %v3149 = vshrl.u32 %v3148, 7
      %v3150 = vsub.s32 %v3147, %v3149
      %v3151 = vrot.slane %v709, %v3150
      %v3153 = vunpack.c.l.s4 1966171168
      %v3154 = vunpack.c.0.s8 %v3153
      %v3155 = vlaneseq
      %v3156 = vshrl.u32 %v3155, 7
      %v3157 = vsub.s32 %v3154, %v3156
      %v3158 = vrot.slane %v3151, %v3157
      %v3160 = vunpack.c.l.s4 1966171168
      %v3161 = vunpack.c.0.s8 %v3160
      %v3162 = vlaneseq
      %v3163 = vshrl.u32 %v3162, 7
      %v3164 = vsub.s32 %v3161, %v3163
      %v3165 = vrot.slane %v723, %v3164
      %v3167 = vunpack.c.l.s4 1966171168
      %v3168 = vunpack.c.0.s8 %v3167
      %v3169 = vlaneseq
      %v3170 = vshrl.u32 %v3169, 7
      %v3171 = vsub.s32 %v3168, %v3170
      %v3172 = vrot.slane %v3165, %v3171
      %v3174 = vunpack.c.l.s4 1966171168
      %v3175 = vunpack.c.0.s8 %v3174
      %v3176 = vlaneseq
      %v3177 = vshrl.u32 %v3176, 7
      %v3178 = vsub.s32 %v3175, %v3177
      %v3179 = vrot.slane %v725, %v3178
      %v3181 = vunpack.c.l.s4 1966171168
      %v3182 = vunpack.c.0.s8 %v3181
      %v3183 = vlaneseq
      %v3184 = vshrl.u32 %v3183, 7
      %v3185 = vsub.s32 %v3182, %v3184
      %v3186 = vrot.slane %v3179, %v3185
      %v3188 = vunpack.c.l.s4 1966171168
      %v3189 = vunpack.c.0.s8 %v3188
      %v3190 = vlaneseq
      %v3191 = vshrl.u32 %v3190, 7
      %v3192 = vsub.s32 %v3189, %v3191
      %v3193 = vrot.slane %v727, %v3192
      %v3195 = vunpack.c.l.s4 1966171168
      %v3196 = vunpack.c.0.s8 %v3195
      %v3197 = vlaneseq
      %v3198 = vshrl.u32 %v3197, 7
      %v3199 = vsub.s32 %v3196, %v3198
      %v3200 = vrot.slane %v3193, %v3199
      %v3202 = vunpack.c.l.s4 1966171168
      %v3203 = vunpack.c.0.s8 %v3202
      %v3204 = vlaneseq
      %v3205 = vshrl.u32 %v3204, 7
      %v3206 = vsub.s32 %v3203, %v3205
      %v3207 = vrot.slane %v751, %v3206
      %v3209 = vunpack.c.l.s4 1966171168
      %v3210 = vunpack.c.0.s8 %v3209
      %v3211 = vlaneseq
      %v3212 = vshrl.u32 %v3211, 7
      %v3213 = vsub.s32 %v3210, %v3212
      %v3214 = vrot.slane %v3207, %v3213
      %v3216 = vunpack.c.l.s4 1966171168
      %v3217 = vunpack.c.0.s8 %v3216
      %v3218 = vlaneseq
      %v3219 = vshrl.u32 %v3218, 7
      %v3220 = vsub.s32 %v3217, %v3219
      %v3221 = vrot.slane %v765, %v3220
      %v3223 = vunpack.c.l.s4 1966171168
      %v3224 = vunpack.c.0.s8 %v3223
      %v3225 = vlaneseq
      %v3226 = vshrl.u32 %v3225, 7
      %v3227 = vsub.s32 %v3224, %v3226
      %v3228 = vrot.slane %v3221, %v3227
      %v3230 = vunpack.c.l.s4 1966171168
      %v3231 = vunpack.c.0.s8 %v3230
      %v3232 = vlaneseq
      %v3233 = vshrl.u32 %v3232, 7
      %v3234 = vsub.s32 %v3231, %v3233
      %v3235 = vrot.slane %v773, %v3234
      %v3237 = vunpack.c.l.s4 1966171168
      %v3238 = vunpack.c.0.s8 %v3237
      %v3239 = vlaneseq
      %v3240 = vshrl.u32 %v3239, 7
      %v3241 = vsub.s32 %v3238, %v3240
      %v3242 = vrot.slane %v3235, %v3241
      %v3244 = vunpack.c.l.s4 1966171168
      %v3245 = vunpack.c.0.s8 %v3244
      %v3246 = vlaneseq
      %v3247 = vshrl.u32 %v3246, 7
      %v3248 = vsub.s32 %v3245, %v3247
      %v3249 = vrot.slane %v775, %v3248
      %v3251 = vunpack.c.l.s4 1966171168
      %v3252 = vunpack.c.0.s8 %v3251
      %v3253 = vlaneseq
      %v3254 = vshrl.u32 %v3253, 7
      %v3255 = vsub.s32 %v3252, %v3254
      %v3256 = vrot.slane %v3249, %v3255
      %v3258 = vunpack.c.l.s4 1966171168
      %v3259 = vunpack.c.0.s8 %v3258
      %v3260 = vlaneseq
      %v3261 = vshrl.u32 %v3260, 7
      %v3262 = vsub.s32 %v3259, %v3261
      %v3263 = vrot.slane %v758, %v3262
      %v3265 = vunpack.c.l.s4 1966171168
      %v3266 = vunpack.c.0.s8 %v3265
      %v3267 = vlaneseq
      %v3268 = vshrl.u32 %v3267, 7
      %v3269 = vsub.s32 %v3266, %v3268
      %v3270 = vrot.slane %v3263, %v3269
      %v3272 = vunpack.c.l.s4 1966171168
      %v3273 = vunpack.c.0.s8 %v3272
      %v3274 = vlaneseq
      %v3275 = vshrl.u32 %v3274, 7
      %v3276 = vsub.s32 %v3273, %v3275
      %v3277 = vrot.slane %v772, %v3276
      %v3279 = vunpack.c.l.s4 1966171168
      %v3280 = vunpack.c.0.s8 %v3279
      %v3281 = vlaneseq
      %v3282 = vshrl.u32 %v3281, 7
      %v3283 = vsub.s32 %v3280, %v3282
      %v3284 = vrot.slane %v3277, %v3283
      %v3286 = vunpack.c.l.s4 1966171168
      %v3287 = vunpack.c.0.s8 %v3286
      %v3288 = vlaneseq
      %v3289 = vshrl.u32 %v3288, 7
      %v3290 = vsub.s32 %v3287, %v3289
      %v3291 = vrot.slane %v774, %v3290
      %v3293 = vunpack.c.l.s4 1966171168
      %v3294 = vunpack.c.0.s8 %v3293
      %v3295 = vlaneseq
      %v3296 = vshrl.u32 %v3295, 7
      %v3297 = vsub.s32 %v3294, %v3296
      %v3298 = vrot.slane %v3291, %v3297
      %v3300 = vunpack.c.l.s4 1966171168
      %v3301 = vunpack.c.0.s8 %v3300
      %v3302 = vlaneseq
      %v3303 = vshrl.u32 %v3302, 7
      %v3304 = vsub.s32 %v3301, %v3303
      %v3305 = vrot.slane %v776, %v3304
      %v3307 = vunpack.c.l.s4 1966171168
      %v3308 = vunpack.c.0.s8 %v3307
      %v3309 = vlaneseq
      %v3310 = vshrl.u32 %v3309, 7
      %v3311 = vsub.s32 %v3308, %v3310
      %v3312 = vrot.slane %v3305, %v3311
      %v3314 = vunpack.c.l.s4 1966171168
      %v3315 = vunpack.c.0.s8 %v3314
      %v3316 = vlaneseq
      %v3317 = vshrl.u32 %v3316, 7
      %v3318 = vsub.s32 %v3315, %v3317
      %v3319 = vrot.slane %v800, %v3318
      %v3321 = vunpack.c.l.s4 1966171168
      %v3322 = vunpack.c.0.s8 %v3321
      %v3323 = vlaneseq
      %v3324 = vshrl.u32 %v3323, 7
      %v3325 = vsub.s32 %v3322, %v3324
      %v3326 = vrot.slane %v3319, %v3325
      %v3328 = vunpack.c.l.s4 1966171168
      %v3329 = vunpack.c.0.s8 %v3328
      %v3330 = vlaneseq
      %v3331 = vshrl.u32 %v3330, 7
      %v3332 = vsub.s32 %v3329, %v3331
      %v3333 = vrot.slane %v814, %v3332
      %v3335 = vunpack.c.l.s4 1966171168
      %v3336 = vunpack.c.0.s8 %v3335
      %v3337 = vlaneseq
      %v3338 = vshrl.u32 %v3337, 7
      %v3339 = vsub.s32 %v3336, %v3338
      %v3340 = vrot.slane %v3333, %v3339
      %v3342 = vunpack.c.l.s4 1966171168
      %v3343 = vunpack.c.0.s8 %v3342
      %v3344 = vlaneseq
      %v3345 = vshrl.u32 %v3344, 7
      %v3346 = vsub.s32 %v3343, %v3345
      %v3347 = vrot.slane %v822, %v3346
      %v3349 = vunpack.c.l.s4 1966171168
      %v3350 = vunpack.c.0.s8 %v3349
      %v3351 = vlaneseq
      %v3352 = vshrl.u32 %v3351, 7
      %v3353 = vsub.s32 %v3350, %v3352
      %v3354 = vrot.slane %v3347, %v3353
      %v3356 = vunpack.c.l.s4 1966171168
      %v3357 = vunpack.c.0.s8 %v3356
      %v3358 = vlaneseq
      %v3359 = vshrl.u32 %v3358, 7
      %v3360 = vsub.s32 %v3357, %v3359
      %v3361 = vrot.slane %v824, %v3360
      %v3363 = vunpack.c.l.s4 1966171168
      %v3364 = vunpack.c.0.s8 %v3363
      %v3365 = vlaneseq
      %v3366 = vshrl.u32 %v3365, 7
      %v3367 = vsub.s32 %v3364, %v3366
      %v3368 = vrot.slane %v3361, %v3367
      %v3370 = vunpack.c.l.s4 1966171168
      %v3371 = vunpack.c.0.s8 %v3370
      %v3372 = vlaneseq
      %v3373 = vshrl.u32 %v3372, 7
      %v3374 = vsub.s32 %v3371, %v3373
      %v3375 = vrot.slane %v807, %v3374
      %v3377 = vunpack.c.l.s4 1966171168
      %v3378 = vunpack.c.0.s8 %v3377
      %v3379 = vlaneseq
      %v3380 = vshrl.u32 %v3379, 7
      %v3381 = vsub.s32 %v3378, %v3380
      %v3382 = vrot.slane %v3375, %v3381
      %v3384 = vunpack.c.l.s4 1966171168
      %v3385 = vunpack.c.0.s8 %v3384
      %v3386 = vlaneseq
      %v3387 = vshrl.u32 %v3386, 7
      %v3388 = vsub.s32 %v3385, %v3387
      %v3389 = vrot.slane %v821, %v3388
      %v3391 = vunpack.c.l.s4 1966171168
      %v3392 = vunpack.c.0.s8 %v3391
      %v3393 = vlaneseq
      %v3394 = vshrl.u32 %v3393, 7
      %v3395 = vsub.s32 %v3392, %v3394
      %v3396 = vrot.slane %v3389, %v3395
      %v3398 = vunpack.c.l.s4 1966171168
      %v3399 = vunpack.c.0.s8 %v3398
      %v3400 = vlaneseq
      %v3401 = vshrl.u32 %v3400, 7
      %v3402 = vsub.s32 %v3399, %v3401
      %v3403 = vrot.slane %v823, %v3402
      %v3405 = vunpack.c.l.s4 1966171168
      %v3406 = vunpack.c.0.s8 %v3405
      %v3407 = vlaneseq
      %v3408 = vshrl.u32 %v3407, 7
      %v3409 = vsub.s32 %v3406, %v3408
      %v3410 = vrot.slane %v3403, %v3409
      %v3412 = vunpack.c.l.s4 1966171168
      %v3413 = vunpack.c.0.s8 %v3412
      %v3414 = vlaneseq
      %v3415 = vshrl.u32 %v3414, 7
      %v3416 = vsub.s32 %v3413, %v3415
      %v3417 = vrot.slane %v825, %v3416
      %v3419 = vunpack.c.l.s4 1966171168
      %v3420 = vunpack.c.0.s8 %v3419
      %v3421 = vlaneseq
      %v3422 = vshrl.u32 %v3421, 7
      %v3423 = vsub.s32 %v3420, %v3422
      %v3424 = vrot.slane %v3417, %v3423
      %v3426 = vunpack.c.l.s4 1966171168
      %v3427 = vunpack.c.0.s8 %v3426
      %v3428 = vlaneseq
      %v3429 = vshrl.u32 %v3428, 7
      %v3430 = vsub.s32 %v3427, %v3429
      %v3431 = vrot.slane %v849, %v3430
      %v3433 = vunpack.c.l.s4 1966171168
      %v3434 = vunpack.c.0.s8 %v3433
      %v3435 = vlaneseq
      %v3436 = vshrl.u32 %v3435, 7
      %v3437 = vsub.s32 %v3434, %v3436
      %v3438 = vrot.slane %v3431, %v3437
      %v3440 = vunpack.c.l.s4 1966171168
      %v3441 = vunpack.c.0.s8 %v3440
      %v3442 = vlaneseq
      %v3443 = vshrl.u32 %v3442, 7
      %v3444 = vsub.s32 %v3441, %v3443
      %v3445 = vrot.slane %v863, %v3444
      %v3447 = vunpack.c.l.s4 1966171168
      %v3448 = vunpack.c.0.s8 %v3447
      %v3449 = vlaneseq
      %v3450 = vshrl.u32 %v3449, 7
      %v3451 = vsub.s32 %v3448, %v3450
      %v3452 = vrot.slane %v3445, %v3451
      %v3454 = vunpack.c.l.s4 1966171168
      %v3455 = vunpack.c.0.s8 %v3454
      %v3456 = vlaneseq
      %v3457 = vshrl.u32 %v3456, 7
      %v3458 = vsub.s32 %v3455, %v3457
      %v3459 = vrot.slane %v871, %v3458
      %v3461 = vunpack.c.l.s4 1966171168
      %v3462 = vunpack.c.0.s8 %v3461
      %v3463 = vlaneseq
      %v3464 = vshrl.u32 %v3463, 7
      %v3465 = vsub.s32 %v3462, %v3464
      %v3466 = vrot.slane %v3459, %v3465
      %v3468 = vunpack.c.l.s4 1966171168
      %v3469 = vunpack.c.0.s8 %v3468
      %v3470 = vlaneseq
      %v3471 = vshrl.u32 %v3470, 7
      %v3472 = vsub.s32 %v3469, %v3471
      %v3473 = vrot.slane %v873, %v3472
      %v3475 = vunpack.c.l.s4 1966171168
      %v3476 = vunpack.c.0.s8 %v3475
      %v3477 = vlaneseq
      %v3478 = vshrl.u32 %v3477, 7
      %v3479 = vsub.s32 %v3476, %v3478
      %v3480 = vrot.slane %v3473, %v3479
      %v3482 = vunpack.c.l.s4 1966171168
      %v3483 = vunpack.c.0.s8 %v3482
      %v3484 = vlaneseq
      %v3485 = vshrl.u32 %v3484, 7
      %v3486 = vsub.s32 %v3483, %v3485
      %v3487 = vrot.slane %v856, %v3486
      %v3489 = vunpack.c.l.s4 1966171168
      %v3490 = vunpack.c.0.s8 %v3489
      %v3491 = vlaneseq
      %v3492 = vshrl.u32 %v3491, 7
      %v3493 = vsub.s32 %v3490, %v3492
      %v3494 = vrot.slane %v3487, %v3493
      %v3496 = vunpack.c.l.s4 1966171168
      %v3497 = vunpack.c.0.s8 %v3496
      %v3498 = vlaneseq
      %v3499 = vshrl.u32 %v3498, 7
      %v3500 = vsub.s32 %v3497, %v3499
      %v3501 = vrot.slane %v870, %v3500
      %v3503 = vunpack.c.l.s4 1966171168
      %v3504 = vunpack.c.0.s8 %v3503
      %v3505 = vlaneseq
      %v3506 = vshrl.u32 %v3505, 7
      %v3507 = vsub.s32 %v3504, %v3506
      %v3508 = vrot.slane %v3501, %v3507
      %v3510 = vunpack.c.l.s4 1966171168
      %v3511 = vunpack.c.0.s8 %v3510
      %v3512 = vlaneseq
      %v3513 = vshrl.u32 %v3512, 7
      %v3514 = vsub.s32 %v3511, %v3513
      %v3515 = vrot.slane %v872, %v3514
      %v3517 = vunpack.c.l.s4 1966171168
      %v3518 = vunpack.c.0.s8 %v3517
      %v3519 = vlaneseq
      %v3520 = vshrl.u32 %v3519, 7
      %v3521 = vsub.s32 %v3518, %v3520
      %v3522 = vrot.slane %v3515, %v3521
      %v3524 = vunpack.c.l.s4 1966171168
      %v3525 = vunpack.c.0.s8 %v3524
      %v3526 = vlaneseq
      %v3527 = vshrl.u32 %v3526, 7
      %v3528 = vsub.s32 %v3525, %v3527
      %v3529 = vrot.slane %v874, %v3528
      %v3531 = vunpack.c.l.s4 1966171168
      %v3532 = vunpack.c.0.s8 %v3531
      %v3533 = vlaneseq
      %v3534 = vshrl.u32 %v3533, 7
      %v3535 = vsub.s32 %v3532, %v3534
      %v3536 = vrot.slane %v3529, %v3535
      %v3538 = vunpack.c.l.s4 1966171168
      %v3539 = vunpack.c.0.s8 %v3538
      %v3540 = vlaneseq
      %v3541 = vshrl.u32 %v3540, 7
      %v3542 = vsub.s32 %v3539, %v3541
      %v3543 = vrot.slane %v898, %v3542
      %v3545 = vunpack.c.l.s4 1966171168
      %v3546 = vunpack.c.0.s8 %v3545
      %v3547 = vlaneseq
      %v3548 = vshrl.u32 %v3547, 7
      %v3549 = vsub.s32 %v3546, %v3548
      %v3550 = vrot.slane %v3543, %v3549
      %v3552 = vunpack.c.l.s4 1966171168
      %v3553 = vunpack.c.0.s8 %v3552
      %v3554 = vlaneseq
      %v3555 = vshrl.u32 %v3554, 7
      %v3556 = vsub.s32 %v3553, %v3555
      %v3557 = vrot.slane %v912, %v3556
      %v3559 = vunpack.c.l.s4 1966171168
      %v3560 = vunpack.c.0.s8 %v3559
      %v3561 = vlaneseq
      %v3562 = vshrl.u32 %v3561, 7
      %v3563 = vsub.s32 %v3560, %v3562
      %v3564 = vrot.slane %v3557, %v3563
      %v3566 = vunpack.c.l.s4 1966171168
      %v3567 = vunpack.c.0.s8 %v3566
      %v3568 = vlaneseq
      %v3569 = vshrl.u32 %v3568, 7
      %v3570 = vsub.s32 %v3567, %v3569
      %v3571 = vrot.slane %v920, %v3570
      %v3573 = vunpack.c.l.s4 1966171168
      %v3574 = vunpack.c.0.s8 %v3573
      %v3575 = vlaneseq
      %v3576 = vshrl.u32 %v3575, 7
      %v3577 = vsub.s32 %v3574, %v3576
      %v3578 = vrot.slane %v3571, %v3577
      %v3580 = vunpack.c.l.s4 1966171168
      %v3581 = vunpack.c.0.s8 %v3580
      %v3582 = vlaneseq
      %v3583 = vshrl.u32 %v3582, 7
      %v3584 = vsub.s32 %v3581, %v3583
      %v3585 = vrot.slane %v922, %v3584
      %v3587 = vunpack.c.l.s4 1966171168
      %v3588 = vunpack.c.0.s8 %v3587
      %v3589 = vlaneseq
      %v3590 = vshrl.u32 %v3589, 7
      %v3591 = vsub.s32 %v3588, %v3590
      %v3592 = vrot.slane %v3585, %v3591
      %v3594 = vunpack.c.l.s4 1966171168
      %v3595 = vunpack.c.0.s8 %v3594
      %v3596 = vlaneseq
      %v3597 = vshrl.u32 %v3596, 7
      %v3598 = vsub.s32 %v3595, %v3597
      %v3599 = vrot.slane %v905, %v3598
      %v3601 = vunpack.c.l.s4 1966171168
      %v3602 = vunpack.c.0.s8 %v3601
      %v3603 = vlaneseq
      %v3604 = vshrl.u32 %v3603, 7
      %v3605 = vsub.s32 %v3602, %v3604
      %v3606 = vrot.slane %v3599, %v3605
      %v3608 = vunpack.c.l.s4 1966171168
      %v3609 = vunpack.c.0.s8 %v3608
      %v3610 = vlaneseq
      %v3611 = vshrl.u32 %v3610, 7
      %v3612 = vsub.s32 %v3609, %v3611
      %v3613 = vrot.slane %v919, %v3612
      %v3615 = vunpack.c.l.s4 1966171168
      %v3616 = vunpack.c.0.s8 %v3615
      %v3617 = vlaneseq
      %v3618 = vshrl.u32 %v3617, 7
      %v3619 = vsub.s32 %v3616, %v3618
      %v3620 = vrot.slane %v3613, %v3619
      %v3622 = vunpack.c.l.s4 1966171168
      %v3623 = vunpack.c.0.s8 %v3622
      %v3624 = vlaneseq
      %v3625 = vshrl.u32 %v3624, 7
      %v3626 = vsub.s32 %v3623, %v3625
      %v3627 = vrot.slane %v921, %v3626
      %v3629 = vunpack.c.l.s4 1966171168
      %v3630 = vunpack.c.0.s8 %v3629
      %v3631 = vlaneseq
      %v3632 = vshrl.u32 %v3631, 7
      %v3633 = vsub.s32 %v3630, %v3632
      %v3634 = vrot.slane %v3627, %v3633
      %v3636 = vunpack.c.l.s4 1966171168
      %v3637 = vunpack.c.0.s8 %v3636
      %v3638 = vlaneseq
      %v3639 = vshrl.u32 %v3638, 7
      %v3640 = vsub.s32 %v3637, %v3639
      %v3641 = vrot.slane %v923, %v3640
      %v3643 = vunpack.c.l.s4 1966171168
      %v3644 = vunpack.c.0.s8 %v3643
      %v3645 = vlaneseq
      %v3646 = vshrl.u32 %v3645, 7
      %v3647 = vsub.s32 %v3644, %v3646
      %v3648 = vrot.slane %v3641, %v3647
      %v3649 = vunpack.c.l.b16 %v2766
      %v3650 = vunpack.c.l.b16 %v2780
      %v3651 = vunpack.c.l.b16 %v2794
      %v3652 = vunpack.c.l.b16 %v2808
      %v3653 = vunpack.c.l.b16 %v2822
      %v3654 = vunpack.c.l.b16 %v2836
      %v3655 = vunpack.c.l.b16 %v2850
      %v3656 = vunpack.c.l.b16 %v2864
      %v3657 = vunpack.c.l.b16 %v2878
      %v3658 = vunpack.c.l.b16 %v2892
      %v3659 = vunpack.c.l.b16 %v2906
      %v3660 = vunpack.c.l.b16 %v2920
      %v3661 = vunpack.c.l.b16 %v2934
      %v3662 = vunpack.c.l.b16 %v2948
      %v3663 = vunpack.c.l.b16 %v2962
      %v3664 = vunpack.c.l.b16 %v2976
      %v3665 = vunpack.c.l.b16 %v2990
      %v3666 = vunpack.c.l.b16 %v3004
      %v3667 = vunpack.c.l.b16 %v3018
      %v3668 = vunpack.c.l.b16 %v3032
      %v3669 = vunpack.c.l.b16 %v3046
      %v3670 = vunpack.c.l.b16 %v3060
      %v3671 = vunpack.c.l.b16 %v3074
      %v3672 = vunpack.c.l.b16 %v3088
      %v3673 = vunpack.c.l.b16 %v3102
      %v3674 = vunpack.c.l.b16 %v3116
      %v3675 = vunpack.c.l.b16 %v3130
      %v3676 = vunpack.c.l.b16 %v3144
      %v3677 = vunpack.c.l.b16 %v3158
      %v3678 = vunpack.c.l.b16 %v3172
      %v3679 = vunpack.c.l.b16 %v3186
      %v3680 = vunpack.c.l.b16 %v3200
      %v3681 = vunpack.c.l.b16 %v3214
      %v3682 = vunpack.c.l.b16 %v3228
      %v3683 = vunpack.c.l.b16 %v3242
      %v3684 = vunpack.c.l.b16 %v3256
      %v3685 = vunpack.c.l.b16 %v3270
      %v3686 = vunpack.c.l.b16 %v3284
      %v3687 = vunpack.c.l.b16 %v3298
      %v3688 = vunpack.c.l.b16 %v3312
      %v3689 = vunpack.c.l.b16 %v3326
      %v3690 = vunpack.c.l.b16 %v3340
      %v3691 = vunpack.c.l.b16 %v3354
      %v3692 = vunpack.c.l.b16 %v3368
      %v3693 = vunpack.c.l.b16 %v3382
      %v3694 = vunpack.c.l.b16 %v3396
      %v3695 = vunpack.c.l.b16 %v3410
      %v3696 = vunpack.c.l.b16 %v3424
      %v3697 = vunpack.c.l.b16 %v3438
      %v3698 = vunpack.c.l.b16 %v3452
      %v3699 = vunpack.c.l.b16 %v3466
      %v3700 = vunpack.c.l.b16 %v3480
      %v3701 = vunpack.c.l.b16 %v3494
      %v3702 = vunpack.c.l.b16 %v3508
      %v3703 = vunpack.c.l.b16 %v3522
      %v3704 = vunpack.c.l.b16 %v3536
      %v3705 = vunpack.c.l.b16 %v3550
      %v3706 = vunpack.c.l.b16 %v3564
      %v3707 = vunpack.c.l.b16 %v3578
      %v3708 = vunpack.c.l.b16 %v3592
      %v3709 = vunpack.c.l.b16 %v3606
      %v3710 = vunpack.c.l.b16 %v3620
      %v3711 = vunpack.c.l.b16 %v3634
      %v3712 = vunpack.c.l.b16 %v3648
      %v3713 = vrot.slane %v3650, 7
      %vm3714 = vcmask 1041409
      %v3715 = vsel %vm3714, %v3713, %v3649
      %v3716 = vrot.slane %v3651, 6
      %vm3717 = vcmask 1042434
      %v3718 = vsel %vm3717, %v3716, %v3715
      %v3719 = vrot.slane %v3652, 5
      %vm3720 = vcmask 1043459
      %v3721 = vsel %vm3720, %v3719, %v3718
      %v3722 = vrot.slane %v3653, 4
      %vm3723 = vcmask 1044484
      %v3724 = vsel %vm3723, %v3722, %v3721
      %v3725 = vrot.slane %v3654, 3
      %vm3726 = vcmask 1045509
      %v3727 = vsel %vm3726, %v3725, %v3724
      %v3728 = vrot.slane %v3655, 2
      %vm3729 = vcmask 1046534
      %v3730 = vsel %vm3729, %v3728, %v3727
      %v3731 = vrot.slane %v3656, 1
      %vm3732 = vcmask 1047559
      %v3733 = vsel %vm3732, %v3731, %v3730
      %v3734 = vrot.slane %v3658, 7
      %v3735 = vsel %vm3714, %v3734, %v3657
      %v3736 = vrot.slane %v3659, 6
      %v3737 = vsel %vm3717, %v3736, %v3735
      %v3738 = vrot.slane %v3660, 5
      %v3739 = vsel %vm3720, %v3738, %v3737
      %v3740 = vrot.slane %v3661, 4
      %v3741 = vsel %vm3723, %v3740, %v3739
      %v3742 = vrot.slane %v3662, 3
      %v3743 = vsel %vm3726, %v3742, %v3741
      %v3744 = vrot.slane %v3663, 2
      %v3745 = vsel %vm3729, %v3744, %v3743
      %v3746 = vrot.slane %v3664, 1
      %v3747 = vsel %vm3732, %v3746, %v3745
      %v3748 = vrot.slane %v3666, 7
      %v3749 = vsel %vm3714, %v3748, %v3665
      %v3750 = vrot.slane %v3667, 6
      %v3751 = vsel %vm3717, %v3750, %v3749
      %v3752 = vrot.slane %v3668, 5
      %v3753 = vsel %vm3720, %v3752, %v3751
      %v3754 = vrot.slane %v3669, 4
      %v3755 = vsel %vm3723, %v3754, %v3753
      %v3756 = vrot.slane %v3670, 3
      %v3757 = vsel %vm3726, %v3756, %v3755
      %v3758 = vrot.slane %v3671, 2
      %v3759 = vsel %vm3729, %v3758, %v3757
      %v3760 = vrot.slane %v3672, 1
      %v3761 = vsel %vm3732, %v3760, %v3759
      %v3762 = vrot.slane %v3674, 7
      %v3763 = vsel %vm3714, %v3762, %v3673
      %v3764 = vrot.slane %v3675, 6
      %v3765 = vsel %vm3717, %v3764, %v3763
      %v3766 = vrot.slane %v3676, 5
      %v3767 = vsel %vm3720, %v3766, %v3765
      %v3768 = vrot.slane %v3677, 4
      %v3769 = vsel %vm3723, %v3768, %v3767
      %v3770 = vrot.slane %v3678, 3
      %v3771 = vsel %vm3726, %v3770, %v3769
      %v3772 = vrot.slane %v3679, 2
      %v3773 = vsel %vm3729, %v3772, %v3771
      %v3774 = vrot.slane %v3680, 1
      %v3775 = vsel %vm3732, %v3774, %v3773
      %v3776 = vrot.slane %v3682, 7
      %v3777 = vsel %vm3714, %v3776, %v3681
      %v3778 = vrot.slane %v3683, 6
      %v3779 = vsel %vm3717, %v3778, %v3777
      %v3780 = vrot.slane %v3684, 5
      %v3781 = vsel %vm3720, %v3780, %v3779
      %v3782 = vrot.slane %v3685, 4
      %v3783 = vsel %vm3723, %v3782, %v3781
      %v3784 = vrot.slane %v3686, 3
      %v3785 = vsel %vm3726, %v3784, %v3783
      %v3786 = vrot.slane %v3687, 2
      %v3787 = vsel %vm3729, %v3786, %v3785
      %v3788 = vrot.slane %v3688, 1
      %v3789 = vsel %vm3732, %v3788, %v3787
      %v3790 = vrot.slane %v3690, 7
      %v3791 = vsel %vm3714, %v3790, %v3689
      %v3792 = vrot.slane %v3691, 6
      %v3793 = vsel %vm3717, %v3792, %v3791
      %v3794 = vrot.slane %v3692, 5
      %v3795 = vsel %vm3720, %v3794, %v3793
      %v3796 = vrot.slane %v3693, 4
      %v3797 = vsel %vm3723, %v3796, %v3795
      %v3798 = vrot.slane %v3694, 3
      %v3799 = vsel %vm3726, %v3798, %v3797
      %v3800 = vrot.slane %v3695, 2
      %v3801 = vsel %vm3729, %v3800, %v3799
      %v3802 = vrot.slane %v3696, 1
      %v3803 = vsel %vm3732, %v3802, %v3801
      %v3804 = vrot.slane %v3698, 7
      %v3805 = vsel %vm3714, %v3804, %v3697
      %v3806 = vrot.slane %v3699, 6
      %v3807 = vsel %vm3717, %v3806, %v3805
      %v3808 = vrot.slane %v3700, 5
      %v3809 = vsel %vm3720, %v3808, %v3807
      %v3810 = vrot.slane %v3701, 4
      %v3811 = vsel %vm3723, %v3810, %v3809
      %v3812 = vrot.slane %v3702, 3
      %v3813 = vsel %vm3726, %v3812, %v3811
      %v3814 = vrot.slane %v3703, 2
      %v3815 = vsel %vm3729, %v3814, %v3813
      %v3816 = vrot.slane %v3704, 1
      %v3817 = vsel %vm3732, %v3816, %v3815
      %v3818 = vrot.slane %v3706, 7
      %v3819 = vsel %vm3714, %v3818, %v3705
      %v3820 = vrot.slane %v3707, 6
      %v3821 = vsel %vm3717, %v3820, %v3819
      %v3822 = vrot.slane %v3708, 5
      %v3823 = vsel %vm3720, %v3822, %v3821
      %v3824 = vrot.slane %v3709, 4
      %v3825 = vsel %vm3723, %v3824, %v3823
      %v3826 = vrot.slane %v3710, 3
      %v3827 = vsel %vm3726, %v3826, %v3825
      %v3828 = vrot.slane %v3711, 2
      %v3829 = vsel %vm3729, %v3828, %v3827
      %v3830 = vrot.slane %v3712, 1
      %v3831 = vsel %vm3732, %v3830, %v3829
      %v3832 = vpack.c.b16 %v3733, %v3733
      %v3833 = vpack.c.b16 %v3747, %v3747
      %v3834 = vpack.c.b16 %v3761, %v3761
      %v3835 = vpack.c.b16 %v3775, %v3775
      %v3836 = vpack.c.b16 %v3789, %v3789
      %v3837 = vpack.c.b16 %v3803, %v3803
      %v3838 = vpack.c.b16 %v3817, %v3817
      %v3839 = vpack.c.b16 %v3831, %v3831
      %v3841 = vunpack.c.l.s4 1966171168
      %v3842 = vunpack.c.0.s8 %v3841
      %v3843 = vlaneseq
      %v3844 = vshrl.u32 %v3843, 7
      %v3845 = vsub.s32 %v3842, %v3844
      %v3846 = vrot.slane %v1066, %v3845
      %v3848 = vunpack.c.l.s4 1966171168
      %v3849 = vunpack.c.0.s8 %v3848
      %v3850 = vlaneseq
      %v3851 = vshrl.u32 %v3850, 7
      %v3852 = vsub.s32 %v3849, %v3851
      %v3853 = vrot.slane %v3846, %v3852
      %v3855 = vunpack.c.l.s4 1966171168
      %v3856 = vunpack.c.0.s8 %v3855
      %v3857 = vlaneseq
      %v3858 = vshrl.u32 %v3857, 7
      %v3859 = vsub.s32 %v3856, %v3858
      %v3860 = vrot.slane %v1074, %v3859
      %v3862 = vunpack.c.l.s4 1966171168
      %v3863 = vunpack.c.0.s8 %v3862
      %v3864 = vlaneseq
      %v3865 = vshrl.u32 %v3864, 7
      %v3866 = vsub.s32 %v3863, %v3865
      %v3867 = vrot.slane %v3860, %v3866
      %v3869 = vunpack.c.l.s4 1966171168
      %v3870 = vunpack.c.0.s8 %v3869
      %v3871 = vlaneseq
      %v3872 = vshrl.u32 %v3871, 7
      %v3873 = vsub.s32 %v3870, %v3872
      %v3874 = vrot.slane %v1082, %v3873
      %v3876 = vunpack.c.l.s4 1966171168
      %v3877 = vunpack.c.0.s8 %v3876
      %v3878 = vlaneseq
      %v3879 = vshrl.u32 %v3878, 7
      %v3880 = vsub.s32 %v3877, %v3879
      %v3881 = vrot.slane %v3874, %v3880
      %v3883 = vunpack.c.l.s4 1966171168
      %v3884 = vunpack.c.0.s8 %v3883
      %v3885 = vlaneseq
      %v3886 = vshrl.u32 %v3885, 7
      %v3887 = vsub.s32 %v3884, %v3886
      %v3888 = vrot.slane %v1090, %v3887
      %v3890 = vunpack.c.l.s4 1966171168
      %v3891 = vunpack.c.0.s8 %v3890
      %v3892 = vlaneseq
      %v3893 = vshrl.u32 %v3892, 7
      %v3894 = vsub.s32 %v3891, %v3893
      %v3895 = vrot.slane %v3888, %v3894
      %v3897 = vunpack.c.l.s4 1966171168
      %v3898 = vunpack.c.0.s8 %v3897
      %v3899 = vlaneseq
      %v3900 = vshrl.u32 %v3899, 7
      %v3901 = vsub.s32 %v3898, %v3900
      %v3902 = vrot.slane %v1098, %v3901
      %v3904 = vunpack.c.l.s4 1966171168
      %v3905 = vunpack.c.0.s8 %v3904
      %v3906 = vlaneseq
      %v3907 = vshrl.u32 %v3906, 7
      %v3908 = vsub.s32 %v3905, %v3907
      %v3909 = vrot.slane %v3902, %v3908
      %v3911 = vunpack.c.l.s4 1966171168
      %v3912 = vunpack.c.0.s8 %v3911
      %v3913 = vlaneseq
      %v3914 = vshrl.u32 %v3913, 7
      %v3915 = vsub.s32 %v3912, %v3914
      %v3916 = vrot.slane %v1106, %v3915
      %v3918 = vunpack.c.l.s4 1966171168
      %v3919 = vunpack.c.0.s8 %v3918
      %v3920 = vlaneseq
      %v3921 = vshrl.u32 %v3920, 7
      %v3922 = vsub.s32 %v3919, %v3921
      %v3923 = vrot.slane %v3916, %v3922
      %v3925 = vunpack.c.l.s4 1966171168
      %v3926 = vunpack.c.0.s8 %v3925
      %v3927 = vlaneseq
      %v3928 = vshrl.u32 %v3927, 7
      %v3929 = vsub.s32 %v3926, %v3928
      %v3930 = vrot.slane %v1114, %v3929
      %v3932 = vunpack.c.l.s4 1966171168
      %v3933 = vunpack.c.0.s8 %v3932
      %v3934 = vlaneseq
      %v3935 = vshrl.u32 %v3934, 7
      %v3936 = vsub.s32 %v3933, %v3935
      %v3937 = vrot.slane %v3930, %v3936
      %v3939 = vunpack.c.l.s4 1966171168
      %v3940 = vunpack.c.0.s8 %v3939
      %v3941 = vlaneseq
      %v3942 = vshrl.u32 %v3941, 7
      %v3943 = vsub.s32 %v3940, %v3942
      %v3944 = vrot.slane %v1122, %v3943
      %v3946 = vunpack.c.l.s4 1966171168
      %v3947 = vunpack.c.0.s8 %v3946
      %v3948 = vlaneseq
      %v3949 = vshrl.u32 %v3948, 7
      %v3950 = vsub.s32 %v3947, %v3949
      %v3951 = vrot.slane %v3944, %v3950
      %v3953 = vunpack.c.l.s4 1966171168
      %v3954 = vunpack.c.0.s8 %v3953
      %v3955 = vlaneseq
      %v3956 = vshrl.u32 %v3955, 7
      %v3957 = vsub.s32 %v3954, %v3956
      %v3958 = vrot.slane %v1131, %v3957
      %v3960 = vunpack.c.l.s4 1966171168
      %v3961 = vunpack.c.0.s8 %v3960
      %v3962 = vlaneseq
      %v3963 = vshrl.u32 %v3962, 7
      %v3964 = vsub.s32 %v3961, %v3963
      %v3965 = vrot.slane %v3958, %v3964
      %v3967 = vunpack.c.l.s4 1966171168
      %v3968 = vunpack.c.0.s8 %v3967
      %v3969 = vlaneseq
      %v3970 = vshrl.u32 %v3969, 7
      %v3971 = vsub.s32 %v3968, %v3970
      %v3972 = vrot.slane %v1139, %v3971
      %v3974 = vunpack.c.l.s4 1966171168
      %v3975 = vunpack.c.0.s8 %v3974
      %v3976 = vlaneseq
      %v3977 = vshrl.u32 %v3976, 7
      %v3978 = vsub.s32 %v3975, %v3977
      %v3979 = vrot.slane %v3972, %v3978
      %v3981 = vunpack.c.l.s4 1966171168
      %v3982 = vunpack.c.0.s8 %v3981
      %v3983 = vlaneseq
      %v3984 = vshrl.u32 %v3983, 7
      %v3985 = vsub.s32 %v3982, %v3984
      %v3986 = vrot.slane %v1147, %v3985
      %v3988 = vunpack.c.l.s4 1966171168
      %v3989 = vunpack.c.0.s8 %v3988
      %v3990 = vlaneseq
      %v3991 = vshrl.u32 %v3990, 7
      %v3992 = vsub.s32 %v3989, %v3991
      %v3993 = vrot.slane %v3986, %v3992
      %v3995 = vunpack.c.l.s4 1966171168
      %v3996 = vunpack.c.0.s8 %v3995
      %v3997 = vlaneseq
      %v3998 = vshrl.u32 %v3997, 7
      %v3999 = vsub.s32 %v3996, %v3998
      %v4000 = vrot.slane %v1155, %v3999
      %v4002 = vunpack.c.l.s4 1966171168
      %v4003 = vunpack.c.0.s8 %v4002
      %v4004 = vlaneseq
      %v4005 = vshrl.u32 %v4004, 7
      %v4006 = vsub.s32 %v4003, %v4005
      %v4007 = vrot.slane %v4000, %v4006
      %v4009 = vunpack.c.l.s4 1966171168
      %v4010 = vunpack.c.0.s8 %v4009
      %v4011 = vlaneseq
      %v4012 = vshrl.u32 %v4011, 7
      %v4013 = vsub.s32 %v4010, %v4012
      %v4014 = vrot.slane %v1163, %v4013
      %v4016 = vunpack.c.l.s4 1966171168
      %v4017 = vunpack.c.0.s8 %v4016
      %v4018 = vlaneseq
      %v4019 = vshrl.u32 %v4018, 7
      %v4020 = vsub.s32 %v4017, %v4019
      %v4021 = vrot.slane %v4014, %v4020
      %v4023 = vunpack.c.l.s4 1966171168
      %v4024 = vunpack.c.0.s8 %v4023
      %v4025 = vlaneseq
      %v4026 = vshrl.u32 %v4025, 7
      %v4027 = vsub.s32 %v4024, %v4026
      %v4028 = vrot.slane %v1171, %v4027
      %v4030 = vunpack.c.l.s4 1966171168
      %v4031 = vunpack.c.0.s8 %v4030
      %v4032 = vlaneseq
      %v4033 = vshrl.u32 %v4032, 7
      %v4034 = vsub.s32 %v4031, %v4033
      %v4035 = vrot.slane %v4028, %v4034
      %v4037 = vunpack.c.l.s4 1966171168
      %v4038 = vunpack.c.0.s8 %v4037
      %v4039 = vlaneseq
      %v4040 = vshrl.u32 %v4039, 7
      %v4041 = vsub.s32 %v4038, %v4040
      %v4042 = vrot.slane %v1179, %v4041
      %v4044 = vunpack.c.l.s4 1966171168
      %v4045 = vunpack.c.0.s8 %v4044
      %v4046 = vlaneseq
      %v4047 = vshrl.u32 %v4046, 7
      %v4048 = vsub.s32 %v4045, %v4047
      %v4049 = vrot.slane %v4042, %v4048
      %v4051 = vunpack.c.l.s4 1966171168
      %v4052 = vunpack.c.0.s8 %v4051
      %v4053 = vlaneseq
      %v4054 = vshrl.u32 %v4053, 7
      %v4055 = vsub.s32 %v4052, %v4054
      %v4056 = vrot.slane %v1187, %v4055
      %v4058 = vunpack.c.l.s4 1966171168
      %v4059 = vunpack.c.0.s8 %v4058
      %v4060 = vlaneseq
      %v4061 = vshrl.u32 %v4060, 7
      %v4062 = vsub.s32 %v4059, %v4061
      %v4063 = vrot.slane %v4056, %v4062
      %v4065 = vunpack.c.l.s4 1966171168
      %v4066 = vunpack.c.0.s8 %v4065
      %v4067 = vlaneseq
      %v4068 = vshrl.u32 %v4067, 7
      %v4069 = vsub.s32 %v4066, %v4068
      %v4070 = vrot.slane %v1196, %v4069
      %v4072 = vunpack.c.l.s4 1966171168
      %v4073 = vunpack.c.0.s8 %v4072
      %v4074 = vlaneseq
      %v4075 = vshrl.u32 %v4074, 7
      %v4076 = vsub.s32 %v4073, %v4075
      %v4077 = vrot.slane %v4070, %v4076
      %v4079 = vunpack.c.l.s4 1966171168
      %v4080 = vunpack.c.0.s8 %v4079
      %v4081 = vlaneseq
      %v4082 = vshrl.u32 %v4081, 7
      %v4083 = vsub.s32 %v4080, %v4082
      %v4084 = vrot.slane %v1204, %v4083
      %v4086 = vunpack.c.l.s4 1966171168
      %v4087 = vunpack.c.0.s8 %v4086
      %v4088 = vlaneseq
      %v4089 = vshrl.u32 %v4088, 7
      %v4090 = vsub.s32 %v4087, %v4089
      %v4091 = vrot.slane %v4084, %v4090
      %v4093 = vunpack.c.l.s4 1966171168
      %v4094 = vunpack.c.0.s8 %v4093
      %v4095 = vlaneseq
      %v4096 = vshrl.u32 %v4095, 7
      %v4097 = vsub.s32 %v4094, %v4096
      %v4098 = vrot.slane %v1212, %v4097
      %v4100 = vunpack.c.l.s4 1966171168
      %v4101 = vunpack.c.0.s8 %v4100
      %v4102 = vlaneseq
      %v4103 = vshrl.u32 %v4102, 7
      %v4104 = vsub.s32 %v4101, %v4103
      %v4105 = vrot.slane %v4098, %v4104
      %v4107 = vunpack.c.l.s4 1966171168
      %v4108 = vunpack.c.0.s8 %v4107
      %v4109 = vlaneseq
      %v4110 = vshrl.u32 %v4109, 7
      %v4111 = vsub.s32 %v4108, %v4110
      %v4112 = vrot.slane %v1220, %v4111
      %v4114 = vunpack.c.l.s4 1966171168
      %v4115 = vunpack.c.0.s8 %v4114
      %v4116 = vlaneseq
      %v4117 = vshrl.u32 %v4116, 7
      %v4118 = vsub.s32 %v4115, %v4117
      %v4119 = vrot.slane %v4112, %v4118
      %v4121 = vunpack.c.l.s4 1966171168
      %v4122 = vunpack.c.0.s8 %v4121
      %v4123 = vlaneseq
      %v4124 = vshrl.u32 %v4123, 7
      %v4125 = vsub.s32 %v4122, %v4124
      %v4126 = vrot.slane %v1228, %v4125
      %v4128 = vunpack.c.l.s4 1966171168
      %v4129 = vunpack.c.0.s8 %v4128
      %v4130 = vlaneseq
      %v4131 = vshrl.u32 %v4130, 7
      %v4132 = vsub.s32 %v4129, %v4131
      %v4133 = vrot.slane %v4126, %v4132
      %v4135 = vunpack.c.l.s4 1966171168
      %v4136 = vunpack.c.0.s8 %v4135
      %v4137 = vlaneseq
      %v4138 = vshrl.u32 %v4137, 7
      %v4139 = vsub.s32 %v4136, %v4138
      %v4140 = vrot.slane %v1236, %v4139
      %v4142 = vunpack.c.l.s4 1966171168
      %v4143 = vunpack.c.0.s8 %v4142
      %v4144 = vlaneseq
      %v4145 = vshrl.u32 %v4144, 7
      %v4146 = vsub.s32 %v4143, %v4145
      %v4147 = vrot.slane %v4140, %v4146
      %v4149 = vunpack.c.l.s4 1966171168
      %v4150 = vunpack.c.0.s8 %v4149
      %v4151 = vlaneseq
      %v4152 = vshrl.u32 %v4151, 7
      %v4153 = vsub.s32 %v4150, %v4152
      %v4154 = vrot.slane %v1244, %v4153
      %v4156 = vunpack.c.l.s4 1966171168
      %v4157 = vunpack.c.0.s8 %v4156
      %v4158 = vlaneseq
      %v4159 = vshrl.u32 %v4158, 7
      %v4160 = vsub.s32 %v4157, %v4159
      %v4161 = vrot.slane %v4154, %v4160
      %v4163 = vunpack.c.l.s4 1966171168
      %v4164 = vunpack.c.0.s8 %v4163
      %v4165 = vlaneseq
      %v4166 = vshrl.u32 %v4165, 7
      %v4167 = vsub.s32 %v4164, %v4166
      %v4168 = vrot.slane %v1252, %v4167
      %v4170 = vunpack.c.l.s4 1966171168
      %v4171 = vunpack.c.0.s8 %v4170
      %v4172 = vlaneseq
      %v4173 = vshrl.u32 %v4172, 7
      %v4174 = vsub.s32 %v4171, %v4173
      %v4175 = vrot.slane %v4168, %v4174
      %v4177 = vunpack.c.l.s4 1966171168
      %v4178 = vunpack.c.0.s8 %v4177
      %v4179 = vlaneseq
      %v4180 = vshrl.u32 %v4179, 7
      %v4181 = vsub.s32 %v4178, %v4180
      %v4182 = vrot.slane %v1261, %v4181
      %v4184 = vunpack.c.l.s4 1966171168
      %v4185 = vunpack.c.0.s8 %v4184
      %v4186 = vlaneseq
      %v4187 = vshrl.u32 %v4186, 7
      %v4188 = vsub.s32 %v4185, %v4187
      %v4189 = vrot.slane %v4182, %v4188
      %v4191 = vunpack.c.l.s4 1966171168
      %v4192 = vunpack.c.0.s8 %v4191
      %v4193 = vlaneseq
      %v4194 = vshrl.u32 %v4193, 7
      %v4195 = vsub.s32 %v4192, %v4194
      %v4196 = vrot.slane %v1269, %v4195
      %v4198 = vunpack.c.l.s4 1966171168
      %v4199 = vunpack.c.0.s8 %v4198
      %v4200 = vlaneseq
      %v4201 = vshrl.u32 %v4200, 7
      %v4202 = vsub.s32 %v4199, %v4201
      %v4203 = vrot.slane %v4196, %v4202
      %v4205 = vunpack.c.l.s4 1966171168
      %v4206 = vunpack.c.0.s8 %v4205
      %v4207 = vlaneseq
      %v4208 = vshrl.u32 %v4207, 7
      %v4209 = vsub.s32 %v4206, %v4208
      %v4210 = vrot.slane %v1277, %v4209
      %v4212 = vunpack.c.l.s4 1966171168
      %v4213 = vunpack.c.0.s8 %v4212
      %v4214 = vlaneseq
      %v4215 = vshrl.u32 %v4214, 7
      %v4216 = vsub.s32 %v4213, %v4215
      %v4217 = vrot.slane %v4210, %v4216
      %v4219 = vunpack.c.l.s4 1966171168
      %v4220 = vunpack.c.0.s8 %v4219
      %v4221 = vlaneseq
      %v4222 = vshrl.u32 %v4221, 7
      %v4223 = vsub.s32 %v4220, %v4222
      %v4224 = vrot.slane %v1285, %v4223
      %v4226 = vunpack.c.l.s4 1966171168
      %v4227 = vunpack.c.0.s8 %v4226
      %v4228 = vlaneseq
      %v4229 = vshrl.u32 %v4228, 7
      %v4230 = vsub.s32 %v4227, %v4229
      %v4231 = vrot.slane %v4224, %v4230
      %v4233 = vunpack.c.l.s4 1966171168
      %v4234 = vunpack.c.0.s8 %v4233
      %v4235 = vlaneseq
      %v4236 = vshrl.u32 %v4235, 7
      %v4237 = vsub.s32 %v4234, %v4236
      %v4238 = vrot.slane %v1293, %v4237
      %v4240 = vunpack.c.l.s4 1966171168
      %v4241 = vunpack.c.0.s8 %v4240
      %v4242 = vlaneseq
      %v4243 = vshrl.u32 %v4242, 7
      %v4244 = vsub.s32 %v4241, %v4243
      %v4245 = vrot.slane %v4238, %v4244
      %v4247 = vunpack.c.l.s4 1966171168
      %v4248 = vunpack.c.0.s8 %v4247
      %v4249 = vlaneseq
      %v4250 = vshrl.u32 %v4249, 7
      %v4251 = vsub.s32 %v4248, %v4250
      %v4252 = vrot.slane %v1301, %v4251
      %v4254 = vunpack.c.l.s4 1966171168
      %v4255 = vunpack.c.0.s8 %v4254
      %v4256 = vlaneseq
      %v4257 = vshrl.u32 %v4256, 7
      %v4258 = vsub.s32 %v4255, %v4257
      %v4259 = vrot.slane %v4252, %v4258
      %v4261 = vunpack.c.l.s4 1966171168
      %v4262 = vunpack.c.0.s8 %v4261
      %v4263 = vlaneseq
      %v4264 = vshrl.u32 %v4263, 7
      %v4265 = vsub.s32 %v4262, %v4264
      %v4266 = vrot.slane %v1309, %v4265
      %v4268 = vunpack.c.l.s4 1966171168
      %v4269 = vunpack.c.0.s8 %v4268
      %v4270 = vlaneseq
      %v4271 = vshrl.u32 %v4270, 7
      %v4272 = vsub.s32 %v4269, %v4271
      %v4273 = vrot.slane %v4266, %v4272
      %v4275 = vunpack.c.l.s4 1966171168
      %v4276 = vunpack.c.0.s8 %v4275
      %v4277 = vlaneseq
      %v4278 = vshrl.u32 %v4277, 7
      %v4279 = vsub.s32 %v4276, %v4278
      %v4280 = vrot.slane %v1317, %v4279
      %v4282 = vunpack.c.l.s4 1966171168
      %v4283 = vunpack.c.0.s8 %v4282
      %v4284 = vlaneseq
      %v4285 = vshrl.u32 %v4284, 7
      %v4286 = vsub.s32 %v4283, %v4285
      %v4287 = vrot.slane %v4280, %v4286
      %v4289 = vunpack.c.l.s4 1966171168
      %v4290 = vunpack.c.0.s8 %v4289
      %v4291 = vlaneseq
      %v4292 = vshrl.u32 %v4291, 7
      %v4293 = vsub.s32 %v4290, %v4292
      %v4294 = vrot.slane %v1326, %v4293
      %v4296 = vunpack.c.l.s4 1966171168
      %v4297 = vunpack.c.0.s8 %v4296
      %v4298 = vlaneseq
      %v4299 = vshrl.u32 %v4298, 7
      %v4300 = vsub.s32 %v4297, %v4299
      %v4301 = vrot.slane %v4294, %v4300
      %v4303 = vunpack.c.l.s4 1966171168
      %v4304 = vunpack.c.0.s8 %v4303
      %v4305 = vlaneseq
      %v4306 = vshrl.u32 %v4305, 7
      %v4307 = vsub.s32 %v4304, %v4306
      %v4308 = vrot.slane %v1334, %v4307
      %v4310 = vunpack.c.l.s4 1966171168
      %v4311 = vunpack.c.0.s8 %v4310
      %v4312 = vlaneseq
      %v4313 = vshrl.u32 %v4312, 7
      %v4314 = vsub.s32 %v4311, %v4313
      %v4315 = vrot.slane %v4308, %v4314
      %v4317 = vunpack.c.l.s4 1966171168
      %v4318 = vunpack.c.0.s8 %v4317
      %v4319 = vlaneseq
      %v4320 = vshrl.u32 %v4319, 7
      %v4321 = vsub.s32 %v4318, %v4320
      %v4322 = vrot.slane %v1342, %v4321
      %v4324 = vunpack.c.l.s4 1966171168
      %v4325 = vunpack.c.0.s8 %v4324
      %v4326 = vlaneseq
      %v4327 = vshrl.u32 %v4326, 7
      %v4328 = vsub.s32 %v4325, %v4327
      %v4329 = vrot.slane %v4322, %v4328
      %v4331 = vunpack.c.l.s4 1966171168
      %v4332 = vunpack.c.0.s8 %v4331
      %v4333 = vlaneseq
      %v4334 = vshrl.u32 %v4333, 7
      %v4335 = vsub.s32 %v4332, %v4334
      %v4336 = vrot.slane %v1350, %v4335
      %v4338 = vunpack.c.l.s4 1966171168
      %v4339 = vunpack.c.0.s8 %v4338
      %v4340 = vlaneseq
      %v4341 = vshrl.u32 %v4340, 7
      %v4342 = vsub.s32 %v4339, %v4341
      %v4343 = vrot.slane %v4336, %v4342
      %v4345 = vunpack.c.l.s4 1966171168
      %v4346 = vunpack.c.0.s8 %v4345
      %v4347 = vlaneseq
      %v4348 = vshrl.u32 %v4347, 7
      %v4349 = vsub.s32 %v4346, %v4348
      %v4350 = vrot.slane %v1358, %v4349
      %v4352 = vunpack.c.l.s4 1966171168
      %v4353 = vunpack.c.0.s8 %v4352
      %v4354 = vlaneseq
      %v4355 = vshrl.u32 %v4354, 7
      %v4356 = vsub.s32 %v4353, %v4355
      %v4357 = vrot.slane %v4350, %v4356
      %v4359 = vunpack.c.l.s4 1966171168
      %v4360 = vunpack.c.0.s8 %v4359
      %v4361 = vlaneseq
      %v4362 = vshrl.u32 %v4361, 7
      %v4363 = vsub.s32 %v4360, %v4362
      %v4364 = vrot.slane %v1366, %v4363
      %v4366 = vunpack.c.l.s4 1966171168
      %v4367 = vunpack.c.0.s8 %v4366
      %v4368 = vlaneseq
      %v4369 = vshrl.u32 %v4368, 7
      %v4370 = vsub.s32 %v4367, %v4369
      %v4371 = vrot.slane %v4364, %v4370
      %v4373 = vunpack.c.l.s4 1966171168
      %v4374 = vunpack.c.0.s8 %v4373
      %v4375 = vlaneseq
      %v4376 = vshrl.u32 %v4375, 7
      %v4377 = vsub.s32 %v4374, %v4376
      %v4378 = vrot.slane %v1374, %v4377
      %v4380 = vunpack.c.l.s4 1966171168
      %v4381 = vunpack.c.0.s8 %v4380
      %v4382 = vlaneseq
      %v4383 = vshrl.u32 %v4382, 7
      %v4384 = vsub.s32 %v4381, %v4383
      %v4385 = vrot.slane %v4378, %v4384
      %v4387 = vunpack.c.l.s4 1966171168
      %v4388 = vunpack.c.0.s8 %v4387
      %v4389 = vlaneseq
      %v4390 = vshrl.u32 %v4389, 7
      %v4391 = vsub.s32 %v4388, %v4390
      %v4392 = vrot.slane %v1382, %v4391
      %v4394 = vunpack.c.l.s4 1966171168
      %v4395 = vunpack.c.0.s8 %v4394
      %v4396 = vlaneseq
      %v4397 = vshrl.u32 %v4396, 7
      %v4398 = vsub.s32 %v4395, %v4397
      %v4399 = vrot.slane %v4392, %v4398
      %v4401 = vunpack.c.l.s4 1966171168
      %v4402 = vunpack.c.0.s8 %v4401
      %v4403 = vlaneseq
      %v4404 = vshrl.u32 %v4403, 7
      %v4405 = vsub.s32 %v4402, %v4404
      %v4406 = vrot.slane %v1391, %v4405
      %v4408 = vunpack.c.l.s4 1966171168
      %v4409 = vunpack.c.0.s8 %v4408
      %v4410 = vlaneseq
      %v4411 = vshrl.u32 %v4410, 7
      %v4412 = vsub.s32 %v4409, %v4411
      %v4413 = vrot.slane %v4406, %v4412
      %v4415 = vunpack.c.l.s4 1966171168
      %v4416 = vunpack.c.0.s8 %v4415
      %v4417 = vlaneseq
      %v4418 = vshrl.u32 %v4417, 7
      %v4419 = vsub.s32 %v4416, %v4418
      %v4420 = vrot.slane %v1399, %v4419
      %v4422 = vunpack.c.l.s4 1966171168
      %v4423 = vunpack.c.0.s8 %v4422
      %v4424 = vlaneseq
      %v4425 = vshrl.u32 %v4424, 7
      %v4426 = vsub.s32 %v4423, %v4425
      %v4427 = vrot.slane %v4420, %v4426
      %v4429 = vunpack.c.l.s4 1966171168
      %v4430 = vunpack.c.0.s8 %v4429
      %v4431 = vlaneseq
      %v4432 = vshrl.u32 %v4431, 7
      %v4433 = vsub.s32 %v4430, %v4432
      %v4434 = vrot.slane %v1407, %v4433
      %v4436 = vunpack.c.l.s4 1966171168
      %v4437 = vunpack.c.0.s8 %v4436
      %v4438 = vlaneseq
      %v4439 = vshrl.u32 %v4438, 7
      %v4440 = vsub.s32 %v4437, %v4439
      %v4441 = vrot.slane %v4434, %v4440
      %v4443 = vunpack.c.l.s4 1966171168
      %v4444 = vunpack.c.0.s8 %v4443
      %v4445 = vlaneseq
      %v4446 = vshrl.u32 %v4445, 7
      %v4447 = vsub.s32 %v4444, %v4446
      %v4448 = vrot.slane %v1415, %v4447
      %v4450 = vunpack.c.l.s4 1966171168
      %v4451 = vunpack.c.0.s8 %v4450
      %v4452 = vlaneseq
      %v4453 = vshrl.u32 %v4452, 7
      %v4454 = vsub.s32 %v4451, %v4453
      %v4455 = vrot.slane %v4448, %v4454
      %v4457 = vunpack.c.l.s4 1966171168
      %v4458 = vunpack.c.0.s8 %v4457
      %v4459 = vlaneseq
      %v4460 = vshrl.u32 %v4459, 7
      %v4461 = vsub.s32 %v4458, %v4460
      %v4462 = vrot.slane %v1423, %v4461
      %v4464 = vunpack.c.l.s4 1966171168
      %v4465 = vunpack.c.0.s8 %v4464
      %v4466 = vlaneseq
      %v4467 = vshrl.u32 %v4466, 7
      %v4468 = vsub.s32 %v4465, %v4467
      %v4469 = vrot.slane %v4462, %v4468
      %v4471 = vunpack.c.l.s4 1966171168
      %v4472 = vunpack.c.0.s8 %v4471
      %v4473 = vlaneseq
      %v4474 = vshrl.u32 %v4473, 7
      %v4475 = vsub.s32 %v4472, %v4474
      %v4476 = vrot.slane %v1431, %v4475
      %v4478 = vunpack.c.l.s4 1966171168
      %v4479 = vunpack.c.0.s8 %v4478
      %v4480 = vlaneseq
      %v4481 = vshrl.u32 %v4480, 7
      %v4482 = vsub.s32 %v4479, %v4481
      %v4483 = vrot.slane %v4476, %v4482
      %v4485 = vunpack.c.l.s4 1966171168
      %v4486 = vunpack.c.0.s8 %v4485
      %v4487 = vlaneseq
      %v4488 = vshrl.u32 %v4487, 7
      %v4489 = vsub.s32 %v4486, %v4488
      %v4490 = vrot.slane %v1439, %v4489
      %v4492 = vunpack.c.l.s4 1966171168
      %v4493 = vunpack.c.0.s8 %v4492
      %v4494 = vlaneseq
      %v4495 = vshrl.u32 %v4494, 7
      %v4496 = vsub.s32 %v4493, %v4495
      %v4497 = vrot.slane %v4490, %v4496
      %v4499 = vunpack.c.l.s4 1966171168
      %v4500 = vunpack.c.0.s8 %v4499
      %v4501 = vlaneseq
      %v4502 = vshrl.u32 %v4501, 7
      %v4503 = vsub.s32 %v4500, %v4502
      %v4504 = vrot.slane %v1447, %v4503
      %v4506 = vunpack.c.l.s4 1966171168
      %v4507 = vunpack.c.0.s8 %v4506
      %v4508 = vlaneseq
      %v4509 = vshrl.u32 %v4508, 7
      %v4510 = vsub.s32 %v4507, %v4509
      %v4511 = vrot.slane %v4504, %v4510
      %v4513 = vunpack.c.l.s4 1966171168
      %v4514 = vunpack.c.0.s8 %v4513
      %v4515 = vlaneseq
      %v4516 = vshrl.u32 %v4515, 7
      %v4517 = vsub.s32 %v4514, %v4516
      %v4518 = vrot.slane %v1456, %v4517
      %v4520 = vunpack.c.l.s4 1966171168
      %v4521 = vunpack.c.0.s8 %v4520
      %v4522 = vlaneseq
      %v4523 = vshrl.u32 %v4522, 7
      %v4524 = vsub.s32 %v4521, %v4523
      %v4525 = vrot.slane %v4518, %v4524
      %v4527 = vunpack.c.l.s4 1966171168
      %v4528 = vunpack.c.0.s8 %v4527
      %v4529 = vlaneseq
      %v4530 = vshrl.u32 %v4529, 7
      %v4531 = vsub.s32 %v4528, %v4530
      %v4532 = vrot.slane %v1464, %v4531
      %v4534 = vunpack.c.l.s4 1966171168
      %v4535 = vunpack.c.0.s8 %v4534
      %v4536 = vlaneseq
      %v4537 = vshrl.u32 %v4536, 7
      %v4538 = vsub.s32 %v4535, %v4537
      %v4539 = vrot.slane %v4532, %v4538
      %v4541 = vunpack.c.l.s4 1966171168
      %v4542 = vunpack.c.0.s8 %v4541
      %v4543 = vlaneseq
      %v4544 = vshrl.u32 %v4543, 7
      %v4545 = vsub.s32 %v4542, %v4544
      %v4546 = vrot.slane %v1472, %v4545
      %v4548 = vunpack.c.l.s4 1966171168
      %v4549 = vunpack.c.0.s8 %v4548
      %v4550 = vlaneseq
      %v4551 = vshrl.u32 %v4550, 7
      %v4552 = vsub.s32 %v4549, %v4551
      %v4553 = vrot.slane %v4546, %v4552
      %v4555 = vunpack.c.l.s4 1966171168
      %v4556 = vunpack.c.0.s8 %v4555
      %v4557 = vlaneseq
      %v4558 = vshrl.u32 %v4557, 7
      %v4559 = vsub.s32 %v4556, %v4558
      %v4560 = vrot.slane %v1480, %v4559
      %v4562 = vunpack.c.l.s4 1966171168
      %v4563 = vunpack.c.0.s8 %v4562
      %v4564 = vlaneseq
      %v4565 = vshrl.u32 %v4564, 7
      %v4566 = vsub.s32 %v4563, %v4565
      %v4567 = vrot.slane %v4560, %v4566
      %v4569 = vunpack.c.l.s4 1966171168
      %v4570 = vunpack.c.0.s8 %v4569
      %v4571 = vlaneseq
      %v4572 = vshrl.u32 %v4571, 7
      %v4573 = vsub.s32 %v4570, %v4572
      %v4574 = vrot.slane %v1488, %v4573
      %v4576 = vunpack.c.l.s4 1966171168
      %v4577 = vunpack.c.0.s8 %v4576
      %v4578 = vlaneseq
      %v4579 = vshrl.u32 %v4578, 7
      %v4580 = vsub.s32 %v4577, %v4579
      %v4581 = vrot.slane %v4574, %v4580
      %v4583 = vunpack.c.l.s4 1966171168
      %v4584 = vunpack.c.0.s8 %v4583
      %v4585 = vlaneseq
      %v4586 = vshrl.u32 %v4585, 7
      %v4587 = vsub.s32 %v4584, %v4586
      %v4588 = vrot.slane %v1496, %v4587
      %v4590 = vunpack.c.l.s4 1966171168
      %v4591 = vunpack.c.0.s8 %v4590
      %v4592 = vlaneseq
      %v4593 = vshrl.u32 %v4592, 7
      %v4594 = vsub.s32 %v4591, %v4593
      %v4595 = vrot.slane %v4588, %v4594
      %v4597 = vunpack.c.l.s4 1966171168
      %v4598 = vunpack.c.0.s8 %v4597
      %v4599 = vlaneseq
      %v4600 = vshrl.u32 %v4599, 7
      %v4601 = vsub.s32 %v4598, %v4600
      %v4602 = vrot.slane %v1504, %v4601
      %v4604 = vunpack.c.l.s4 1966171168
      %v4605 = vunpack.c.0.s8 %v4604
      %v4606 = vlaneseq
      %v4607 = vshrl.u32 %v4606, 7
      %v4608 = vsub.s32 %v4605, %v4607
      %v4609 = vrot.slane %v4602, %v4608
      %v4611 = vunpack.c.l.s4 1966171168
      %v4612 = vunpack.c.0.s8 %v4611
      %v4613 = vlaneseq
      %v4614 = vshrl.u32 %v4613, 7
      %v4615 = vsub.s32 %v4612, %v4614
      %v4616 = vrot.slane %v1512, %v4615
      %v4618 = vunpack.c.l.s4 1966171168
      %v4619 = vunpack.c.0.s8 %v4618
      %v4620 = vlaneseq
      %v4621 = vshrl.u32 %v4620, 7
      %v4622 = vsub.s32 %v4619, %v4621
      %v4623 = vrot.slane %v4616, %v4622
      %v4625 = vunpack.c.l.s4 1966171168
      %v4626 = vunpack.c.0.s8 %v4625
      %v4627 = vlaneseq
      %v4628 = vshrl.u32 %v4627, 7
      %v4629 = vsub.s32 %v4626, %v4628
      %v4630 = vrot.slane %v1521, %v4629
      %v4632 = vunpack.c.l.s4 1966171168
      %v4633 = vunpack.c.0.s8 %v4632
      %v4634 = vlaneseq
      %v4635 = vshrl.u32 %v4634, 7
      %v4636 = vsub.s32 %v4633, %v4635
      %v4637 = vrot.slane %v4630, %v4636
      %v4639 = vunpack.c.l.s4 1966171168
      %v4640 = vunpack.c.0.s8 %v4639
      %v4641 = vlaneseq
      %v4642 = vshrl.u32 %v4641, 7
      %v4643 = vsub.s32 %v4640, %v4642
      %v4644 = vrot.slane %v1529, %v4643
      %v4646 = vunpack.c.l.s4 1966171168
      %v4647 = vunpack.c.0.s8 %v4646
      %v4648 = vlaneseq
      %v4649 = vshrl.u32 %v4648, 7
      %v4650 = vsub.s32 %v4647, %v4649
      %v4651 = vrot.slane %v4644, %v4650
      %v4653 = vunpack.c.l.s4 1966171168
      %v4654 = vunpack.c.0.s8 %v4653
      %v4655 = vlaneseq
      %v4656 = vshrl.u32 %v4655, 7
      %v4657 = vsub.s32 %v4654, %v4656
      %v4658 = vrot.slane %v1537, %v4657
      %v4660 = vunpack.c.l.s4 1966171168
      %v4661 = vunpack.c.0.s8 %v4660
      %v4662 = vlaneseq
      %v4663 = vshrl.u32 %v4662, 7
      %v4664 = vsub.s32 %v4661, %v4663
      %v4665 = vrot.slane %v4658, %v4664
      %v4667 = vunpack.c.l.s4 1966171168
      %v4668 = vunpack.c.0.s8 %v4667
      %v4669 = vlaneseq
      %v4670 = vshrl.u32 %v4669, 7
      %v4671 = vsub.s32 %v4668, %v4670
      %v4672 = vrot.slane %v1545, %v4671
      %v4674 = vunpack.c.l.s4 1966171168
      %v4675 = vunpack.c.0.s8 %v4674
      %v4676 = vlaneseq
      %v4677 = vshrl.u32 %v4676, 7
      %v4678 = vsub.s32 %v4675, %v4677
      %v4679 = vrot.slane %v4672, %v4678
      %v4681 = vunpack.c.l.s4 1966171168
      %v4682 = vunpack.c.0.s8 %v4681
      %v4683 = vlaneseq
      %v4684 = vshrl.u32 %v4683, 7
      %v4685 = vsub.s32 %v4682, %v4684
      %v4686 = vrot.slane %v1553, %v4685
      %v4688 = vunpack.c.l.s4 1966171168
      %v4689 = vunpack.c.0.s8 %v4688
      %v4690 = vlaneseq
      %v4691 = vshrl.u32 %v4690, 7
      %v4692 = vsub.s32 %v4689, %v4691
      %v4693 = vrot.slane %v4686, %v4692
      %v4695 = vunpack.c.l.s4 1966171168
      %v4696 = vunpack.c.0.s8 %v4695
      %v4697 = vlaneseq
      %v4698 = vshrl.u32 %v4697, 7
      %v4699 = vsub.s32 %v4696, %v4698
      %v4700 = vrot.slane %v1561, %v4699
      %v4702 = vunpack.c.l.s4 1966171168
      %v4703 = vunpack.c.0.s8 %v4702
      %v4704 = vlaneseq
      %v4705 = vshrl.u32 %v4704, 7
      %v4706 = vsub.s32 %v4703, %v4705
      %v4707 = vrot.slane %v4700, %v4706
      %v4709 = vunpack.c.l.s4 1966171168
      %v4710 = vunpack.c.0.s8 %v4709
      %v4711 = vlaneseq
      %v4712 = vshrl.u32 %v4711, 7
      %v4713 = vsub.s32 %v4710, %v4712
      %v4714 = vrot.slane %v1569, %v4713
      %v4716 = vunpack.c.l.s4 1966171168
      %v4717 = vunpack.c.0.s8 %v4716
      %v4718 = vlaneseq
      %v4719 = vshrl.u32 %v4718, 7
      %v4720 = vsub.s32 %v4717, %v4719
      %v4721 = vrot.slane %v4714, %v4720
      %v4723 = vunpack.c.l.s4 1966171168
      %v4724 = vunpack.c.0.s8 %v4723
      %v4725 = vlaneseq
      %v4726 = vshrl.u32 %v4725, 7
      %v4727 = vsub.s32 %v4724, %v4726
      %v4728 = vrot.slane %v1577, %v4727
      %v4730 = vunpack.c.l.s4 1966171168
      %v4731 = vunpack.c.0.s8 %v4730
      %v4732 = vlaneseq
      %v4733 = vshrl.u32 %v4732, 7
      %v4734 = vsub.s32 %v4731, %v4733
      %v4735 = vrot.slane %v4728, %v4734
      %v4736 = vunpack.c.l.b16 %v3853
      %v4737 = vunpack.c.l.b16 %v3867
      %v4738 = vunpack.c.l.b16 %v3881
      %v4739 = vunpack.c.l.b16 %v3895
      %v4740 = vunpack.c.l.b16 %v3909
      %v4741 = vunpack.c.l.b16 %v3923
      %v4742 = vunpack.c.l.b16 %v3937
      %v4743 = vunpack.c.l.b16 %v3951
      %v4744 = vunpack.c.l.b16 %v3965
      %v4745 = vunpack.c.l.b16 %v3979
      %v4746 = vunpack.c.l.b16 %v3993
      %v4747 = vunpack.c.l.b16 %v4007
      %v4748 = vunpack.c.l.b16 %v4021
      %v4749 = vunpack.c.l.b16 %v4035
      %v4750 = vunpack.c.l.b16 %v4049
      %v4751 = vunpack.c.l.b16 %v4063
      %v4752 = vunpack.c.l.b16 %v4077
      %v4753 = vunpack.c.l.b16 %v4091
      %v4754 = vunpack.c.l.b16 %v4105
      %v4755 = vunpack.c.l.b16 %v4119
      %v4756 = vunpack.c.l.b16 %v4133
      %v4757 = vunpack.c.l.b16 %v4147
      %v4758 = vunpack.c.l.b16 %v4161
      %v4759 = vunpack.c.l.b16 %v4175
      %v4760 = vunpack.c.l.b16 %v4189
      %v4761 = vunpack.c.l.b16 %v4203
      %v4762 = vunpack.c.l.b16 %v4217
      %v4763 = vunpack.c.l.b16 %v4231
      %v4764 = vunpack.c.l.b16 %v4245
      %v4765 = vunpack.c.l.b16 %v4259
      %v4766 = vunpack.c.l.b16 %v4273
      %v4767 = vunpack.c.l.b16 %v4287
      %v4768 = vunpack.c.l.b16 %v4301
      %v4769 = vunpack.c.l.b16 %v4315
      %v4770 = vunpack.c.l.b16 %v4329
      %v4771 = vunpack.c.l.b16 %v4343
      %v4772 = vunpack.c.l.b16 %v4357
      %v4773 = vunpack.c.l.b16 %v4371
      %v4774 = vunpack.c.l.b16 %v4385
      %v4775 = vunpack.c.l.b16 %v4399
      %v4776 = vunpack.c.l.b16 %v4413
      %v4777 = vunpack.c.l.b16 %v4427
      %v4778 = vunpack.c.l.b16 %v4441
      %v4779 = vunpack.c.l.b16 %v4455
      %v4780 = vunpack.c.l.b16 %v4469
      %v4781 = vunpack.c.l.b16 %v4483
      %v4782 = vunpack.c.l.b16 %v4497
      %v4783 = vunpack.c.l.b16 %v4511
      %v4784 = vunpack.c.l.b16 %v4525
      %v4785 = vunpack.c.l.b16 %v4539
      %v4786 = vunpack.c.l.b16 %v4553
      %v4787 = vunpack.c.l.b16 %v4567
      %v4788 = vunpack.c.l.b16 %v4581
      %v4789 = vunpack.c.l.b16 %v4595
      %v4790 = vunpack.c.l.b16 %v4609
      %v4791 = vunpack.c.l.b16 %v4623
      %v4792 = vunpack.c.l.b16 %v4637
      %v4793 = vunpack.c.l.b16 %v4651
      %v4794 = vunpack.c.l.b16 %v4665
      %v4795 = vunpack.c.l.b16 %v4679
      %v4796 = vunpack.c.l.b16 %v4693
      %v4797 = vunpack.c.l.b16 %v4707
      %v4798 = vunpack.c.l.b16 %v4721
      %v4799 = vunpack.c.l.b16 %v4735
      %v4800 = vrot.slane %v4737, 7
      %v4801 = vsel %vm3714, %v4800, %v4736
      %v4802 = vrot.slane %v4738, 6
      %v4803 = vsel %vm3717, %v4802, %v4801
      %v4804 = vrot.slane %v4739, 5
      %v4805 = vsel %vm3720, %v4804, %v4803
      %v4806 = vrot.slane %v4740, 4
      %v4807 = vsel %vm3723, %v4806, %v4805
      %v4808 = vrot.slane %v4741, 3
      %v4809 = vsel %vm3726, %v4808, %v4807
      %v4810 = vrot.slane %v4742, 2
      %v4811 = vsel %vm3729, %v4810, %v4809
      %v4812 = vrot.slane %v4743, 1
      %v4813 = vsel %vm3732, %v4812, %v4811
      %v4814 = vrot.slane %v4745, 7
      %v4815 = vsel %vm3714, %v4814, %v4744
      %v4816 = vrot.slane %v4746, 6
      %v4817 = vsel %vm3717, %v4816, %v4815
      %v4818 = vrot.slane %v4747, 5
      %v4819 = vsel %vm3720, %v4818, %v4817
      %v4820 = vrot.slane %v4748, 4
      %v4821 = vsel %vm3723, %v4820, %v4819
      %v4822 = vrot.slane %v4749, 3
      %v4823 = vsel %vm3726, %v4822, %v4821
      %v4824 = vrot.slane %v4750, 2
      %v4825 = vsel %vm3729, %v4824, %v4823
      %v4826 = vrot.slane %v4751, 1
      %v4827 = vsel %vm3732, %v4826, %v4825
      %v4828 = vrot.slane %v4753, 7
      %v4829 = vsel %vm3714, %v4828, %v4752
      %v4830 = vrot.slane %v4754, 6
      %v4831 = vsel %vm3717, %v4830, %v4829
      %v4832 = vrot.slane %v4755, 5
      %v4833 = vsel %vm3720, %v4832, %v4831
      %v4834 = vrot.slane %v4756, 4
      %v4835 = vsel %vm3723, %v4834, %v4833
      %v4836 = vrot.slane %v4757, 3
      %v4837 = vsel %vm3726, %v4836, %v4835
      %v4838 = vrot.slane %v4758, 2
      %v4839 = vsel %vm3729, %v4838, %v4837
      %v4840 = vrot.slane %v4759, 1
      %v4841 = vsel %vm3732, %v4840, %v4839
      %v4842 = vrot.slane %v4761, 7
      %v4843 = vsel %vm3714, %v4842, %v4760
      %v4844 = vrot.slane %v4762, 6
      %v4845 = vsel %vm3717, %v4844, %v4843
      %v4846 = vrot.slane %v4763, 5
      %v4847 = vsel %vm3720, %v4846, %v4845
      %v4848 = vrot.slane %v4764, 4
      %v4849 = vsel %vm3723, %v4848, %v4847
      %v4850 = vrot.slane %v4765, 3
      %v4851 = vsel %vm3726, %v4850, %v4849
      %v4852 = vrot.slane %v4766, 2
      %v4853 = vsel %vm3729, %v4852, %v4851
      %v4854 = vrot.slane %v4767, 1
      %v4855 = vsel %vm3732, %v4854, %v4853
      %v4856 = vrot.slane %v4769, 7
      %v4857 = vsel %vm3714, %v4856, %v4768
      %v4858 = vrot.slane %v4770, 6
      %v4859 = vsel %vm3717, %v4858, %v4857
      %v4860 = vrot.slane %v4771, 5
      %v4861 = vsel %vm3720, %v4860, %v4859
      %v4862 = vrot.slane %v4772, 4
      %v4863 = vsel %vm3723, %v4862, %v4861
      %v4864 = vrot.slane %v4773, 3
      %v4865 = vsel %vm3726, %v4864, %v4863
      %v4866 = vrot.slane %v4774, 2
      %v4867 = vsel %vm3729, %v4866, %v4865
      %v4868 = vrot.slane %v4775, 1
      %v4869 = vsel %vm3732, %v4868, %v4867
      %v4870 = vrot.slane %v4777, 7
      %v4871 = vsel %vm3714, %v4870, %v4776
      %v4872 = vrot.slane %v4778, 6
      %v4873 = vsel %vm3717, %v4872, %v4871
      %v4874 = vrot.slane %v4779, 5
      %v4875 = vsel %vm3720, %v4874, %v4873
      %v4876 = vrot.slane %v4780, 4
      %v4877 = vsel %vm3723, %v4876, %v4875
      %v4878 = vrot.slane %v4781, 3
      %v4879 = vsel %vm3726, %v4878, %v4877
      %v4880 = vrot.slane %v4782, 2
      %v4881 = vsel %vm3729, %v4880, %v4879
      %v4882 = vrot.slane %v4783, 1
      %v4883 = vsel %vm3732, %v4882, %v4881
      %v4884 = vrot.slane %v4785, 7
      %v4885 = vsel %vm3714, %v4884, %v4784
      %v4886 = vrot.slane %v4786, 6
      %v4887 = vsel %vm3717, %v4886, %v4885
      %v4888 = vrot.slane %v4787, 5
      %v4889 = vsel %vm3720, %v4888, %v4887
      %v4890 = vrot.slane %v4788, 4
      %v4891 = vsel %vm3723, %v4890, %v4889
      %v4892 = vrot.slane %v4789, 3
      %v4893 = vsel %vm3726, %v4892, %v4891
      %v4894 = vrot.slane %v4790, 2
      %v4895 = vsel %vm3729, %v4894, %v4893
      %v4896 = vrot.slane %v4791, 1
      %v4897 = vsel %vm3732, %v4896, %v4895
      %v4898 = vrot.slane %v4793, 7
      %v4899 = vsel %vm3714, %v4898, %v4792
      %v4900 = vrot.slane %v4794, 6
      %v4901 = vsel %vm3717, %v4900, %v4899
      %v4902 = vrot.slane %v4795, 5
      %v4903 = vsel %vm3720, %v4902, %v4901
      %v4904 = vrot.slane %v4796, 4
      %v4905 = vsel %vm3723, %v4904, %v4903
      %v4906 = vrot.slane %v4797, 3
      %v4907 = vsel %vm3726, %v4906, %v4905
      %v4908 = vrot.slane %v4798, 2
      %v4909 = vsel %vm3729, %v4908, %v4907
      %v4910 = vrot.slane %v4799, 1
      %v4911 = vsel %vm3732, %v4910, %v4909
      %v4912 = vpack.c.b16 %v4813, %v4813
      %v4913 = vpack.c.b16 %v4827, %v4827
      %v4914 = vpack.c.b16 %v4841, %v4841
      %v4915 = vpack.c.b16 %v4855, %v4855
      %v4916 = vpack.c.b16 %v4869, %v4869
      %v4917 = vpack.c.b16 %v4883, %v4883
      %v4918 = vpack.c.b16 %v4897, %v4897
      %v4919 = vpack.c.b16 %v4911, %v4911
      %4920 = vrot.lane.b32.xlu0 %v4912, 4
      %v4921 = vpop.permute.xlu0 %4920
      %4922 = vrot.lane.b32.xlu0 %v4913, 4
      %v4923 = vpop.permute.xlu0 %4922
      %4924 = vrot.lane.b32.xlu0 %v4914, 4
      %v4925 = vpop.permute.xlu0 %4924
      %4926 = vrot.lane.b32.xlu0 %v4915, 4
      %v4927 = vpop.permute.xlu0 %4926
      %4928 = vrot.lane.b32.xlu0 %v4916, 4
      %v4929 = vpop.permute.xlu0 %4928
      %4930 = vrot.lane.b32.xlu0 %v4917, 4
      %v4931 = vpop.permute.xlu0 %4930
      %4932 = vrot.lane.b32.xlu0 %v4918, 4
      %v4933 = vpop.permute.xlu0 %4932
      %4934 = vrot.lane.b32.xlu0 %v4919, 4
      %v4935 = vpop.permute.xlu0 %4934
      %v4937 = vunpack.c.l.s4 1966171168
      %v4938 = vunpack.c.0.s8 %v4937
      %v4939 = vlaneseq
      %v4940 = vshrl.u32 %v4939, 7
      %v4941 = vsub.s32 %v4938, %v4940
      %v4942 = vrot.slane %v945, %v4941
      %v4944 = vunpack.c.l.s4 1966171168
      %v4945 = vunpack.c.0.s8 %v4944
      %v4946 = vlaneseq
      %v4947 = vshrl.u32 %v4946, 7
      %v4948 = vsub.s32 %v4945, %v4947
      %v4949 = vrot.slane %v4942, %v4948
      %v4951 = vunpack.c.l.s4 1966171168
      %v4952 = vunpack.c.0.s8 %v4951
      %v4953 = vlaneseq
      %v4954 = vshrl.u32 %v4953, 7
      %v4955 = vsub.s32 %v4952, %v4954
      %v4956 = vrot.slane %v959, %v4955
      %v4958 = vunpack.c.l.s4 1966171168
      %v4959 = vunpack.c.0.s8 %v4958
      %v4960 = vlaneseq
      %v4961 = vshrl.u32 %v4960, 7
      %v4962 = vsub.s32 %v4959, %v4961
      %v4963 = vrot.slane %v4956, %v4962
      %v4965 = vunpack.c.l.s4 1966171168
      %v4966 = vunpack.c.0.s8 %v4965
      %v4967 = vlaneseq
      %v4968 = vshrl.u32 %v4967, 7
      %v4969 = vsub.s32 %v4966, %v4968
      %v4970 = vrot.slane %v973, %v4969
      %v4972 = vunpack.c.l.s4 1966171168
      %v4973 = vunpack.c.0.s8 %v4972
      %v4974 = vlaneseq
      %v4975 = vshrl.u32 %v4974, 7
      %v4976 = vsub.s32 %v4973, %v4975
      %v4977 = vrot.slane %v4970, %v4976
      %v4979 = vunpack.c.l.s4 1966171168
      %v4980 = vunpack.c.0.s8 %v4979
      %v4981 = vlaneseq
      %v4982 = vshrl.u32 %v4981, 7
      %v4983 = vsub.s32 %v4980, %v4982
      %v4984 = vrot.slane %v987, %v4983
      %v4986 = vunpack.c.l.s4 1966171168
      %v4987 = vunpack.c.0.s8 %v4986
      %v4988 = vlaneseq
      %v4989 = vshrl.u32 %v4988, 7
      %v4990 = vsub.s32 %v4987, %v4989
      %v4991 = vrot.slane %v4984, %v4990
      %v4993 = vunpack.c.l.s4 1966171168
      %v4994 = vunpack.c.0.s8 %v4993
      %v4995 = vlaneseq
      %v4996 = vshrl.u32 %v4995, 7
      %v4997 = vsub.s32 %v4994, %v4996
      %v4998 = vrot.slane %v1001, %v4997
      %v5000 = vunpack.c.l.s4 1966171168
      %v5001 = vunpack.c.0.s8 %v5000
      %v5002 = vlaneseq
      %v5003 = vshrl.u32 %v5002, 7
      %v5004 = vsub.s32 %v5001, %v5003
      %v5005 = vrot.slane %v4998, %v5004
      %v5007 = vunpack.c.l.s4 1966171168
      %v5008 = vunpack.c.0.s8 %v5007
      %v5009 = vlaneseq
      %v5010 = vshrl.u32 %v5009, 7
      %v5011 = vsub.s32 %v5008, %v5010
      %v5012 = vrot.slane %v1015, %v5011
      %v5014 = vunpack.c.l.s4 1966171168
      %v5015 = vunpack.c.0.s8 %v5014
      %v5016 = vlaneseq
      %v5017 = vshrl.u32 %v5016, 7
      %v5018 = vsub.s32 %v5015, %v5017
      %v5019 = vrot.slane %v5012, %v5018
      %v5021 = vunpack.c.l.s4 1966171168
      %v5022 = vunpack.c.0.s8 %v5021
      %v5023 = vlaneseq
      %v5024 = vshrl.u32 %v5023, 7
      %v5025 = vsub.s32 %v5022, %v5024
      %v5026 = vrot.slane %v1029, %v5025
      %v5028 = vunpack.c.l.s4 1966171168
      %v5029 = vunpack.c.0.s8 %v5028
      %v5030 = vlaneseq
      %v5031 = vshrl.u32 %v5030, 7
      %v5032 = vsub.s32 %v5029, %v5031
      %v5033 = vrot.slane %v5026, %v5032
      %v5035 = vunpack.c.l.s4 1966171168
      %v5036 = vunpack.c.0.s8 %v5035
      %v5037 = vlaneseq
      %v5038 = vshrl.u32 %v5037, 7
      %v5039 = vsub.s32 %v5036, %v5038
      %v5040 = vrot.slane %v1043, %v5039
      %v5042 = vunpack.c.l.s4 1966171168
      %v5043 = vunpack.c.0.s8 %v5042
      %v5044 = vlaneseq
      %v5045 = vshrl.u32 %v5044, 7
      %v5046 = vsub.s32 %v5043, %v5045
      %v5047 = vrot.slane %v5040, %v5046
      %v5048 = vunpack.c.l.b16 %v4949
      %v5049 = vunpack.c.l.b16 %v4963
      %v5050 = vunpack.c.l.b16 %v4977
      %v5051 = vunpack.c.l.b16 %v4991
      %v5052 = vunpack.c.l.b16 %v5005
      %v5053 = vunpack.c.l.b16 %v5019
      %v5054 = vunpack.c.l.b16 %v5033
      %v5055 = vunpack.c.l.b16 %v5047
      %v5056 = vrot.slane %v3651, 7
      %v5057 = vsel %vm3714, %v5056, %v3650
      %v5058 = vrot.slane %v3652, 6
      %v5059 = vsel %vm3717, %v5058, %v5057
      %v5060 = vrot.slane %v3653, 5
      %v5061 = vsel %vm3720, %v5060, %v5059
      %v5062 = vrot.slane %v3654, 4
      %v5063 = vsel %vm3723, %v5062, %v5061
      %v5064 = vrot.slane %v3655, 3
      %v5065 = vsel %vm3726, %v5064, %v5063
      %v5066 = vrot.slane %v3656, 2
      %v5067 = vsel %vm3729, %v5066, %v5065
      %v5068 = vrot.slane %v5048, 1
      %v5069 = vsel %vm3732, %v5068, %v5067
      %v5070 = vrot.slane %v3659, 7
      %v5071 = vsel %vm3714, %v5070, %v3658
      %v5072 = vrot.slane %v3660, 6
      %v5073 = vsel %vm3717, %v5072, %v5071
      %v5074 = vrot.slane %v3661, 5
      %v5075 = vsel %vm3720, %v5074, %v5073
      %v5076 = vrot.slane %v3662, 4
      %v5077 = vsel %vm3723, %v5076, %v5075
      %v5078 = vrot.slane %v3663, 3
      %v5079 = vsel %vm3726, %v5078, %v5077
      %v5080 = vrot.slane %v3664, 2
      %v5081 = vsel %vm3729, %v5080, %v5079
      %v5082 = vrot.slane %v5049, 1
      %v5083 = vsel %vm3732, %v5082, %v5081
      %v5084 = vrot.slane %v3667, 7
      %v5085 = vsel %vm3714, %v5084, %v3666
      %v5086 = vrot.slane %v3668, 6
      %v5087 = vsel %vm3717, %v5086, %v5085
      %v5088 = vrot.slane %v3669, 5
      %v5089 = vsel %vm3720, %v5088, %v5087
      %v5090 = vrot.slane %v3670, 4
      %v5091 = vsel %vm3723, %v5090, %v5089
      %v5092 = vrot.slane %v3671, 3
      %v5093 = vsel %vm3726, %v5092, %v5091
      %v5094 = vrot.slane %v3672, 2
      %v5095 = vsel %vm3729, %v5094, %v5093
      %v5096 = vrot.slane %v5050, 1
      %v5097 = vsel %vm3732, %v5096, %v5095
      %v5098 = vrot.slane %v3675, 7
      %v5099 = vsel %vm3714, %v5098, %v3674
      %v5100 = vrot.slane %v3676, 6
      %v5101 = vsel %vm3717, %v5100, %v5099
      %v5102 = vrot.slane %v3677, 5
      %v5103 = vsel %vm3720, %v5102, %v5101
      %v5104 = vrot.slane %v3678, 4
      %v5105 = vsel %vm3723, %v5104, %v5103
      %v5106 = vrot.slane %v3679, 3
      %v5107 = vsel %vm3726, %v5106, %v5105
      %v5108 = vrot.slane %v3680, 2
      %v5109 = vsel %vm3729, %v5108, %v5107
      %v5110 = vrot.slane %v5051, 1
      %v5111 = vsel %vm3732, %v5110, %v5109
      %v5112 = vrot.slane %v3683, 7
      %v5113 = vsel %vm3714, %v5112, %v3682
      %v5114 = vrot.slane %v3684, 6
      %v5115 = vsel %vm3717, %v5114, %v5113
      %v5116 = vrot.slane %v3685, 5
      %v5117 = vsel %vm3720, %v5116, %v5115
      %v5118 = vrot.slane %v3686, 4
      %v5119 = vsel %vm3723, %v5118, %v5117
      %v5120 = vrot.slane %v3687, 3
      %v5121 = vsel %vm3726, %v5120, %v5119
      %v5122 = vrot.slane %v3688, 2
      %v5123 = vsel %vm3729, %v5122, %v5121
      %v5124 = vrot.slane %v5052, 1
      %v5125 = vsel %vm3732, %v5124, %v5123
      %v5126 = vrot.slane %v3691, 7
      %v5127 = vsel %vm3714, %v5126, %v3690
      %v5128 = vrot.slane %v3692, 6
      %v5129 = vsel %vm3717, %v5128, %v5127
      %v5130 = vrot.slane %v3693, 5
      %v5131 = vsel %vm3720, %v5130, %v5129
      %v5132 = vrot.slane %v3694, 4
      %v5133 = vsel %vm3723, %v5132, %v5131
      %v5134 = vrot.slane %v3695, 3
      %v5135 = vsel %vm3726, %v5134, %v5133
      %v5136 = vrot.slane %v3696, 2
      %v5137 = vsel %vm3729, %v5136, %v5135
      %v5138 = vrot.slane %v5053, 1
      %v5139 = vsel %vm3732, %v5138, %v5137
      %v5140 = vrot.slane %v3699, 7
      %v5141 = vsel %vm3714, %v5140, %v3698
      %v5142 = vrot.slane %v3700, 6
      %v5143 = vsel %vm3717, %v5142, %v5141
      %v5144 = vrot.slane %v3701, 5
      %v5145 = vsel %vm3720, %v5144, %v5143
      %v5146 = vrot.slane %v3702, 4
      %v5147 = vsel %vm3723, %v5146, %v5145
      %v5148 = vrot.slane %v3703, 3
      %v5149 = vsel %vm3726, %v5148, %v5147
      %v5150 = vrot.slane %v3704, 2
      %v5151 = vsel %vm3729, %v5150, %v5149
      %v5152 = vrot.slane %v5054, 1
      %v5153 = vsel %vm3732, %v5152, %v5151
      %v5154 = vrot.slane %v3707, 7
      %v5155 = vsel %vm3714, %v5154, %v3706
      %v5156 = vrot.slane %v3708, 6
      %v5157 = vsel %vm3717, %v5156, %v5155
      %v5158 = vrot.slane %v3709, 5
      %v5159 = vsel %vm3720, %v5158, %v5157
      %v5160 = vrot.slane %v3710, 4
      %v5161 = vsel %vm3723, %v5160, %v5159
      %v5162 = vrot.slane %v3711, 3
      %v5163 = vsel %vm3726, %v5162, %v5161
      %v5164 = vrot.slane %v3712, 2
      %v5165 = vsel %vm3729, %v5164, %v5163
      %v5166 = vrot.slane %v5055, 1
      %v5167 = vsel %vm3732, %v5166, %v5165
      %v5168 = vpack.c.b16 %v5069, %v5069
      %v5169 = vpack.c.b16 %v5083, %v5083
      %v5170 = vpack.c.b16 %v5097, %v5097
      %v5171 = vpack.c.b16 %v5111, %v5111
      %v5172 = vpack.c.b16 %v5125, %v5125
      %v5173 = vpack.c.b16 %v5139, %v5139
      %v5174 = vpack.c.b16 %v5153, %v5153
      %v5175 = vpack.c.b16 %v5167, %v5167
      %5176 = vrot.lane.b32.xlu0 %v5168, 8
      %v5177 = vpop.permute.xlu0 %5176
      %5178 = vrot.lane.b32.xlu0 %v5169, 8
      %v5179 = vpop.permute.xlu0 %5178
      %5180 = vrot.lane.b32.xlu0 %v5170, 8
      %v5181 = vpop.permute.xlu0 %5180
      %5182 = vrot.lane.b32.xlu0 %v5171, 8
      %v5183 = vpop.permute.xlu0 %5182
      %5184 = vrot.lane.b32.xlu0 %v5172, 8
      %v5185 = vpop.permute.xlu0 %5184
      %5186 = vrot.lane.b32.xlu0 %v5173, 8
      %v5187 = vpop.permute.xlu0 %5186
      %5188 = vrot.lane.b32.xlu0 %v5174, 8
      %v5189 = vpop.permute.xlu0 %5188
      %5190 = vrot.lane.b32.xlu0 %v5175, 8
      %v5191 = vpop.permute.xlu0 %5190
      %v5193 = vunpack.c.l.s4 1966171168
      %v5194 = vunpack.c.0.s8 %v5193
      %v5195 = vlaneseq
      %v5196 = vshrl.u32 %v5195, 7
      %v5197 = vsub.s32 %v5194, %v5196
      %v5198 = vrot.slane %v1609, %v5197
      %v5200 = vunpack.c.l.s4 1966171168
      %v5201 = vunpack.c.0.s8 %v5200
      %v5202 = vlaneseq
      %v5203 = vshrl.u32 %v5202, 7
      %v5204 = vsub.s32 %v5201, %v5203
      %v5205 = vrot.slane %v5198, %v5204
      %v5207 = vunpack.c.l.s4 1966171168
      %v5208 = vunpack.c.0.s8 %v5207
      %v5209 = vlaneseq
      %v5210 = vshrl.u32 %v5209, 7
      %v5211 = vsub.s32 %v5208, %v5210
      %v5212 = vrot.slane %v1623, %v5211
      %v5214 = vunpack.c.l.s4 1966171168
      %v5215 = vunpack.c.0.s8 %v5214
      %v5216 = vlaneseq
      %v5217 = vshrl.u32 %v5216, 7
      %v5218 = vsub.s32 %v5215, %v5217
      %v5219 = vrot.slane %v5212, %v5218
      %v5221 = vunpack.c.l.s4 1966171168
      %v5222 = vunpack.c.0.s8 %v5221
      %v5223 = vlaneseq
      %v5224 = vshrl.u32 %v5223, 7
      %v5225 = vsub.s32 %v5222, %v5224
      %v5226 = vrot.slane %v1631, %v5225
      %v5228 = vunpack.c.l.s4 1966171168
      %v5229 = vunpack.c.0.s8 %v5228
      %v5230 = vlaneseq
      %v5231 = vshrl.u32 %v5230, 7
      %v5232 = vsub.s32 %v5229, %v5231
      %v5233 = vrot.slane %v5226, %v5232
      %v5235 = vunpack.c.l.s4 1966171168
      %v5236 = vunpack.c.0.s8 %v5235
      %v5237 = vlaneseq
      %v5238 = vshrl.u32 %v5237, 7
      %v5239 = vsub.s32 %v5236, %v5238
      %v5240 = vrot.slane %v1633, %v5239
      %v5242 = vunpack.c.l.s4 1966171168
      %v5243 = vunpack.c.0.s8 %v5242
      %v5244 = vlaneseq
      %v5245 = vshrl.u32 %v5244, 7
      %v5246 = vsub.s32 %v5243, %v5245
      %v5247 = vrot.slane %v5240, %v5246
      %v5249 = vunpack.c.l.s4 1966171168
      %v5250 = vunpack.c.0.s8 %v5249
      %v5251 = vlaneseq
      %v5252 = vshrl.u32 %v5251, 7
      %v5253 = vsub.s32 %v5250, %v5252
      %v5254 = vrot.slane %v1616, %v5253
      %v5256 = vunpack.c.l.s4 1966171168
      %v5257 = vunpack.c.0.s8 %v5256
      %v5258 = vlaneseq
      %v5259 = vshrl.u32 %v5258, 7
      %v5260 = vsub.s32 %v5257, %v5259
      %v5261 = vrot.slane %v5254, %v5260
      %v5263 = vunpack.c.l.s4 1966171168
      %v5264 = vunpack.c.0.s8 %v5263
      %v5265 = vlaneseq
      %v5266 = vshrl.u32 %v5265, 7
      %v5267 = vsub.s32 %v5264, %v5266
      %v5268 = vrot.slane %v1630, %v5267
      %v5270 = vunpack.c.l.s4 1966171168
      %v5271 = vunpack.c.0.s8 %v5270
      %v5272 = vlaneseq
      %v5273 = vshrl.u32 %v5272, 7
      %v5274 = vsub.s32 %v5271, %v5273
      %v5275 = vrot.slane %v5268, %v5274
      %v5277 = vunpack.c.l.s4 1966171168
      %v5278 = vunpack.c.0.s8 %v5277
      %v5279 = vlaneseq
      %v5280 = vshrl.u32 %v5279, 7
      %v5281 = vsub.s32 %v5278, %v5280
      %v5282 = vrot.slane %v1632, %v5281
      %v5284 = vunpack.c.l.s4 1966171168
      %v5285 = vunpack.c.0.s8 %v5284
      %v5286 = vlaneseq
      %v5287 = vshrl.u32 %v5286, 7
      %v5288 = vsub.s32 %v5285, %v5287
      %v5289 = vrot.slane %v5282, %v5288
      %v5291 = vunpack.c.l.s4 1966171168
      %v5292 = vunpack.c.0.s8 %v5291
      %v5293 = vlaneseq
      %v5294 = vshrl.u32 %v5293, 7
      %v5295 = vsub.s32 %v5292, %v5294
      %v5296 = vrot.slane %v1634, %v5295
      %v5298 = vunpack.c.l.s4 1966171168
      %v5299 = vunpack.c.0.s8 %v5298
      %v5300 = vlaneseq
      %v5301 = vshrl.u32 %v5300, 7
      %v5302 = vsub.s32 %v5299, %v5301
      %v5303 = vrot.slane %v5296, %v5302
      %v5305 = vunpack.c.l.s4 1966171168
      %v5306 = vunpack.c.0.s8 %v5305
      %v5307 = vlaneseq
      %v5308 = vshrl.u32 %v5307, 7
      %v5309 = vsub.s32 %v5306, %v5308
      %v5310 = vrot.slane %v1658, %v5309
      %v5312 = vunpack.c.l.s4 1966171168
      %v5313 = vunpack.c.0.s8 %v5312
      %v5314 = vlaneseq
      %v5315 = vshrl.u32 %v5314, 7
      %v5316 = vsub.s32 %v5313, %v5315
      %v5317 = vrot.slane %v5310, %v5316
      %v5319 = vunpack.c.l.s4 1966171168
      %v5320 = vunpack.c.0.s8 %v5319
      %v5321 = vlaneseq
      %v5322 = vshrl.u32 %v5321, 7
      %v5323 = vsub.s32 %v5320, %v5322
      %v5324 = vrot.slane %v1672, %v5323
      %v5326 = vunpack.c.l.s4 1966171168
      %v5327 = vunpack.c.0.s8 %v5326
      %v5328 = vlaneseq
      %v5329 = vshrl.u32 %v5328, 7
      %v5330 = vsub.s32 %v5327, %v5329
      %v5331 = vrot.slane %v5324, %v5330
      %v5333 = vunpack.c.l.s4 1966171168
      %v5334 = vunpack.c.0.s8 %v5333
      %v5335 = vlaneseq
      %v5336 = vshrl.u32 %v5335, 7
      %v5337 = vsub.s32 %v5334, %v5336
      %v5338 = vrot.slane %v1680, %v5337
      %v5340 = vunpack.c.l.s4 1966171168
      %v5341 = vunpack.c.0.s8 %v5340
      %v5342 = vlaneseq
      %v5343 = vshrl.u32 %v5342, 7
      %v5344 = vsub.s32 %v5341, %v5343
      %v5345 = vrot.slane %v5338, %v5344
      %v5347 = vunpack.c.l.s4 1966171168
      %v5348 = vunpack.c.0.s8 %v5347
      %v5349 = vlaneseq
      %v5350 = vshrl.u32 %v5349, 7
      %v5351 = vsub.s32 %v5348, %v5350
      %v5352 = vrot.slane %v1682, %v5351
      %v5354 = vunpack.c.l.s4 1966171168
      %v5355 = vunpack.c.0.s8 %v5354
      %v5356 = vlaneseq
      %v5357 = vshrl.u32 %v5356, 7
      %v5358 = vsub.s32 %v5355, %v5357
      %v5359 = vrot.slane %v5352, %v5358
      %v5361 = vunpack.c.l.s4 1966171168
      %v5362 = vunpack.c.0.s8 %v5361
      %v5363 = vlaneseq
      %v5364 = vshrl.u32 %v5363, 7
      %v5365 = vsub.s32 %v5362, %v5364
      %v5366 = vrot.slane %v1665, %v5365
      %v5368 = vunpack.c.l.s4 1966171168
      %v5369 = vunpack.c.0.s8 %v5368
      %v5370 = vlaneseq
      %v5371 = vshrl.u32 %v5370, 7
      %v5372 = vsub.s32 %v5369, %v5371
      %v5373 = vrot.slane %v5366, %v5372
      %v5375 = vunpack.c.l.s4 1966171168
      %v5376 = vunpack.c.0.s8 %v5375
      %v5377 = vlaneseq
      %v5378 = vshrl.u32 %v5377, 7
      %v5379 = vsub.s32 %v5376, %v5378
      %v5380 = vrot.slane %v1679, %v5379
      %v5382 = vunpack.c.l.s4 1966171168
      %v5383 = vunpack.c.0.s8 %v5382
      %v5384 = vlaneseq
      %v5385 = vshrl.u32 %v5384, 7
      %v5386 = vsub.s32 %v5383, %v5385
      %v5387 = vrot.slane %v5380, %v5386
      %v5389 = vunpack.c.l.s4 1966171168
      %v5390 = vunpack.c.0.s8 %v5389
      %v5391 = vlaneseq
      %v5392 = vshrl.u32 %v5391, 7
      %v5393 = vsub.s32 %v5390, %v5392
      %v5394 = vrot.slane %v1681, %v5393
      %v5396 = vunpack.c.l.s4 1966171168
      %v5397 = vunpack.c.0.s8 %v5396
      %v5398 = vlaneseq
      %v5399 = vshrl.u32 %v5398, 7
      %v5400 = vsub.s32 %v5397, %v5399
      %v5401 = vrot.slane %v5394, %v5400
      %v5403 = vunpack.c.l.s4 1966171168
      %v5404 = vunpack.c.0.s8 %v5403
      %v5405 = vlaneseq
      %v5406 = vshrl.u32 %v5405, 7
      %v5407 = vsub.s32 %v5404, %v5406
      %v5408 = vrot.slane %v1683, %v5407
      %v5410 = vunpack.c.l.s4 1966171168
      %v5411 = vunpack.c.0.s8 %v5410
      %v5412 = vlaneseq
      %v5413 = vshrl.u32 %v5412, 7
      %v5414 = vsub.s32 %v5411, %v5413
      %v5415 = vrot.slane %v5408, %v5414
      %v5417 = vunpack.c.l.s4 1966171168
      %v5418 = vunpack.c.0.s8 %v5417
      %v5419 = vlaneseq
      %v5420 = vshrl.u32 %v5419, 7
      %v5421 = vsub.s32 %v5418, %v5420
      %v5422 = vrot.slane %v1707, %v5421
      %v5424 = vunpack.c.l.s4 1966171168
      %v5425 = vunpack.c.0.s8 %v5424
      %v5426 = vlaneseq
      %v5427 = vshrl.u32 %v5426, 7
      %v5428 = vsub.s32 %v5425, %v5427
      %v5429 = vrot.slane %v5422, %v5428
      %v5431 = vunpack.c.l.s4 1966171168
      %v5432 = vunpack.c.0.s8 %v5431
      %v5433 = vlaneseq
      %v5434 = vshrl.u32 %v5433, 7
      %v5435 = vsub.s32 %v5432, %v5434
      %v5436 = vrot.slane %v1721, %v5435
      %v5438 = vunpack.c.l.s4 1966171168
      %v5439 = vunpack.c.0.s8 %v5438
      %v5440 = vlaneseq
      %v5441 = vshrl.u32 %v5440, 7
      %v5442 = vsub.s32 %v5439, %v5441
      %v5443 = vrot.slane %v5436, %v5442
      %v5445 = vunpack.c.l.s4 1966171168
      %v5446 = vunpack.c.0.s8 %v5445
      %v5447 = vlaneseq
      %v5448 = vshrl.u32 %v5447, 7
      %v5449 = vsub.s32 %v5446, %v5448
      %v5450 = vrot.slane %v1729, %v5449
      %v5452 = vunpack.c.l.s4 1966171168
      %v5453 = vunpack.c.0.s8 %v5452
      %v5454 = vlaneseq
      %v5455 = vshrl.u32 %v5454, 7
      %v5456 = vsub.s32 %v5453, %v5455
      %v5457 = vrot.slane %v5450, %v5456
      %v5459 = vunpack.c.l.s4 1966171168
      %v5460 = vunpack.c.0.s8 %v5459
      %v5461 = vlaneseq
      %v5462 = vshrl.u32 %v5461, 7
      %v5463 = vsub.s32 %v5460, %v5462
      %v5464 = vrot.slane %v1731, %v5463
      %v5466 = vunpack.c.l.s4 1966171168
      %v5467 = vunpack.c.0.s8 %v5466
      %v5468 = vlaneseq
      %v5469 = vshrl.u32 %v5468, 7
      %v5470 = vsub.s32 %v5467, %v5469
      %v5471 = vrot.slane %v5464, %v5470
      %v5473 = vunpack.c.l.s4 1966171168
      %v5474 = vunpack.c.0.s8 %v5473
      %v5475 = vlaneseq
      %v5476 = vshrl.u32 %v5475, 7
      %v5477 = vsub.s32 %v5474, %v5476
      %v5478 = vrot.slane %v1714, %v5477
      %v5480 = vunpack.c.l.s4 1966171168
      %v5481 = vunpack.c.0.s8 %v5480
      %v5482 = vlaneseq
      %v5483 = vshrl.u32 %v5482, 7
      %v5484 = vsub.s32 %v5481, %v5483
      %v5485 = vrot.slane %v5478, %v5484
      %v5487 = vunpack.c.l.s4 1966171168
      %v5488 = vunpack.c.0.s8 %v5487
      %v5489 = vlaneseq
      %v5490 = vshrl.u32 %v5489, 7
      %v5491 = vsub.s32 %v5488, %v5490
      %v5492 = vrot.slane %v1728, %v5491
      %v5494 = vunpack.c.l.s4 1966171168
      %v5495 = vunpack.c.0.s8 %v5494
      %v5496 = vlaneseq
      %v5497 = vshrl.u32 %v5496, 7
      %v5498 = vsub.s32 %v5495, %v5497
      %v5499 = vrot.slane %v5492, %v5498
      %v5501 = vunpack.c.l.s4 1966171168
      %v5502 = vunpack.c.0.s8 %v5501
      %v5503 = vlaneseq
      %v5504 = vshrl.u32 %v5503, 7
      %v5505 = vsub.s32 %v5502, %v5504
      %v5506 = vrot.slane %v1730, %v5505
      %v5508 = vunpack.c.l.s4 1966171168
      %v5509 = vunpack.c.0.s8 %v5508
      %v5510 = vlaneseq
      %v5511 = vshrl.u32 %v5510, 7
      %v5512 = vsub.s32 %v5509, %v5511
      %v5513 = vrot.slane %v5506, %v5512
      %v5515 = vunpack.c.l.s4 1966171168
      %v5516 = vunpack.c.0.s8 %v5515
      %v5517 = vlaneseq
      %v5518 = vshrl.u32 %v5517, 7
      %v5519 = vsub.s32 %v5516, %v5518
      %v5520 = vrot.slane %v1732, %v5519
      %v5522 = vunpack.c.l.s4 1966171168
      %v5523 = vunpack.c.0.s8 %v5522
      %v5524 = vlaneseq
      %v5525 = vshrl.u32 %v5524, 7
      %v5526 = vsub.s32 %v5523, %v5525
      %v5527 = vrot.slane %v5520, %v5526
      %v5529 = vunpack.c.l.s4 1966171168
      %v5530 = vunpack.c.0.s8 %v5529
      %v5531 = vlaneseq
      %v5532 = vshrl.u32 %v5531, 7
      %v5533 = vsub.s32 %v5530, %v5532
      %v5534 = vrot.slane %v1756, %v5533
      %v5536 = vunpack.c.l.s4 1966171168
      %v5537 = vunpack.c.0.s8 %v5536
      %v5538 = vlaneseq
      %v5539 = vshrl.u32 %v5538, 7
      %v5540 = vsub.s32 %v5537, %v5539
      %v5541 = vrot.slane %v5534, %v5540
      %v5543 = vunpack.c.l.s4 1966171168
      %v5544 = vunpack.c.0.s8 %v5543
      %v5545 = vlaneseq
      %v5546 = vshrl.u32 %v5545, 7
      %v5547 = vsub.s32 %v5544, %v5546
      %v5548 = vrot.slane %v1770, %v5547
      %v5550 = vunpack.c.l.s4 1966171168
      %v5551 = vunpack.c.0.s8 %v5550
      %v5552 = vlaneseq
      %v5553 = vshrl.u32 %v5552, 7
      %v5554 = vsub.s32 %v5551, %v5553
      %v5555 = vrot.slane %v5548, %v5554
      %v5557 = vunpack.c.l.s4 1966171168
      %v5558 = vunpack.c.0.s8 %v5557
      %v5559 = vlaneseq
      %v5560 = vshrl.u32 %v5559, 7
      %v5561 = vsub.s32 %v5558, %v5560
      %v5562 = vrot.slane %v1778, %v5561
      %v5564 = vunpack.c.l.s4 1966171168
      %v5565 = vunpack.c.0.s8 %v5564
      %v5566 = vlaneseq
      %v5567 = vshrl.u32 %v5566, 7
      %v5568 = vsub.s32 %v5565, %v5567
      %v5569 = vrot.slane %v5562, %v5568
      %v5571 = vunpack.c.l.s4 1966171168
      %v5572 = vunpack.c.0.s8 %v5571
      %v5573 = vlaneseq
      %v5574 = vshrl.u32 %v5573, 7
      %v5575 = vsub.s32 %v5572, %v5574
      %v5576 = vrot.slane %v1780, %v5575
      %v5578 = vunpack.c.l.s4 1966171168
      %v5579 = vunpack.c.0.s8 %v5578
      %v5580 = vlaneseq
      %v5581 = vshrl.u32 %v5580, 7
      %v5582 = vsub.s32 %v5579, %v5581
      %v5583 = vrot.slane %v5576, %v5582
      %v5585 = vunpack.c.l.s4 1966171168
      %v5586 = vunpack.c.0.s8 %v5585
      %v5587 = vlaneseq
      %v5588 = vshrl.u32 %v5587, 7
      %v5589 = vsub.s32 %v5586, %v5588
      %v5590 = vrot.slane %v1763, %v5589
      %v5592 = vunpack.c.l.s4 1966171168
      %v5593 = vunpack.c.0.s8 %v5592
      %v5594 = vlaneseq
      %v5595 = vshrl.u32 %v5594, 7
      %v5596 = vsub.s32 %v5593, %v5595
      %v5597 = vrot.slane %v5590, %v5596
      %v5599 = vunpack.c.l.s4 1966171168
      %v5600 = vunpack.c.0.s8 %v5599
      %v5601 = vlaneseq
      %v5602 = vshrl.u32 %v5601, 7
      %v5603 = vsub.s32 %v5600, %v5602
      %v5604 = vrot.slane %v1777, %v5603
      %v5606 = vunpack.c.l.s4 1966171168
      %v5607 = vunpack.c.0.s8 %v5606
      %v5608 = vlaneseq
      %v5609 = vshrl.u32 %v5608, 7
      %v5610 = vsub.s32 %v5607, %v5609
      %v5611 = vrot.slane %v5604, %v5610
      %v5613 = vunpack.c.l.s4 1966171168
      %v5614 = vunpack.c.0.s8 %v5613
      %v5615 = vlaneseq
      %v5616 = vshrl.u32 %v5615, 7
      %v5617 = vsub.s32 %v5614, %v5616
      %v5618 = vrot.slane %v1779, %v5617
      %v5620 = vunpack.c.l.s4 1966171168
      %v5621 = vunpack.c.0.s8 %v5620
      %v5622 = vlaneseq
      %v5623 = vshrl.u32 %v5622, 7
      %v5624 = vsub.s32 %v5621, %v5623
      %v5625 = vrot.slane %v5618, %v5624
      %v5627 = vunpack.c.l.s4 1966171168
      %v5628 = vunpack.c.0.s8 %v5627
      %v5629 = vlaneseq
      %v5630 = vshrl.u32 %v5629, 7
      %v5631 = vsub.s32 %v5628, %v5630
      %v5632 = vrot.slane %v1781, %v5631
      %v5634 = vunpack.c.l.s4 1966171168
      %v5635 = vunpack.c.0.s8 %v5634
      %v5636 = vlaneseq
      %v5637 = vshrl.u32 %v5636, 7
      %v5638 = vsub.s32 %v5635, %v5637
      %v5639 = vrot.slane %v5632, %v5638
      %v5641 = vunpack.c.l.s4 1966171168
      %v5642 = vunpack.c.0.s8 %v5641
      %v5643 = vlaneseq
      %v5644 = vshrl.u32 %v5643, 7
      %v5645 = vsub.s32 %v5642, %v5644
      %v5646 = vrot.slane %v1805, %v5645
      %v5648 = vunpack.c.l.s4 1966171168
      %v5649 = vunpack.c.0.s8 %v5648
      %v5650 = vlaneseq
      %v5651 = vshrl.u32 %v5650, 7
      %v5652 = vsub.s32 %v5649, %v5651
      %v5653 = vrot.slane %v5646, %v5652
      %v5655 = vunpack.c.l.s4 1966171168
      %v5656 = vunpack.c.0.s8 %v5655
      %v5657 = vlaneseq
      %v5658 = vshrl.u32 %v5657, 7
      %v5659 = vsub.s32 %v5656, %v5658
      %v5660 = vrot.slane %v1819, %v5659
      %v5662 = vunpack.c.l.s4 1966171168
      %v5663 = vunpack.c.0.s8 %v5662
      %v5664 = vlaneseq
      %v5665 = vshrl.u32 %v5664, 7
      %v5666 = vsub.s32 %v5663, %v5665
      %v5667 = vrot.slane %v5660, %v5666
      %v5669 = vunpack.c.l.s4 1966171168
      %v5670 = vunpack.c.0.s8 %v5669
      %v5671 = vlaneseq
      %v5672 = vshrl.u32 %v5671, 7
      %v5673 = vsub.s32 %v5670, %v5672
      %v5674 = vrot.slane %v1827, %v5673
      %v5676 = vunpack.c.l.s4 1966171168
      %v5677 = vunpack.c.0.s8 %v5676
      %v5678 = vlaneseq
      %v5679 = vshrl.u32 %v5678, 7
      %v5680 = vsub.s32 %v5677, %v5679
      %v5681 = vrot.slane %v5674, %v5680
      %v5683 = vunpack.c.l.s4 1966171168
      %v5684 = vunpack.c.0.s8 %v5683
      %v5685 = vlaneseq
      %v5686 = vshrl.u32 %v5685, 7
      %v5687 = vsub.s32 %v5684, %v5686
      %v5688 = vrot.slane %v1829, %v5687
      %v5690 = vunpack.c.l.s4 1966171168
      %v5691 = vunpack.c.0.s8 %v5690
      %v5692 = vlaneseq
      %v5693 = vshrl.u32 %v5692, 7
      %v5694 = vsub.s32 %v5691, %v5693
      %v5695 = vrot.slane %v5688, %v5694
      %v5697 = vunpack.c.l.s4 1966171168
      %v5698 = vunpack.c.0.s8 %v5697
      %v5699 = vlaneseq
      %v5700 = vshrl.u32 %v5699, 7
      %v5701 = vsub.s32 %v5698, %v5700
      %v5702 = vrot.slane %v1812, %v5701
      %v5704 = vunpack.c.l.s4 1966171168
      %v5705 = vunpack.c.0.s8 %v5704
      %v5706 = vlaneseq
      %v5707 = vshrl.u32 %v5706, 7
      %v5708 = vsub.s32 %v5705, %v5707
      %v5709 = vrot.slane %v5702, %v5708
      %v5711 = vunpack.c.l.s4 1966171168
      %v5712 = vunpack.c.0.s8 %v5711
      %v5713 = vlaneseq
      %v5714 = vshrl.u32 %v5713, 7
      %v5715 = vsub.s32 %v5712, %v5714
      %v5716 = vrot.slane %v1826, %v5715
      %v5718 = vunpack.c.l.s4 1966171168
      %v5719 = vunpack.c.0.s8 %v5718
      %v5720 = vlaneseq
      %v5721 = vshrl.u32 %v5720, 7
      %v5722 = vsub.s32 %v5719, %v5721
      %v5723 = vrot.slane %v5716, %v5722
      %v5725 = vunpack.c.l.s4 1966171168
      %v5726 = vunpack.c.0.s8 %v5725
      %v5727 = vlaneseq
      %v5728 = vshrl.u32 %v5727, 7
      %v5729 = vsub.s32 %v5726, %v5728
      %v5730 = vrot.slane %v1828, %v5729
      %v5732 = vunpack.c.l.s4 1966171168
      %v5733 = vunpack.c.0.s8 %v5732
      %v5734 = vlaneseq
      %v5735 = vshrl.u32 %v5734, 7
      %v5736 = vsub.s32 %v5733, %v5735
      %v5737 = vrot.slane %v5730, %v5736
      %v5739 = vunpack.c.l.s4 1966171168
      %v5740 = vunpack.c.0.s8 %v5739
      %v5741 = vlaneseq
      %v5742 = vshrl.u32 %v5741, 7
      %v5743 = vsub.s32 %v5740, %v5742
      %v5744 = vrot.slane %v1830, %v5743
      %v5746 = vunpack.c.l.s4 1966171168
      %v5747 = vunpack.c.0.s8 %v5746
      %v5748 = vlaneseq
      %v5749 = vshrl.u32 %v5748, 7
      %v5750 = vsub.s32 %v5747, %v5749
      %v5751 = vrot.slane %v5744, %v5750
      %v5753 = vunpack.c.l.s4 1966171168
      %v5754 = vunpack.c.0.s8 %v5753
      %v5755 = vlaneseq
      %v5756 = vshrl.u32 %v5755, 7
      %v5757 = vsub.s32 %v5754, %v5756
      %v5758 = vrot.slane %v1854, %v5757
      %v5760 = vunpack.c.l.s4 1966171168
      %v5761 = vunpack.c.0.s8 %v5760
      %v5762 = vlaneseq
      %v5763 = vshrl.u32 %v5762, 7
      %v5764 = vsub.s32 %v5761, %v5763
      %v5765 = vrot.slane %v5758, %v5764
      %v5767 = vunpack.c.l.s4 1966171168
      %v5768 = vunpack.c.0.s8 %v5767
      %v5769 = vlaneseq
      %v5770 = vshrl.u32 %v5769, 7
      %v5771 = vsub.s32 %v5768, %v5770
      %v5772 = vrot.slane %v1868, %v5771
      %v5774 = vunpack.c.l.s4 1966171168
      %v5775 = vunpack.c.0.s8 %v5774
      %v5776 = vlaneseq
      %v5777 = vshrl.u32 %v5776, 7
      %v5778 = vsub.s32 %v5775, %v5777
      %v5779 = vrot.slane %v5772, %v5778
      %v5781 = vunpack.c.l.s4 1966171168
      %v5782 = vunpack.c.0.s8 %v5781
      %v5783 = vlaneseq
      %v5784 = vshrl.u32 %v5783, 7
      %v5785 = vsub.s32 %v5782, %v5784
      %v5786 = vrot.slane %v1876, %v5785
      %v5788 = vunpack.c.l.s4 1966171168
      %v5789 = vunpack.c.0.s8 %v5788
      %v5790 = vlaneseq
      %v5791 = vshrl.u32 %v5790, 7
      %v5792 = vsub.s32 %v5789, %v5791
      %v5793 = vrot.slane %v5786, %v5792
      %v5795 = vunpack.c.l.s4 1966171168
      %v5796 = vunpack.c.0.s8 %v5795
      %v5797 = vlaneseq
      %v5798 = vshrl.u32 %v5797, 7
      %v5799 = vsub.s32 %v5796, %v5798
      %v5800 = vrot.slane %v1878, %v5799
      %v5802 = vunpack.c.l.s4 1966171168
      %v5803 = vunpack.c.0.s8 %v5802
      %v5804 = vlaneseq
      %v5805 = vshrl.u32 %v5804, 7
      %v5806 = vsub.s32 %v5803, %v5805
      %v5807 = vrot.slane %v5800, %v5806
      %v5809 = vunpack.c.l.s4 1966171168
      %v5810 = vunpack.c.0.s8 %v5809
      %v5811 = vlaneseq
      %v5812 = vshrl.u32 %v5811, 7
      %v5813 = vsub.s32 %v5810, %v5812
      %v5814 = vrot.slane %v1861, %v5813
      %v5816 = vunpack.c.l.s4 1966171168
      %v5817 = vunpack.c.0.s8 %v5816
      %v5818 = vlaneseq
      %v5819 = vshrl.u32 %v5818, 7
      %v5820 = vsub.s32 %v5817, %v5819
      %v5821 = vrot.slane %v5814, %v5820
      %v5823 = vunpack.c.l.s4 1966171168
      %v5824 = vunpack.c.0.s8 %v5823
      %v5825 = vlaneseq
      %v5826 = vshrl.u32 %v5825, 7
      %v5827 = vsub.s32 %v5824, %v5826
      %v5828 = vrot.slane %v1875, %v5827
      %v5830 = vunpack.c.l.s4 1966171168
      %v5831 = vunpack.c.0.s8 %v5830
      %v5832 = vlaneseq
      %v5833 = vshrl.u32 %v5832, 7
      %v5834 = vsub.s32 %v5831, %v5833
      %v5835 = vrot.slane %v5828, %v5834
      %v5837 = vunpack.c.l.s4 1966171168
      %v5838 = vunpack.c.0.s8 %v5837
      %v5839 = vlaneseq
      %v5840 = vshrl.u32 %v5839, 7
      %v5841 = vsub.s32 %v5838, %v5840
      %v5842 = vrot.slane %v1877, %v5841
      %v5844 = vunpack.c.l.s4 1966171168
      %v5845 = vunpack.c.0.s8 %v5844
      %v5846 = vlaneseq
      %v5847 = vshrl.u32 %v5846, 7
      %v5848 = vsub.s32 %v5845, %v5847
      %v5849 = vrot.slane %v5842, %v5848
      %v5851 = vunpack.c.l.s4 1966171168
      %v5852 = vunpack.c.0.s8 %v5851
      %v5853 = vlaneseq
      %v5854 = vshrl.u32 %v5853, 7
      %v5855 = vsub.s32 %v5852, %v5854
      %v5856 = vrot.slane %v1879, %v5855
      %v5858 = vunpack.c.l.s4 1966171168
      %v5859 = vunpack.c.0.s8 %v5858
      %v5860 = vlaneseq
      %v5861 = vshrl.u32 %v5860, 7
      %v5862 = vsub.s32 %v5859, %v5861
      %v5863 = vrot.slane %v5856, %v5862
      %v5865 = vunpack.c.l.s4 1966171168
      %v5866 = vunpack.c.0.s8 %v5865
      %v5867 = vlaneseq
      %v5868 = vshrl.u32 %v5867, 7
      %v5869 = vsub.s32 %v5866, %v5868
      %v5870 = vrot.slane %v1903, %v5869
      %v5872 = vunpack.c.l.s4 1966171168
      %v5873 = vunpack.c.0.s8 %v5872
      %v5874 = vlaneseq
      %v5875 = vshrl.u32 %v5874, 7
      %v5876 = vsub.s32 %v5873, %v5875
      %v5877 = vrot.slane %v5870, %v5876
      %v5879 = vunpack.c.l.s4 1966171168
      %v5880 = vunpack.c.0.s8 %v5879
      %v5881 = vlaneseq
      %v5882 = vshrl.u32 %v5881, 7
      %v5883 = vsub.s32 %v5880, %v5882
      %v5884 = vrot.slane %v1917, %v5883
      %v5886 = vunpack.c.l.s4 1966171168
      %v5887 = vunpack.c.0.s8 %v5886
      %v5888 = vlaneseq
      %v5889 = vshrl.u32 %v5888, 7
      %v5890 = vsub.s32 %v5887, %v5889
      %v5891 = vrot.slane %v5884, %v5890
      %v5893 = vunpack.c.l.s4 1966171168
      %v5894 = vunpack.c.0.s8 %v5893
      %v5895 = vlaneseq
      %v5896 = vshrl.u32 %v5895, 7
      %v5897 = vsub.s32 %v5894, %v5896
      %v5898 = vrot.slane %v1925, %v5897
      %v5900 = vunpack.c.l.s4 1966171168
      %v5901 = vunpack.c.0.s8 %v5900
      %v5902 = vlaneseq
      %v5903 = vshrl.u32 %v5902, 7
      %v5904 = vsub.s32 %v5901, %v5903
      %v5905 = vrot.slane %v5898, %v5904
      %v5907 = vunpack.c.l.s4 1966171168
      %v5908 = vunpack.c.0.s8 %v5907
      %v5909 = vlaneseq
      %v5910 = vshrl.u32 %v5909, 7
      %v5911 = vsub.s32 %v5908, %v5910
      %v5912 = vrot.slane %v1927, %v5911
      %v5914 = vunpack.c.l.s4 1966171168
      %v5915 = vunpack.c.0.s8 %v5914
      %v5916 = vlaneseq
      %v5917 = vshrl.u32 %v5916, 7
      %v5918 = vsub.s32 %v5915, %v5917
      %v5919 = vrot.slane %v5912, %v5918
      %v5921 = vunpack.c.l.s4 1966171168
      %v5922 = vunpack.c.0.s8 %v5921
      %v5923 = vlaneseq
      %v5924 = vshrl.u32 %v5923, 7
      %v5925 = vsub.s32 %v5922, %v5924
      %v5926 = vrot.slane %v1910, %v5925
      %v5928 = vunpack.c.l.s4 1966171168
      %v5929 = vunpack.c.0.s8 %v5928
      %v5930 = vlaneseq
      %v5931 = vshrl.u32 %v5930, 7
      %v5932 = vsub.s32 %v5929, %v5931
      %v5933 = vrot.slane %v5926, %v5932
      %v5935 = vunpack.c.l.s4 1966171168
      %v5936 = vunpack.c.0.s8 %v5935
      %v5937 = vlaneseq
      %v5938 = vshrl.u32 %v5937, 7
      %v5939 = vsub.s32 %v5936, %v5938
      %v5940 = vrot.slane %v1924, %v5939
      %v5942 = vunpack.c.l.s4 1966171168
      %v5943 = vunpack.c.0.s8 %v5942
      %v5944 = vlaneseq
      %v5945 = vshrl.u32 %v5944, 7
      %v5946 = vsub.s32 %v5943, %v5945
      %v5947 = vrot.slane %v5940, %v5946
      %v5949 = vunpack.c.l.s4 1966171168
      %v5950 = vunpack.c.0.s8 %v5949
      %v5951 = vlaneseq
      %v5952 = vshrl.u32 %v5951, 7
      %v5953 = vsub.s32 %v5950, %v5952
      %v5954 = vrot.slane %v1926, %v5953
      %v5956 = vunpack.c.l.s4 1966171168
      %v5957 = vunpack.c.0.s8 %v5956
      %v5958 = vlaneseq
      %v5959 = vshrl.u32 %v5958, 7
      %v5960 = vsub.s32 %v5957, %v5959
      %v5961 = vrot.slane %v5954, %v5960
      %v5963 = vunpack.c.l.s4 1966171168
      %v5964 = vunpack.c.0.s8 %v5963
      %v5965 = vlaneseq
      %v5966 = vshrl.u32 %v5965, 7
      %v5967 = vsub.s32 %v5964, %v5966
      %v5968 = vrot.slane %v1928, %v5967
      %v5970 = vunpack.c.l.s4 1966171168
      %v5971 = vunpack.c.0.s8 %v5970
      %v5972 = vlaneseq
      %v5973 = vshrl.u32 %v5972, 7
      %v5974 = vsub.s32 %v5971, %v5973
      %v5975 = vrot.slane %v5968, %v5974
      %v5977 = vunpack.c.l.s4 1966171168
      %v5978 = vunpack.c.0.s8 %v5977
      %v5979 = vlaneseq
      %v5980 = vshrl.u32 %v5979, 7
      %v5981 = vsub.s32 %v5978, %v5980
      %v5982 = vrot.slane %v1952, %v5981
      %v5984 = vunpack.c.l.s4 1966171168
      %v5985 = vunpack.c.0.s8 %v5984
      %v5986 = vlaneseq
      %v5987 = vshrl.u32 %v5986, 7
      %v5988 = vsub.s32 %v5985, %v5987
      %v5989 = vrot.slane %v5982, %v5988
      %v5991 = vunpack.c.l.s4 1966171168
      %v5992 = vunpack.c.0.s8 %v5991
      %v5993 = vlaneseq
      %v5994 = vshrl.u32 %v5993, 7
      %v5995 = vsub.s32 %v5992, %v5994
      %v5996 = vrot.slane %v1966, %v5995
      %v5998 = vunpack.c.l.s4 1966171168
      %v5999 = vunpack.c.0.s8 %v5998
      %v6000 = vlaneseq
      %v6001 = vshrl.u32 %v6000, 7
      %v6002 = vsub.s32 %v5999, %v6001
      %v6003 = vrot.slane %v5996, %v6002
      %v6005 = vunpack.c.l.s4 1966171168
      %v6006 = vunpack.c.0.s8 %v6005
      %v6007 = vlaneseq
      %v6008 = vshrl.u32 %v6007, 7
      %v6009 = vsub.s32 %v6006, %v6008
      %v6010 = vrot.slane %v1974, %v6009
      %v6012 = vunpack.c.l.s4 1966171168
      %v6013 = vunpack.c.0.s8 %v6012
      %v6014 = vlaneseq
      %v6015 = vshrl.u32 %v6014, 7
      %v6016 = vsub.s32 %v6013, %v6015
      %v6017 = vrot.slane %v6010, %v6016
      %v6019 = vunpack.c.l.s4 1966171168
      %v6020 = vunpack.c.0.s8 %v6019
      %v6021 = vlaneseq
      %v6022 = vshrl.u32 %v6021, 7
      %v6023 = vsub.s32 %v6020, %v6022
      %v6024 = vrot.slane %v1976, %v6023
      %v6026 = vunpack.c.l.s4 1966171168
      %v6027 = vunpack.c.0.s8 %v6026
      %v6028 = vlaneseq
      %v6029 = vshrl.u32 %v6028, 7
      %v6030 = vsub.s32 %v6027, %v6029
      %v6031 = vrot.slane %v6024, %v6030
      %v6033 = vunpack.c.l.s4 1966171168
      %v6034 = vunpack.c.0.s8 %v6033
      %v6035 = vlaneseq
      %v6036 = vshrl.u32 %v6035, 7
      %v6037 = vsub.s32 %v6034, %v6036
      %v6038 = vrot.slane %v1959, %v6037
      %v6040 = vunpack.c.l.s4 1966171168
      %v6041 = vunpack.c.0.s8 %v6040
      %v6042 = vlaneseq
      %v6043 = vshrl.u32 %v6042, 7
      %v6044 = vsub.s32 %v6041, %v6043
      %v6045 = vrot.slane %v6038, %v6044
      %v6047 = vunpack.c.l.s4 1966171168
      %v6048 = vunpack.c.0.s8 %v6047
      %v6049 = vlaneseq
      %v6050 = vshrl.u32 %v6049, 7
      %v6051 = vsub.s32 %v6048, %v6050
      %v6052 = vrot.slane %v1973, %v6051
      %v6054 = vunpack.c.l.s4 1966171168
      %v6055 = vunpack.c.0.s8 %v6054
      %v6056 = vlaneseq
      %v6057 = vshrl.u32 %v6056, 7
      %v6058 = vsub.s32 %v6055, %v6057
      %v6059 = vrot.slane %v6052, %v6058
      %v6061 = vunpack.c.l.s4 1966171168
      %v6062 = vunpack.c.0.s8 %v6061
      %v6063 = vlaneseq
      %v6064 = vshrl.u32 %v6063, 7
      %v6065 = vsub.s32 %v6062, %v6064
      %v6066 = vrot.slane %v1975, %v6065
      %v6068 = vunpack.c.l.s4 1966171168
      %v6069 = vunpack.c.0.s8 %v6068
      %v6070 = vlaneseq
      %v6071 = vshrl.u32 %v6070, 7
      %v6072 = vsub.s32 %v6069, %v6071
      %v6073 = vrot.slane %v6066, %v6072
      %v6075 = vunpack.c.l.s4 1966171168
      %v6076 = vunpack.c.0.s8 %v6075
      %v6077 = vlaneseq
      %v6078 = vshrl.u32 %v6077, 7
      %v6079 = vsub.s32 %v6076, %v6078
      %v6080 = vrot.slane %v1977, %v6079
      %v6082 = vunpack.c.l.s4 1966171168
      %v6083 = vunpack.c.0.s8 %v6082
      %v6084 = vlaneseq
      %v6085 = vshrl.u32 %v6084, 7
      %v6086 = vsub.s32 %v6083, %v6085
      %v6087 = vrot.slane %v6080, %v6086
      %v6088 = vunpack.c.l.b16 %v5205
      %v6089 = vunpack.c.l.b16 %v5219
      %v6090 = vunpack.c.l.b16 %v5233
      %v6091 = vunpack.c.l.b16 %v5247
      %v6092 = vunpack.c.l.b16 %v5261
      %v6093 = vunpack.c.l.b16 %v5275
      %v6094 = vunpack.c.l.b16 %v5289
      %v6095 = vunpack.c.l.b16 %v5303
      %v6096 = vunpack.c.l.b16 %v5317
      %v6097 = vunpack.c.l.b16 %v5331
      %v6098 = vunpack.c.l.b16 %v5345
      %v6099 = vunpack.c.l.b16 %v5359
      %v6100 = vunpack.c.l.b16 %v5373
      %v6101 = vunpack.c.l.b16 %v5387
      %v6102 = vunpack.c.l.b16 %v5401
      %v6103 = vunpack.c.l.b16 %v5415
      %v6104 = vunpack.c.l.b16 %v5429
      %v6105 = vunpack.c.l.b16 %v5443
      %v6106 = vunpack.c.l.b16 %v5457
      %v6107 = vunpack.c.l.b16 %v5471
      %v6108 = vunpack.c.l.b16 %v5485
      %v6109 = vunpack.c.l.b16 %v5499
      %v6110 = vunpack.c.l.b16 %v5513
      %v6111 = vunpack.c.l.b16 %v5527
      %v6112 = vunpack.c.l.b16 %v5541
      %v6113 = vunpack.c.l.b16 %v5555
      %v6114 = vunpack.c.l.b16 %v5569
      %v6115 = vunpack.c.l.b16 %v5583
      %v6116 = vunpack.c.l.b16 %v5597
      %v6117 = vunpack.c.l.b16 %v5611
      %v6118 = vunpack.c.l.b16 %v5625
      %v6119 = vunpack.c.l.b16 %v5639
      %v6120 = vunpack.c.l.b16 %v5653
      %v6121 = vunpack.c.l.b16 %v5667
      %v6122 = vunpack.c.l.b16 %v5681
      %v6123 = vunpack.c.l.b16 %v5695
      %v6124 = vunpack.c.l.b16 %v5709
      %v6125 = vunpack.c.l.b16 %v5723
      %v6126 = vunpack.c.l.b16 %v5737
      %v6127 = vunpack.c.l.b16 %v5751
      %v6128 = vunpack.c.l.b16 %v5765
      %v6129 = vunpack.c.l.b16 %v5779
      %v6130 = vunpack.c.l.b16 %v5793
      %v6131 = vunpack.c.l.b16 %v5807
      %v6132 = vunpack.c.l.b16 %v5821
      %v6133 = vunpack.c.l.b16 %v5835
      %v6134 = vunpack.c.l.b16 %v5849
      %v6135 = vunpack.c.l.b16 %v5863
      %v6136 = vunpack.c.l.b16 %v5877
      %v6137 = vunpack.c.l.b16 %v5891
      %v6138 = vunpack.c.l.b16 %v5905
      %v6139 = vunpack.c.l.b16 %v5919
      %v6140 = vunpack.c.l.b16 %v5933
      %v6141 = vunpack.c.l.b16 %v5947
      %v6142 = vunpack.c.l.b16 %v5961
      %v6143 = vunpack.c.l.b16 %v5975
      %v6144 = vunpack.c.l.b16 %v5989
      %v6145 = vunpack.c.l.b16 %v6003
      %v6146 = vunpack.c.l.b16 %v6017
      %v6147 = vunpack.c.l.b16 %v6031
      %v6148 = vunpack.c.l.b16 %v6045
      %v6149 = vunpack.c.l.b16 %v6059
      %v6150 = vunpack.c.l.b16 %v6073
      %v6151 = vunpack.c.l.b16 %v6087
      %v6152 = vrot.slane %v6089, 7
      %v6153 = vsel %vm3714, %v6152, %v6088
      %v6154 = vrot.slane %v6090, 6
      %v6155 = vsel %vm3717, %v6154, %v6153
      %v6156 = vrot.slane %v6091, 5
      %v6157 = vsel %vm3720, %v6156, %v6155
      %v6158 = vrot.slane %v6092, 4
      %v6159 = vsel %vm3723, %v6158, %v6157
      %v6160 = vrot.slane %v6093, 3
      %v6161 = vsel %vm3726, %v6160, %v6159
      %v6162 = vrot.slane %v6094, 2
      %v6163 = vsel %vm3729, %v6162, %v6161
      %v6164 = vrot.slane %v6095, 1
      %v6165 = vsel %vm3732, %v6164, %v6163
      %v6166 = vrot.slane %v6097, 7
      %v6167 = vsel %vm3714, %v6166, %v6096
      %v6168 = vrot.slane %v6098, 6
      %v6169 = vsel %vm3717, %v6168, %v6167
      %v6170 = vrot.slane %v6099, 5
      %v6171 = vsel %vm3720, %v6170, %v6169
      %v6172 = vrot.slane %v6100, 4
      %v6173 = vsel %vm3723, %v6172, %v6171
      %v6174 = vrot.slane %v6101, 3
      %v6175 = vsel %vm3726, %v6174, %v6173
      %v6176 = vrot.slane %v6102, 2
      %v6177 = vsel %vm3729, %v6176, %v6175
      %v6178 = vrot.slane %v6103, 1
      %v6179 = vsel %vm3732, %v6178, %v6177
      %v6180 = vrot.slane %v6105, 7
      %v6181 = vsel %vm3714, %v6180, %v6104
      %v6182 = vrot.slane %v6106, 6
      %v6183 = vsel %vm3717, %v6182, %v6181
      %v6184 = vrot.slane %v6107, 5
      %v6185 = vsel %vm3720, %v6184, %v6183
      %v6186 = vrot.slane %v6108, 4
      %v6187 = vsel %vm3723, %v6186, %v6185
      %v6188 = vrot.slane %v6109, 3
      %v6189 = vsel %vm3726, %v6188, %v6187
      %v6190 = vrot.slane %v6110, 2
      %v6191 = vsel %vm3729, %v6190, %v6189
      %v6192 = vrot.slane %v6111, 1
      %v6193 = vsel %vm3732, %v6192, %v6191
      %v6194 = vrot.slane %v6113, 7
      %v6195 = vsel %vm3714, %v6194, %v6112
      %v6196 = vrot.slane %v6114, 6
      %v6197 = vsel %vm3717, %v6196, %v6195
      %v6198 = vrot.slane %v6115, 5
      %v6199 = vsel %vm3720, %v6198, %v6197
      %v6200 = vrot.slane %v6116, 4
      %v6201 = vsel %vm3723, %v6200, %v6199
      %v6202 = vrot.slane %v6117, 3
      %v6203 = vsel %vm3726, %v6202, %v6201
      %v6204 = vrot.slane %v6118, 2
      %v6205 = vsel %vm3729, %v6204, %v6203
      %v6206 = vrot.slane %v6119, 1
      %v6207 = vsel %vm3732, %v6206, %v6205
      %v6208 = vrot.slane %v6121, 7
      %v6209 = vsel %vm3714, %v6208, %v6120
      %v6210 = vrot.slane %v6122, 6
      %v6211 = vsel %vm3717, %v6210, %v6209
      %v6212 = vrot.slane %v6123, 5
      %v6213 = vsel %vm3720, %v6212, %v6211
      %v6214 = vrot.slane %v6124, 4
      %v6215 = vsel %vm3723, %v6214, %v6213
      %v6216 = vrot.slane %v6125, 3
      %v6217 = vsel %vm3726, %v6216, %v6215
      %v6218 = vrot.slane %v6126, 2
      %v6219 = vsel %vm3729, %v6218, %v6217
      %v6220 = vrot.slane %v6127, 1
      %v6221 = vsel %vm3732, %v6220, %v6219
      %v6222 = vrot.slane %v6129, 7
      %v6223 = vsel %vm3714, %v6222, %v6128
      %v6224 = vrot.slane %v6130, 6
      %v6225 = vsel %vm3717, %v6224, %v6223
      %v6226 = vrot.slane %v6131, 5
      %v6227 = vsel %vm3720, %v6226, %v6225
      %v6228 = vrot.slane %v6132, 4
      %v6229 = vsel %vm3723, %v6228, %v6227
      %v6230 = vrot.slane %v6133, 3
      %v6231 = vsel %vm3726, %v6230, %v6229
      %v6232 = vrot.slane %v6134, 2
      %v6233 = vsel %vm3729, %v6232, %v6231
      %v6234 = vrot.slane %v6135, 1
      %v6235 = vsel %vm3732, %v6234, %v6233
      %v6236 = vrot.slane %v6137, 7
      %v6237 = vsel %vm3714, %v6236, %v6136
      %v6238 = vrot.slane %v6138, 6
      %v6239 = vsel %vm3717, %v6238, %v6237
      %v6240 = vrot.slane %v6139, 5
      %v6241 = vsel %vm3720, %v6240, %v6239
      %v6242 = vrot.slane %v6140, 4
      %v6243 = vsel %vm3723, %v6242, %v6241
      %v6244 = vrot.slane %v6141, 3
      %v6245 = vsel %vm3726, %v6244, %v6243
      %v6246 = vrot.slane %v6142, 2
      %v6247 = vsel %vm3729, %v6246, %v6245
      %v6248 = vrot.slane %v6143, 1
      %v6249 = vsel %vm3732, %v6248, %v6247
      %v6250 = vrot.slane %v6145, 7
      %v6251 = vsel %vm3714, %v6250, %v6144
      %v6252 = vrot.slane %v6146, 6
      %v6253 = vsel %vm3717, %v6252, %v6251
      %v6254 = vrot.slane %v6147, 5
      %v6255 = vsel %vm3720, %v6254, %v6253
      %v6256 = vrot.slane %v6148, 4
      %v6257 = vsel %vm3723, %v6256, %v6255
      %v6258 = vrot.slane %v6149, 3
      %v6259 = vsel %vm3726, %v6258, %v6257
      %v6260 = vrot.slane %v6150, 2
      %v6261 = vsel %vm3729, %v6260, %v6259
      %v6262 = vrot.slane %v6151, 1
      %v6263 = vsel %vm3732, %v6262, %v6261
      %v6264 = vpack.c.b16 %v6165, %v6165
      %v6265 = vpack.c.b16 %v6179, %v6179
      %v6266 = vpack.c.b16 %v6193, %v6193
      %v6267 = vpack.c.b16 %v6207, %v6207
      %v6268 = vpack.c.b16 %v6221, %v6221
      %v6269 = vpack.c.b16 %v6235, %v6235
      %v6270 = vpack.c.b16 %v6249, %v6249
      %v6271 = vpack.c.b16 %v6263, %v6263
      %6272 = vrot.lane.b32.xlu0 %v6264, 12
      %v6273 = vpop.permute.xlu0 %6272
      %6274 = vrot.lane.b32.xlu0 %v6265, 12
      %v6275 = vpop.permute.xlu0 %6274
      %6276 = vrot.lane.b32.xlu0 %v6266, 12
      %v6277 = vpop.permute.xlu0 %6276
      %6278 = vrot.lane.b32.xlu0 %v6267, 12
      %v6279 = vpop.permute.xlu0 %6278
      %6280 = vrot.lane.b32.xlu0 %v6268, 12
      %v6281 = vpop.permute.xlu0 %6280
      %6282 = vrot.lane.b32.xlu0 %v6269, 12
      %v6283 = vpop.permute.xlu0 %6282
      %6284 = vrot.lane.b32.xlu0 %v6270, 12
      %v6285 = vpop.permute.xlu0 %6284
      %6286 = vrot.lane.b32.xlu0 %v6271, 12
      %v6287 = vpop.permute.xlu0 %6286
      %v6289 = vunpack.c.l.s4 1966171168
      %v6290 = vunpack.c.0.s8 %v6289
      %v6291 = vlaneseq
      %v6292 = vshrl.u32 %v6291, 7
      %v6293 = vsub.s32 %v6290, %v6292
      %v6294 = vrot.slane %v2106, %v6293
      %v6296 = vunpack.c.l.s4 1966171168
      %v6297 = vunpack.c.0.s8 %v6296
      %v6298 = vlaneseq
      %v6299 = vshrl.u32 %v6298, 7
      %v6300 = vsub.s32 %v6297, %v6299
      %v6301 = vrot.slane %v6294, %v6300
      %v6303 = vunpack.c.l.s4 1966171168
      %v6304 = vunpack.c.0.s8 %v6303
      %v6305 = vlaneseq
      %v6306 = vshrl.u32 %v6305, 7
      %v6307 = vsub.s32 %v6304, %v6306
      %v6308 = vrot.slane %v2114, %v6307
      %v6310 = vunpack.c.l.s4 1966171168
      %v6311 = vunpack.c.0.s8 %v6310
      %v6312 = vlaneseq
      %v6313 = vshrl.u32 %v6312, 7
      %v6314 = vsub.s32 %v6311, %v6313
      %v6315 = vrot.slane %v6308, %v6314
      %v6317 = vunpack.c.l.s4 1966171168
      %v6318 = vunpack.c.0.s8 %v6317
      %v6319 = vlaneseq
      %v6320 = vshrl.u32 %v6319, 7
      %v6321 = vsub.s32 %v6318, %v6320
      %v6322 = vrot.slane %v2122, %v6321
      %v6324 = vunpack.c.l.s4 1966171168
      %v6325 = vunpack.c.0.s8 %v6324
      %v6326 = vlaneseq
      %v6327 = vshrl.u32 %v6326, 7
      %v6328 = vsub.s32 %v6325, %v6327
      %v6329 = vrot.slane %v6322, %v6328
      %v6331 = vunpack.c.l.s4 1966171168
      %v6332 = vunpack.c.0.s8 %v6331
      %v6333 = vlaneseq
      %v6334 = vshrl.u32 %v6333, 7
      %v6335 = vsub.s32 %v6332, %v6334
      %v6336 = vrot.slane %v2130, %v6335
      %v6338 = vunpack.c.l.s4 1966171168
      %v6339 = vunpack.c.0.s8 %v6338
      %v6340 = vlaneseq
      %v6341 = vshrl.u32 %v6340, 7
      %v6342 = vsub.s32 %v6339, %v6341
      %v6343 = vrot.slane %v6336, %v6342
      %v6345 = vunpack.c.l.s4 1966171168
      %v6346 = vunpack.c.0.s8 %v6345
      %v6347 = vlaneseq
      %v6348 = vshrl.u32 %v6347, 7
      %v6349 = vsub.s32 %v6346, %v6348
      %v6350 = vrot.slane %v2138, %v6349
      %v6352 = vunpack.c.l.s4 1966171168
      %v6353 = vunpack.c.0.s8 %v6352
      %v6354 = vlaneseq
      %v6355 = vshrl.u32 %v6354, 7
      %v6356 = vsub.s32 %v6353, %v6355
      %v6357 = vrot.slane %v6350, %v6356
      %v6359 = vunpack.c.l.s4 1966171168
      %v6360 = vunpack.c.0.s8 %v6359
      %v6361 = vlaneseq
      %v6362 = vshrl.u32 %v6361, 7
      %v6363 = vsub.s32 %v6360, %v6362
      %v6364 = vrot.slane %v2146, %v6363
      %v6366 = vunpack.c.l.s4 1966171168
      %v6367 = vunpack.c.0.s8 %v6366
      %v6368 = vlaneseq
      %v6369 = vshrl.u32 %v6368, 7
      %v6370 = vsub.s32 %v6367, %v6369
      %v6371 = vrot.slane %v6364, %v6370
      %v6373 = vunpack.c.l.s4 1966171168
      %v6374 = vunpack.c.0.s8 %v6373
      %v6375 = vlaneseq
      %v6376 = vshrl.u32 %v6375, 7
      %v6377 = vsub.s32 %v6374, %v6376
      %v6378 = vrot.slane %v2154, %v6377
      %v6380 = vunpack.c.l.s4 1966171168
      %v6381 = vunpack.c.0.s8 %v6380
      %v6382 = vlaneseq
      %v6383 = vshrl.u32 %v6382, 7
      %v6384 = vsub.s32 %v6381, %v6383
      %v6385 = vrot.slane %v6378, %v6384
      %v6387 = vunpack.c.l.s4 1966171168
      %v6388 = vunpack.c.0.s8 %v6387
      %v6389 = vlaneseq
      %v6390 = vshrl.u32 %v6389, 7
      %v6391 = vsub.s32 %v6388, %v6390
      %v6392 = vrot.slane %v2162, %v6391
      %v6394 = vunpack.c.l.s4 1966171168
      %v6395 = vunpack.c.0.s8 %v6394
      %v6396 = vlaneseq
      %v6397 = vshrl.u32 %v6396, 7
      %v6398 = vsub.s32 %v6395, %v6397
      %v6399 = vrot.slane %v6392, %v6398
      %v6401 = vunpack.c.l.s4 1966171168
      %v6402 = vunpack.c.0.s8 %v6401
      %v6403 = vlaneseq
      %v6404 = vshrl.u32 %v6403, 7
      %v6405 = vsub.s32 %v6402, %v6404
      %v6406 = vrot.slane %v2171, %v6405
      %v6408 = vunpack.c.l.s4 1966171168
      %v6409 = vunpack.c.0.s8 %v6408
      %v6410 = vlaneseq
      %v6411 = vshrl.u32 %v6410, 7
      %v6412 = vsub.s32 %v6409, %v6411
      %v6413 = vrot.slane %v6406, %v6412
      %v6415 = vunpack.c.l.s4 1966171168
      %v6416 = vunpack.c.0.s8 %v6415
      %v6417 = vlaneseq
      %v6418 = vshrl.u32 %v6417, 7
      %v6419 = vsub.s32 %v6416, %v6418
      %v6420 = vrot.slane %v2179, %v6419
      %v6422 = vunpack.c.l.s4 1966171168
      %v6423 = vunpack.c.0.s8 %v6422
      %v6424 = vlaneseq
      %v6425 = vshrl.u32 %v6424, 7
      %v6426 = vsub.s32 %v6423, %v6425
      %v6427 = vrot.slane %v6420, %v6426
      %v6429 = vunpack.c.l.s4 1966171168
      %v6430 = vunpack.c.0.s8 %v6429
      %v6431 = vlaneseq
      %v6432 = vshrl.u32 %v6431, 7
      %v6433 = vsub.s32 %v6430, %v6432
      %v6434 = vrot.slane %v2187, %v6433
      %v6436 = vunpack.c.l.s4 1966171168
      %v6437 = vunpack.c.0.s8 %v6436
      %v6438 = vlaneseq
      %v6439 = vshrl.u32 %v6438, 7
      %v6440 = vsub.s32 %v6437, %v6439
      %v6441 = vrot.slane %v6434, %v6440
      %v6443 = vunpack.c.l.s4 1966171168
      %v6444 = vunpack.c.0.s8 %v6443
      %v6445 = vlaneseq
      %v6446 = vshrl.u32 %v6445, 7
      %v6447 = vsub.s32 %v6444, %v6446
      %v6448 = vrot.slane %v2195, %v6447
      %v6450 = vunpack.c.l.s4 1966171168
      %v6451 = vunpack.c.0.s8 %v6450
      %v6452 = vlaneseq
      %v6453 = vshrl.u32 %v6452, 7
      %v6454 = vsub.s32 %v6451, %v6453
      %v6455 = vrot.slane %v6448, %v6454
      %v6457 = vunpack.c.l.s4 1966171168
      %v6458 = vunpack.c.0.s8 %v6457
      %v6459 = vlaneseq
      %v6460 = vshrl.u32 %v6459, 7
      %v6461 = vsub.s32 %v6458, %v6460
      %v6462 = vrot.slane %v2203, %v6461
      %v6464 = vunpack.c.l.s4 1966171168
      %v6465 = vunpack.c.0.s8 %v6464
      %v6466 = vlaneseq
      %v6467 = vshrl.u32 %v6466, 7
      %v6468 = vsub.s32 %v6465, %v6467
      %v6469 = vrot.slane %v6462, %v6468
      %v6471 = vunpack.c.l.s4 1966171168
      %v6472 = vunpack.c.0.s8 %v6471
      %v6473 = vlaneseq
      %v6474 = vshrl.u32 %v6473, 7
      %v6475 = vsub.s32 %v6472, %v6474
      %v6476 = vrot.slane %v2211, %v6475
      %v6478 = vunpack.c.l.s4 1966171168
      %v6479 = vunpack.c.0.s8 %v6478
      %v6480 = vlaneseq
      %v6481 = vshrl.u32 %v6480, 7
      %v6482 = vsub.s32 %v6479, %v6481
      %v6483 = vrot.slane %v6476, %v6482
      %v6485 = vunpack.c.l.s4 1966171168
      %v6486 = vunpack.c.0.s8 %v6485
      %v6487 = vlaneseq
      %v6488 = vshrl.u32 %v6487, 7
      %v6489 = vsub.s32 %v6486, %v6488
      %v6490 = vrot.slane %v2219, %v6489
      %v6492 = vunpack.c.l.s4 1966171168
      %v6493 = vunpack.c.0.s8 %v6492
      %v6494 = vlaneseq
      %v6495 = vshrl.u32 %v6494, 7
      %v6496 = vsub.s32 %v6493, %v6495
      %v6497 = vrot.slane %v6490, %v6496
      %v6499 = vunpack.c.l.s4 1966171168
      %v6500 = vunpack.c.0.s8 %v6499
      %v6501 = vlaneseq
      %v6502 = vshrl.u32 %v6501, 7
      %v6503 = vsub.s32 %v6500, %v6502
      %v6504 = vrot.slane %v2227, %v6503
      %v6506 = vunpack.c.l.s4 1966171168
      %v6507 = vunpack.c.0.s8 %v6506
      %v6508 = vlaneseq
      %v6509 = vshrl.u32 %v6508, 7
      %v6510 = vsub.s32 %v6507, %v6509
      %v6511 = vrot.slane %v6504, %v6510
      %v6513 = vunpack.c.l.s4 1966171168
      %v6514 = vunpack.c.0.s8 %v6513
      %v6515 = vlaneseq
      %v6516 = vshrl.u32 %v6515, 7
      %v6517 = vsub.s32 %v6514, %v6516
      %v6518 = vrot.slane %v2236, %v6517
      %v6520 = vunpack.c.l.s4 1966171168
      %v6521 = vunpack.c.0.s8 %v6520
      %v6522 = vlaneseq
      %v6523 = vshrl.u32 %v6522, 7
      %v6524 = vsub.s32 %v6521, %v6523
      %v6525 = vrot.slane %v6518, %v6524
      %v6527 = vunpack.c.l.s4 1966171168
      %v6528 = vunpack.c.0.s8 %v6527
      %v6529 = vlaneseq
      %v6530 = vshrl.u32 %v6529, 7
      %v6531 = vsub.s32 %v6528, %v6530
      %v6532 = vrot.slane %v2244, %v6531
      %v6534 = vunpack.c.l.s4 1966171168
      %v6535 = vunpack.c.0.s8 %v6534
      %v6536 = vlaneseq
      %v6537 = vshrl.u32 %v6536, 7
      %v6538 = vsub.s32 %v6535, %v6537
      %v6539 = vrot.slane %v6532, %v6538
      %v6541 = vunpack.c.l.s4 1966171168
      %v6542 = vunpack.c.0.s8 %v6541
      %v6543 = vlaneseq
      %v6544 = vshrl.u32 %v6543, 7
      %v6545 = vsub.s32 %v6542, %v6544
      %v6546 = vrot.slane %v2252, %v6545
      %v6548 = vunpack.c.l.s4 1966171168
      %v6549 = vunpack.c.0.s8 %v6548
      %v6550 = vlaneseq
      %v6551 = vshrl.u32 %v6550, 7
      %v6552 = vsub.s32 %v6549, %v6551
      %v6553 = vrot.slane %v6546, %v6552
      %v6555 = vunpack.c.l.s4 1966171168
      %v6556 = vunpack.c.0.s8 %v6555
      %v6557 = vlaneseq
      %v6558 = vshrl.u32 %v6557, 7
      %v6559 = vsub.s32 %v6556, %v6558
      %v6560 = vrot.slane %v2260, %v6559
      %v6562 = vunpack.c.l.s4 1966171168
      %v6563 = vunpack.c.0.s8 %v6562
      %v6564 = vlaneseq
      %v6565 = vshrl.u32 %v6564, 7
      %v6566 = vsub.s32 %v6563, %v6565
      %v6567 = vrot.slane %v6560, %v6566
      %v6569 = vunpack.c.l.s4 1966171168
      %v6570 = vunpack.c.0.s8 %v6569
      %v6571 = vlaneseq
      %v6572 = vshrl.u32 %v6571, 7
      %v6573 = vsub.s32 %v6570, %v6572
      %v6574 = vrot.slane %v2268, %v6573
      %v6576 = vunpack.c.l.s4 1966171168
      %v6577 = vunpack.c.0.s8 %v6576
      %v6578 = vlaneseq
      %v6579 = vshrl.u32 %v6578, 7
      %v6580 = vsub.s32 %v6577, %v6579
      %v6581 = vrot.slane %v6574, %v6580
      %v6583 = vunpack.c.l.s4 1966171168
      %v6584 = vunpack.c.0.s8 %v6583
      %v6585 = vlaneseq
      %v6586 = vshrl.u32 %v6585, 7
      %v6587 = vsub.s32 %v6584, %v6586
      %v6588 = vrot.slane %v2276, %v6587
      %v6590 = vunpack.c.l.s4 1966171168
      %v6591 = vunpack.c.0.s8 %v6590
      %v6592 = vlaneseq
      %v6593 = vshrl.u32 %v6592, 7
      %v6594 = vsub.s32 %v6591, %v6593
      %v6595 = vrot.slane %v6588, %v6594
      %v6597 = vunpack.c.l.s4 1966171168
      %v6598 = vunpack.c.0.s8 %v6597
      %v6599 = vlaneseq
      %v6600 = vshrl.u32 %v6599, 7
      %v6601 = vsub.s32 %v6598, %v6600
      %v6602 = vrot.slane %v2284, %v6601
      %v6604 = vunpack.c.l.s4 1966171168
      %v6605 = vunpack.c.0.s8 %v6604
      %v6606 = vlaneseq
      %v6607 = vshrl.u32 %v6606, 7
      %v6608 = vsub.s32 %v6605, %v6607
      %v6609 = vrot.slane %v6602, %v6608
      %v6611 = vunpack.c.l.s4 1966171168
      %v6612 = vunpack.c.0.s8 %v6611
      %v6613 = vlaneseq
      %v6614 = vshrl.u32 %v6613, 7
      %v6615 = vsub.s32 %v6612, %v6614
      %v6616 = vrot.slane %v2292, %v6615
      %v6618 = vunpack.c.l.s4 1966171168
      %v6619 = vunpack.c.0.s8 %v6618
      %v6620 = vlaneseq
      %v6621 = vshrl.u32 %v6620, 7
      %v6622 = vsub.s32 %v6619, %v6621
      %v6623 = vrot.slane %v6616, %v6622
      %v6625 = vunpack.c.l.s4 1966171168
      %v6626 = vunpack.c.0.s8 %v6625
      %v6627 = vlaneseq
      %v6628 = vshrl.u32 %v6627, 7
      %v6629 = vsub.s32 %v6626, %v6628
      %v6630 = vrot.slane %v2301, %v6629
      %v6632 = vunpack.c.l.s4 1966171168
      %v6633 = vunpack.c.0.s8 %v6632
      %v6634 = vlaneseq
      %v6635 = vshrl.u32 %v6634, 7
      %v6636 = vsub.s32 %v6633, %v6635
      %v6637 = vrot.slane %v6630, %v6636
      %v6639 = vunpack.c.l.s4 1966171168
      %v6640 = vunpack.c.0.s8 %v6639
      %v6641 = vlaneseq
      %v6642 = vshrl.u32 %v6641, 7
      %v6643 = vsub.s32 %v6640, %v6642
      %v6644 = vrot.slane %v2309, %v6643
      %v6646 = vunpack.c.l.s4 1966171168
      %v6647 = vunpack.c.0.s8 %v6646
      %v6648 = vlaneseq
      %v6649 = vshrl.u32 %v6648, 7
      %v6650 = vsub.s32 %v6647, %v6649
      %v6651 = vrot.slane %v6644, %v6650
      %v6653 = vunpack.c.l.s4 1966171168
      %v6654 = vunpack.c.0.s8 %v6653
      %v6655 = vlaneseq
      %v6656 = vshrl.u32 %v6655, 7
      %v6657 = vsub.s32 %v6654, %v6656
      %v6658 = vrot.slane %v2317, %v6657
      %v6660 = vunpack.c.l.s4 1966171168
      %v6661 = vunpack.c.0.s8 %v6660
      %v6662 = vlaneseq
      %v6663 = vshrl.u32 %v6662, 7
      %v6664 = vsub.s32 %v6661, %v6663
      %v6665 = vrot.slane %v6658, %v6664
      %v6667 = vunpack.c.l.s4 1966171168
      %v6668 = vunpack.c.0.s8 %v6667
      %v6669 = vlaneseq
      %v6670 = vshrl.u32 %v6669, 7
      %v6671 = vsub.s32 %v6668, %v6670
      %v6672 = vrot.slane %v2325, %v6671
      %v6674 = vunpack.c.l.s4 1966171168
      %v6675 = vunpack.c.0.s8 %v6674
      %v6676 = vlaneseq
      %v6677 = vshrl.u32 %v6676, 7
      %v6678 = vsub.s32 %v6675, %v6677
      %v6679 = vrot.slane %v6672, %v6678
      %v6681 = vunpack.c.l.s4 1966171168
      %v6682 = vunpack.c.0.s8 %v6681
      %v6683 = vlaneseq
      %v6684 = vshrl.u32 %v6683, 7
      %v6685 = vsub.s32 %v6682, %v6684
      %v6686 = vrot.slane %v2333, %v6685
      %v6688 = vunpack.c.l.s4 1966171168
      %v6689 = vunpack.c.0.s8 %v6688
      %v6690 = vlaneseq
      %v6691 = vshrl.u32 %v6690, 7
      %v6692 = vsub.s32 %v6689, %v6691
      %v6693 = vrot.slane %v6686, %v6692
      %v6695 = vunpack.c.l.s4 1966171168
      %v6696 = vunpack.c.0.s8 %v6695
      %v6697 = vlaneseq
      %v6698 = vshrl.u32 %v6697, 7
      %v6699 = vsub.s32 %v6696, %v6698
      %v6700 = vrot.slane %v2341, %v6699
      %v6702 = vunpack.c.l.s4 1966171168
      %v6703 = vunpack.c.0.s8 %v6702
      %v6704 = vlaneseq
      %v6705 = vshrl.u32 %v6704, 7
      %v6706 = vsub.s32 %v6703, %v6705
      %v6707 = vrot.slane %v6700, %v6706
      %v6709 = vunpack.c.l.s4 1966171168
      %v6710 = vunpack.c.0.s8 %v6709
      %v6711 = vlaneseq
      %v6712 = vshrl.u32 %v6711, 7
      %v6713 = vsub.s32 %v6710, %v6712
      %v6714 = vrot.slane %v2349, %v6713
      %v6716 = vunpack.c.l.s4 1966171168
      %v6717 = vunpack.c.0.s8 %v6716
      %v6718 = vlaneseq
      %v6719 = vshrl.u32 %v6718, 7
      %v6720 = vsub.s32 %v6717, %v6719
      %v6721 = vrot.slane %v6714, %v6720
      %v6723 = vunpack.c.l.s4 1966171168
      %v6724 = vunpack.c.0.s8 %v6723
      %v6725 = vlaneseq
      %v6726 = vshrl.u32 %v6725, 7
      %v6727 = vsub.s32 %v6724, %v6726
      %v6728 = vrot.slane %v2357, %v6727
      %v6730 = vunpack.c.l.s4 1966171168
      %v6731 = vunpack.c.0.s8 %v6730
      %v6732 = vlaneseq
      %v6733 = vshrl.u32 %v6732, 7
      %v6734 = vsub.s32 %v6731, %v6733
      %v6735 = vrot.slane %v6728, %v6734
      %v6737 = vunpack.c.l.s4 1966171168
      %v6738 = vunpack.c.0.s8 %v6737
      %v6739 = vlaneseq
      %v6740 = vshrl.u32 %v6739, 7
      %v6741 = vsub.s32 %v6738, %v6740
      %v6742 = vrot.slane %v2366, %v6741
      %v6744 = vunpack.c.l.s4 1966171168
      %v6745 = vunpack.c.0.s8 %v6744
      %v6746 = vlaneseq
      %v6747 = vshrl.u32 %v6746, 7
      %v6748 = vsub.s32 %v6745, %v6747
      %v6749 = vrot.slane %v6742, %v6748
      %v6751 = vunpack.c.l.s4 1966171168
      %v6752 = vunpack.c.0.s8 %v6751
      %v6753 = vlaneseq
      %v6754 = vshrl.u32 %v6753, 7
      %v6755 = vsub.s32 %v6752, %v6754
      %v6756 = vrot.slane %v2374, %v6755
      %v6758 = vunpack.c.l.s4 1966171168
      %v6759 = vunpack.c.0.s8 %v6758
      %v6760 = vlaneseq
      %v6761 = vshrl.u32 %v6760, 7
      %v6762 = vsub.s32 %v6759, %v6761
      %v6763 = vrot.slane %v6756, %v6762
      %v6765 = vunpack.c.l.s4 1966171168
      %v6766 = vunpack.c.0.s8 %v6765
      %v6767 = vlaneseq
      %v6768 = vshrl.u32 %v6767, 7
      %v6769 = vsub.s32 %v6766, %v6768
      %v6770 = vrot.slane %v2382, %v6769
      %v6772 = vunpack.c.l.s4 1966171168
      %v6773 = vunpack.c.0.s8 %v6772
      %v6774 = vlaneseq
      %v6775 = vshrl.u32 %v6774, 7
      %v6776 = vsub.s32 %v6773, %v6775
      %v6777 = vrot.slane %v6770, %v6776
      %v6779 = vunpack.c.l.s4 1966171168
      %v6780 = vunpack.c.0.s8 %v6779
      %v6781 = vlaneseq
      %v6782 = vshrl.u32 %v6781, 7
      %v6783 = vsub.s32 %v6780, %v6782
      %v6784 = vrot.slane %v2390, %v6783
      %v6786 = vunpack.c.l.s4 1966171168
      %v6787 = vunpack.c.0.s8 %v6786
      %v6788 = vlaneseq
      %v6789 = vshrl.u32 %v6788, 7
      %v6790 = vsub.s32 %v6787, %v6789
      %v6791 = vrot.slane %v6784, %v6790
      %v6793 = vunpack.c.l.s4 1966171168
      %v6794 = vunpack.c.0.s8 %v6793
      %v6795 = vlaneseq
      %v6796 = vshrl.u32 %v6795, 7
      %v6797 = vsub.s32 %v6794, %v6796
      %v6798 = vrot.slane %v2398, %v6797
      %v6800 = vunpack.c.l.s4 1966171168
      %v6801 = vunpack.c.0.s8 %v6800
      %v6802 = vlaneseq
      %v6803 = vshrl.u32 %v6802, 7
      %v6804 = vsub.s32 %v6801, %v6803
      %v6805 = vrot.slane %v6798, %v6804
      %v6807 = vunpack.c.l.s4 1966171168
      %v6808 = vunpack.c.0.s8 %v6807
      %v6809 = vlaneseq
      %v6810 = vshrl.u32 %v6809, 7
      %v6811 = vsub.s32 %v6808, %v6810
      %v6812 = vrot.slane %v2406, %v6811
      %v6814 = vunpack.c.l.s4 1966171168
      %v6815 = vunpack.c.0.s8 %v6814
      %v6816 = vlaneseq
      %v6817 = vshrl.u32 %v6816, 7
      %v6818 = vsub.s32 %v6815, %v6817
      %v6819 = vrot.slane %v6812, %v6818
      %v6821 = vunpack.c.l.s4 1966171168
      %v6822 = vunpack.c.0.s8 %v6821
      %v6823 = vlaneseq
      %v6824 = vshrl.u32 %v6823, 7
      %v6825 = vsub.s32 %v6822, %v6824
      %v6826 = vrot.slane %v2414, %v6825
      %v6828 = vunpack.c.l.s4 1966171168
      %v6829 = vunpack.c.0.s8 %v6828
      %v6830 = vlaneseq
      %v6831 = vshrl.u32 %v6830, 7
      %v6832 = vsub.s32 %v6829, %v6831
      %v6833 = vrot.slane %v6826, %v6832
      %v6835 = vunpack.c.l.s4 1966171168
      %v6836 = vunpack.c.0.s8 %v6835
      %v6837 = vlaneseq
      %v6838 = vshrl.u32 %v6837, 7
      %v6839 = vsub.s32 %v6836, %v6838
      %v6840 = vrot.slane %v2422, %v6839
      %v6842 = vunpack.c.l.s4 1966171168
      %v6843 = vunpack.c.0.s8 %v6842
      %v6844 = vlaneseq
      %v6845 = vshrl.u32 %v6844, 7
      %v6846 = vsub.s32 %v6843, %v6845
      %v6847 = vrot.slane %v6840, %v6846
      %v6849 = vunpack.c.l.s4 1966171168
      %v6850 = vunpack.c.0.s8 %v6849
      %v6851 = vlaneseq
      %v6852 = vshrl.u32 %v6851, 7
      %v6853 = vsub.s32 %v6850, %v6852
      %v6854 = vrot.slane %v2431, %v6853
      %v6856 = vunpack.c.l.s4 1966171168
      %v6857 = vunpack.c.0.s8 %v6856
      %v6858 = vlaneseq
      %v6859 = vshrl.u32 %v6858, 7
      %v6860 = vsub.s32 %v6857, %v6859
      %v6861 = vrot.slane %v6854, %v6860
      %v6863 = vunpack.c.l.s4 1966171168
      %v6864 = vunpack.c.0.s8 %v6863
      %v6865 = vlaneseq
      %v6866 = vshrl.u32 %v6865, 7
      %v6867 = vsub.s32 %v6864, %v6866
      %v6868 = vrot.slane %v2439, %v6867
      %v6870 = vunpack.c.l.s4 1966171168
      %v6871 = vunpack.c.0.s8 %v6870
      %v6872 = vlaneseq
      %v6873 = vshrl.u32 %v6872, 7
      %v6874 = vsub.s32 %v6871, %v6873
      %v6875 = vrot.slane %v6868, %v6874
      %v6877 = vunpack.c.l.s4 1966171168
      %v6878 = vunpack.c.0.s8 %v6877
      %v6879 = vlaneseq
      %v6880 = vshrl.u32 %v6879, 7
      %v6881 = vsub.s32 %v6878, %v6880
      %v6882 = vrot.slane %v2447, %v6881
      %v6884 = vunpack.c.l.s4 1966171168
      %v6885 = vunpack.c.0.s8 %v6884
      %v6886 = vlaneseq
      %v6887 = vshrl.u32 %v6886, 7
      %v6888 = vsub.s32 %v6885, %v6887
      %v6889 = vrot.slane %v6882, %v6888
      %v6891 = vunpack.c.l.s4 1966171168
      %v6892 = vunpack.c.0.s8 %v6891
      %v6893 = vlaneseq
      %v6894 = vshrl.u32 %v6893, 7
      %v6895 = vsub.s32 %v6892, %v6894
      %v6896 = vrot.slane %v2455, %v6895
      %v6898 = vunpack.c.l.s4 1966171168
      %v6899 = vunpack.c.0.s8 %v6898
      %v6900 = vlaneseq
      %v6901 = vshrl.u32 %v6900, 7
      %v6902 = vsub.s32 %v6899, %v6901
      %v6903 = vrot.slane %v6896, %v6902
      %v6905 = vunpack.c.l.s4 1966171168
      %v6906 = vunpack.c.0.s8 %v6905
      %v6907 = vlaneseq
      %v6908 = vshrl.u32 %v6907, 7
      %v6909 = vsub.s32 %v6906, %v6908
      %v6910 = vrot.slane %v2463, %v6909
      %v6912 = vunpack.c.l.s4 1966171168
      %v6913 = vunpack.c.0.s8 %v6912
      %v6914 = vlaneseq
      %v6915 = vshrl.u32 %v6914, 7
      %v6916 = vsub.s32 %v6913, %v6915
      %v6917 = vrot.slane %v6910, %v6916
      %v6919 = vunpack.c.l.s4 1966171168
      %v6920 = vunpack.c.0.s8 %v6919
      %v6921 = vlaneseq
      %v6922 = vshrl.u32 %v6921, 7
      %v6923 = vsub.s32 %v6920, %v6922
      %v6924 = vrot.slane %v2471, %v6923
      %v6926 = vunpack.c.l.s4 1966171168
      %v6927 = vunpack.c.0.s8 %v6926
      %v6928 = vlaneseq
      %v6929 = vshrl.u32 %v6928, 7
      %v6930 = vsub.s32 %v6927, %v6929
      %v6931 = vrot.slane %v6924, %v6930
      %v6933 = vunpack.c.l.s4 1966171168
      %v6934 = vunpack.c.0.s8 %v6933
      %v6935 = vlaneseq
      %v6936 = vshrl.u32 %v6935, 7
      %v6937 = vsub.s32 %v6934, %v6936
      %v6938 = vrot.slane %v2479, %v6937
      %v6940 = vunpack.c.l.s4 1966171168
      %v6941 = vunpack.c.0.s8 %v6940
      %v6942 = vlaneseq
      %v6943 = vshrl.u32 %v6942, 7
      %v6944 = vsub.s32 %v6941, %v6943
      %v6945 = vrot.slane %v6938, %v6944
      %v6947 = vunpack.c.l.s4 1966171168
      %v6948 = vunpack.c.0.s8 %v6947
      %v6949 = vlaneseq
      %v6950 = vshrl.u32 %v6949, 7
      %v6951 = vsub.s32 %v6948, %v6950
      %v6952 = vrot.slane %v2487, %v6951
      %v6954 = vunpack.c.l.s4 1966171168
      %v6955 = vunpack.c.0.s8 %v6954
      %v6956 = vlaneseq
      %v6957 = vshrl.u32 %v6956, 7
      %v6958 = vsub.s32 %v6955, %v6957
      %v6959 = vrot.slane %v6952, %v6958
      %v6961 = vunpack.c.l.s4 1966171168
      %v6962 = vunpack.c.0.s8 %v6961
      %v6963 = vlaneseq
      %v6964 = vshrl.u32 %v6963, 7
      %v6965 = vsub.s32 %v6962, %v6964
      %v6966 = vrot.slane %v2496, %v6965
      %v6968 = vunpack.c.l.s4 1966171168
      %v6969 = vunpack.c.0.s8 %v6968
      %v6970 = vlaneseq
      %v6971 = vshrl.u32 %v6970, 7
      %v6972 = vsub.s32 %v6969, %v6971
      %v6973 = vrot.slane %v6966, %v6972
      %v6975 = vunpack.c.l.s4 1966171168
      %v6976 = vunpack.c.0.s8 %v6975
      %v6977 = vlaneseq
      %v6978 = vshrl.u32 %v6977, 7
      %v6979 = vsub.s32 %v6976, %v6978
      %v6980 = vrot.slane %v2504, %v6979
      %v6982 = vunpack.c.l.s4 1966171168
      %v6983 = vunpack.c.0.s8 %v6982
      %v6984 = vlaneseq
      %v6985 = vshrl.u32 %v6984, 7
      %v6986 = vsub.s32 %v6983, %v6985
      %v6987 = vrot.slane %v6980, %v6986
      %v6989 = vunpack.c.l.s4 1966171168
      %v6990 = vunpack.c.0.s8 %v6989
      %v6991 = vlaneseq
      %v6992 = vshrl.u32 %v6991, 7
      %v6993 = vsub.s32 %v6990, %v6992
      %v6994 = vrot.slane %v2512, %v6993
      %v6996 = vunpack.c.l.s4 1966171168
      %v6997 = vunpack.c.0.s8 %v6996
      %v6998 = vlaneseq
      %v6999 = vshrl.u32 %v6998, 7
      %v7000 = vsub.s32 %v6997, %v6999
      %v7001 = vrot.slane %v6994, %v7000
      %v7003 = vunpack.c.l.s4 1966171168
      %v7004 = vunpack.c.0.s8 %v7003
      %v7005 = vlaneseq
      %v7006 = vshrl.u32 %v7005, 7
      %v7007 = vsub.s32 %v7004, %v7006
      %v7008 = vrot.slane %v2520, %v7007
      %v7010 = vunpack.c.l.s4 1966171168
      %v7011 = vunpack.c.0.s8 %v7010
      %v7012 = vlaneseq
      %v7013 = vshrl.u32 %v7012, 7
      %v7014 = vsub.s32 %v7011, %v7013
      %v7015 = vrot.slane %v7008, %v7014
      %v7017 = vunpack.c.l.s4 1966171168
      %v7018 = vunpack.c.0.s8 %v7017
      %v7019 = vlaneseq
      %v7020 = vshrl.u32 %v7019, 7
      %v7021 = vsub.s32 %v7018, %v7020
      %v7022 = vrot.slane %v2528, %v7021
      %v7024 = vunpack.c.l.s4 1966171168
      %v7025 = vunpack.c.0.s8 %v7024
      %v7026 = vlaneseq
      %v7027 = vshrl.u32 %v7026, 7
      %v7028 = vsub.s32 %v7025, %v7027
      %v7029 = vrot.slane %v7022, %v7028
      %v7031 = vunpack.c.l.s4 1966171168
      %v7032 = vunpack.c.0.s8 %v7031
      %v7033 = vlaneseq
      %v7034 = vshrl.u32 %v7033, 7
      %v7035 = vsub.s32 %v7032, %v7034
      %v7036 = vrot.slane %v2536, %v7035
      %v7038 = vunpack.c.l.s4 1966171168
      %v7039 = vunpack.c.0.s8 %v7038
      %v7040 = vlaneseq
      %v7041 = vshrl.u32 %v7040, 7
      %v7042 = vsub.s32 %v7039, %v7041
      %v7043 = vrot.slane %v7036, %v7042
      %v7045 = vunpack.c.l.s4 1966171168
      %v7046 = vunpack.c.0.s8 %v7045
      %v7047 = vlaneseq
      %v7048 = vshrl.u32 %v7047, 7
      %v7049 = vsub.s32 %v7046, %v7048
      %v7050 = vrot.slane %v2544, %v7049
      %v7052 = vunpack.c.l.s4 1966171168
      %v7053 = vunpack.c.0.s8 %v7052
      %v7054 = vlaneseq
      %v7055 = vshrl.u32 %v7054, 7
      %v7056 = vsub.s32 %v7053, %v7055
      %v7057 = vrot.slane %v7050, %v7056
      %v7059 = vunpack.c.l.s4 1966171168
      %v7060 = vunpack.c.0.s8 %v7059
      %v7061 = vlaneseq
      %v7062 = vshrl.u32 %v7061, 7
      %v7063 = vsub.s32 %v7060, %v7062
      %v7064 = vrot.slane %v2552, %v7063
      %v7066 = vunpack.c.l.s4 1966171168
      %v7067 = vunpack.c.0.s8 %v7066
      %v7068 = vlaneseq
      %v7069 = vshrl.u32 %v7068, 7
      %v7070 = vsub.s32 %v7067, %v7069
      %v7071 = vrot.slane %v7064, %v7070
      %v7073 = vunpack.c.l.s4 1966171168
      %v7074 = vunpack.c.0.s8 %v7073
      %v7075 = vlaneseq
      %v7076 = vshrl.u32 %v7075, 7
      %v7077 = vsub.s32 %v7074, %v7076
      %v7078 = vrot.slane %v2561, %v7077
      %v7080 = vunpack.c.l.s4 1966171168
      %v7081 = vunpack.c.0.s8 %v7080
      %v7082 = vlaneseq
      %v7083 = vshrl.u32 %v7082, 7
      %v7084 = vsub.s32 %v7081, %v7083
      %v7085 = vrot.slane %v7078, %v7084
      %v7087 = vunpack.c.l.s4 1966171168
      %v7088 = vunpack.c.0.s8 %v7087
      %v7089 = vlaneseq
      %v7090 = vshrl.u32 %v7089, 7
      %v7091 = vsub.s32 %v7088, %v7090
      %v7092 = vrot.slane %v2569, %v7091
      %v7094 = vunpack.c.l.s4 1966171168
      %v7095 = vunpack.c.0.s8 %v7094
      %v7096 = vlaneseq
      %v7097 = vshrl.u32 %v7096, 7
      %v7098 = vsub.s32 %v7095, %v7097
      %v7099 = vrot.slane %v7092, %v7098
      %v7101 = vunpack.c.l.s4 1966171168
      %v7102 = vunpack.c.0.s8 %v7101
      %v7103 = vlaneseq
      %v7104 = vshrl.u32 %v7103, 7
      %v7105 = vsub.s32 %v7102, %v7104
      %v7106 = vrot.slane %v2577, %v7105
      %v7108 = vunpack.c.l.s4 1966171168
      %v7109 = vunpack.c.0.s8 %v7108
      %v7110 = vlaneseq
      %v7111 = vshrl.u32 %v7110, 7
      %v7112 = vsub.s32 %v7109, %v7111
      %v7113 = vrot.slane %v7106, %v7112
      %v7115 = vunpack.c.l.s4 1966171168
      %v7116 = vunpack.c.0.s8 %v7115
      %v7117 = vlaneseq
      %v7118 = vshrl.u32 %v7117, 7
      %v7119 = vsub.s32 %v7116, %v7118
      %v7120 = vrot.slane %v2585, %v7119
      %v7122 = vunpack.c.l.s4 1966171168
      %v7123 = vunpack.c.0.s8 %v7122
      %v7124 = vlaneseq
      %v7125 = vshrl.u32 %v7124, 7
      %v7126 = vsub.s32 %v7123, %v7125
      %v7127 = vrot.slane %v7120, %v7126
      %v7129 = vunpack.c.l.s4 1966171168
      %v7130 = vunpack.c.0.s8 %v7129
      %v7131 = vlaneseq
      %v7132 = vshrl.u32 %v7131, 7
      %v7133 = vsub.s32 %v7130, %v7132
      %v7134 = vrot.slane %v2593, %v7133
      %v7136 = vunpack.c.l.s4 1966171168
      %v7137 = vunpack.c.0.s8 %v7136
      %v7138 = vlaneseq
      %v7139 = vshrl.u32 %v7138, 7
      %v7140 = vsub.s32 %v7137, %v7139
      %v7141 = vrot.slane %v7134, %v7140
      %v7143 = vunpack.c.l.s4 1966171168
      %v7144 = vunpack.c.0.s8 %v7143
      %v7145 = vlaneseq
      %v7146 = vshrl.u32 %v7145, 7
      %v7147 = vsub.s32 %v7144, %v7146
      %v7148 = vrot.slane %v2601, %v7147
      %v7150 = vunpack.c.l.s4 1966171168
      %v7151 = vunpack.c.0.s8 %v7150
      %v7152 = vlaneseq
      %v7153 = vshrl.u32 %v7152, 7
      %v7154 = vsub.s32 %v7151, %v7153
      %v7155 = vrot.slane %v7148, %v7154
      %v7157 = vunpack.c.l.s4 1966171168
      %v7158 = vunpack.c.0.s8 %v7157
      %v7159 = vlaneseq
      %v7160 = vshrl.u32 %v7159, 7
      %v7161 = vsub.s32 %v7158, %v7160
      %v7162 = vrot.slane %v2609, %v7161
      %v7164 = vunpack.c.l.s4 1966171168
      %v7165 = vunpack.c.0.s8 %v7164
      %v7166 = vlaneseq
      %v7167 = vshrl.u32 %v7166, 7
      %v7168 = vsub.s32 %v7165, %v7167
      %v7169 = vrot.slane %v7162, %v7168
      %v7171 = vunpack.c.l.s4 1966171168
      %v7172 = vunpack.c.0.s8 %v7171
      %v7173 = vlaneseq
      %v7174 = vshrl.u32 %v7173, 7
      %v7175 = vsub.s32 %v7172, %v7174
      %v7176 = vrot.slane %v2617, %v7175
      %v7178 = vunpack.c.l.s4 1966171168
      %v7179 = vunpack.c.0.s8 %v7178
      %v7180 = vlaneseq
      %v7181 = vshrl.u32 %v7180, 7
      %v7182 = vsub.s32 %v7179, %v7181
      %v7183 = vrot.slane %v7176, %v7182
      %v7184 = vunpack.c.l.b16 %v6301
      %v7185 = vunpack.c.l.b16 %v6315
      %v7186 = vunpack.c.l.b16 %v6329
      %v7187 = vunpack.c.l.b16 %v6343
      %v7188 = vunpack.c.l.b16 %v6357
      %v7189 = vunpack.c.l.b16 %v6371
      %v7190 = vunpack.c.l.b16 %v6385
      %v7191 = vunpack.c.l.b16 %v6399
      %v7192 = vunpack.c.l.b16 %v6413
      %v7193 = vunpack.c.l.b16 %v6427
      %v7194 = vunpack.c.l.b16 %v6441
      %v7195 = vunpack.c.l.b16 %v6455
      %v7196 = vunpack.c.l.b16 %v6469
      %v7197 = vunpack.c.l.b16 %v6483
      %v7198 = vunpack.c.l.b16 %v6497
      %v7199 = vunpack.c.l.b16 %v6511
      %v7200 = vunpack.c.l.b16 %v6525
      %v7201 = vunpack.c.l.b16 %v6539
      %v7202 = vunpack.c.l.b16 %v6553
      %v7203 = vunpack.c.l.b16 %v6567
      %v7204 = vunpack.c.l.b16 %v6581
      %v7205 = vunpack.c.l.b16 %v6595
      %v7206 = vunpack.c.l.b16 %v6609
      %v7207 = vunpack.c.l.b16 %v6623
      %v7208 = vunpack.c.l.b16 %v6637
      %v7209 = vunpack.c.l.b16 %v6651
      %v7210 = vunpack.c.l.b16 %v6665
      %v7211 = vunpack.c.l.b16 %v6679
      %v7212 = vunpack.c.l.b16 %v6693
      %v7213 = vunpack.c.l.b16 %v6707
      %v7214 = vunpack.c.l.b16 %v6721
      %v7215 = vunpack.c.l.b16 %v6735
      %v7216 = vunpack.c.l.b16 %v6749
      %v7217 = vunpack.c.l.b16 %v6763
      %v7218 = vunpack.c.l.b16 %v6777
      %v7219 = vunpack.c.l.b16 %v6791
      %v7220 = vunpack.c.l.b16 %v6805
      %v7221 = vunpack.c.l.b16 %v6819
      %v7222 = vunpack.c.l.b16 %v6833
      %v7223 = vunpack.c.l.b16 %v6847
      %v7224 = vunpack.c.l.b16 %v6861
      %v7225 = vunpack.c.l.b16 %v6875
      %v7226 = vunpack.c.l.b16 %v6889
      %v7227 = vunpack.c.l.b16 %v6903
      %v7228 = vunpack.c.l.b16 %v6917
      %v7229 = vunpack.c.l.b16 %v6931
      %v7230 = vunpack.c.l.b16 %v6945
      %v7231 = vunpack.c.l.b16 %v6959
      %v7232 = vunpack.c.l.b16 %v6973
      %v7233 = vunpack.c.l.b16 %v6987
      %v7234 = vunpack.c.l.b16 %v7001
      %v7235 = vunpack.c.l.b16 %v7015
      %v7236 = vunpack.c.l.b16 %v7029
      %v7237 = vunpack.c.l.b16 %v7043
      %v7238 = vunpack.c.l.b16 %v7057
      %v7239 = vunpack.c.l.b16 %v7071
      %v7240 = vunpack.c.l.b16 %v7085
      %v7241 = vunpack.c.l.b16 %v7099
      %v7242 = vunpack.c.l.b16 %v7113
      %v7243 = vunpack.c.l.b16 %v7127
      %v7244 = vunpack.c.l.b16 %v7141
      %v7245 = vunpack.c.l.b16 %v7155
      %v7246 = vunpack.c.l.b16 %v7169
      %v7247 = vunpack.c.l.b16 %v7183
      %v7248 = vrot.slane %v7185, 7
      %v7249 = vsel %vm3714, %v7248, %v7184
      %v7250 = vrot.slane %v7186, 6
      %v7251 = vsel %vm3717, %v7250, %v7249
      %v7252 = vrot.slane %v7187, 5
      %v7253 = vsel %vm3720, %v7252, %v7251
      %v7254 = vrot.slane %v7188, 4
      %v7255 = vsel %vm3723, %v7254, %v7253
      %v7256 = vrot.slane %v7189, 3
      %v7257 = vsel %vm3726, %v7256, %v7255
      %v7258 = vrot.slane %v7190, 2
      %v7259 = vsel %vm3729, %v7258, %v7257
      %v7260 = vrot.slane %v7191, 1
      %v7261 = vsel %vm3732, %v7260, %v7259
      %v7262 = vrot.slane %v7193, 7
      %v7263 = vsel %vm3714, %v7262, %v7192
      %v7264 = vrot.slane %v7194, 6
      %v7265 = vsel %vm3717, %v7264, %v7263
      %v7266 = vrot.slane %v7195, 5
      %v7267 = vsel %vm3720, %v7266, %v7265
      %v7268 = vrot.slane %v7196, 4
      %v7269 = vsel %vm3723, %v7268, %v7267
      %v7270 = vrot.slane %v7197, 3
      %v7271 = vsel %vm3726, %v7270, %v7269
      %v7272 = vrot.slane %v7198, 2
      %v7273 = vsel %vm3729, %v7272, %v7271
      %v7274 = vrot.slane %v7199, 1
      %v7275 = vsel %vm3732, %v7274, %v7273
      %v7276 = vrot.slane %v7201, 7
      %v7277 = vsel %vm3714, %v7276, %v7200
      %v7278 = vrot.slane %v7202, 6
      %v7279 = vsel %vm3717, %v7278, %v7277
      %v7280 = vrot.slane %v7203, 5
      %v7281 = vsel %vm3720, %v7280, %v7279
      %v7282 = vrot.slane %v7204, 4
      %v7283 = vsel %vm3723, %v7282, %v7281
      %v7284 = vrot.slane %v7205, 3
      %v7285 = vsel %vm3726, %v7284, %v7283
      %v7286 = vrot.slane %v7206, 2
      %v7287 = vsel %vm3729, %v7286, %v7285
      %v7288 = vrot.slane %v7207, 1
      %v7289 = vsel %vm3732, %v7288, %v7287
      %v7290 = vrot.slane %v7209, 7
      %v7291 = vsel %vm3714, %v7290, %v7208
      %v7292 = vrot.slane %v7210, 6
      %v7293 = vsel %vm3717, %v7292, %v7291
      %v7294 = vrot.slane %v7211, 5
      %v7295 = vsel %vm3720, %v7294, %v7293
      %v7296 = vrot.slane %v7212, 4
      %v7297 = vsel %vm3723, %v7296, %v7295
      %v7298 = vrot.slane %v7213, 3
      %v7299 = vsel %vm3726, %v7298, %v7297
      %v7300 = vrot.slane %v7214, 2
      %v7301 = vsel %vm3729, %v7300, %v7299
      %v7302 = vrot.slane %v7215, 1
      %v7303 = vsel %vm3732, %v7302, %v7301
      %v7304 = vrot.slane %v7217, 7
      %v7305 = vsel %vm3714, %v7304, %v7216
      %v7306 = vrot.slane %v7218, 6
      %v7307 = vsel %vm3717, %v7306, %v7305
      %v7308 = vrot.slane %v7219, 5
      %v7309 = vsel %vm3720, %v7308, %v7307
      %v7310 = vrot.slane %v7220, 4
      %v7311 = vsel %vm3723, %v7310, %v7309
      %v7312 = vrot.slane %v7221, 3
      %v7313 = vsel %vm3726, %v7312, %v7311
      %v7314 = vrot.slane %v7222, 2
      %v7315 = vsel %vm3729, %v7314, %v7313
      %v7316 = vrot.slane %v7223, 1
      %v7317 = vsel %vm3732, %v7316, %v7315
      %v7318 = vrot.slane %v7225, 7
      %v7319 = vsel %vm3714, %v7318, %v7224
      %v7320 = vrot.slane %v7226, 6
      %v7321 = vsel %vm3717, %v7320, %v7319
      %v7322 = vrot.slane %v7227, 5
      %v7323 = vsel %vm3720, %v7322, %v7321
      %v7324 = vrot.slane %v7228, 4
      %v7325 = vsel %vm3723, %v7324, %v7323
      %v7326 = vrot.slane %v7229, 3
      %v7327 = vsel %vm3726, %v7326, %v7325
      %v7328 = vrot.slane %v7230, 2
      %v7329 = vsel %vm3729, %v7328, %v7327
      %v7330 = vrot.slane %v7231, 1
      %v7331 = vsel %vm3732, %v7330, %v7329
      %v7332 = vrot.slane %v7233, 7
      %v7333 = vsel %vm3714, %v7332, %v7232
      %v7334 = vrot.slane %v7234, 6
      %v7335 = vsel %vm3717, %v7334, %v7333
      %v7336 = vrot.slane %v7235, 5
      %v7337 = vsel %vm3720, %v7336, %v7335
      %v7338 = vrot.slane %v7236, 4
      %v7339 = vsel %vm3723, %v7338, %v7337
      %v7340 = vrot.slane %v7237, 3
      %v7341 = vsel %vm3726, %v7340, %v7339
      %v7342 = vrot.slane %v7238, 2
      %v7343 = vsel %vm3729, %v7342, %v7341
      %v7344 = vrot.slane %v7239, 1
      %v7345 = vsel %vm3732, %v7344, %v7343
      %v7346 = vrot.slane %v7241, 7
      %v7347 = vsel %vm3714, %v7346, %v7240
      %v7348 = vrot.slane %v7242, 6
      %v7349 = vsel %vm3717, %v7348, %v7347
      %v7350 = vrot.slane %v7243, 5
      %v7351 = vsel %vm3720, %v7350, %v7349
      %v7352 = vrot.slane %v7244, 4
      %v7353 = vsel %vm3723, %v7352, %v7351
      %v7354 = vrot.slane %v7245, 3
      %v7355 = vsel %vm3726, %v7354, %v7353
      %v7356 = vrot.slane %v7246, 2
      %v7357 = vsel %vm3729, %v7356, %v7355
      %v7358 = vrot.slane %v7247, 1
      %v7359 = vsel %vm3732, %v7358, %v7357
      %v7360 = vpack.c.b16 %v7261, %v7261
      %v7361 = vpack.c.b16 %v7275, %v7275
      %v7362 = vpack.c.b16 %v7289, %v7289
      %v7363 = vpack.c.b16 %v7303, %v7303
      %v7364 = vpack.c.b16 %v7317, %v7317
      %v7365 = vpack.c.b16 %v7331, %v7331
      %v7366 = vpack.c.b16 %v7345, %v7345
      %v7367 = vpack.c.b16 %v7359, %v7359
      %7368 = vrot.lane.b32.xlu0 %v7360, 16
      %v7369 = vpop.permute.xlu0 %7368
      %7370 = vrot.lane.b32.xlu0 %v7361, 16
      %v7371 = vpop.permute.xlu0 %7370
      %7372 = vrot.lane.b32.xlu0 %v7362, 16
      %v7373 = vpop.permute.xlu0 %7372
      %7374 = vrot.lane.b32.xlu0 %v7363, 16
      %v7375 = vpop.permute.xlu0 %7374
      %7376 = vrot.lane.b32.xlu0 %v7364, 16
      %v7377 = vpop.permute.xlu0 %7376
      %7378 = vrot.lane.b32.xlu0 %v7365, 16
      %v7379 = vpop.permute.xlu0 %7378
      %7380 = vrot.lane.b32.xlu0 %v7366, 16
      %v7381 = vpop.permute.xlu0 %7380
      %7382 = vrot.lane.b32.xlu0 %v7367, 16
      %v7383 = vpop.permute.xlu0 %7382
      %v7385 = vunpack.c.l.s4 1966171168
      %v7386 = vunpack.c.0.s8 %v7385
      %v7387 = vlaneseq
      %v7388 = vshrl.u32 %v7387, 7
      %v7389 = vsub.s32 %v7386, %v7388
      %v7390 = vrot.slane %v1999, %v7389
      %v7392 = vunpack.c.l.s4 1966171168
      %v7393 = vunpack.c.0.s8 %v7392
      %v7394 = vlaneseq
      %v7395 = vshrl.u32 %v7394, 7
      %v7396 = vsub.s32 %v7393, %v7395
      %v7397 = vrot.slane %v7390, %v7396
      %v7399 = vunpack.c.l.s4 1966171168
      %v7400 = vunpack.c.0.s8 %v7399
      %v7401 = vlaneseq
      %v7402 = vshrl.u32 %v7401, 7
      %v7403 = vsub.s32 %v7400, %v7402
      %v7404 = vrot.slane %v2013, %v7403
      %v7406 = vunpack.c.l.s4 1966171168
      %v7407 = vunpack.c.0.s8 %v7406
      %v7408 = vlaneseq
      %v7409 = vshrl.u32 %v7408, 7
      %v7410 = vsub.s32 %v7407, %v7409
      %v7411 = vrot.slane %v7404, %v7410
      %v7413 = vunpack.c.l.s4 1966171168
      %v7414 = vunpack.c.0.s8 %v7413
      %v7415 = vlaneseq
      %v7416 = vshrl.u32 %v7415, 7
      %v7417 = vsub.s32 %v7414, %v7416
      %v7418 = vrot.slane %v2027, %v7417
      %v7420 = vunpack.c.l.s4 1966171168
      %v7421 = vunpack.c.0.s8 %v7420
      %v7422 = vlaneseq
      %v7423 = vshrl.u32 %v7422, 7
      %v7424 = vsub.s32 %v7421, %v7423
      %v7425 = vrot.slane %v7418, %v7424
      %v7427 = vunpack.c.l.s4 1966171168
      %v7428 = vunpack.c.0.s8 %v7427
      %v7429 = vlaneseq
      %v7430 = vshrl.u32 %v7429, 7
      %v7431 = vsub.s32 %v7428, %v7430
      %v7432 = vrot.slane %v2041, %v7431
      %v7434 = vunpack.c.l.s4 1966171168
      %v7435 = vunpack.c.0.s8 %v7434
      %v7436 = vlaneseq
      %v7437 = vshrl.u32 %v7436, 7
      %v7438 = vsub.s32 %v7435, %v7437
      %v7439 = vrot.slane %v7432, %v7438
      %v7441 = vunpack.c.l.s4 1966171168
      %v7442 = vunpack.c.0.s8 %v7441
      %v7443 = vlaneseq
      %v7444 = vshrl.u32 %v7443, 7
      %v7445 = vsub.s32 %v7442, %v7444
      %v7446 = vrot.slane %v2055, %v7445
      %v7448 = vunpack.c.l.s4 1966171168
      %v7449 = vunpack.c.0.s8 %v7448
      %v7450 = vlaneseq
      %v7451 = vshrl.u32 %v7450, 7
      %v7452 = vsub.s32 %v7449, %v7451
      %v7453 = vrot.slane %v7446, %v7452
      %v7455 = vunpack.c.l.s4 1966171168
      %v7456 = vunpack.c.0.s8 %v7455
      %v7457 = vlaneseq
      %v7458 = vshrl.u32 %v7457, 7
      %v7459 = vsub.s32 %v7456, %v7458
      %v7460 = vrot.slane %v2069, %v7459
      %v7462 = vunpack.c.l.s4 1966171168
      %v7463 = vunpack.c.0.s8 %v7462
      %v7464 = vlaneseq
      %v7465 = vshrl.u32 %v7464, 7
      %v7466 = vsub.s32 %v7463, %v7465
      %v7467 = vrot.slane %v7460, %v7466
      %v7469 = vunpack.c.l.s4 1966171168
      %v7470 = vunpack.c.0.s8 %v7469
      %v7471 = vlaneseq
      %v7472 = vshrl.u32 %v7471, 7
      %v7473 = vsub.s32 %v7470, %v7472
      %v7474 = vrot.slane %v2083, %v7473
      %v7476 = vunpack.c.l.s4 1966171168
      %v7477 = vunpack.c.0.s8 %v7476
      %v7478 = vlaneseq
      %v7479 = vshrl.u32 %v7478, 7
      %v7480 = vsub.s32 %v7477, %v7479
      %v7481 = vrot.slane %v7474, %v7480
      %v7483 = vunpack.c.l.s4 1966171168
      %v7484 = vunpack.c.0.s8 %v7483
      %v7485 = vlaneseq
      %v7486 = vshrl.u32 %v7485, 7
      %v7487 = vsub.s32 %v7484, %v7486
      %v7488 = vrot.slane %v2097, %v7487
      %v7490 = vunpack.c.l.s4 1966171168
      %v7491 = vunpack.c.0.s8 %v7490
      %v7492 = vlaneseq
      %v7493 = vshrl.u32 %v7492, 7
      %v7494 = vsub.s32 %v7491, %v7493
      %v7495 = vrot.slane %v7488, %v7494
      %v7496 = vunpack.c.l.b16 %v7397
      %v7497 = vunpack.c.l.b16 %v7411
      %v7498 = vunpack.c.l.b16 %v7425
      %v7499 = vunpack.c.l.b16 %v7439
      %v7500 = vunpack.c.l.b16 %v7453
      %v7501 = vunpack.c.l.b16 %v7467
      %v7502 = vunpack.c.l.b16 %v7481
      %v7503 = vunpack.c.l.b16 %v7495
      %v7504 = vrot.slane %v6090, 7
      %v7505 = vsel %vm3714, %v7504, %v6089
      %v7506 = vrot.slane %v6091, 6
      %v7507 = vsel %vm3717, %v7506, %v7505
      %v7508 = vrot.slane %v6092, 5
      %v7509 = vsel %vm3720, %v7508, %v7507
      %v7510 = vrot.slane %v6093, 4
      %v7511 = vsel %vm3723, %v7510, %v7509
      %v7512 = vrot.slane %v6094, 3
      %v7513 = vsel %vm3726, %v7512, %v7511
      %v7514 = vrot.slane %v6095, 2
      %v7515 = vsel %vm3729, %v7514, %v7513
      %v7516 = vrot.slane %v7496, 1
      %v7517 = vsel %vm3732, %v7516, %v7515
      %v7518 = vrot.slane %v6098, 7
      %v7519 = vsel %vm3714, %v7518, %v6097
      %v7520 = vrot.slane %v6099, 6
      %v7521 = vsel %vm3717, %v7520, %v7519
      %v7522 = vrot.slane %v6100, 5
      %v7523 = vsel %vm3720, %v7522, %v7521
      %v7524 = vrot.slane %v6101, 4
      %v7525 = vsel %vm3723, %v7524, %v7523
      %v7526 = vrot.slane %v6102, 3
      %v7527 = vsel %vm3726, %v7526, %v7525
      %v7528 = vrot.slane %v6103, 2
      %v7529 = vsel %vm3729, %v7528, %v7527
      %v7530 = vrot.slane %v7497, 1
      %v7531 = vsel %vm3732, %v7530, %v7529
      %v7532 = vrot.slane %v6106, 7
      %v7533 = vsel %vm3714, %v7532, %v6105
      %v7534 = vrot.slane %v6107, 6
      %v7535 = vsel %vm3717, %v7534, %v7533
      %v7536 = vrot.slane %v6108, 5
      %v7537 = vsel %vm3720, %v7536, %v7535
      %v7538 = vrot.slane %v6109, 4
      %v7539 = vsel %vm3723, %v7538, %v7537
      %v7540 = vrot.slane %v6110, 3
      %v7541 = vsel %vm3726, %v7540, %v7539
      %v7542 = vrot.slane %v6111, 2
      %v7543 = vsel %vm3729, %v7542, %v7541
      %v7544 = vrot.slane %v7498, 1
      %v7545 = vsel %vm3732, %v7544, %v7543
      %v7546 = vrot.slane %v6114, 7
      %v7547 = vsel %vm3714, %v7546, %v6113
      %v7548 = vrot.slane %v6115, 6
      %v7549 = vsel %vm3717, %v7548, %v7547
      %v7550 = vrot.slane %v6116, 5
      %v7551 = vsel %vm3720, %v7550, %v7549
      %v7552 = vrot.slane %v6117, 4
      %v7553 = vsel %vm3723, %v7552, %v7551
      %v7554 = vrot.slane %v6118, 3
      %v7555 = vsel %vm3726, %v7554, %v7553
      %v7556 = vrot.slane %v6119, 2
      %v7557 = vsel %vm3729, %v7556, %v7555
      %v7558 = vrot.slane %v7499, 1
      %v7559 = vsel %vm3732, %v7558, %v7557
      %v7560 = vrot.slane %v6122, 7
      %v7561 = vsel %vm3714, %v7560, %v6121
      %v7562 = vrot.slane %v6123, 6
      %v7563 = vsel %vm3717, %v7562, %v7561
      %v7564 = vrot.slane %v6124, 5
      %v7565 = vsel %vm3720, %v7564, %v7563
      %v7566 = vrot.slane %v6125, 4
      %v7567 = vsel %vm3723, %v7566, %v7565
      %v7568 = vrot.slane %v6126, 3
      %v7569 = vsel %vm3726, %v7568, %v7567
      %v7570 = vrot.slane %v6127, 2
      %v7571 = vsel %vm3729, %v7570, %v7569
      %v7572 = vrot.slane %v7500, 1
      %v7573 = vsel %vm3732, %v7572, %v7571
      %v7574 = vrot.slane %v6130, 7
      %v7575 = vsel %vm3714, %v7574, %v6129
      %v7576 = vrot.slane %v6131, 6
      %v7577 = vsel %vm3717, %v7576, %v7575
      %v7578 = vrot.slane %v6132, 5
      %v7579 = vsel %vm3720, %v7578, %v7577
      %v7580 = vrot.slane %v6133, 4
      %v7581 = vsel %vm3723, %v7580, %v7579
      %v7582 = vrot.slane %v6134, 3
      %v7583 = vsel %vm3726, %v7582, %v7581
      %v7584 = vrot.slane %v6135, 2
      %v7585 = vsel %vm3729, %v7584, %v7583
      %v7586 = vrot.slane %v7501, 1
      %v7587 = vsel %vm3732, %v7586, %v7585
      %v7588 = vrot.slane %v6138, 7
      %v7589 = vsel %vm3714, %v7588, %v6137
      %v7590 = vrot.slane %v6139, 6
      %v7591 = vsel %vm3717, %v7590, %v7589
      %v7592 = vrot.slane %v6140, 5
      %v7593 = vsel %vm3720, %v7592, %v7591
      %v7594 = vrot.slane %v6141, 4
      %v7595 = vsel %vm3723, %v7594, %v7593
      %v7596 = vrot.slane %v6142, 3
      %v7597 = vsel %vm3726, %v7596, %v7595
      %v7598 = vrot.slane %v6143, 2
      %v7599 = vsel %vm3729, %v7598, %v7597
      %v7600 = vrot.slane %v7502, 1
      %v7601 = vsel %vm3732, %v7600, %v7599
      %v7602 = vrot.slane %v6146, 7
      %v7603 = vsel %vm3714, %v7602, %v6145
      %v7604 = vrot.slane %v6147, 6
      %v7605 = vsel %vm3717, %v7604, %v7603
      %v7606 = vrot.slane %v6148, 5
      %v7607 = vsel %vm3720, %v7606, %v7605
      %v7608 = vrot.slane %v6149, 4
      %v7609 = vsel %vm3723, %v7608, %v7607
      %v7610 = vrot.slane %v6150, 3
      %v7611 = vsel %vm3726, %v7610, %v7609
      %v7612 = vrot.slane %v6151, 2
      %v7613 = vsel %vm3729, %v7612, %v7611
      %v7614 = vrot.slane %v7503, 1
      %v7615 = vsel %vm3732, %v7614, %v7613
      %v7616 = vpack.c.b16 %v7517, %v7517
      %v7617 = vpack.c.b16 %v7531, %v7531
      %v7618 = vpack.c.b16 %v7545, %v7545
      %v7619 = vpack.c.b16 %v7559, %v7559
      %v7620 = vpack.c.b16 %v7573, %v7573
      %v7621 = vpack.c.b16 %v7587, %v7587
      %v7622 = vpack.c.b16 %v7601, %v7601
      %v7623 = vpack.c.b16 %v7615, %v7615
      %7624 = vrot.lane.b32.xlu0 %v7616, 20
      %v7625 = vpop.permute.xlu0 %7624
      %7626 = vrot.lane.b32.xlu0 %v7617, 20
      %v7627 = vpop.permute.xlu0 %7626
      %7628 = vrot.lane.b32.xlu0 %v7618, 20
      %v7629 = vpop.permute.xlu0 %7628
      %7630 = vrot.lane.b32.xlu0 %v7619, 20
      %v7631 = vpop.permute.xlu0 %7630
      %7632 = vrot.lane.b32.xlu0 %v7620, 20
      %v7633 = vpop.permute.xlu0 %7632
      %7634 = vrot.lane.b32.xlu0 %v7621, 20
      %v7635 = vpop.permute.xlu0 %7634
      %7636 = vrot.lane.b32.xlu0 %v7622, 20
      %v7637 = vpop.permute.xlu0 %7636
      %7638 = vrot.lane.b32.xlu0 %v7623, 20
      %v7639 = vpop.permute.xlu0 %7638
      %v7641 = vunpack.c.l.s4 1966171168
      %v7642 = vunpack.c.0.s8 %v7641
      %v7643 = vlaneseq
      %v7644 = vshrl.u32 %v7643, 7
      %v7645 = vsub.s32 %v7642, %v7644
      %v7646 = vrot.slane %v2642, %v7645
      %v7648 = vunpack.c.l.s4 1966171168
      %v7649 = vunpack.c.0.s8 %v7648
      %v7650 = vlaneseq
      %v7651 = vshrl.u32 %v7650, 7
      %v7652 = vsub.s32 %v7649, %v7651
      %v7653 = vrot.slane %v7646, %v7652
      %v7655 = vunpack.c.l.s4 1966171168
      %v7656 = vunpack.c.0.s8 %v7655
      %v7657 = vlaneseq
      %v7658 = vshrl.u32 %v7657, 7
      %v7659 = vsub.s32 %v7656, %v7658
      %v7660 = vrot.slane %v2656, %v7659
      %v7662 = vunpack.c.l.s4 1966171168
      %v7663 = vunpack.c.0.s8 %v7662
      %v7664 = vlaneseq
      %v7665 = vshrl.u32 %v7664, 7
      %v7666 = vsub.s32 %v7663, %v7665
      %v7667 = vrot.slane %v7660, %v7666
      %v7669 = vunpack.c.l.s4 1966171168
      %v7670 = vunpack.c.0.s8 %v7669
      %v7671 = vlaneseq
      %v7672 = vshrl.u32 %v7671, 7
      %v7673 = vsub.s32 %v7670, %v7672
      %v7674 = vrot.slane %v2664, %v7673
      %v7676 = vunpack.c.l.s4 1966171168
      %v7677 = vunpack.c.0.s8 %v7676
      %v7678 = vlaneseq
      %v7679 = vshrl.u32 %v7678, 7
      %v7680 = vsub.s32 %v7677, %v7679
      %v7681 = vrot.slane %v7674, %v7680
      %v7683 = vunpack.c.l.s4 1966171168
      %v7684 = vunpack.c.0.s8 %v7683
      %v7685 = vlaneseq
      %v7686 = vshrl.u32 %v7685, 7
      %v7687 = vsub.s32 %v7684, %v7686
      %v7688 = vrot.slane %v2666, %v7687
      %v7690 = vunpack.c.l.s4 1966171168
      %v7691 = vunpack.c.0.s8 %v7690
      %v7692 = vlaneseq
      %v7693 = vshrl.u32 %v7692, 7
      %v7694 = vsub.s32 %v7691, %v7693
      %v7695 = vrot.slane %v7688, %v7694
      %v7697 = vunpack.c.l.s4 1966171168
      %v7698 = vunpack.c.0.s8 %v7697
      %v7699 = vlaneseq
      %v7700 = vshrl.u32 %v7699, 7
      %v7701 = vsub.s32 %v7698, %v7700
      %v7702 = vrot.slane %v2649, %v7701
      %v7704 = vunpack.c.l.s4 1966171168
      %v7705 = vunpack.c.0.s8 %v7704
      %v7706 = vlaneseq
      %v7707 = vshrl.u32 %v7706, 7
      %v7708 = vsub.s32 %v7705, %v7707
      %v7709 = vrot.slane %v7702, %v7708
      %v7711 = vunpack.c.l.s4 1966171168
      %v7712 = vunpack.c.0.s8 %v7711
      %v7713 = vlaneseq
      %v7714 = vshrl.u32 %v7713, 7
      %v7715 = vsub.s32 %v7712, %v7714
      %v7716 = vrot.slane %v2663, %v7715
      %v7718 = vunpack.c.l.s4 1966171168
      %v7719 = vunpack.c.0.s8 %v7718
      %v7720 = vlaneseq
      %v7721 = vshrl.u32 %v7720, 7
      %v7722 = vsub.s32 %v7719, %v7721
      %v7723 = vrot.slane %v7716, %v7722
      %v7725 = vunpack.c.l.s4 1966171168
      %v7726 = vunpack.c.0.s8 %v7725
      %v7727 = vlaneseq
      %v7728 = vshrl.u32 %v7727, 7
      %v7729 = vsub.s32 %v7726, %v7728
      %v7730 = vrot.slane %v2665, %v7729
      %v7732 = vunpack.c.l.s4 1966171168
      %v7733 = vunpack.c.0.s8 %v7732
      %v7734 = vlaneseq
      %v7735 = vshrl.u32 %v7734, 7
      %v7736 = vsub.s32 %v7733, %v7735
      %v7737 = vrot.slane %v7730, %v7736
      %v7739 = vunpack.c.l.s4 1966171168
      %v7740 = vunpack.c.0.s8 %v7739
      %v7741 = vlaneseq
      %v7742 = vshrl.u32 %v7741, 7
      %v7743 = vsub.s32 %v7740, %v7742
      %v7744 = vrot.slane %v2667, %v7743
      %v7746 = vunpack.c.l.s4 1966171168
      %v7747 = vunpack.c.0.s8 %v7746
      %v7748 = vlaneseq
      %v7749 = vshrl.u32 %v7748, 7
      %v7750 = vsub.s32 %v7747, %v7749
      %v7751 = vrot.slane %v7744, %v7750
      %v7752 = vunpack.c.l.b16 %v7653
      %v7753 = vunpack.c.l.b16 %v7667
      %v7754 = vunpack.c.l.b16 %v7681
      %v7755 = vunpack.c.l.b16 %v7695
      %v7756 = vunpack.c.l.b16 %v7709
      %v7757 = vunpack.c.l.b16 %v7723
      %v7758 = vunpack.c.l.b16 %v7737
      %v7759 = vunpack.c.l.b16 %v7751
      %v7760 = vrot.slane %v7753, 7
      %v7761 = vsel %vm3714, %v7760, %v7752
      %v7762 = vrot.slane %v7754, 6
      %v7763 = vsel %vm3717, %v7762, %v7761
      %v7764 = vrot.slane %v7755, 5
      %v7765 = vsel %vm3720, %v7764, %v7763
      %v7766 = vrot.slane %v7756, 4
      %v7767 = vsel %vm3723, %v7766, %v7765
      %v7768 = vrot.slane %v7757, 3
      %v7769 = vsel %vm3726, %v7768, %v7767
      %v7770 = vrot.slane %v7758, 2
      %v7771 = vsel %vm3729, %v7770, %v7769
      %v7772 = vrot.slane %v7759, 1
      %v7773 = vsel %vm3732, %v7772, %v7771
      %v7774 = vpack.c.b16 %v7773, %v7773
      %7775 = vrot.lane.b32.xlu0 %v3833, 24
      %v7776 = vpop.permute.xlu0 %7775
      %7777 = vrot.lane.b32.xlu0 %v3834, 24
      %v7778 = vpop.permute.xlu0 %7777
      %7779 = vrot.lane.b32.xlu0 %v3835, 24
      %v7780 = vpop.permute.xlu0 %7779
      %7781 = vrot.lane.b32.xlu0 %v3836, 24
      %v7782 = vpop.permute.xlu0 %7781
      %7783 = vrot.lane.b32.xlu0 %v3837, 24
      %v7784 = vpop.permute.xlu0 %7783
      %7785 = vrot.lane.b32.xlu0 %v3838, 24
      %v7786 = vpop.permute.xlu0 %7785
      %7787 = vrot.lane.b32.xlu0 %v3839, 24
      %v7788 = vpop.permute.xlu0 %7787
      %7789 = vrot.lane.b32.xlu0 %v7774, 24
      %v7790 = vpop.permute.xlu0 %7789
      %v7792 = vunpack.c.l.s4 1966171168
      %v7793 = vunpack.c.0.s8 %v7792
      %v7794 = vlaneseq
      %v7795 = vshrl.u32 %v7794, 7
      %v7796 = vsub.s32 %v7793, %v7795
      %v7797 = vrot.slane %v2691, %v7796
      %v7799 = vunpack.c.l.s4 1966171168
      %v7800 = vunpack.c.0.s8 %v7799
      %v7801 = vlaneseq
      %v7802 = vshrl.u32 %v7801, 7
      %v7803 = vsub.s32 %v7800, %v7802
      %v7804 = vrot.slane %v7797, %v7803
      %v7806 = vunpack.c.l.s4 1966171168
      %v7807 = vunpack.c.0.s8 %v7806
      %v7808 = vlaneseq
      %v7809 = vshrl.u32 %v7808, 7
      %v7810 = vsub.s32 %v7807, %v7809
      %v7811 = vrot.slane %v2699, %v7810
      %v7813 = vunpack.c.l.s4 1966171168
      %v7814 = vunpack.c.0.s8 %v7813
      %v7815 = vlaneseq
      %v7816 = vshrl.u32 %v7815, 7
      %v7817 = vsub.s32 %v7814, %v7816
      %v7818 = vrot.slane %v7811, %v7817
      %v7820 = vunpack.c.l.s4 1966171168
      %v7821 = vunpack.c.0.s8 %v7820
      %v7822 = vlaneseq
      %v7823 = vshrl.u32 %v7822, 7
      %v7824 = vsub.s32 %v7821, %v7823
      %v7825 = vrot.slane %v2707, %v7824
      %v7827 = vunpack.c.l.s4 1966171168
      %v7828 = vunpack.c.0.s8 %v7827
      %v7829 = vlaneseq
      %v7830 = vshrl.u32 %v7829, 7
      %v7831 = vsub.s32 %v7828, %v7830
      %v7832 = vrot.slane %v7825, %v7831
      %v7834 = vunpack.c.l.s4 1966171168
      %v7835 = vunpack.c.0.s8 %v7834
      %v7836 = vlaneseq
      %v7837 = vshrl.u32 %v7836, 7
      %v7838 = vsub.s32 %v7835, %v7837
      %v7839 = vrot.slane %v2715, %v7838
      %v7841 = vunpack.c.l.s4 1966171168
      %v7842 = vunpack.c.0.s8 %v7841
      %v7843 = vlaneseq
      %v7844 = vshrl.u32 %v7843, 7
      %v7845 = vsub.s32 %v7842, %v7844
      %v7846 = vrot.slane %v7839, %v7845
      %v7848 = vunpack.c.l.s4 1966171168
      %v7849 = vunpack.c.0.s8 %v7848
      %v7850 = vlaneseq
      %v7851 = vshrl.u32 %v7850, 7
      %v7852 = vsub.s32 %v7849, %v7851
      %v7853 = vrot.slane %v2723, %v7852
      %v7855 = vunpack.c.l.s4 1966171168
      %v7856 = vunpack.c.0.s8 %v7855
      %v7857 = vlaneseq
      %v7858 = vshrl.u32 %v7857, 7
      %v7859 = vsub.s32 %v7856, %v7858
      %v7860 = vrot.slane %v7853, %v7859
      %v7862 = vunpack.c.l.s4 1966171168
      %v7863 = vunpack.c.0.s8 %v7862
      %v7864 = vlaneseq
      %v7865 = vshrl.u32 %v7864, 7
      %v7866 = vsub.s32 %v7863, %v7865
      %v7867 = vrot.slane %v2731, %v7866
      %v7869 = vunpack.c.l.s4 1966171168
      %v7870 = vunpack.c.0.s8 %v7869
      %v7871 = vlaneseq
      %v7872 = vshrl.u32 %v7871, 7
      %v7873 = vsub.s32 %v7870, %v7872
      %v7874 = vrot.slane %v7867, %v7873
      %v7876 = vunpack.c.l.s4 1966171168
      %v7877 = vunpack.c.0.s8 %v7876
      %v7878 = vlaneseq
      %v7879 = vshrl.u32 %v7878, 7
      %v7880 = vsub.s32 %v7877, %v7879
      %v7881 = vrot.slane %v2739, %v7880
      %v7883 = vunpack.c.l.s4 1966171168
      %v7884 = vunpack.c.0.s8 %v7883
      %v7885 = vlaneseq
      %v7886 = vshrl.u32 %v7885, 7
      %v7887 = vsub.s32 %v7884, %v7886
      %v7888 = vrot.slane %v7881, %v7887
      %v7890 = vunpack.c.l.s4 1966171168
      %v7891 = vunpack.c.0.s8 %v7890
      %v7892 = vlaneseq
      %v7893 = vshrl.u32 %v7892, 7
      %v7894 = vsub.s32 %v7891, %v7893
      %v7895 = vrot.slane %v2747, %v7894
      %v7897 = vunpack.c.l.s4 1966171168
      %v7898 = vunpack.c.0.s8 %v7897
      %v7899 = vlaneseq
      %v7900 = vshrl.u32 %v7899, 7
      %v7901 = vsub.s32 %v7898, %v7900
      %v7902 = vrot.slane %v7895, %v7901
      %v7903 = vunpack.c.l.b16 %v7804
      %v7904 = vunpack.c.l.b16 %v7818
      %v7905 = vunpack.c.l.b16 %v7832
      %v7906 = vunpack.c.l.b16 %v7846
      %v7907 = vunpack.c.l.b16 %v7860
      %v7908 = vunpack.c.l.b16 %v7874
      %v7909 = vunpack.c.l.b16 %v7888
      %v7910 = vunpack.c.l.b16 %v7902
      %v7911 = vrot.slane %v7904, 7
      %v7912 = vsel %vm3714, %v7911, %v7903
      %v7913 = vrot.slane %v7905, 6
      %v7914 = vsel %vm3717, %v7913, %v7912
      %v7915 = vrot.slane %v7906, 5
      %v7916 = vsel %vm3720, %v7915, %v7914
      %v7917 = vrot.slane %v7907, 4
      %v7918 = vsel %vm3723, %v7917, %v7916
      %v7919 = vrot.slane %v7908, 3
      %v7920 = vsel %vm3726, %v7919, %v7918
      %v7921 = vrot.slane %v7909, 2
      %v7922 = vsel %vm3729, %v7921, %v7920
      %v7923 = vrot.slane %v7910, 1
      %v7924 = vsel %vm3732, %v7923, %v7922
      %v7925 = vpack.c.b16 %v7924, %v7924
      %7926 = vrot.lane.b32.xlu0 %v4913, 28
      %v7927 = vpop.permute.xlu0 %7926
      %7928 = vrot.lane.b32.xlu0 %v4914, 28
      %v7929 = vpop.permute.xlu0 %7928
      %7930 = vrot.lane.b32.xlu0 %v4915, 28
      %v7931 = vpop.permute.xlu0 %7930
      %7932 = vrot.lane.b32.xlu0 %v4916, 28
      %v7933 = vpop.permute.xlu0 %7932
      %7934 = vrot.lane.b32.xlu0 %v4917, 28
      %v7935 = vpop.permute.xlu0 %7934
      %7936 = vrot.lane.b32.xlu0 %v4918, 28
      %v7937 = vpop.permute.xlu0 %7936
      %7938 = vrot.lane.b32.xlu0 %v4919, 28
      %v7939 = vpop.permute.xlu0 %7938
      %7940 = vrot.lane.b32.xlu0 %v7925, 28
      %v7941 = vpop.permute.xlu0 %7940
      %v7943 = vunpack.c.l.s4 1966171168
      %v7944 = vunpack.c.0.s8 %v7943
      %v7945 = vlaneseq
      %v7946 = vshrl.u32 %v7945, 7
      %v7947 = vsub.s32 %v7944, %v7946
      %v7948 = vrot.slane %v2682, %v7947
      %v7950 = vunpack.c.l.s4 1966171168
      %v7951 = vunpack.c.0.s8 %v7950
      %v7952 = vlaneseq
      %v7953 = vshrl.u32 %v7952, 7
      %v7954 = vsub.s32 %v7951, %v7953
      %v7955 = vrot.slane %v7948, %v7954
      %v7956 = vunpack.c.l.b16 %v7955
      %v7957 = vrot.slane %v7754, 7
      %v7958 = vsel %vm3714, %v7957, %v7753
      %v7959 = vrot.slane %v7755, 6
      %v7960 = vsel %vm3717, %v7959, %v7958
      %v7961 = vrot.slane %v7756, 5
      %v7962 = vsel %vm3720, %v7961, %v7960
      %v7963 = vrot.slane %v7757, 4
      %v7964 = vsel %vm3723, %v7963, %v7962
      %v7965 = vrot.slane %v7758, 3
      %v7966 = vsel %vm3726, %v7965, %v7964
      %v7967 = vrot.slane %v7759, 2
      %v7968 = vsel %vm3729, %v7967, %v7966
      %v7969 = vrot.slane %v7956, 1
      %v7970 = vsel %vm3732, %v7969, %v7968
      %v7971 = vpack.c.b16 %v7970, %v7970
      %7972 = vrot.lane.b32.xlu0 %v5169, 32
      %v7973 = vpop.permute.xlu0 %7972
      %7974 = vrot.lane.b32.xlu0 %v5170, 32
      %v7975 = vpop.permute.xlu0 %7974
      %7976 = vrot.lane.b32.xlu0 %v5171, 32
      %v7977 = vpop.permute.xlu0 %7976
      %7978 = vrot.lane.b32.xlu0 %v5172, 32
      %v7979 = vpop.permute.xlu0 %7978
      %7980 = vrot.lane.b32.xlu0 %v5173, 32
      %v7981 = vpop.permute.xlu0 %7980
      %7982 = vrot.lane.b32.xlu0 %v5174, 32
      %v7983 = vpop.permute.xlu0 %7982
      %7984 = vrot.lane.b32.xlu0 %v5175, 32
      %v7985 = vpop.permute.xlu0 %7984
      %7986 = vrot.lane.b32.xlu0 %v7971, 32
      %v7987 = vpop.permute.xlu0 %7986
      %vm7988 = vcmask 31744
      %v7991 = vsel %vm7988, %v3832, %v4921
      %v7994 = vsel %vm7988, %v3833, %v4923
      %v7997 = vsel %vm7988, %v3834, %v4925
      %v8000 = vsel %vm7988, %v3835, %v4927
      %v8003 = vsel %vm7988, %v3836, %v4929
      %v8006 = vsel %vm7988, %v3837, %v4931
      %v8009 = vsel %vm7988, %v3838, %v4933
      %v8012 = vsel %vm7988, %v3839, %v4935
      %vm8013 = vcmask 64512
      %v8015 = vsel %vm8013, %v7991, %v5177
      %v8017 = vsel %vm8013, %v7994, %v5179
      %v8019 = vsel %vm8013, %v7997, %v5181
      %v8021 = vsel %vm8013, %v8000, %v5183
      %v8023 = vsel %vm8013, %v8003, %v5185
      %v8025 = vsel %vm8013, %v8006, %v5187
      %v8027 = vsel %vm8013, %v8009, %v5189
      %v8029 = vsel %vm8013, %v8012, %v5191
      %vm8030 = vcmask 97280
      %v8032 = vsel %vm8030, %v8015, %v6273
      %v8034 = vsel %vm8030, %v8017, %v6275
      %v8036 = vsel %vm8030, %v8019, %v6277
      %v8038 = vsel %vm8030, %v8021, %v6279
      %v8040 = vsel %vm8030, %v8023, %v6281
      %v8042 = vsel %vm8030, %v8025, %v6283
      %v8044 = vsel %vm8030, %v8027, %v6285
      %v8046 = vsel %vm8030, %v8029, %v6287
      %vm8047 = vcmask 130048
      %v8049 = vsel %vm8047, %v8032, %v7369
      %v8051 = vsel %vm8047, %v8034, %v7371
      %v8053 = vsel %vm8047, %v8036, %v7373
      %v8055 = vsel %vm8047, %v8038, %v7375
      %v8057 = vsel %vm8047, %v8040, %v7377
      %v8059 = vsel %vm8047, %v8042, %v7379
      %v8061 = vsel %vm8047, %v8044, %v7381
      %v8063 = vsel %vm8047, %v8046, %v7383
      %vm8064 = vcmask 162816
      %v8066 = vsel %vm8064, %v8049, %v7625
      %v8068 = vsel %vm8064, %v8051, %v7627
      %v8070 = vsel %vm8064, %v8053, %v7629
      %v8072 = vsel %vm8064, %v8055, %v7631
      %v8074 = vsel %vm8064, %v8057, %v7633
      %v8076 = vsel %vm8064, %v8059, %v7635
      %v8078 = vsel %vm8064, %v8061, %v7637
      %v8080 = vsel %vm8064, %v8063, %v7639
      %vm8081 = vcmask 195584
      %v8083 = vsel %vm8081, %v8066, %v7776
      %v8085 = vsel %vm8081, %v8068, %v7778
      %v8087 = vsel %vm8081, %v8070, %v7780
      %v8089 = vsel %vm8081, %v8072, %v7782
      %v8091 = vsel %vm8081, %v8074, %v7784
      %v8093 = vsel %vm8081, %v8076, %v7786
      %v8095 = vsel %vm8081, %v8078, %v7788
      %v8097 = vsel %vm8081, %v8080, %v7790
      %vm8098 = vcmask 228352
      %v8100 = vsel %vm8098, %v8083, %v7927
      %v8102 = vsel %vm8098, %v8085, %v7929
      %v8104 = vsel %vm8098, %v8087, %v7931
      %v8106 = vsel %vm8098, %v8089, %v7933
      %v8108 = vsel %vm8098, %v8091, %v7935
      %v8110 = vsel %vm8098, %v8093, %v7937
      %v8112 = vsel %vm8098, %v8095, %v7939
      %v8114 = vsel %vm8098, %v8097, %v7941
      %vm8115 = vcmask 261120
      %v8117 = vsel %vm8115, %v8100, %v7973
      %v8119 = vsel %vm8115, %v8102, %v7975
      %v8121 = vsel %vm8115, %v8104, %v7977
      %v8123 = vsel %vm8115, %v8106, %v7979
      %v8125 = vsel %vm8115, %v8108, %v7981
      %v8127 = vsel %vm8115, %v8110, %v7983
      %v8129 = vsel %vm8115, %v8112, %v7985
      %v8131 = vsel %vm8115, %v8114, %v7987
      %v8140 = vunpack.c.l.b16 %v8117
      %v8141 = vunpack.c.l.b16 %v8119
      %v8142 = vunpack.c.l.b16 %v8121
      %v8143 = vunpack.c.l.b16 %v8123
      %v8144 = vunpack.c.l.b16 %v8125
      %v8145 = vunpack.c.l.b16 %v8127
      %v8146 = vunpack.c.l.b16 %v8129
      %v8147 = vunpack.c.l.b16 %v8131
      %v8148 = vpack.c.b16 %v8141, %v8140
      %v8149 = vpack.c.b16 %v8143, %v8142
      %v8150 = vpack.c.b16 %v8145, %v8144
      %v8151 = vpack.c.b16 %v8147, %v8146
      %v8157 = vunpack.c.l.b16 %v2748
      %v8158 = vunpack.c.l.b16 %v2749
      %v8159 = vunpack.c.l.b16 %v2750
      %v8160 = vunpack.c.l.b16 %v2751
      %v8161 = vunpack.c.l.b16 %v2752
      %v8162 = vpack.c.b16 %v8158, %v8157
      %v8163 = vpack.c.b16 %v8160, %v8159
      %v8164 = vpack.c.b16 %v8161, %v8161
      %vm8167 = vcmask 293888
      %v8169 = vsel %vm8167, %v8148, 0
      %v8172 = vsel %vm8167, %v8149, 0
      %v8175 = vsel %vm8167, %v8150, 0
      %v8178 = vsel %vm8167, %v8151, 0
      %vm8180 = vcmask 1041408
      %v8182 = vsel %vm8180, %v8164, 0
      %8184 = vmatprep.subr.bf16.mxu0 0
      %8185 = vmatpush1.bf16.msra.mxu0 %v8162
      %8186 = vmatprep.subr.bf16.mxu0 0
      %8187 = vmatpush1.bf16.msra.mxu0 %v8163
      %8188 = vmatprep.subr.bf16.mxu0 0
      %8189 = vmatpush1.bf16.msra.mxu0 %v8182
      %8190 = vmatprep.subr.bf16.mxu0 0
      %8191 = vmatpush1.bf16.msra.mxu0 0
      %8192 = vmatprep.subr.bf16.mxu0 0
      %8193 = vmatpush1.bf16.msra.mxu0 0
      %8194 = vmatprep.subr.bf16.mxu0 0
      %8195 = vmatpush1.bf16.msra.mxu0 0
      %8196 = vmatprep.subr.bf16.mxu0 0
      %8197 = vmatpush1.bf16.msra.mxu0 0
      %8198 = vmatprep.subr.bf16.mxu0 0
      %8199 = vmatpush1.bf16.msra.mxu0 0
      %8200 = vmatprep.subr.bf16.mxu0 0
      %8201 = vmatpush1.bf16.msra.mxu0 0
      %8202 = vmatprep.subr.bf16.mxu0 0
      %8203 = vmatpush1.bf16.msra.mxu0 0
      %8204 = vmatprep.subr.bf16.mxu0 0
      %8205 = vmatpush1.bf16.msra.mxu0 0
      %8206 = vmatprep.subr.bf16.mxu0 0
      %8207 = vmatpush1.bf16.msra.mxu0 0
      %8208 = vmatprep.subr.bf16.mxu0 0
      %8209 = vmatpush1.bf16.msra.mxu0 0
      %8210 = vmatprep.subr.bf16.mxu0 0
      %8211 = vmatpush1.bf16.msra.mxu0 0
      %8212 = vmatprep.subr.bf16.mxu0 0
      %8213 = vmatpush1.bf16.msra.mxu0 0
      %8214 = vmatprep.subr.bf16.mxu0 0
      %8215 = vmatpush1.bf16.msra.mxu0 0
      %8216 = vmatprep.mubr.bf16.mxu0 0
      %8217 = vmatmul.mubr.bf16.gmra.mrb[0].mxu0 %v8169
      %v8218 = vpop.f32.mrb[0].mxu0
      %v8219 = vadd.f32 0.0, %v8218
      %v8220 = vpop.f32.mrb[0].mxu0
      %v8221 = vpop.f32.mrb[0].mxu0
      %v8222 = vadd.f32 0.0, %v8221
      %v8223 = vpop.f32.mrb[0].mxu0
      %8224 = vmatprep.mubr.bf16.mxu0 0
      %8225 = vmatmul.mubr.bf16.gmra.mrb[0].mxu0 %v8172
      %v8226 = vpop.f32.mrb[0].mxu0
      %v8227 = vadd.f32 0.0, %v8226
      %v8228 = vpop.f32.mrb[0].mxu0
      %v8229 = vpop.f32.mrb[0].mxu0
      %v8230 = vadd.f32 0.0, %v8229
      %v8231 = vpop.f32.mrb[0].mxu0
      %8232 = vmatprep.mubr.bf16.mxu0 0
      %8233 = vmatmul.mubr.bf16.gmra.mrb[0].mxu0 %v8175
      %v8234 = vpop.f32.mrb[0].mxu0
      %v8235 = vadd.f32 0.0, %v8234
      %v8236 = vpop.f32.mrb[0].mxu0
      %v8237 = vpop.f32.mrb[0].mxu0
      %v8238 = vadd.f32 0.0, %v8237
      %v8239 = vpop.f32.mrb[0].mxu0
      %8240 = vmatprep.mubr.bf16.mxu0 0
      %8241 = vmatmul.mubr.bf16.gmra.mrb[0].mxu0 %v8178
      %v8242 = vpop.f32.mrb[0].mxu0
      %v8243 = vadd.f32 0.0, %v8242
      %v8244 = vpop.f32.mrb[0].mxu0
      %v8245 = vpop.f32.mrb[0].mxu0
      %v8246 = vadd.f32 0.0, %v8245
      %v8247 = vpop.f32.mrb[0].mxu0
      %8248 = vdwg.mxu0
      %8249 = vst.msk [vmem:[%s271] sm:$0xff] %vm8013, %v8219
      %8250 = vst.msk [vmem:[%s271 + $0x8] sm:$0xff] %vm8013, %v8222
      %8251 = vst.msk [vmem:[%s271 + $0x10] sm:$0xff] %vm8013, %v8227
      %8252 = vst.msk [vmem:[%s271 + $0x18] sm:$0xff] %vm8013, %v8230
      %8253 = vst.msk [vmem:[%s271 + $0x20] sm:$0xff] %vm8013, %v8235
      %8254 = vst.msk [vmem:[%s271 + $0x28] sm:$0xff] %vm8013, %v8238
      %8255 = vst.msk [vmem:[%s271 + $0x30] sm:$0xff] %vm8013, %v8243
      %8256 = vst.msk [vmem:[%s271 + $0x38] sm:$0xff] %vm8013, %v8246
      %v8257 = vsel %vm8013, %v8219, 0.0
      %v8258 = vsel %vm8013, %v8222, 0.0
      %v8259 = vadd.f32 %v8257, %v8258
      %v8260 = vsel %vm8013, %v8227, 0.0
      %v8261 = vadd.f32 %v8259, %v8260
      %v8262 = vsel %vm8013, %v8230, 0.0
      %v8263 = vadd.f32 %v8261, %v8262
      %v8264 = vsel %vm8013, %v8235, 0.0
      %v8265 = vadd.f32 %v8263, %v8264
      %v8266 = vsel %vm8013, %v8238, 0.0
      %v8267 = vadd.f32 %v8265, %v8266
      %v8268 = vsel %vm8013, %v8243, 0.0
      %v8269 = vadd.f32 %v8267, %v8268
      %v8270 = vsel %vm8013, %v8246, 0.0
      %v8271 = vadd.f32 %v8269, %v8270
      %v8272 = vrot.slane %v8271, 4
      %v8273 = vadd.f32 %v8271, %v8272
      %v8274 = vrot.slane %v8273, 2
      %v8275 = vadd.f32 %v8273, %v8274
      %v8276 = vrot.slane %v8275, 1
      %v8277 = vadd.f32 %v8275, %v8276
      %v8278 = vmul.f32 %v8219, %v8219
      %v8279 = vmul.f32 %v8222, %v8222
      %v8280 = vmul.f32 %v8227, %v8227
      %v8281 = vmul.f32 %v8230, %v8230
      %v8282 = vmul.f32 %v8235, %v8235
      %v8283 = vmul.f32 %v8238, %v8238
      %v8284 = vmul.f32 %v8243, %v8243
      %v8285 = vmul.f32 %v8246, %v8246
      %v8286 = vsel %vm8013, %v8278, 0.0
      %v8287 = vsel %vm8013, %v8279, 0.0
      %v8288 = vadd.f32 %v8286, %v8287
      %v8289 = vsel %vm8013, %v8280, 0.0
      %v8290 = vadd.f32 %v8288, %v8289
      %v8291 = vsel %vm8013, %v8281, 0.0
      %v8292 = vadd.f32 %v8290, %v8291
      %v8293 = vsel %vm8013, %v8282, 0.0
      %v8294 = vadd.f32 %v8292, %v8293
      %v8295 = vsel %vm8013, %v8283, 0.0
      %v8296 = vadd.f32 %v8294, %v8295
      %v8297 = vsel %vm8013, %v8284, 0.0
      %v8298 = vadd.f32 %v8296, %v8297
      %v8299 = vsel %vm8013, %v8285, 0.0
      %v8300 = vadd.f32 %v8298, %v8299
      %v8301 = vrot.slane %v8300, 4
      %v8302 = vadd.f32 %v8300, %v8301
      %v8303 = vrot.slane %v8302, 2
      %v8304 = vadd.f32 %v8302, %v8303
      %v8305 = vrot.slane %v8304, 1
      %v8306 = vadd.f32 %v8304, %v8305
      %vm8307 = vcmask 1040384
      %v8308 = vsel %vm8307, %v8277, %v8306
      %vm8309 = vcmask 58368
      %8310 = vst.msk [vmem:[%s280] sm:$0x3] %vm8309, %v8308
      %v8311 = vld [vmem:[%s2] sm:$0x3]
      %v8312 = vpack.c.b16 %v7275, %v7261
      %v8313 = vpack.c.b16 %v7303, %v7289
      %v8314 = vpack.c.b16 %v7331, %v7317
      %v8315 = vpack.c.b16 %v7359, %v7345
      %v8317 = vsel %vm7988, %v8312, 0
      %v8320 = vsel %vm7988, %v8313, 0
      %v8323 = vsel %vm7988, %v8314, 0
      %v8326 = vsel %vm7988, %v8315, 0
      %v8329 = vsel %vm8180, %v8311, 0
      %8331 = vmatprep.subr.bf16.mxu0 0
      %8332 = vmatpush1.bf16.msra.mxu0 %v8329
      %8333 = vmatprep.subr.bf16.mxu0 0
      %8334 = vmatpush1.bf16.msra.mxu0 0
      %8335 = vmatprep.subr.bf16.mxu0 0
      %8336 = vmatpush1.bf16.msra.mxu0 0
      %8337 = vmatprep.subr.bf16.mxu0 0
      %8338 = vmatpush1.bf16.msra.mxu0 0
      %8339 = vmatprep.subr.bf16.mxu0 0
      %8340 = vmatpush1.bf16.msra.mxu0 0
      %8341 = vmatprep.subr.bf16.mxu0 0
      %8342 = vmatpush1.bf16.msra.mxu0 0
      %8343 = vmatprep.subr.bf16.mxu0 0
      %8344 = vmatpush1.bf16.msra.mxu0 0
      %8345 = vmatprep.subr.bf16.mxu0 0
      %8346 = vmatpush1.bf16.msra.mxu0 0
      %8347 = vmatprep.subr.bf16.mxu0 0
      %8348 = vmatpush1.bf16.msra.mxu0 0
      %8349 = vmatprep.subr.bf16.mxu0 0
      %8350 = vmatpush1.bf16.msra.mxu0 0
      %8351 = vmatprep.subr.bf16.mxu0 0
      %8352 = vmatpush1.bf16.msra.mxu0 0
      %8353 = vmatprep.subr.bf16.mxu0 0
      %8354 = vmatpush1.bf16.msra.mxu0 0
      %8355 = vmatprep.subr.bf16.mxu0 0
      %8356 = vmatpush1.bf16.msra.mxu0 0
      %8357 = vmatprep.subr.bf16.mxu0 0
      %8358 = vmatpush1.bf16.msra.mxu0 0
      %8359 = vmatprep.subr.bf16.mxu0 0
      %8360 = vmatpush1.bf16.msra.mxu0 0
      %8361 = vmatprep.subr.bf16.mxu0 0
      %8362 = vmatpush1.bf16.msra.mxu0 0
      %8363 = vmatprep.mubr.bf16.mxu0 0
      %8364 = vmatmul.mubr.bf16.gmra.mrb[0].mxu0 %v8317
      %v8365 = vpop.f32.mrb[0].mxu0
      %v8366 = vadd.f32 0.0, %v8365
      %v8367 = vpop.f32.mrb[0].mxu0
      %v8368 = vpop.f32.mrb[0].mxu0
      %v8369 = vadd.f32 0.0, %v8368
      %v8370 = vpop.f32.mrb[0].mxu0
      %8371 = vmatprep.mubr.bf16.mxu0 0
      %8372 = vmatmul.mubr.bf16.gmra.mrb[0].mxu0 %v8320
      %v8373 = vpop.f32.mrb[0].mxu0
      %v8374 = vadd.f32 0.0, %v8373
      %v8375 = vpop.f32.mrb[0].mxu0
      %v8376 = vpop.f32.mrb[0].mxu0
      %v8377 = vadd.f32 0.0, %v8376
      %v8378 = vpop.f32.mrb[0].mxu0
      %8379 = vmatprep.mubr.bf16.mxu0 0
      %8380 = vmatmul.mubr.bf16.gmra.mrb[0].mxu0 %v8323
      %v8381 = vpop.f32.mrb[0].mxu0
      %v8382 = vadd.f32 0.0, %v8381
      %v8383 = vpop.f32.mrb[0].mxu0
      %v8384 = vpop.f32.mrb[0].mxu0
      %v8385 = vadd.f32 0.0, %v8384
      %v8386 = vpop.f32.mrb[0].mxu0
      %8387 = vmatprep.mubr.bf16.mxu0 0
      %8388 = vmatmul.mubr.bf16.gmra.mrb[0].mxu0 %v8326
      %v8389 = vpop.f32.mrb[0].mxu0
      %v8390 = vadd.f32 0.0, %v8389
      %v8391 = vpop.f32.mrb[0].mxu0
      %v8392 = vpop.f32.mrb[0].mxu0
      %v8393 = vadd.f32 0.0, %v8392
      %v8394 = vpop.f32.mrb[0].mxu0
      %8395 = vdwg.mxu0
      %8396 = vst.msk [vmem:[%s276] sm:$0xff] %vm8013, %v8366
      %8397 = vst.msk [vmem:[%s276 + $0x8] sm:$0xff] %vm8013, %v8369
      %8398 = vst.msk [vmem:[%s276 + $0x10] sm:$0xff] %vm8013, %v8374
      %8399 = vst.msk [vmem:[%s276 + $0x18] sm:$0xff] %vm8013, %v8377
      %8400 = vst.msk [vmem:[%s276 + $0x20] sm:$0xff] %vm8013, %v8382
      %8401 = vst.msk [vmem:[%s276 + $0x28] sm:$0xff] %vm8013, %v8385
      %8402 = vst.msk [vmem:[%s276 + $0x30] sm:$0xff] %vm8013, %v8390
      %8403 = vst.msk [vmem:[%s276 + $0x38] sm:$0xff] %vm8013, %v8393
      %v8404 = vsel %vm8013, %v8366, 0.0
      %v8405 = vsel %vm8013, %v8369, 0.0
      %v8406 = vadd.f32 %v8404, %v8405
      %v8407 = vsel %vm8013, %v8374, 0.0
      %v8408 = vadd.f32 %v8406, %v8407
      %v8409 = vsel %vm8013, %v8377, 0.0
      %v8410 = vadd.f32 %v8408, %v8409
      %v8411 = vsel %vm8013, %v8382, 0.0
      %v8412 = vadd.f32 %v8410, %v8411
      %v8413 = vsel %vm8013, %v8385, 0.0
      %v8414 = vadd.f32 %v8412, %v8413
      %v8415 = vsel %vm8013, %v8390, 0.0
      %v8416 = vadd.f32 %v8414, %v8415
      %v8417 = vsel %vm8013, %v8393, 0.0
      %v8418 = vadd.f32 %v8416, %v8417
      %v8419 = vrot.slane %v8418, 4
      %v8420 = vadd.f32 %v8418, %v8419
      %v8421 = vrot.slane %v8420, 2
      %v8422 = vadd.f32 %v8420, %v8421
      %v8423 = vrot.slane %v8422, 1
      %v8424 = vadd.f32 %v8422, %v8423
      %v8425 = vmul.f32 %v8366, %v8366
      %v8426 = vmul.f32 %v8369, %v8369
      %v8427 = vmul.f32 %v8374, %v8374
      %v8428 = vmul.f32 %v8377, %v8377
      %v8429 = vmul.f32 %v8382, %v8382
      %v8430 = vmul.f32 %v8385, %v8385
      %v8431 = vmul.f32 %v8390, %v8390
      %v8432 = vmul.f32 %v8393, %v8393
      %v8433 = vsel %vm8013, %v8425, 0.0
      %v8434 = vsel %vm8013, %v8426, 0.0
      %v8435 = vadd.f32 %v8433, %v8434
      %v8436 = vsel %vm8013, %v8427, 0.0
      %v8437 = vadd.f32 %v8435, %v8436
      %v8438 = vsel %vm8013, %v8428, 0.0
      %v8439 = vadd.f32 %v8437, %v8438
      %v8440 = vsel %vm8013, %v8429, 0.0
      %v8441 = vadd.f32 %v8439, %v8440
      %v8442 = vsel %vm8013, %v8430, 0.0
      %v8443 = vadd.f32 %v8441, %v8442
      %v8444 = vsel %vm8013, %v8431, 0.0
      %v8445 = vadd.f32 %v8443, %v8444
      %v8446 = vsel %vm8013, %v8432, 0.0
      %v8447 = vadd.f32 %v8445, %v8446
      %v8448 = vrot.slane %v8447, 4
      %v8449 = vadd.f32 %v8447, %v8448
      %v8450 = vrot.slane %v8449, 2
      %v8451 = vadd.f32 %v8449, %v8450
      %v8452 = vrot.slane %v8451, 1
      %v8453 = vadd.f32 %v8451, %v8452
      %v8454 = vsel %vm8307, %v8424, %v8453
      %8455 = vst.msk [vmem:[%s284] sm:$0x3] %vm8309, %v8454
      %p8456 = scmp.lt.s32.totalorder %s18, 1
      %s8457 = scalar_select %p8456, %s18, 1
      %s8458 = smul.addr %s8457, 8
      %s8459 = smul.addr %s8458, 8
      %s8460 = scalar_lea.vmem %s3, %s8459
      %p8461 = scmp.lt.s32.totalorder %s18, 1
      %s8462 = scalar_select %p8461, %s18, 1
      %s8463 = smul.addr %s8462, 8
      %s8464 = smul.addr %s8463, 8
      %s8465 = scalar_lea.vmem %s4, %s8464
      %p8466 = scmp.lt.s32.totalorder %s18, 1
      %s8467 = scalar_select %p8466, %s18, 1
      %s8468 = smul.addr %s8467, 2
      %s8469 = scalar_lea.vmem %s5, %s8468
      %p8470 = scmp.lt.s32.totalorder %s18, 1
      %s8471 = scalar_select %p8470, %s18, 1
      %s8472 = smul.addr %s8471, 2
      %s8473 = scalar_lea.vmem %s6, %s8472
      // Predicated region
      $region33: #{_basic_block_forward.3} parent=31 // pred_check
        %p8474 = pneg %p104
      $region34: #{_basic_block_forward.3} parent=31 // pred_check_branch
        %8476 = sbr.rel (%p8474) target = $region36
      $region35: #{_basic_block_forward.3} parent=31 // pred_region
        _
      $region36: #{_basic_block_forward.3} parent=31 // pred_fallthru
        _
      // Predicated region
      $region37: #{_basic_block_forward.3} parent=31 // pred_check
        %p8477 = pneg %p130
      $region38: #{_basic_block_forward.3} parent=31 // pred_check_branch
        %8479 = sbr.rel (%p8477) target = $region40
      $region39: #{_basic_block_forward.3} parent=31 // pred_region
        _
      $region40: #{_basic_block_forward.3} parent=31 // pred_fallthru
        _
      // Predicated region
      $region41: #{_basic_block_forward.3} parent=31 // pred_check
        %p8480 = pneg %p156
      $region42: #{_basic_block_forward.3} parent=31 // pred_check_branch
        %8482 = sbr.rel (%p8480) target = $region44
      $region43: #{_basic_block_forward.3} parent=31 // pred_region
        _
      $region44: #{_basic_block_forward.3} parent=31 // pred_fallthru
        _
      // Predicated region
      $region45: #{_basic_block_forward.3} parent=31 // pred_check
        %p8483 = pneg %p182
      $region46: #{_basic_block_forward.3} parent=31 // pred_check_branch
        %8485 = sbr.rel (%p8483) target = $region48
      $region47: #{_basic_block_forward.3} parent=31 // pred_region
        _
      $region48: #{_basic_block_forward.3} parent=31 // pred_fallthru
        _
    $region32: #{_basic_block_forward.3} parent=5 // pred_fallthru
      _
    %p8486 = scmp.le.s32.totalorder 2, %s13
    // Predicated region
    $region49: #{_basic_block_forward.3} parent=5 // pred_check
      %p8487 = pneg %p8486
    $region50: #{_basic_block_forward.3} parent=5 // pred_check_branch
      %8489 = sbr.rel (%p8487) target = $region52
    $region51: #{_basic_block_forward.3} parent=5 // pred_region
      %s8490 = ssub.s32 %s13, 2
      // Predicated region
      $region53: #{_basic_block_forward.3} parent=51 // pred_check
        %p8491 = pneg %p110
      $region54: #{_basic_block_forward.3} parent=51 // pred_check_branch
        %8493 = sbr.rel (%p8491) target = $region56
      $region55: #{_basic_block_forward.3} parent=51 // pred_region
        %p8494 = scmp.lt.s32.totalorder %s19, 1
        %s8495 = scalar_select %p8494, %s19, 1
        %s8496 = smul.addr %s8495, 8
        %s8497 = smul.addr %s8496, 8
        %s8498 = scalar_lea.vmem %s3, %s8497
      $region56: #{_basic_block_forward.3} parent=51 // pred_fallthru
        _
      // Predicated region
      $region57: #{_basic_block_forward.3} parent=51 // pred_check
        %p8499 = pneg %p136
      $region58: #{_basic_block_forward.3} parent=51 // pred_check_branch
        %8501 = sbr.rel (%p8499) target = $region60
      $region59: #{_basic_block_forward.3} parent=51 // pred_region
        %p8502 = scmp.lt.s32.totalorder %s19, 1
        %s8503 = scalar_select %p8502, %s19, 1
        %s8504 = smul.addr %s8503, 8
        %s8505 = smul.addr %s8504, 8
        %s8506 = scalar_lea.vmem %s4, %s8505
      $region60: #{_basic_block_forward.3} parent=51 // pred_fallthru
        _
      // Predicated region
      $region61: #{_basic_block_forward.3} parent=51 // pred_check
        %p8507 = pneg %p162
      $region62: #{_basic_block_forward.3} parent=51 // pred_check_branch
        %8509 = sbr.rel (%p8507) target = $region64
      $region63: #{_basic_block_forward.3} parent=51 // pred_region
        %p8510 = scmp.lt.s32.totalorder %s19, 1
        %s8511 = scalar_select %p8510, %s19, 1
        %s8512 = smul.addr %s8511, 2
        %s8513 = scalar_lea.vmem %s5, %s8512
      $region64: #{_basic_block_forward.3} parent=51 // pred_fallthru
        _
      // Predicated region
      $region65: #{_basic_block_forward.3} parent=51 // pred_check
        %p8514 = pneg %p188
      $region66: #{_basic_block_forward.3} parent=51 // pred_check_branch
        %8516 = sbr.rel (%p8514) target = $region68
      $region67: #{_basic_block_forward.3} parent=51 // pred_region
        %p8517 = scmp.lt.s32.totalorder %s19, 1
        %s8518 = scalar_select %p8517, %s19, 1
        %s8519 = smul.addr %s8518, 2
        %s8520 = scalar_lea.vmem %s6, %s8519
      $region68: #{_basic_block_forward.3} parent=51 // pred_fallthru
        _
    $region52: #{_basic_block_forward.3} parent=5 // pred_fallthru
      _
  $region6: #{_basic_block_forward.3} parent=0 // loop_footer
    %s17 = sadd.s32 1, %s13
  $region7: #{_basic_block_forward.3} parent=0 // loop_footer_branch
    %12 = sbr.rel target = $region3
  $region8: #{_basic_block_forward.3} parent=0 // loop_exit
    _

</llo_original>
